<compile_context>
chip_gen: v6e
topology: v6e:2x2x1
jax: 0.10.0
libtpu: 0.0.40
codegen_flags: <defaults>
</compile_context>

<pallas_src>
import functools

import numpy as np
import jax
import jax.numpy as jnp
from jax.experimental import pallas as pl
from jax.experimental.pallas import tpu as pltpu

EPS = 1e-5      # nn.BatchNorm2d default eps
LANE = 128


def _round_up(v, m):
    return (v + m - 1) // m * m


# ---------------------------------------------------------------------------
# Host-side constant preparation (plain numpy, runs once)
# ---------------------------------------------------------------------------

def _conv_toeplitz(w, h_in, w_in, pad_rows_to=None, pad_cols_to=None):
    """Unrolled matrix of a 3x3 'valid' conv on a channel-major flat image.

    w: (Cout, Cin, 3, 3) PyTorch layout.
    Row index    = ci * h_in * w_in + hi * w_in + wi
    Column index = co * h_out * w_out + ho * w_out + wo
    """
    w = np.asarray(w, np.float32)
    cout, cin, kh, kw = w.shape
    h_out, w_out = h_in - kh + 1, w_in - kw + 1
    t = np.zeros((cin * h_in * w_in, cout * h_out * w_out), np.float32)
    for co in range(cout):
        for ci in range(cin):
            for dy in range(kh):
                for dx in range(kw):
                    val = w[co, ci, dy, dx]
                    for ho in range(h_out):
                        rows = ci * h_in * w_in + (ho + dy) * w_in + dx + np.arange(w_out)
                        cols = co * h_out * w_out + ho * w_out + np.arange(w_out)
                        t[rows, cols] = val
    if pad_rows_to is not None and pad_rows_to > t.shape[0]:
        t = np.pad(t, ((0, pad_rows_to - t.shape[0]), (0, 0)))
    if pad_cols_to is not None and pad_cols_to > t.shape[1]:
        t = np.pad(t, ((0, 0), (0, pad_cols_to - t.shape[1])))
    return t


def _channel_expander(c, hw, cols):
    """(c, cols): row ch is 1.0 on the lanes belonging to channel ch."""
    ex = np.zeros((c, cols), np.float32)
    for ch in range(c):
        ex[ch, ch * hw:(ch + 1) * hw] = 1.0
    return ex


def prepare_constants(params, ch, h, w):
    """Precompute the kernel's constant operands from module parameters."""
    h1, w1 = h - 2, w - 2          # after conv1
    h2, w2 = h - 4, w - 4          # after conv2
    l1 = ch * h1 * w1
    l2 = ch * h2 * w2
    l1p = _round_up(l1, 256)       # lane-dense y1; whole MXU K-passes for conv2
    l2p = _round_up(l2, LANE)      # lane-dense padded output width
    # Conv biases b1/b2 are dropped on purpose: training-mode BatchNorm subtracts
    # the per-channel batch mean, so a constant per-channel shift has no effect.
    t1 = _conv_toeplitz(params["w1"], h, w, pad_cols_to=l1p)             # (ch*h*w, l1p)
    t2 = _conv_toeplitz(params["w2"], h1, w1,
                        pad_rows_to=l1p, pad_cols_to=l2p)                # (l1p, l2p)
    ex1 = _channel_expander(ch, h1 * w1, l1p)                            # (ch, l1p)
    ex2 = _channel_expander(ch, h2 * w2, l2p)                            # (ch, l2p)
    gb = np.stack([np.asarray(params["g1"], np.float32),
                   np.asarray(params["be1"], np.float32),
                   np.asarray(params["g2"], np.float32),
                   np.asarray(params["be2"], np.float32)], axis=0)       # (4, ch)
    return {
        "t1": jnp.asarray(t1, jnp.bfloat16),    # bf16: halves dominant DMA bytes
        "t2": jnp.asarray(t2, jnp.bfloat16),
        "ex1": jnp.asarray(ex1, jnp.float32),
        "ex2": jnp.asarray(ex2, jnp.float32),
        "gb": jnp.asarray(gb, jnp.float32),
    }


# ---------------------------------------------------------------------------
# Pallas kernel
# ---------------------------------------------------------------------------

def _bn_relu(y, ex, gamma_row, beta_row, inv_count):
    """Training-mode BatchNorm2d + ReLU on a channel-major (N, L) slab.

    y: (N, L) f32; ex: (C, L) one-hot expander; gamma/beta: (1, C);
    inv_count = 1 / (N * H * W).  Lane padding of y stays exactly zero.
    """
    n = y.shape[0]
    # one matmul for both sum(y) and sum(y^2): stack along sublanes (cheap)
    combined = jnp.concatenate([y, y * y], axis=0)                    # (2N, L)
    sums = jax.lax.dot_general(
        combined, ex, (((1,), (1,)), ((), ())),
        precision=jax.lax.Precision.HIGHEST,
        preferred_element_type=jnp.float32)                           # (2N, C)
    mean_c = jnp.sum(sums[:n], axis=0, keepdims=True) * inv_count     # (1, C)
    msq_c = jnp.sum(sums[n:], axis=0, keepdims=True) * inv_count      # (1, C)
    var_c = jnp.maximum(msq_c - mean_c * mean_c, 0.0)                 # biased, >= 0
    rstd_c = jax.lax.rsqrt(var_c + EPS)
    # fold the BN affine: one expander matmul for both scale and shift
    scale_c = rstd_c * gamma_row                                       # (1, C)
    shift_c = beta_row - mean_c * scale_c                              # (1, C)
    ss = jnp.dot(jnp.concatenate([scale_c, shift_c], axis=0), ex,
                 precision=jax.lax.Precision.HIGHEST,
                 preferred_element_type=jnp.float32)                   # (2, L)
    return jnp.maximum(y * ss[0:1, :] + ss[1:2, :], 0.0)


def subset_kernel(x_ref, xcrop_ref, t1_ref, t2_ref, ex1_ref, ex2_ref, gb_ref,
                  out_ref, *, inv1, inv2):
    gb = gb_ref[...]                                                   # (4, C)
    # conv1 as a single bf16 MXU matmul against the unrolled conv matrix
    y1 = jnp.dot(x_ref[...], t1_ref[...], preferred_element_type=jnp.float32)
    y1 = _bn_relu(y1, ex1_ref[...], gb[0:1, :], gb[1:2, :], inv1)
    # conv2 (y1 lanes and t2 rows are both padded to the same 256-multiple;
    # cast the tiny y1 to bf16 so the big t2 is consumed directly in bf16)
    y2 = jnp.dot(y1.astype(jnp.bfloat16), t2_ref[...],
                 preferred_element_type=jnp.float32)
    y2 = _bn_relu(y2, ex2_ref[...], gb[2:3, :], gb[3:4, :], inv2)
    # residual add of the center-cropped input; lane-dense, unmasked store
    out_ref[...] = (y2 + xcrop_ref[...]).astype(out_ref.dtype)


def subset_forward(x_nchw, consts):
    """x_nchw: (N, C, H, W) float32 -> (N, C, H-4, W-4) float32."""
    n, ch, h, w = x_nchw.shape
    assert h >= 5 and w >= 5, "need H, W >= 5 for two valid 3x3 convs"
    h1, w1 = h - 2, w - 2
    h2, w2 = h - 4, w - 4
    l2 = ch * h2 * w2
    l2p = _round_up(l2, LANE)
    x_flat = x_nchw.reshape(n, ch * h * w).astype(jnp.bfloat16)   # channel-major lanes
    xcrop = x_nchw[:, :, 2:-2, 2:-2].reshape(n, l2)               # residual, f32
    xcrop = jnp.pad(xcrop, ((0, 0), (0, l2p - l2)))
    kernel = functools.partial(subset_kernel,
                               inv1=1.0 / (n * h1 * w1),
                               inv2=1.0 / (n * h2 * w2))
    vmem = pl.BlockSpec(memory_space=pltpu.MemorySpace.VMEM)
    out = pl.pallas_call(
        kernel,
        out_shape=jax.ShapeDtypeStruct((n, l2p), jnp.float32),
        in_specs=[vmem] * 7,
        out_specs=vmem,
    )(x_flat, xcrop, consts["t1"], consts["t2"],
      consts["ex1"], consts["ex2"], consts["gb"])
    return out[:, :l2].reshape(n, ch, h2, w2)


# ---------------------------------------------------------------------------
# Parameters, reference, and self-test
# ---------------------------------------------------------------------------

def init_params(key, ch_in, ch_out):
    """Deterministic synthetic parameters; shapes match the nn.Module."""
    assert ch_in == ch_out, "residual x[..., 2:-2, 2:-2] add requires ch_in == ch_out"
    k1, k2, k3, k4 = jax.random.split(key, 4)
    fan1, fan2 = ch_in * 9, ch_out * 9
    return {
        "w1": jax.random.normal(k1, (ch_out, ch_in, 3, 3), jnp.float32) / np.sqrt(fan1),
        "b1": 0.01 * jax.random.normal(k2, (ch_out,), jnp.float32),
        "g1": jnp.ones((ch_out,), jnp.float32),
        "be1": jnp.zeros((ch_out,), jnp.float32),
        "w2": jax.random.normal(k3, (ch_out, ch_out, 3, 3), jnp.float32) / np.sqrt(fan2),
        "b2": 0.01 * jax.random.normal(k4, (ch_out,), jnp.float32),
        "g2": jnp.ones((ch_out,), jnp.float32),
        "be2": jnp.zeros((ch_out,), jnp.float32),
    }


def subset_reference(x, params):
    """Pure-JAX reference of the PyTorch module (training-mode BatchNorm)."""
    def conv(z, w, b):
        y = jax.lax.conv_general_dilated(
            z, w, window_strides=(1, 1), padding="VALID",
            dimension_numbers=("NCHW", "OIHW", "NCHW"))
        return y + b[None, :, None, None]

    def bn_relu(z, g, b):
        mean = jnp.mean(z, axis=(0, 2, 3), keepdims=True)
        var = jnp.mean(jnp.square(z - mean), axis=(0, 2, 3), keepdims=True)
        zn = (z - mean) * jax.lax.rsqrt(var + EPS)
        return jnp.maximum(zn * g[None, :, None, None] + b[None, :, None, None], 0.0)

    y = bn_relu(conv(x, params["w1"], params["b1"]), params["g1"], params["be1"])
    y = bn_relu(conv(y, params["w2"], params["b2"]), params["g2"], params["be2"])
    return y + x[:, :, 2:-2, 2:-2]


if __name__ == "__main__":
    key = jax.random.PRNGKey(0)
    kx, kp = jax.random.split(key)

    N, CH, H, W = 2, 4, 16, 16                  # residual requires ch_in == ch_out
    x = jax.random.normal(kx, (N, CH, H, W), jnp.float32)    # NCHW, like PyTorch
    params = init_params(kp, CH, CH)
    consts = prepare_constants(params, CH, H, W)

    out = subset_forward(x, consts)
    jax.block_until_ready(out)
    assert out.shape == (N, CH, H - 4, W - 4), out.shape

    # semantic check vs pure-JAX reference (loose tol: bf16 MXU weight passes)
    ref = subset_reference(x, params)
    err = float(jnp.max(jnp.abs(out - ref)))
    assert err < 5e-2, f"max abs error vs reference: {err}"

    print("KERNEL_OK")
</pallas_src>

<mosaic_0001>
module attributes {stable_mosaic.version = 11 : i64} {
  func.func @subset_kernel(%arg0: memref<2x1024xbf16, #tpu.memory_space<vmem>>, %arg1: memref<2x640xf32, #tpu.memory_space<vmem>>, %arg2: memref<1024x1024xbf16, #tpu.memory_space<vmem>>, %arg3: memref<1024x640xbf16, #tpu.memory_space<vmem>>, %arg4: memref<4x1024xf32, #tpu.memory_space<vmem>>, %arg5: memref<4x640xf32, #tpu.memory_space<vmem>>, %arg6: memref<4x4xf32, #tpu.memory_space<vmem>>, %arg7: memref<2x640xf32, #tpu.memory_space<vmem>>) attributes {dimension_semantics = [], scalar_prefetch = 0 : i64, scratch_operands = 0 : i64, tpu.core_type = #tpu.core_type<tc>} {
    %c0 = arith.constant 0 : index
    %c0_0 = arith.constant 0 : index
    %0 = vector.load %arg6[%c0, %c0_0] : memref<4x4xf32, #tpu.memory_space<vmem>>, vector<4x4xf32>
    %c0_1 = arith.constant 0 : index
    %c0_2 = arith.constant 0 : index
    %1 = vector.load %arg0[%c0_1, %c0_2] : memref<2x1024xbf16, #tpu.memory_space<vmem>>, vector<2x1024xbf16>
    %c0_3 = arith.constant 0 : index
    %c0_4 = arith.constant 0 : index
    %2 = vector.load %arg2[%c0_3, %c0_4] : memref<1024x1024xbf16, #tpu.memory_space<vmem>>, vector<1024x1024xbf16>
    %cst = arith.constant dense<0.000000e+00> : vector<2x1024xf32>
    %3 = tpu.matmul %1, %2, %cst {dimension_numbers = #tpu.dot_dimension_numbers<[1], [0], [0], [1], [0, 0, 1, 1], [], []>} : vector<2x1024xbf16>, vector<1024x1024xbf16>, vector<2x1024xf32> -> vector<2x1024xf32>
    %c0_5 = arith.constant 0 : index
    %c0_6 = arith.constant 0 : index
    %4 = vector.load %arg4[%c0_5, %c0_6] : memref<4x1024xf32, #tpu.memory_space<vmem>>, vector<4x1024xf32>
    %5 = vector.extract_strided_slice %0 {offsets = [0, 0], sizes = [1, 4], strides = [1, 1]} : vector<4x4xf32> to vector<1x4xf32>
    %6 = vector.extract_strided_slice %0 {offsets = [1, 0], sizes = [1, 4], strides = [1, 1]} : vector<4x4xf32> to vector<1x4xf32>
    %7 = arith.mulf %3, %3 : vector<2x1024xf32>
    %8 = tpu.concatenate %3, %7 in 0 : vector<2x1024xf32>, vector<2x1024xf32> -> vector<4x1024xf32>
    %cst_7 = arith.constant dense<0.000000e+00> : vector<4x4xf32>
    %9 = tpu.matmul %8, %4, %cst_7 {dimension_numbers = #tpu.dot_dimension_numbers<[1], [1], [0], [0], [0, 0, 1, 0], [], []>, precision = #tpu.contract_precision<fp32>} : vector<4x1024xf32>, vector<4x1024xf32>, vector<4x4xf32> -> vector<4x4xf32>
    %10 = vector.extract_strided_slice %9 {offsets = [0, 0], sizes = [2, 4], strides = [1, 1]} : vector<4x4xf32> to vector<2x4xf32>
    %cst_8 = arith.constant dense<0.000000e+00> : vector<4xf32>
    %11 = vector.multi_reduction <add>, %10, %cst_8 [0] : vector<2x4xf32> to vector<4xf32>
    %12 = vector.shape_cast %11 : vector<4xf32> to vector<1x4xf32>
    %cst_9 = arith.constant 0.00255102036 : f32
    %13 = vector.broadcast %cst_9 : f32 to vector<1x4xf32>
    %14 = arith.mulf %12, %13 : vector<1x4xf32>
    %15 = vector.extract_strided_slice %9 {offsets = [2, 0], sizes = [2, 4], strides = [1, 1]} : vector<4x4xf32> to vector<2x4xf32>
    %cst_10 = arith.constant dense<0.000000e+00> : vector<4xf32>
    %16 = vector.multi_reduction <add>, %15, %cst_10 [0] : vector<2x4xf32> to vector<4xf32>
    %17 = vector.shape_cast %16 : vector<4xf32> to vector<1x4xf32>
    %cst_11 = arith.constant 0.00255102036 : f32
    %18 = vector.broadcast %cst_11 : f32 to vector<1x4xf32>
    %19 = arith.mulf %17, %18 : vector<1x4xf32>
    %20 = arith.mulf %14, %14 : vector<1x4xf32>
    %21 = arith.subf %19, %20 : vector<1x4xf32>
    %cst_12 = arith.constant 0.000000e+00 : f32
    %22 = vector.broadcast %cst_12 : f32 to vector<1x4xf32>
    %23 = arith.maximumf %21, %22 : vector<1x4xf32>
    %cst_13 = arith.constant 9.99999974E-6 : f32
    %24 = vector.broadcast %cst_13 : f32 to vector<1x4xf32>
    %25 = arith.addf %23, %24 : vector<1x4xf32>
    %26 = math.rsqrt %25 : vector<1x4xf32>
    %27 = arith.mulf %26, %5 : vector<1x4xf32>
    %28 = arith.mulf %14, %27 : vector<1x4xf32>
    %29 = arith.subf %6, %28 : vector<1x4xf32>
    %30 = tpu.concatenate %27, %29 in 0 : vector<1x4xf32>, vector<1x4xf32> -> vector<2x4xf32>
    %cst_14 = arith.constant dense<0.000000e+00> : vector<2x1024xf32>
    %31 = tpu.matmul %30, %4, %cst_14 {dimension_numbers = #tpu.dot_dimension_numbers<[1], [0], [0], [1], [0, 0, 1, 1], [], []>, precision = #tpu.contract_precision<fp32>} : vector<2x4xf32>, vector<4x1024xf32>, vector<2x1024xf32> -> vector<2x1024xf32>
    %32 = vector.extract_strided_slice %31 {offsets = [0, 0], sizes = [1, 1024], strides = [1, 1]} : vector<2x1024xf32> to vector<1x1024xf32>
    %33 = vector.broadcast %32 : vector<1x1024xf32> to vector<2x1024xf32>
    %34 = arith.mulf %3, %33 : vector<2x1024xf32>
    %35 = vector.extract_strided_slice %31 {offsets = [1, 0], sizes = [1, 1024], strides = [1, 1]} : vector<2x1024xf32> to vector<1x1024xf32>
    %36 = vector.broadcast %35 : vector<1x1024xf32> to vector<2x1024xf32>
    %37 = arith.addf %34, %36 : vector<2x1024xf32>
    %cst_15 = arith.constant 0.000000e+00 : f32
    %38 = vector.broadcast %cst_15 : f32 to vector<2x1024xf32>
    %39 = arith.maximumf %37, %38 : vector<2x1024xf32>
    %40 = arith.truncf %39 : vector<2x1024xf32> to vector<2x1024xbf16>
    %c0_16 = arith.constant 0 : index
    %c0_17 = arith.constant 0 : index
    %41 = vector.load %arg3[%c0_16, %c0_17] : memref<1024x640xbf16, #tpu.memory_space<vmem>>, vector<1024x640xbf16>
    %cst_18 = arith.constant dense<0.000000e+00> : vector<2x640xf32>
    %42 = tpu.matmul %40, %41, %cst_18 {dimension_numbers = #tpu.dot_dimension_numbers<[1], [0], [0], [1], [0, 0, 1, 1], [], []>} : vector<2x1024xbf16>, vector<1024x640xbf16>, vector<2x640xf32> -> vector<2x640xf32>
    %c0_19 = arith.constant 0 : index
    %c0_20 = arith.constant 0 : index
    %43 = vector.load %arg5[%c0_19, %c0_20] : memref<4x640xf32, #tpu.memory_space<vmem>>, vector<4x640xf32>
    %44 = vector.extract_strided_slice %0 {offsets = [2, 0], sizes = [1, 4], strides = [1, 1]} : vector<4x4xf32> to vector<1x4xf32>
    %45 = vector.extract_strided_slice %0 {offsets = [3, 0], sizes = [1, 4], strides = [1, 1]} : vector<4x4xf32> to vector<1x4xf32>
    %46 = arith.mulf %42, %42 : vector<2x640xf32>
    %47 = tpu.concatenate %42, %46 in 0 : vector<2x640xf32>, vector<2x640xf32> -> vector<4x640xf32>
    %cst_21 = arith.constant dense<0.000000e+00> : vector<4x4xf32>
    %48 = tpu.matmul %47, %43, %cst_21 {dimension_numbers = #tpu.dot_dimension_numbers<[1], [1], [0], [0], [0, 0, 1, 0], [], []>, precision = #tpu.contract_precision<fp32>} : vector<4x640xf32>, vector<4x640xf32>, vector<4x4xf32> -> vector<4x4xf32>
    %49 = vector.extract_strided_slice %48 {offsets = [0, 0], sizes = [2, 4], strides = [1, 1]} : vector<4x4xf32> to vector<2x4xf32>
    %cst_22 = arith.constant dense<0.000000e+00> : vector<4xf32>
    %50 = vector.multi_reduction <add>, %49, %cst_22 [0] : vector<2x4xf32> to vector<4xf32>
    %51 = vector.shape_cast %50 : vector<4xf32> to vector<1x4xf32>
    %cst_23 = arith.constant 0.00347222225 : f32
    %52 = vector.broadcast %cst_23 : f32 to vector<1x4xf32>
    %53 = arith.mulf %51, %52 : vector<1x4xf32>
    %54 = vector.extract_strided_slice %48 {offsets = [2, 0], sizes = [2, 4], strides = [1, 1]} : vector<4x4xf32> to vector<2x4xf32>
    %cst_24 = arith.constant dense<0.000000e+00> : vector<4xf32>
    %55 = vector.multi_reduction <add>, %54, %cst_24 [0] : vector<2x4xf32> to vector<4xf32>
    %56 = vector.shape_cast %55 : vector<4xf32> to vector<1x4xf32>
    %cst_25 = arith.constant 0.00347222225 : f32
    %57 = vector.broadcast %cst_25 : f32 to vector<1x4xf32>
    %58 = arith.mulf %56, %57 : vector<1x4xf32>
    %59 = arith.mulf %53, %53 : vector<1x4xf32>
    %60 = arith.subf %58, %59 : vector<1x4xf32>
    %cst_26 = arith.constant 0.000000e+00 : f32
    %61 = vector.broadcast %cst_26 : f32 to vector<1x4xf32>
    %62 = arith.maximumf %60, %61 : vector<1x4xf32>
    %cst_27 = arith.constant 9.99999974E-6 : f32
    %63 = vector.broadcast %cst_27 : f32 to vector<1x4xf32>
    %64 = arith.addf %62, %63 : vector<1x4xf32>
    %65 = math.rsqrt %64 : vector<1x4xf32>
    %66 = arith.mulf %65, %44 : vector<1x4xf32>
    %67 = arith.mulf %53, %66 : vector<1x4xf32>
    %68 = arith.subf %45, %67 : vector<1x4xf32>
    %69 = tpu.concatenate %66, %68 in 0 : vector<1x4xf32>, vector<1x4xf32> -> vector<2x4xf32>
    %cst_28 = arith.constant dense<0.000000e+00> : vector<2x640xf32>
    %70 = tpu.matmul %69, %43, %cst_28 {dimension_numbers = #tpu.dot_dimension_numbers<[1], [0], [0], [1], [0, 0, 1, 1], [], []>, precision = #tpu.contract_precision<fp32>} : vector<2x4xf32>, vector<4x640xf32>, vector<2x640xf32> -> vector<2x640xf32>
    %71 = vector.extract_strided_slice %70 {offsets = [0, 0], sizes = [1, 640], strides = [1, 1]} : vector<2x640xf32> to vector<1x640xf32>
    %72 = vector.broadcast %71 : vector<1x640xf32> to vector<2x640xf32>
    %73 = arith.mulf %42, %72 : vector<2x640xf32>
    %74 = vector.extract_strided_slice %70 {offsets = [1, 0], sizes = [1, 640], strides = [1, 1]} : vector<2x640xf32> to vector<1x640xf32>
    %75 = vector.broadcast %74 : vector<1x640xf32> to vector<2x640xf32>
    %76 = arith.addf %73, %75 : vector<2x640xf32>
    %cst_29 = arith.constant 0.000000e+00 : f32
    %77 = vector.broadcast %cst_29 : f32 to vector<2x640xf32>
    %78 = arith.maximumf %76, %77 : vector<2x640xf32>
    %c0_30 = arith.constant 0 : index
    %c0_31 = arith.constant 0 : index
    %79 = vector.load %arg1[%c0_30, %c0_31] : memref<2x640xf32, #tpu.memory_space<vmem>>, vector<2x640xf32>
    %80 = arith.addf %78, %79 : vector<2x640xf32>
    %c0_32 = arith.constant 0 : index
    %c0_33 = arith.constant 0 : index
    %81 = vector.load %arg7[%c0_32, %c0_33] : memref<2x640xf32, #tpu.memory_space<vmem>>, vector<2x640xf32>
    tpu.vector_store %arg7[%c0_32, %c0_33], %80 {strides = array<i32>} : memref<2x640xf32, #tpu.memory_space<vmem>>, vector<2x640xf32>,
    return
  }
}

</mosaic_0001>

<llo_original>
// kernel: tpu_custom_call.1
$region0: #{tpu_custom_call.1}
  #allocation0 [shape = 'u32[]', space=smem, size = 0x4, offset = 0x4, fixed_abs, tag = 'smem constant byte address 0x4 - core index']
  #allocation1 [shape = 'u32[144,128]{1,0:T(1,128)}', space=vmem, size = 0x12000, scoped, tag = 'internal scratch']
  %s0 = inlined_call_operand.hbm [shape: bf16[2,1024], index: 0, kind: input, shape index: {}]
  %s1 = inlined_call_operand.hbm [shape: f32[2,640], index: 1, kind: input, shape index: {}]
  %s2 = inlined_call_operand.hbm [shape: bf16[1024,1024], index: 2, kind: input, shape index: {}]
  %s3 = inlined_call_operand.hbm [shape: bf16[1024,640], index: 3, kind: input, shape index: {}]
  %s4 = inlined_call_operand.hbm [shape: f32[4,1024], index: 4, kind: input, shape index: {}]
  %s5 = inlined_call_operand.hbm [shape: f32[4,640], index: 5, kind: input, shape index: {}]
  %s6 = inlined_call_operand.hbm [shape: f32[4,4], index: 6, kind: input, shape index: {}]
  %s7 = inlined_call_operand.hbm [shape: f32[2,640], index: 7, kind: output, shape index: {}]
  %s8 = sld [smem:[#allocation0]]
  $region66: #{tpu_custom_call.1} parent=0
    _
  %s10 = ssub.s32 1, %s8
  %s11 = scalar_select 0, %s10, %s8
  $region1: #{tpu_custom_call.1} parent=0
    #allocation2 [shape = 'u8[4096]{0}', space=vmem, size = 0x1000, scoped, tag = 'input window, operand 0, single buffered']
    #allocation3 [shape = 's32[1]{0}', space=sflag, size = 0x4, scoped, tag = 'scoped memory for tpu_custom_call.1']
    #allocation4 [shape = 's32[1]{0}', space=sflag, size = 0x4, scoped, tag = 'scoped memory for tpu_custom_call.1']
    #allocation5 [shape = 'u8[5120]{0}', space=vmem, size = 0x1400, scoped, tag = 'input window, operand 1, single buffered']
    #allocation6 [shape = 's32[1]{0}', space=sflag, size = 0x4, scoped, tag = 'scoped memory for tpu_custom_call.1']
    #allocation7 [shape = 'u8[2097152]{0}', space=vmem, size = 0x200000, scoped, tag = 'input window, operand 2, single buffered']
    #allocation8 [shape = 'u8[1310720]{0}', space=vmem, size = 0x140000, scoped, tag = 'input window, operand 3, single buffered']
    #allocation9 [shape = 's32[1]{0}', space=sflag, size = 0x4, scoped, tag = 'scoped memory for tpu_custom_call.1']
    #allocation10 [shape = 'u8[16384]{0}', space=vmem, size = 0x4000, scoped, tag = 'input window, operand 4, single buffered']
    #allocation11 [shape = 'u8[10240]{0}', space=vmem, size = 0x2800, scoped, tag = 'input window, operand 5, single buffered']
    #allocation12 [shape = 's32[1]{0}', space=sflag, size = 0x4, scoped, tag = 'scoped memory for tpu_custom_call.1']
    #allocation13 [shape = 'u8[2048]{0}', space=vmem, size = 0x800, scoped, tag = 'input window, operand 6, single buffered']
    #allocation14 [shape = 'u8[5120]{0}', space=vmem, size = 0x1400, scoped, tag = 'output window, operand 0, single buffered']
    %12 = vsyncpa [#allocation3], 0
    %13 = vsyncpa [#allocation6], 0
    %14 = vsyncpa [#allocation9], 0
    %15 = vsyncpa [#allocation12], 0
    %16 = vsyncpa [#allocation4], 0
    // Predicated region
    $region2: #{tpu_custom_call.1} parent=1 // pred_check
      _
    $region3: #{tpu_custom_call.1} parent=1 // pred_check_branch
      %18 = sbr.rel (0) target = $region5
    $region4: #{tpu_custom_call.1} parent=1 // pred_region
      %s20 = ssub.s32 128, 128
      %21 = vsyncadd [#allocation3], %s20
      %s23 = sshll.u32 [#allocation2], 4
      %s24 = int_to_ptr.vmem [resolvable:$true] %s23
      %26 = dma.hbm_to_vmem [thread:$0]  %s0, 128, %s24, [#allocation3]
    $region5: #{tpu_custom_call.1} parent=1 // pred_fallthru
      _
    // Predicated region
    $region6: #{tpu_custom_call.1} parent=1 // pred_check
      _
    $region7: #{tpu_custom_call.1} parent=1 // pred_check_branch
      %28 = sbr.rel (0) target = $region9
    $region8: #{tpu_custom_call.1} parent=1 // pred_region
      %s30 = ssub.s32 160, 160
      %31 = vsyncadd [#allocation6], %s30
      %s33 = sshll.u32 [#allocation5], 4
      %s34 = int_to_ptr.vmem [resolvable:$true] %s33
      %36 = dma.hbm_to_vmem [thread:$0]  %s1, 160, %s34, [#allocation6]
    $region9: #{tpu_custom_call.1} parent=1 // pred_fallthru
      _
    // Predicated region
    $region10: #{tpu_custom_call.1} parent=1 // pred_check
      _
    $region11: #{tpu_custom_call.1} parent=1 // pred_check_branch
      %38 = sbr.rel (0) target = $region13
    $region12: #{tpu_custom_call.1} parent=1 // pred_region
      %s40 = ssub.s32 65536, 65536
      %41 = vsyncadd [#allocation6], %s40
      %s42 = sshll.u32 [#allocation7], 4
      %s43 = int_to_ptr.vmem [resolvable:$true] %s42
      %48 = dma.hbm_to_vmem [thread:$0]  %s2, 65536, %s43, [#allocation6], 512, 512, 32
    $region13: #{tpu_custom_call.1} parent=1 // pred_fallthru
      _
    // Predicated region
    $region14: #{tpu_custom_call.1} parent=1 // pred_check
      _
    $region15: #{tpu_custom_call.1} parent=1 // pred_check_branch
      %50 = sbr.rel (0) target = $region17
    $region16: #{tpu_custom_call.1} parent=1 // pred_region
      %s52 = ssub.s32 40960, 40960
      %53 = vsyncadd [#allocation9], %s52
      %s54 = sshll.u32 [#allocation8], 4
      %s55 = int_to_ptr.vmem [resolvable:$true] %s54
      %60 = dma.hbm_to_vmem [thread:$0]  %s3, 40960, %s55, [#allocation9], 320, 320, 20
    $region17: #{tpu_custom_call.1} parent=1 // pred_fallthru
      _
    // Predicated region
    $region18: #{tpu_custom_call.1} parent=1 // pred_check
      _
    $region19: #{tpu_custom_call.1} parent=1 // pred_check_branch
      %62 = sbr.rel (0) target = $region21
    $region20: #{tpu_custom_call.1} parent=1 // pred_region
      %s64 = ssub.s32 512, 512
      %65 = vsyncadd [#allocation9], %s64
      %s67 = sshll.u32 [#allocation10], 4
      %s68 = int_to_ptr.vmem [resolvable:$true] %s67
      %70 = dma.hbm_to_vmem [thread:$0]  %s4, 512, %s68, [#allocation9]
    $region21: #{tpu_custom_call.1} parent=1 // pred_fallthru
      _
    // Predicated region
    $region22: #{tpu_custom_call.1} parent=1 // pred_check
      _
    $region23: #{tpu_custom_call.1} parent=1 // pred_check_branch
      %72 = sbr.rel (0) target = $region25
    $region24: #{tpu_custom_call.1} parent=1 // pred_region
      %s74 = ssub.s32 320, 320
      %75 = vsyncadd [#allocation12], %s74
      %s77 = sshll.u32 [#allocation11], 4
      %s78 = int_to_ptr.vmem [resolvable:$true] %s77
      %80 = dma.hbm_to_vmem [thread:$0]  %s5, 320, %s78, [#allocation12]
    $region25: #{tpu_custom_call.1} parent=1 // pred_fallthru
      _
    // Predicated region
    $region26: #{tpu_custom_call.1} parent=1 // pred_check
      _
    $region27: #{tpu_custom_call.1} parent=1 // pred_check_branch
      %82 = sbr.rel (0) target = $region29
    $region28: #{tpu_custom_call.1} parent=1 // pred_region
      %s84 = ssub.s32 64, 64
      %85 = vsyncadd [#allocation12], %s84
      %s87 = sshll.u32 [#allocation13], 4
      %s88 = int_to_ptr.vmem [resolvable:$true] %s87
      %90 = dma.hbm_to_vmem [thread:$0]  %s6, 64, %s88, [#allocation12]
    $region29: #{tpu_custom_call.1} parent=1 // pred_fallthru
      _
    // Predicated region
    $region30: #{tpu_custom_call.1} parent=1 // pred_check
      _
    $region31: #{tpu_custom_call.1} parent=1 // pred_check_branch
      %92 = sbr.rel (0) target = $region33
    $region32: #{tpu_custom_call.1} parent=1 // pred_region
      %93 = dma.done [#allocation3], 128
    $region33: #{tpu_custom_call.1} parent=1 // pred_fallthru
      _
    // Predicated region
    $region34: #{tpu_custom_call.1} parent=1 // pred_check
      _
    $region35: #{tpu_custom_call.1} parent=1 // pred_check_branch
      %95 = sbr.rel (0) target = $region37
    $region36: #{tpu_custom_call.1} parent=1 // pred_region
      %96 = dma.done [#allocation6], 160
    $region37: #{tpu_custom_call.1} parent=1 // pred_fallthru
      _
    // Predicated region
    $region38: #{tpu_custom_call.1} parent=1 // pred_check
      _
    $region39: #{tpu_custom_call.1} parent=1 // pred_check_branch
      %98 = sbr.rel (0) target = $region41
    $region40: #{tpu_custom_call.1} parent=1 // pred_region
      %99 = dma.done [#allocation6], 65536
    $region41: #{tpu_custom_call.1} parent=1 // pred_fallthru
      _
    // Predicated region
    $region42: #{tpu_custom_call.1} parent=1 // pred_check
      _
    $region43: #{tpu_custom_call.1} parent=1 // pred_check_branch
      %101 = sbr.rel (0) target = $region45
    $region44: #{tpu_custom_call.1} parent=1 // pred_region
      %102 = dma.done [#allocation9], 40960
    $region45: #{tpu_custom_call.1} parent=1 // pred_fallthru
      _
    // Predicated region
    $region46: #{tpu_custom_call.1} parent=1 // pred_check
      _
    $region47: #{tpu_custom_call.1} parent=1 // pred_check_branch
      %104 = sbr.rel (0) target = $region49
    $region48: #{tpu_custom_call.1} parent=1 // pred_region
      %105 = dma.done [#allocation9], 512
    $region49: #{tpu_custom_call.1} parent=1 // pred_fallthru
      _
    // Predicated region
    $region50: #{tpu_custom_call.1} parent=1 // pred_check
      _
    $region51: #{tpu_custom_call.1} parent=1 // pred_check_branch
      %107 = sbr.rel (0) target = $region53
    $region52: #{tpu_custom_call.1} parent=1 // pred_region
      %108 = dma.done [#allocation12], 320
    $region53: #{tpu_custom_call.1} parent=1 // pred_fallthru
      _
    // Predicated region
    $region54: #{tpu_custom_call.1} parent=1 // pred_check
      _
    $region55: #{tpu_custom_call.1} parent=1 // pred_check_branch
      %110 = sbr.rel (0) target = $region57
    $region56: #{tpu_custom_call.1} parent=1 // pred_region
      %111 = dma.done [#allocation12], 64
    $region57: #{tpu_custom_call.1} parent=1 // pred_fallthru
      _
    %v113 = vld [vmem:[#allocation13] sm:$0xf]
    %v114 = vld [vmem:[#allocation2] sm:$0xff]
    %v115 = vld [vmem:[#allocation7] sm:$0xff]
    %v116 = vld [vmem:[#allocation7 + $0x8] sm:$0xff]
    %v117 = vld [vmem:[#allocation7 + $0x10] sm:$0xff]
    %v118 = vld [vmem:[#allocation7 + $0x18] sm:$0xff]
    %v119 = vld [vmem:[#allocation7 + $0x20] sm:$0xff]
    %v120 = vld [vmem:[#allocation7 + $0x28] sm:$0xff]
    %v121 = vld [vmem:[#allocation7 + $0x30] sm:$0xff]
    %v122 = vld [vmem:[#allocation7 + $0x38] sm:$0xff]
    %v123 = vld [vmem:[#allocation7 + $0x40] sm:$0xff]
    %v124 = vld [vmem:[#allocation7 + $0x48] sm:$0xff]
    %v125 = vld [vmem:[#allocation7 + $0x50] sm:$0xff]
    %v126 = vld [vmem:[#allocation7 + $0x58] sm:$0xff]
    %v127 = vld [vmem:[#allocation7 + $0x60] sm:$0xff]
    %v128 = vld [vmem:[#allocation7 + $0x68] sm:$0xff]
    %v129 = vld [vmem:[#allocation7 + $0x70] sm:$0xff]
    %v130 = vld [vmem:[#allocation7 + $0x78] sm:$0xff]
    %v131 = vld [vmem:[#allocation7 + $0x80] sm:$0xff]
    %v132 = vld [vmem:[#allocation7 + $0x88] sm:$0xff]
    %v133 = vld [vmem:[#allocation7 + $0x90] sm:$0xff]
    %v134 = vld [vmem:[#allocation7 + $0x98] sm:$0xff]
    %v135 = vld [vmem:[#allocation7 + $0xa0] sm:$0xff]
    %v136 = vld [vmem:[#allocation7 + $0xa8] sm:$0xff]
    %v137 = vld [vmem:[#allocation7 + $0xb0] sm:$0xff]
    %v138 = vld [vmem:[#allocation7 + $0xb8] sm:$0xff]
    %v139 = vld [vmem:[#allocation7 + $0xc0] sm:$0xff]
    %v140 = vld [vmem:[#allocation7 + $0xc8] sm:$0xff]
    %v141 = vld [vmem:[#allocation7 + $0xd0] sm:$0xff]
    %v142 = vld [vmem:[#allocation7 + $0xd8] sm:$0xff]
    %v143 = vld [vmem:[#allocation7 + $0xe0] sm:$0xff]
    %v144 = vld [vmem:[#allocation7 + $0xe8] sm:$0xff]
    %v145 = vld [vmem:[#allocation7 + $0xf0] sm:$0xff]
    %v146 = vld [vmem:[#allocation7 + $0xf8] sm:$0xff]
    %v147 = vld [vmem:[#allocation7 + $0x100] sm:$0xff]
    %v148 = vld [vmem:[#allocation7 + $0x108] sm:$0xff]
    %v149 = vld [vmem:[#allocation7 + $0x110] sm:$0xff]
    %v150 = vld [vmem:[#allocation7 + $0x118] sm:$0xff]
    %v151 = vld [vmem:[#allocation7 + $0x120] sm:$0xff]
    %v152 = vld [vmem:[#allocation7 + $0x128] sm:$0xff]
    %v153 = vld [vmem:[#allocation7 + $0x130] sm:$0xff]
    %v154 = vld [vmem:[#allocation7 + $0x138] sm:$0xff]
    %v155 = vld [vmem:[#allocation7 + $0x140] sm:$0xff]
    %v156 = vld [vmem:[#allocation7 + $0x148] sm:$0xff]
    %v157 = vld [vmem:[#allocation7 + $0x150] sm:$0xff]
    %v158 = vld [vmem:[#allocation7 + $0x158] sm:$0xff]
    %v159 = vld [vmem:[#allocation7 + $0x160] sm:$0xff]
    %v160 = vld [vmem:[#allocation7 + $0x168] sm:$0xff]
    %v161 = vld [vmem:[#allocation7 + $0x170] sm:$0xff]
    %v162 = vld [vmem:[#allocation7 + $0x178] sm:$0xff]
    %v163 = vld [vmem:[#allocation7 + $0x180] sm:$0xff]
    %v164 = vld [vmem:[#allocation7 + $0x188] sm:$0xff]
    %v165 = vld [vmem:[#allocation7 + $0x190] sm:$0xff]
    %v166 = vld [vmem:[#allocation7 + $0x198] sm:$0xff]
    %v167 = vld [vmem:[#allocation7 + $0x1a0] sm:$0xff]
    %v168 = vld [vmem:[#allocation7 + $0x1a8] sm:$0xff]
    %v169 = vld [vmem:[#allocation7 + $0x1b0] sm:$0xff]
    %v170 = vld [vmem:[#allocation7 + $0x1b8] sm:$0xff]
    %v171 = vld [vmem:[#allocation7 + $0x1c0] sm:$0xff]
    %v172 = vld [vmem:[#allocation7 + $0x1c8] sm:$0xff]
    %v173 = vld [vmem:[#allocation7 + $0x1d0] sm:$0xff]
    %v174 = vld [vmem:[#allocation7 + $0x1d8] sm:$0xff]
    %v175 = vld [vmem:[#allocation7 + $0x1e0] sm:$0xff]
    %v176 = vld [vmem:[#allocation7 + $0x1e8] sm:$0xff]
    %v177 = vld [vmem:[#allocation7 + $0x1f0] sm:$0xff]
    %v178 = vld [vmem:[#allocation7 + $0x1f8] sm:$0xff]
    %v179 = vld [vmem:[#allocation7 + $0x200] sm:$0xff]
    %v180 = vld [vmem:[#allocation7 + $0x208] sm:$0xff]
    %v181 = vld [vmem:[#allocation7 + $0x210] sm:$0xff]
    %v182 = vld [vmem:[#allocation7 + $0x218] sm:$0xff]
    %v183 = vld [vmem:[#allocation7 + $0x220] sm:$0xff]
    %v184 = vld [vmem:[#allocation7 + $0x228] sm:$0xff]
    %v185 = vld [vmem:[#allocation7 + $0x230] sm:$0xff]
    %v186 = vld [vmem:[#allocation7 + $0x238] sm:$0xff]
    %v187 = vld [vmem:[#allocation7 + $0x240] sm:$0xff]
    %v188 = vld [vmem:[#allocation7 + $0x248] sm:$0xff]
    %v189 = vld [vmem:[#allocation7 + $0x250] sm:$0xff]
    %v190 = vld [vmem:[#allocation7 + $0x258] sm:$0xff]
    %v191 = vld [vmem:[#allocation7 + $0x260] sm:$0xff]
    %v192 = vld [vmem:[#allocation7 + $0x268] sm:$0xff]
    %v193 = vld [vmem:[#allocation7 + $0x270] sm:$0xff]
    %v194 = vld [vmem:[#allocation7 + $0x278] sm:$0xff]
    %v195 = vld [vmem:[#allocation7 + $0x280] sm:$0xff]
    %v196 = vld [vmem:[#allocation7 + $0x288] sm:$0xff]
    %v197 = vld [vmem:[#allocation7 + $0x290] sm:$0xff]
    %v198 = vld [vmem:[#allocation7 + $0x298] sm:$0xff]
    %v199 = vld [vmem:[#allocation7 + $0x2a0] sm:$0xff]
    %v200 = vld [vmem:[#allocation7 + $0x2a8] sm:$0xff]
    %v201 = vld [vmem:[#allocation7 + $0x2b0] sm:$0xff]
    %v202 = vld [vmem:[#allocation7 + $0x2b8] sm:$0xff]
    %v203 = vld [vmem:[#allocation7 + $0x2c0] sm:$0xff]
    %v204 = vld [vmem:[#allocation7 + $0x2c8] sm:$0xff]
    %v205 = vld [vmem:[#allocation7 + $0x2d0] sm:$0xff]
    %v206 = vld [vmem:[#allocation7 + $0x2d8] sm:$0xff]
    %v207 = vld [vmem:[#allocation7 + $0x2e0] sm:$0xff]
    %v208 = vld [vmem:[#allocation7 + $0x2e8] sm:$0xff]
    %v209 = vld [vmem:[#allocation7 + $0x2f0] sm:$0xff]
    %v210 = vld [vmem:[#allocation7 + $0x2f8] sm:$0xff]
    %v211 = vld [vmem:[#allocation7 + $0x300] sm:$0xff]
    %v212 = vld [vmem:[#allocation7 + $0x308] sm:$0xff]
    %v213 = vld [vmem:[#allocation7 + $0x310] sm:$0xff]
    %v214 = vld [vmem:[#allocation7 + $0x318] sm:$0xff]
    %v215 = vld [vmem:[#allocation7 + $0x320] sm:$0xff]
    %v216 = vld [vmem:[#allocation7 + $0x328] sm:$0xff]
    %v217 = vld [vmem:[#allocation7 + $0x330] sm:$0xff]
    %v218 = vld [vmem:[#allocation7 + $0x338] sm:$0xff]
    %v219 = vld [vmem:[#allocation7 + $0x340] sm:$0xff]
    %v220 = vld [vmem:[#allocation7 + $0x348] sm:$0xff]
    %v221 = vld [vmem:[#allocation7 + $0x350] sm:$0xff]
    %v222 = vld [vmem:[#allocation7 + $0x358] sm:$0xff]
    %v223 = vld [vmem:[#allocation7 + $0x360] sm:$0xff]
    %v224 = vld [vmem:[#allocation7 + $0x368] sm:$0xff]
    %v225 = vld [vmem:[#allocation7 + $0x370] sm:$0xff]
    %v226 = vld [vmem:[#allocation7 + $0x378] sm:$0xff]
    %v227 = vld [vmem:[#allocation7 + $0x380] sm:$0xff]
    %v228 = vld [vmem:[#allocation7 + $0x388] sm:$0xff]
    %v229 = vld [vmem:[#allocation7 + $0x390] sm:$0xff]
    %v230 = vld [vmem:[#allocation7 + $0x398] sm:$0xff]
    %v231 = vld [vmem:[#allocation7 + $0x3a0] sm:$0xff]
    %v232 = vld [vmem:[#allocation7 + $0x3a8] sm:$0xff]
    %v233 = vld [vmem:[#allocation7 + $0x3b0] sm:$0xff]
    %v234 = vld [vmem:[#allocation7 + $0x3b8] sm:$0xff]
    %v235 = vld [vmem:[#allocation7 + $0x3c0] sm:$0xff]
    %v236 = vld [vmem:[#allocation7 + $0x3c8] sm:$0xff]
    %v237 = vld [vmem:[#allocation7 + $0x3d0] sm:$0xff]
    %v238 = vld [vmem:[#allocation7 + $0x3d8] sm:$0xff]
    %v239 = vld [vmem:[#allocation7 + $0x3e0] sm:$0xff]
    %v240 = vld [vmem:[#allocation7 + $0x3e8] sm:$0xff]
    %v241 = vld [vmem:[#allocation7 + $0x3f0] sm:$0xff]
    %v242 = vld [vmem:[#allocation7 + $0x3f8] sm:$0xff]
    %v243 = vld [vmem:[#allocation7 + $0x400] sm:$0xff]
    %v244 = vld [vmem:[#allocation7 + $0x408] sm:$0xff]
    %v245 = vld [vmem:[#allocation7 + $0x410] sm:$0xff]
    %v246 = vld [vmem:[#allocation7 + $0x418] sm:$0xff]
    %v247 = vld [vmem:[#allocation7 + $0x420] sm:$0xff]
    %v248 = vld [vmem:[#allocation7 + $0x428] sm:$0xff]
    %v249 = vld [vmem:[#allocation7 + $0x430] sm:$0xff]
    %v250 = vld [vmem:[#allocation7 + $0x438] sm:$0xff]
    %v251 = vld [vmem:[#allocation7 + $0x440] sm:$0xff]
    %v252 = vld [vmem:[#allocation7 + $0x448] sm:$0xff]
    %v253 = vld [vmem:[#allocation7 + $0x450] sm:$0xff]
    %v254 = vld [vmem:[#allocation7 + $0x458] sm:$0xff]
    %v255 = vld [vmem:[#allocation7 + $0x460] sm:$0xff]
    %v256 = vld [vmem:[#allocation7 + $0x468] sm:$0xff]
    %v257 = vld [vmem:[#allocation7 + $0x470] sm:$0xff]
    %v258 = vld [vmem:[#allocation7 + $0x478] sm:$0xff]
    %v259 = vld [vmem:[#allocation7 + $0x480] sm:$0xff]
    %v260 = vld [vmem:[#allocation7 + $0x488] sm:$0xff]
    %v261 = vld [vmem:[#allocation7 + $0x490] sm:$0xff]
    %v262 = vld [vmem:[#allocation7 + $0x498] sm:$0xff]
    %v263 = vld [vmem:[#allocation7 + $0x4a0] sm:$0xff]
    %v264 = vld [vmem:[#allocation7 + $0x4a8] sm:$0xff]
    %v265 = vld [vmem:[#allocation7 + $0x4b0] sm:$0xff]
    %v266 = vld [vmem:[#allocation7 + $0x4b8] sm:$0xff]
    %v267 = vld [vmem:[#allocation7 + $0x4c0] sm:$0xff]
    %v268 = vld [vmem:[#allocation7 + $0x4c8] sm:$0xff]
    %v269 = vld [vmem:[#allocation7 + $0x4d0] sm:$0xff]
    %v270 = vld [vmem:[#allocation7 + $0x4d8] sm:$0xff]
    %v271 = vld [vmem:[#allocation7 + $0x4e0] sm:$0xff]
    %v272 = vld [vmem:[#allocation7 + $0x4e8] sm:$0xff]
    %v273 = vld [vmem:[#allocation7 + $0x4f0] sm:$0xff]
    %v274 = vld [vmem:[#allocation7 + $0x4f8] sm:$0xff]
    %v275 = vld [vmem:[#allocation7 + $0x500] sm:$0xff]
    %v276 = vld [vmem:[#allocation7 + $0x508] sm:$0xff]
    %v277 = vld [vmem:[#allocation7 + $0x510] sm:$0xff]
    %v278 = vld [vmem:[#allocation7 + $0x518] sm:$0xff]
    %v279 = vld [vmem:[#allocation7 + $0x520] sm:$0xff]
    %v280 = vld [vmem:[#allocation7 + $0x528] sm:$0xff]
    %v281 = vld [vmem:[#allocation7 + $0x530] sm:$0xff]
    %v282 = vld [vmem:[#allocation7 + $0x538] sm:$0xff]
    %v283 = vld [vmem:[#allocation7 + $0x540] sm:$0xff]
    %v284 = vld [vmem:[#allocation7 + $0x548] sm:$0xff]
    %v285 = vld [vmem:[#allocation7 + $0x550] sm:$0xff]
    %v286 = vld [vmem:[#allocation7 + $0x558] sm:$0xff]
    %v287 = vld [vmem:[#allocation7 + $0x560] sm:$0xff]
    %v288 = vld [vmem:[#allocation7 + $0x568] sm:$0xff]
    %v289 = vld [vmem:[#allocation7 + $0x570] sm:$0xff]
    %v290 = vld [vmem:[#allocation7 + $0x578] sm:$0xff]
    %v291 = vld [vmem:[#allocation7 + $0x580] sm:$0xff]
    %v292 = vld [vmem:[#allocation7 + $0x588] sm:$0xff]
    %v293 = vld [vmem:[#allocation7 + $0x590] sm:$0xff]
    %v294 = vld [vmem:[#allocation7 + $0x598] sm:$0xff]
    %v295 = vld [vmem:[#allocation7 + $0x5a0] sm:$0xff]
    %v296 = vld [vmem:[#allocation7 + $0x5a8] sm:$0xff]
    %v297 = vld [vmem:[#allocation7 + $0x5b0] sm:$0xff]
    %v298 = vld [vmem:[#allocation7 + $0x5b8] sm:$0xff]
    %v299 = vld [vmem:[#allocation7 + $0x5c0] sm:$0xff]
    %v300 = vld [vmem:[#allocation7 + $0x5c8] sm:$0xff]
    %v301 = vld [vmem:[#allocation7 + $0x5d0] sm:$0xff]
    %v302 = vld [vmem:[#allocation7 + $0x5d8] sm:$0xff]
    %v303 = vld [vmem:[#allocation7 + $0x5e0] sm:$0xff]
    %v304 = vld [vmem:[#allocation7 + $0x5e8] sm:$0xff]
    %v305 = vld [vmem:[#allocation7 + $0x5f0] sm:$0xff]
    %v306 = vld [vmem:[#allocation7 + $0x5f8] sm:$0xff]
    %v307 = vld [vmem:[#allocation7 + $0x600] sm:$0xff]
    %v308 = vld [vmem:[#allocation7 + $0x608] sm:$0xff]
    %v309 = vld [vmem:[#allocation7 + $0x610] sm:$0xff]
    %v310 = vld [vmem:[#allocation7 + $0x618] sm:$0xff]
    %v311 = vld [vmem:[#allocation7 + $0x620] sm:$0xff]
    %v312 = vld [vmem:[#allocation7 + $0x628] sm:$0xff]
    %v313 = vld [vmem:[#allocation7 + $0x630] sm:$0xff]
    %v314 = vld [vmem:[#allocation7 + $0x638] sm:$0xff]
    %v315 = vld [vmem:[#allocation7 + $0x640] sm:$0xff]
    %v316 = vld [vmem:[#allocation7 + $0x648] sm:$0xff]
    %v317 = vld [vmem:[#allocation7 + $0x650] sm:$0xff]
    %v318 = vld [vmem:[#allocation7 + $0x658] sm:$0xff]
    %v319 = vld [vmem:[#allocation7 + $0x660] sm:$0xff]
    %v320 = vld [vmem:[#allocation7 + $0x668] sm:$0xff]
    %v321 = vld [vmem:[#allocation7 + $0x670] sm:$0xff]
    %v322 = vld [vmem:[#allocation7 + $0x678] sm:$0xff]
    %v323 = vld [vmem:[#allocation7 + $0x680] sm:$0xff]
    %v324 = vld [vmem:[#allocation7 + $0x688] sm:$0xff]
    %v325 = vld [vmem:[#allocation7 + $0x690] sm:$0xff]
    %v326 = vld [vmem:[#allocation7 + $0x698] sm:$0xff]
    %v327 = vld [vmem:[#allocation7 + $0x6a0] sm:$0xff]
    %v328 = vld [vmem:[#allocation7 + $0x6a8] sm:$0xff]
    %v329 = vld [vmem:[#allocation7 + $0x6b0] sm:$0xff]
    %v330 = vld [vmem:[#allocation7 + $0x6b8] sm:$0xff]
    %v331 = vld [vmem:[#allocation7 + $0x6c0] sm:$0xff]
    %v332 = vld [vmem:[#allocation7 + $0x6c8] sm:$0xff]
    %v333 = vld [vmem:[#allocation7 + $0x6d0] sm:$0xff]
    %v334 = vld [vmem:[#allocation7 + $0x6d8] sm:$0xff]
    %v335 = vld [vmem:[#allocation7 + $0x6e0] sm:$0xff]
    %v336 = vld [vmem:[#allocation7 + $0x6e8] sm:$0xff]
    %v337 = vld [vmem:[#allocation7 + $0x6f0] sm:$0xff]
    %v338 = vld [vmem:[#allocation7 + $0x6f8] sm:$0xff]
    %v339 = vld [vmem:[#allocation7 + $0x700] sm:$0xff]
    %v340 = vld [vmem:[#allocation7 + $0x708] sm:$0xff]
    %v341 = vld [vmem:[#allocation7 + $0x710] sm:$0xff]
    %v342 = vld [vmem:[#allocation7 + $0x718] sm:$0xff]
    %v343 = vld [vmem:[#allocation7 + $0x720] sm:$0xff]
    %v344 = vld [vmem:[#allocation7 + $0x728] sm:$0xff]
    %v345 = vld [vmem:[#allocation7 + $0x730] sm:$0xff]
    %v346 = vld [vmem:[#allocation7 + $0x738] sm:$0xff]
    %v347 = vld [vmem:[#allocation7 + $0x740] sm:$0xff]
    %v348 = vld [vmem:[#allocation7 + $0x748] sm:$0xff]
    %v349 = vld [vmem:[#allocation7 + $0x750] sm:$0xff]
    %v350 = vld [vmem:[#allocation7 + $0x758] sm:$0xff]
    %v351 = vld [vmem:[#allocation7 + $0x760] sm:$0xff]
    %v352 = vld [vmem:[#allocation7 + $0x768] sm:$0xff]
    %v353 = vld [vmem:[#allocation7 + $0x770] sm:$0xff]
    %v354 = vld [vmem:[#allocation7 + $0x778] sm:$0xff]
    %v355 = vld [vmem:[#allocation7 + $0x780] sm:$0xff]
    %v356 = vld [vmem:[#allocation7 + $0x788] sm:$0xff]
    %v357 = vld [vmem:[#allocation7 + $0x790] sm:$0xff]
    %v358 = vld [vmem:[#allocation7 + $0x798] sm:$0xff]
    %v359 = vld [vmem:[#allocation7 + $0x7a0] sm:$0xff]
    %v360 = vld [vmem:[#allocation7 + $0x7a8] sm:$0xff]
    %v361 = vld [vmem:[#allocation7 + $0x7b0] sm:$0xff]
    %v362 = vld [vmem:[#allocation7 + $0x7b8] sm:$0xff]
    %v363 = vld [vmem:[#allocation7 + $0x7c0] sm:$0xff]
    %v364 = vld [vmem:[#allocation7 + $0x7c8] sm:$0xff]
    %v365 = vld [vmem:[#allocation7 + $0x7d0] sm:$0xff]
    %v366 = vld [vmem:[#allocation7 + $0x7d8] sm:$0xff]
    %v367 = vld [vmem:[#allocation7 + $0x7e0] sm:$0xff]
    %v368 = vld [vmem:[#allocation7 + $0x7e8] sm:$0xff]
    %v369 = vld [vmem:[#allocation7 + $0x7f0] sm:$0xff]
    %v370 = vld [vmem:[#allocation7 + $0x7f8] sm:$0xff]
    %v371 = vld [vmem:[#allocation7 + $0x800] sm:$0xff]
    %v372 = vld [vmem:[#allocation7 + $0x808] sm:$0xff]
    %v373 = vld [vmem:[#allocation7 + $0x810] sm:$0xff]
    %v374 = vld [vmem:[#allocation7 + $0x818] sm:$0xff]
    %v375 = vld [vmem:[#allocation7 + $0x820] sm:$0xff]
    %v376 = vld [vmem:[#allocation7 + $0x828] sm:$0xff]
    %v377 = vld [vmem:[#allocation7 + $0x830] sm:$0xff]
    %v378 = vld [vmem:[#allocation7 + $0x838] sm:$0xff]
    %v379 = vld [vmem:[#allocation7 + $0x840] sm:$0xff]
    %v380 = vld [vmem:[#allocation7 + $0x848] sm:$0xff]
    %v381 = vld [vmem:[#allocation7 + $0x850] sm:$0xff]
    %v382 = vld [vmem:[#allocation7 + $0x858] sm:$0xff]
    %v383 = vld [vmem:[#allocation7 + $0x860] sm:$0xff]
    %v384 = vld [vmem:[#allocation7 + $0x868] sm:$0xff]
    %v385 = vld [vmem:[#allocation7 + $0x870] sm:$0xff]
    %v386 = vld [vmem:[#allocation7 + $0x878] sm:$0xff]
    %v387 = vld [vmem:[#allocation7 + $0x880] sm:$0xff]
    %v388 = vld [vmem:[#allocation7 + $0x888] sm:$0xff]
    %v389 = vld [vmem:[#allocation7 + $0x890] sm:$0xff]
    %v390 = vld [vmem:[#allocation7 + $0x898] sm:$0xff]
    %v391 = vld [vmem:[#allocation7 + $0x8a0] sm:$0xff]
    %v392 = vld [vmem:[#allocation7 + $0x8a8] sm:$0xff]
    %v393 = vld [vmem:[#allocation7 + $0x8b0] sm:$0xff]
    %v394 = vld [vmem:[#allocation7 + $0x8b8] sm:$0xff]
    %v395 = vld [vmem:[#allocation7 + $0x8c0] sm:$0xff]
    %v396 = vld [vmem:[#allocation7 + $0x8c8] sm:$0xff]
    %v397 = vld [vmem:[#allocation7 + $0x8d0] sm:$0xff]
    %v398 = vld [vmem:[#allocation7 + $0x8d8] sm:$0xff]
    %v399 = vld [vmem:[#allocation7 + $0x8e0] sm:$0xff]
    %v400 = vld [vmem:[#allocation7 + $0x8e8] sm:$0xff]
    %v401 = vld [vmem:[#allocation7 + $0x8f0] sm:$0xff]
    %v402 = vld [vmem:[#allocation7 + $0x8f8] sm:$0xff]
    %v403 = vld [vmem:[#allocation7 + $0x900] sm:$0xff]
    %v404 = vld [vmem:[#allocation7 + $0x908] sm:$0xff]
    %v405 = vld [vmem:[#allocation7 + $0x910] sm:$0xff]
    %v406 = vld [vmem:[#allocation7 + $0x918] sm:$0xff]
    %v407 = vld [vmem:[#allocation7 + $0x920] sm:$0xff]
    %v408 = vld [vmem:[#allocation7 + $0x928] sm:$0xff]
    %v409 = vld [vmem:[#allocation7 + $0x930] sm:$0xff]
    %v410 = vld [vmem:[#allocation7 + $0x938] sm:$0xff]
    %v411 = vld [vmem:[#allocation7 + $0x940] sm:$0xff]
    %v412 = vld [vmem:[#allocation7 + $0x948] sm:$0xff]
    %v413 = vld [vmem:[#allocation7 + $0x950] sm:$0xff]
    %v414 = vld [vmem:[#allocation7 + $0x958] sm:$0xff]
    %v415 = vld [vmem:[#allocation7 + $0x960] sm:$0xff]
    %v416 = vld [vmem:[#allocation7 + $0x968] sm:$0xff]
    %v417 = vld [vmem:[#allocation7 + $0x970] sm:$0xff]
    %v418 = vld [vmem:[#allocation7 + $0x978] sm:$0xff]
    %v419 = vld [vmem:[#allocation7 + $0x980] sm:$0xff]
    %v420 = vld [vmem:[#allocation7 + $0x988] sm:$0xff]
    %v421 = vld [vmem:[#allocation7 + $0x990] sm:$0xff]
    %v422 = vld [vmem:[#allocation7 + $0x998] sm:$0xff]
    %v423 = vld [vmem:[#allocation7 + $0x9a0] sm:$0xff]
    %v424 = vld [vmem:[#allocation7 + $0x9a8] sm:$0xff]
    %v425 = vld [vmem:[#allocation7 + $0x9b0] sm:$0xff]
    %v426 = vld [vmem:[#allocation7 + $0x9b8] sm:$0xff]
    %v427 = vld [vmem:[#allocation7 + $0x9c0] sm:$0xff]
    %v428 = vld [vmem:[#allocation7 + $0x9c8] sm:$0xff]
    %v429 = vld [vmem:[#allocation7 + $0x9d0] sm:$0xff]
    %v430 = vld [vmem:[#allocation7 + $0x9d8] sm:$0xff]
    %v431 = vld [vmem:[#allocation7 + $0x9e0] sm:$0xff]
    %v432 = vld [vmem:[#allocation7 + $0x9e8] sm:$0xff]
    %v433 = vld [vmem:[#allocation7 + $0x9f0] sm:$0xff]
    %v434 = vld [vmem:[#allocation7 + $0x9f8] sm:$0xff]
    %v435 = vld [vmem:[#allocation7 + $0xa00] sm:$0xff]
    %v436 = vld [vmem:[#allocation7 + $0xa08] sm:$0xff]
    %v437 = vld [vmem:[#allocation7 + $0xa10] sm:$0xff]
    %v438 = vld [vmem:[#allocation7 + $0xa18] sm:$0xff]
    %v439 = vld [vmem:[#allocation7 + $0xa20] sm:$0xff]
    %v440 = vld [vmem:[#allocation7 + $0xa28] sm:$0xff]
    %v441 = vld [vmem:[#allocation7 + $0xa30] sm:$0xff]
    %v442 = vld [vmem:[#allocation7 + $0xa38] sm:$0xff]
    %v443 = vld [vmem:[#allocation7 + $0xa40] sm:$0xff]
    %v444 = vld [vmem:[#allocation7 + $0xa48] sm:$0xff]
    %v445 = vld [vmem:[#allocation7 + $0xa50] sm:$0xff]
    %v446 = vld [vmem:[#allocation7 + $0xa58] sm:$0xff]
    %v447 = vld [vmem:[#allocation7 + $0xa60] sm:$0xff]
    %v448 = vld [vmem:[#allocation7 + $0xa68] sm:$0xff]
    %v449 = vld [vmem:[#allocation7 + $0xa70] sm:$0xff]
    %v450 = vld [vmem:[#allocation7 + $0xa78] sm:$0xff]
    %v451 = vld [vmem:[#allocation7 + $0xa80] sm:$0xff]
    %v452 = vld [vmem:[#allocation7 + $0xa88] sm:$0xff]
    %v453 = vld [vmem:[#allocation7 + $0xa90] sm:$0xff]
    %v454 = vld [vmem:[#allocation7 + $0xa98] sm:$0xff]
    %v455 = vld [vmem:[#allocation7 + $0xaa0] sm:$0xff]
    %v456 = vld [vmem:[#allocation7 + $0xaa8] sm:$0xff]
    %v457 = vld [vmem:[#allocation7 + $0xab0] sm:$0xff]
    %v458 = vld [vmem:[#allocation7 + $0xab8] sm:$0xff]
    %v459 = vld [vmem:[#allocation7 + $0xac0] sm:$0xff]
    %v460 = vld [vmem:[#allocation7 + $0xac8] sm:$0xff]
    %v461 = vld [vmem:[#allocation7 + $0xad0] sm:$0xff]
    %v462 = vld [vmem:[#allocation7 + $0xad8] sm:$0xff]
    %v463 = vld [vmem:[#allocation7 + $0xae0] sm:$0xff]
    %v464 = vld [vmem:[#allocation7 + $0xae8] sm:$0xff]
    %v465 = vld [vmem:[#allocation7 + $0xaf0] sm:$0xff]
    %v466 = vld [vmem:[#allocation7 + $0xaf8] sm:$0xff]
    %v467 = vld [vmem:[#allocation7 + $0xb00] sm:$0xff]
    %v468 = vld [vmem:[#allocation7 + $0xb08] sm:$0xff]
    %v469 = vld [vmem:[#allocation7 + $0xb10] sm:$0xff]
    %v470 = vld [vmem:[#allocation7 + $0xb18] sm:$0xff]
    %v471 = vld [vmem:[#allocation7 + $0xb20] sm:$0xff]
    %v472 = vld [vmem:[#allocation7 + $0xb28] sm:$0xff]
    %v473 = vld [vmem:[#allocation7 + $0xb30] sm:$0xff]
    %v474 = vld [vmem:[#allocation7 + $0xb38] sm:$0xff]
    %v475 = vld [vmem:[#allocation7 + $0xb40] sm:$0xff]
    %v476 = vld [vmem:[#allocation7 + $0xb48] sm:$0xff]
    %v477 = vld [vmem:[#allocation7 + $0xb50] sm:$0xff]
    %v478 = vld [vmem:[#allocation7 + $0xb58] sm:$0xff]
    %v479 = vld [vmem:[#allocation7 + $0xb60] sm:$0xff]
    %v480 = vld [vmem:[#allocation7 + $0xb68] sm:$0xff]
    %v481 = vld [vmem:[#allocation7 + $0xb70] sm:$0xff]
    %v482 = vld [vmem:[#allocation7 + $0xb78] sm:$0xff]
    %v483 = vld [vmem:[#allocation7 + $0xb80] sm:$0xff]
    %v484 = vld [vmem:[#allocation7 + $0xb88] sm:$0xff]
    %v485 = vld [vmem:[#allocation7 + $0xb90] sm:$0xff]
    %v486 = vld [vmem:[#allocation7 + $0xb98] sm:$0xff]
    %v487 = vld [vmem:[#allocation7 + $0xba0] sm:$0xff]
    %v488 = vld [vmem:[#allocation7 + $0xba8] sm:$0xff]
    %v489 = vld [vmem:[#allocation7 + $0xbb0] sm:$0xff]
    %v490 = vld [vmem:[#allocation7 + $0xbb8] sm:$0xff]
    %v491 = vld [vmem:[#allocation7 + $0xbc0] sm:$0xff]
    %v492 = vld [vmem:[#allocation7 + $0xbc8] sm:$0xff]
    %v493 = vld [vmem:[#allocation7 + $0xbd0] sm:$0xff]
    %v494 = vld [vmem:[#allocation7 + $0xbd8] sm:$0xff]
    %v495 = vld [vmem:[#allocation7 + $0xbe0] sm:$0xff]
    %v496 = vld [vmem:[#allocation7 + $0xbe8] sm:$0xff]
    %v497 = vld [vmem:[#allocation7 + $0xbf0] sm:$0xff]
    %v498 = vld [vmem:[#allocation7 + $0xbf8] sm:$0xff]
    %v499 = vld [vmem:[#allocation7 + $0xc00] sm:$0xff]
    %v500 = vld [vmem:[#allocation7 + $0xc08] sm:$0xff]
    %v501 = vld [vmem:[#allocation7 + $0xc10] sm:$0xff]
    %v502 = vld [vmem:[#allocation7 + $0xc18] sm:$0xff]
    %v503 = vld [vmem:[#allocation7 + $0xc20] sm:$0xff]
    %v504 = vld [vmem:[#allocation7 + $0xc28] sm:$0xff]
    %v505 = vld [vmem:[#allocation7 + $0xc30] sm:$0xff]
    %v506 = vld [vmem:[#allocation7 + $0xc38] sm:$0xff]
    %v507 = vld [vmem:[#allocation7 + $0xc40] sm:$0xff]
    %v508 = vld [vmem:[#allocation7 + $0xc48] sm:$0xff]
    %v509 = vld [vmem:[#allocation7 + $0xc50] sm:$0xff]
    %v510 = vld [vmem:[#allocation7 + $0xc58] sm:$0xff]
    %v511 = vld [vmem:[#allocation7 + $0xc60] sm:$0xff]
    %v512 = vld [vmem:[#allocation7 + $0xc68] sm:$0xff]
    %v513 = vld [vmem:[#allocation7 + $0xc70] sm:$0xff]
    %v514 = vld [vmem:[#allocation7 + $0xc78] sm:$0xff]
    %v515 = vld [vmem:[#allocation7 + $0xc80] sm:$0xff]
    %v516 = vld [vmem:[#allocation7 + $0xc88] sm:$0xff]
    %v517 = vld [vmem:[#allocation7 + $0xc90] sm:$0xff]
    %v518 = vld [vmem:[#allocation7 + $0xc98] sm:$0xff]
    %v519 = vld [vmem:[#allocation7 + $0xca0] sm:$0xff]
    %v520 = vld [vmem:[#allocation7 + $0xca8] sm:$0xff]
    %v521 = vld [vmem:[#allocation7 + $0xcb0] sm:$0xff]
    %v522 = vld [vmem:[#allocation7 + $0xcb8] sm:$0xff]
    %v523 = vld [vmem:[#allocation7 + $0xcc0] sm:$0xff]
    %v524 = vld [vmem:[#allocation7 + $0xcc8] sm:$0xff]
    %v525 = vld [vmem:[#allocation7 + $0xcd0] sm:$0xff]
    %v526 = vld [vmem:[#allocation7 + $0xcd8] sm:$0xff]
    %v527 = vld [vmem:[#allocation7 + $0xce0] sm:$0xff]
    %v528 = vld [vmem:[#allocation7 + $0xce8] sm:$0xff]
    %v529 = vld [vmem:[#allocation7 + $0xcf0] sm:$0xff]
    %v530 = vld [vmem:[#allocation7 + $0xcf8] sm:$0xff]
    %v531 = vld [vmem:[#allocation7 + $0xd00] sm:$0xff]
    %v532 = vld [vmem:[#allocation7 + $0xd08] sm:$0xff]
    %v533 = vld [vmem:[#allocation7 + $0xd10] sm:$0xff]
    %v534 = vld [vmem:[#allocation7 + $0xd18] sm:$0xff]
    %v535 = vld [vmem:[#allocation7 + $0xd20] sm:$0xff]
    %v536 = vld [vmem:[#allocation7 + $0xd28] sm:$0xff]
    %v537 = vld [vmem:[#allocation7 + $0xd30] sm:$0xff]
    %v538 = vld [vmem:[#allocation7 + $0xd38] sm:$0xff]
    %v539 = vld [vmem:[#allocation7 + $0xd40] sm:$0xff]
    %v540 = vld [vmem:[#allocation7 + $0xd48] sm:$0xff]
    %v541 = vld [vmem:[#allocation7 + $0xd50] sm:$0xff]
    %v542 = vld [vmem:[#allocation7 + $0xd58] sm:$0xff]
    %v543 = vld [vmem:[#allocation7 + $0xd60] sm:$0xff]
    %v544 = vld [vmem:[#allocation7 + $0xd68] sm:$0xff]
    %v545 = vld [vmem:[#allocation7 + $0xd70] sm:$0xff]
    %v546 = vld [vmem:[#allocation7 + $0xd78] sm:$0xff]
    %v547 = vld [vmem:[#allocation7 + $0xd80] sm:$0xff]
    %v548 = vld [vmem:[#allocation7 + $0xd88] sm:$0xff]
    %v549 = vld [vmem:[#allocation7 + $0xd90] sm:$0xff]
    %v550 = vld [vmem:[#allocation7 + $0xd98] sm:$0xff]
    %v551 = vld [vmem:[#allocation7 + $0xda0] sm:$0xff]
    %v552 = vld [vmem:[#allocation7 + $0xda8] sm:$0xff]
    %v553 = vld [vmem:[#allocation7 + $0xdb0] sm:$0xff]
    %v554 = vld [vmem:[#allocation7 + $0xdb8] sm:$0xff]
    %v555 = vld [vmem:[#allocation7 + $0xdc0] sm:$0xff]
    %v556 = vld [vmem:[#allocation7 + $0xdc8] sm:$0xff]
    %v557 = vld [vmem:[#allocation7 + $0xdd0] sm:$0xff]
    %v558 = vld [vmem:[#allocation7 + $0xdd8] sm:$0xff]
    %v559 = vld [vmem:[#allocation7 + $0xde0] sm:$0xff]
    %v560 = vld [vmem:[#allocation7 + $0xde8] sm:$0xff]
    %v561 = vld [vmem:[#allocation7 + $0xdf0] sm:$0xff]
    %v562 = vld [vmem:[#allocation7 + $0xdf8] sm:$0xff]
    %v563 = vld [vmem:[#allocation7 + $0xe00] sm:$0xff]
    %v564 = vld [vmem:[#allocation7 + $0xe08] sm:$0xff]
    %v565 = vld [vmem:[#allocation7 + $0xe10] sm:$0xff]
    %v566 = vld [vmem:[#allocation7 + $0xe18] sm:$0xff]
    %v567 = vld [vmem:[#allocation7 + $0xe20] sm:$0xff]
    %v568 = vld [vmem:[#allocation7 + $0xe28] sm:$0xff]
    %v569 = vld [vmem:[#allocation7 + $0xe30] sm:$0xff]
    %v570 = vld [vmem:[#allocation7 + $0xe38] sm:$0xff]
    %v571 = vld [vmem:[#allocation7 + $0xe40] sm:$0xff]
    %v572 = vld [vmem:[#allocation7 + $0xe48] sm:$0xff]
    %v573 = vld [vmem:[#allocation7 + $0xe50] sm:$0xff]
    %v574 = vld [vmem:[#allocation7 + $0xe58] sm:$0xff]
    %v575 = vld [vmem:[#allocation7 + $0xe60] sm:$0xff]
    %v576 = vld [vmem:[#allocation7 + $0xe68] sm:$0xff]
    %v577 = vld [vmem:[#allocation7 + $0xe70] sm:$0xff]
    %v578 = vld [vmem:[#allocation7 + $0xe78] sm:$0xff]
    %v579 = vld [vmem:[#allocation7 + $0xe80] sm:$0xff]
    %v580 = vld [vmem:[#allocation7 + $0xe88] sm:$0xff]
    %v581 = vld [vmem:[#allocation7 + $0xe90] sm:$0xff]
    %v582 = vld [vmem:[#allocation7 + $0xe98] sm:$0xff]
    %v583 = vld [vmem:[#allocation7 + $0xea0] sm:$0xff]
    %v584 = vld [vmem:[#allocation7 + $0xea8] sm:$0xff]
    %v585 = vld [vmem:[#allocation7 + $0xeb0] sm:$0xff]
    %v586 = vld [vmem:[#allocation7 + $0xeb8] sm:$0xff]
    %v587 = vld [vmem:[#allocation7 + $0xec0] sm:$0xff]
    %v588 = vld [vmem:[#allocation7 + $0xec8] sm:$0xff]
    %v589 = vld [vmem:[#allocation7 + $0xed0] sm:$0xff]
    %v590 = vld [vmem:[#allocation7 + $0xed8] sm:$0xff]
    %v591 = vld [vmem:[#allocation7 + $0xee0] sm:$0xff]
    %v592 = vld [vmem:[#allocation7 + $0xee8] sm:$0xff]
    %v593 = vld [vmem:[#allocation7 + $0xef0] sm:$0xff]
    %v594 = vld [vmem:[#allocation7 + $0xef8] sm:$0xff]
    %v595 = vld [vmem:[#allocation7 + $0xf00] sm:$0xff]
    %v596 = vld [vmem:[#allocation7 + $0xf08] sm:$0xff]
    %v597 = vld [vmem:[#allocation7 + $0xf10] sm:$0xff]
    %v598 = vld [vmem:[#allocation7 + $0xf18] sm:$0xff]
    %v599 = vld [vmem:[#allocation7 + $0xf20] sm:$0xff]
    %v600 = vld [vmem:[#allocation7 + $0xf28] sm:$0xff]
    %v601 = vld [vmem:[#allocation7 + $0xf30] sm:$0xff]
    %v602 = vld [vmem:[#allocation7 + $0xf38] sm:$0xff]
    %v603 = vld [vmem:[#allocation7 + $0xf40] sm:$0xff]
    %v604 = vld [vmem:[#allocation7 + $0xf48] sm:$0xff]
    %v605 = vld [vmem:[#allocation7 + $0xf50] sm:$0xff]
    %v606 = vld [vmem:[#allocation7 + $0xf58] sm:$0xff]
    %v607 = vld [vmem:[#allocation7 + $0xf60] sm:$0xff]
    %v608 = vld [vmem:[#allocation7 + $0xf68] sm:$0xff]
    %v609 = vld [vmem:[#allocation7 + $0xf70] sm:$0xff]
    %v610 = vld [vmem:[#allocation7 + $0xf78] sm:$0xff]
    %v611 = vld [vmem:[#allocation7 + $0xf80] sm:$0xff]
    %v612 = vld [vmem:[#allocation7 + $0xf88] sm:$0xff]
    %v613 = vld [vmem:[#allocation7 + $0xf90] sm:$0xff]
    %v614 = vld [vmem:[#allocation7 + $0xf98] sm:$0xff]
    %v615 = vld [vmem:[#allocation7 + $0xfa0] sm:$0xff]
    %v616 = vld [vmem:[#allocation7 + $0xfa8] sm:$0xff]
    %v617 = vld [vmem:[#allocation7 + $0xfb0] sm:$0xff]
    %v618 = vld [vmem:[#allocation7 + $0xfb8] sm:$0xff]
    %v619 = vld [vmem:[#allocation7 + $0xfc0] sm:$0xff]
    %v620 = vld [vmem:[#allocation7 + $0xfc8] sm:$0xff]
    %v621 = vld [vmem:[#allocation7 + $0xfd0] sm:$0xff]
    %v622 = vld [vmem:[#allocation7 + $0xfd8] sm:$0xff]
    %v623 = vld [vmem:[#allocation7 + $0xfe0] sm:$0xff]
    %v624 = vld [vmem:[#allocation7 + $0xfe8] sm:$0xff]
    %v625 = vld [vmem:[#allocation7 + $0xff0] sm:$0xff]
    %v626 = vld [vmem:[#allocation7 + $0xff8] sm:$0xff]
    %v628 = vcombine.high %v114, %v114
    %v630 = vunpack.c.l.s4 1966171168
    %v631 = vunpack.c.0.s8 %v630
    %v632 = vlaneseq
    %v633 = vshrl.u32 %v632, 7
    %v634 = vsub.s32 %v631, %v633
    %v635 = vrot.slane %v114, %v634
    %v637 = vunpack.c.l.s4 1966171168
    %v638 = vunpack.c.0.s8 %v637
    %v639 = vlaneseq
    %v640 = vshrl.u32 %v639, 7
    %v641 = vsub.s32 %v638, %v640
    %v642 = vrot.slane %v628, %v641
    %v643 = vcombine.high %v635, %v635
    %v644 = vcombine.high %v642, %v642
    %v646 = vunpack.c.l.s4 1966171168
    %v647 = vunpack.c.0.s8 %v646
    %v648 = vlaneseq
    %v649 = vshrl.u32 %v648, 7
    %v650 = vsub.s32 %v647, %v649
    %v651 = vrot.slane %v635, %v650
    %v653 = vunpack.c.l.s4 1966171168
    %v654 = vunpack.c.0.s8 %v653
    %v655 = vlaneseq
    %v656 = vshrl.u32 %v655, 7
    %v657 = vsub.s32 %v654, %v656
    %v658 = vrot.slane %v642, %v657
    %v660 = vunpack.c.l.s4 1966171168
    %v661 = vunpack.c.0.s8 %v660
    %v662 = vlaneseq
    %v663 = vshrl.u32 %v662, 7
    %v664 = vsub.s32 %v661, %v663
    %v665 = vrot.slane %v643, %v664
    %v667 = vunpack.c.l.s4 1966171168
    %v668 = vunpack.c.0.s8 %v667
    %v669 = vlaneseq
    %v670 = vshrl.u32 %v669, 7
    %v671 = vsub.s32 %v668, %v670
    %v672 = vrot.slane %v644, %v671
    %v673 = vcombine.high %v651, %v651
    %v674 = vcombine.high %v658, %v658
    %v675 = vcombine.high %v665, %v665
    %v676 = vcombine.high %v672, %v672
    %v1197 = vunpack.c.l.b16 %v115
    %v1198 = vunpack.c.h.b16 %v115
    %v1199 = vunpack.c.l.b16 %v116
    %v1200 = vunpack.c.h.b16 %v116
    %v1201 = vunpack.c.l.b16 %v117
    %v1202 = vunpack.c.h.b16 %v117
    %v1203 = vunpack.c.l.b16 %v118
    %v1204 = vunpack.c.h.b16 %v118
    %v1205 = vunpack.c.l.b16 %v119
    %v1206 = vunpack.c.h.b16 %v119
    %v1207 = vunpack.c.l.b16 %v120
    %v1208 = vunpack.c.h.b16 %v120
    %v1209 = vunpack.c.l.b16 %v121
    %v1210 = vunpack.c.h.b16 %v121
    %v1211 = vunpack.c.l.b16 %v122
    %v1212 = vunpack.c.h.b16 %v122
    %v1213 = vunpack.c.l.b16 %v123
    %v1214 = vunpack.c.h.b16 %v123
    %v1215 = vunpack.c.l.b16 %v124
    %v1216 = vunpack.c.h.b16 %v124
    %v1217 = vunpack.c.l.b16 %v125
    %v1218 = vunpack.c.h.b16 %v125
    %v1219 = vunpack.c.l.b16 %v126
    %v1220 = vunpack.c.h.b16 %v126
    %v1221 = vunpack.c.l.b16 %v127
    %v1222 = vunpack.c.h.b16 %v127
    %v1223 = vunpack.c.l.b16 %v128
    %v1224 = vunpack.c.h.b16 %v128
    %v1225 = vunpack.c.l.b16 %v129
    %v1226 = vunpack.c.h.b16 %v129
    %v1227 = vunpack.c.l.b16 %v130
    %v1228 = vunpack.c.h.b16 %v130
    %v1229 = vunpack.c.l.b16 %v131
    %v1230 = vunpack.c.h.b16 %v131
    %v1231 = vunpack.c.l.b16 %v132
    %v1232 = vunpack.c.h.b16 %v132
    %v1233 = vunpack.c.l.b16 %v133
    %v1234 = vunpack.c.h.b16 %v133
    %v1235 = vunpack.c.l.b16 %v134
    %v1236 = vunpack.c.h.b16 %v134
    %v1237 = vunpack.c.l.b16 %v135
    %v1238 = vunpack.c.h.b16 %v135
    %v1239 = vunpack.c.l.b16 %v136
    %v1240 = vunpack.c.h.b16 %v136
    %v1241 = vunpack.c.l.b16 %v137
    %v1242 = vunpack.c.h.b16 %v137
    %v1243 = vunpack.c.l.b16 %v138
    %v1244 = vunpack.c.h.b16 %v138
    %v1245 = vunpack.c.l.b16 %v139
    %v1246 = vunpack.c.h.b16 %v139
    %v1247 = vunpack.c.l.b16 %v140
    %v1248 = vunpack.c.h.b16 %v140
    %v1249 = vunpack.c.l.b16 %v141
    %v1250 = vunpack.c.h.b16 %v141
    %v1251 = vunpack.c.l.b16 %v142
    %v1252 = vunpack.c.h.b16 %v142
    %v1253 = vunpack.c.l.b16 %v143
    %v1254 = vunpack.c.h.b16 %v143
    %v1255 = vunpack.c.l.b16 %v144
    %v1256 = vunpack.c.h.b16 %v144
    %v1257 = vunpack.c.l.b16 %v145
    %v1258 = vunpack.c.h.b16 %v145
    %v1259 = vunpack.c.l.b16 %v146
    %v1260 = vunpack.c.h.b16 %v146
    %v1261 = vunpack.c.l.b16 %v147
    %v1262 = vunpack.c.h.b16 %v147
    %v1263 = vunpack.c.l.b16 %v148
    %v1264 = vunpack.c.h.b16 %v148
    %v1265 = vunpack.c.l.b16 %v149
    %v1266 = vunpack.c.h.b16 %v149
    %v1267 = vunpack.c.l.b16 %v150
    %v1268 = vunpack.c.h.b16 %v150
    %v1269 = vunpack.c.l.b16 %v151
    %v1270 = vunpack.c.h.b16 %v151
    %v1271 = vunpack.c.l.b16 %v152
    %v1272 = vunpack.c.h.b16 %v152
    %v1273 = vunpack.c.l.b16 %v153
    %v1274 = vunpack.c.h.b16 %v153
    %v1275 = vunpack.c.l.b16 %v154
    %v1276 = vunpack.c.h.b16 %v154
    %v1277 = vunpack.c.l.b16 %v155
    %v1278 = vunpack.c.h.b16 %v155
    %v1279 = vunpack.c.l.b16 %v156
    %v1280 = vunpack.c.h.b16 %v156
    %v1281 = vunpack.c.l.b16 %v157
    %v1282 = vunpack.c.h.b16 %v157
    %v1283 = vunpack.c.l.b16 %v158
    %v1284 = vunpack.c.h.b16 %v158
    %v1285 = vunpack.c.l.b16 %v159
    %v1286 = vunpack.c.h.b16 %v159
    %v1287 = vunpack.c.l.b16 %v160
    %v1288 = vunpack.c.h.b16 %v160
    %v1289 = vunpack.c.l.b16 %v161
    %v1290 = vunpack.c.h.b16 %v161
    %v1291 = vunpack.c.l.b16 %v162
    %v1292 = vunpack.c.h.b16 %v162
    %v1293 = vunpack.c.l.b16 %v163
    %v1294 = vunpack.c.h.b16 %v163
    %v1295 = vunpack.c.l.b16 %v164
    %v1296 = vunpack.c.h.b16 %v164
    %v1297 = vunpack.c.l.b16 %v165
    %v1298 = vunpack.c.h.b16 %v165
    %v1299 = vunpack.c.l.b16 %v166
    %v1300 = vunpack.c.h.b16 %v166
    %v1301 = vunpack.c.l.b16 %v167
    %v1302 = vunpack.c.h.b16 %v167
    %v1303 = vunpack.c.l.b16 %v168
    %v1304 = vunpack.c.h.b16 %v168
    %v1305 = vunpack.c.l.b16 %v169
    %v1306 = vunpack.c.h.b16 %v169
    %v1307 = vunpack.c.l.b16 %v170
    %v1308 = vunpack.c.h.b16 %v170
    %v1309 = vunpack.c.l.b16 %v171
    %v1310 = vunpack.c.h.b16 %v171
    %v1311 = vunpack.c.l.b16 %v172
    %v1312 = vunpack.c.h.b16 %v172
    %v1313 = vunpack.c.l.b16 %v173
    %v1314 = vunpack.c.h.b16 %v173
    %v1315 = vunpack.c.l.b16 %v174
    %v1316 = vunpack.c.h.b16 %v174
    %v1317 = vunpack.c.l.b16 %v175
    %v1318 = vunpack.c.h.b16 %v175
    %v1319 = vunpack.c.l.b16 %v176
    %v1320 = vunpack.c.h.b16 %v176
    %v1321 = vunpack.c.l.b16 %v177
    %v1322 = vunpack.c.h.b16 %v177
    %v1323 = vunpack.c.l.b16 %v178
    %v1324 = vunpack.c.h.b16 %v178
    %v1325 = vunpack.c.l.b16 %v179
    %v1326 = vunpack.c.h.b16 %v179
    %v1327 = vunpack.c.l.b16 %v180
    %v1328 = vunpack.c.h.b16 %v180
    %v1329 = vunpack.c.l.b16 %v181
    %v1330 = vunpack.c.h.b16 %v181
    %v1331 = vunpack.c.l.b16 %v182
    %v1332 = vunpack.c.h.b16 %v182
    %v1333 = vunpack.c.l.b16 %v183
    %v1334 = vunpack.c.h.b16 %v183
    %v1335 = vunpack.c.l.b16 %v184
    %v1336 = vunpack.c.h.b16 %v184
    %v1337 = vunpack.c.l.b16 %v185
    %v1338 = vunpack.c.h.b16 %v185
    %v1339 = vunpack.c.l.b16 %v186
    %v1340 = vunpack.c.h.b16 %v186
    %v1341 = vunpack.c.l.b16 %v187
    %v1342 = vunpack.c.h.b16 %v187
    %v1343 = vunpack.c.l.b16 %v188
    %v1344 = vunpack.c.h.b16 %v188
    %v1345 = vunpack.c.l.b16 %v189
    %v1346 = vunpack.c.h.b16 %v189
    %v1347 = vunpack.c.l.b16 %v190
    %v1348 = vunpack.c.h.b16 %v190
    %v1349 = vunpack.c.l.b16 %v191
    %v1350 = vunpack.c.h.b16 %v191
    %v1351 = vunpack.c.l.b16 %v192
    %v1352 = vunpack.c.h.b16 %v192
    %v1353 = vunpack.c.l.b16 %v193
    %v1354 = vunpack.c.h.b16 %v193
    %v1355 = vunpack.c.l.b16 %v194
    %v1356 = vunpack.c.h.b16 %v194
    %v1357 = vunpack.c.l.b16 %v195
    %v1358 = vunpack.c.h.b16 %v195
    %v1359 = vunpack.c.l.b16 %v196
    %v1360 = vunpack.c.h.b16 %v196
    %v1361 = vunpack.c.l.b16 %v197
    %v1362 = vunpack.c.h.b16 %v197
    %v1363 = vunpack.c.l.b16 %v198
    %v1364 = vunpack.c.h.b16 %v198
    %v1365 = vunpack.c.l.b16 %v199
    %v1366 = vunpack.c.h.b16 %v199
    %v1367 = vunpack.c.l.b16 %v200
    %v1368 = vunpack.c.h.b16 %v200
    %v1369 = vunpack.c.l.b16 %v201
    %v1370 = vunpack.c.h.b16 %v201
    %v1371 = vunpack.c.l.b16 %v202
    %v1372 = vunpack.c.h.b16 %v202
    %v1373 = vunpack.c.l.b16 %v203
    %v1374 = vunpack.c.h.b16 %v203
    %v1375 = vunpack.c.l.b16 %v204
    %v1376 = vunpack.c.h.b16 %v204
    %v1377 = vunpack.c.l.b16 %v205
    %v1378 = vunpack.c.h.b16 %v205
    %v1379 = vunpack.c.l.b16 %v206
    %v1380 = vunpack.c.h.b16 %v206
    %v1381 = vunpack.c.l.b16 %v207
    %v1382 = vunpack.c.h.b16 %v207
    %v1383 = vunpack.c.l.b16 %v208
    %v1384 = vunpack.c.h.b16 %v208
    %v1385 = vunpack.c.l.b16 %v209
    %v1386 = vunpack.c.h.b16 %v209
    %v1387 = vunpack.c.l.b16 %v210
    %v1388 = vunpack.c.h.b16 %v210
    %v1389 = vunpack.c.l.b16 %v211
    %v1390 = vunpack.c.h.b16 %v211
    %v1391 = vunpack.c.l.b16 %v212
    %v1392 = vunpack.c.h.b16 %v212
    %v1393 = vunpack.c.l.b16 %v213
    %v1394 = vunpack.c.h.b16 %v213
    %v1395 = vunpack.c.l.b16 %v214
    %v1396 = vunpack.c.h.b16 %v214
    %v1397 = vunpack.c.l.b16 %v215
    %v1398 = vunpack.c.h.b16 %v215
    %v1399 = vunpack.c.l.b16 %v216
    %v1400 = vunpack.c.h.b16 %v216
    %v1401 = vunpack.c.l.b16 %v217
    %v1402 = vunpack.c.h.b16 %v217
    %v1403 = vunpack.c.l.b16 %v218
    %v1404 = vunpack.c.h.b16 %v218
    %v1405 = vunpack.c.l.b16 %v219
    %v1406 = vunpack.c.h.b16 %v219
    %v1407 = vunpack.c.l.b16 %v220
    %v1408 = vunpack.c.h.b16 %v220
    %v1409 = vunpack.c.l.b16 %v221
    %v1410 = vunpack.c.h.b16 %v221
    %v1411 = vunpack.c.l.b16 %v222
    %v1412 = vunpack.c.h.b16 %v222
    %v1413 = vunpack.c.l.b16 %v223
    %v1414 = vunpack.c.h.b16 %v223
    %v1415 = vunpack.c.l.b16 %v224
    %v1416 = vunpack.c.h.b16 %v224
    %v1417 = vunpack.c.l.b16 %v225
    %v1418 = vunpack.c.h.b16 %v225
    %v1419 = vunpack.c.l.b16 %v226
    %v1420 = vunpack.c.h.b16 %v226
    %v1421 = vunpack.c.l.b16 %v227
    %v1422 = vunpack.c.h.b16 %v227
    %v1423 = vunpack.c.l.b16 %v228
    %v1424 = vunpack.c.h.b16 %v228
    %v1425 = vunpack.c.l.b16 %v229
    %v1426 = vunpack.c.h.b16 %v229
    %v1427 = vunpack.c.l.b16 %v230
    %v1428 = vunpack.c.h.b16 %v230
    %v1429 = vunpack.c.l.b16 %v231
    %v1430 = vunpack.c.h.b16 %v231
    %v1431 = vunpack.c.l.b16 %v232
    %v1432 = vunpack.c.h.b16 %v232
    %v1433 = vunpack.c.l.b16 %v233
    %v1434 = vunpack.c.h.b16 %v233
    %v1435 = vunpack.c.l.b16 %v234
    %v1436 = vunpack.c.h.b16 %v234
    %v1437 = vunpack.c.l.b16 %v235
    %v1438 = vunpack.c.h.b16 %v235
    %v1439 = vunpack.c.l.b16 %v236
    %v1440 = vunpack.c.h.b16 %v236
    %v1441 = vunpack.c.l.b16 %v237
    %v1442 = vunpack.c.h.b16 %v237
    %v1443 = vunpack.c.l.b16 %v238
    %v1444 = vunpack.c.h.b16 %v238
    %v1445 = vunpack.c.l.b16 %v239
    %v1446 = vunpack.c.h.b16 %v239
    %v1447 = vunpack.c.l.b16 %v240
    %v1448 = vunpack.c.h.b16 %v240
    %v1449 = vunpack.c.l.b16 %v241
    %v1450 = vunpack.c.h.b16 %v241
    %v1451 = vunpack.c.l.b16 %v242
    %v1452 = vunpack.c.h.b16 %v242
    %v1453 = vunpack.c.l.b16 %v243
    %v1454 = vunpack.c.h.b16 %v243
    %v1455 = vunpack.c.l.b16 %v244
    %v1456 = vunpack.c.h.b16 %v244
    %v1457 = vunpack.c.l.b16 %v245
    %v1458 = vunpack.c.h.b16 %v245
    %v1459 = vunpack.c.l.b16 %v246
    %v1460 = vunpack.c.h.b16 %v246
    %v1461 = vunpack.c.l.b16 %v247
    %v1462 = vunpack.c.h.b16 %v247
    %v1463 = vunpack.c.l.b16 %v248
    %v1464 = vunpack.c.h.b16 %v248
    %v1465 = vunpack.c.l.b16 %v249
    %v1466 = vunpack.c.h.b16 %v249
    %v1467 = vunpack.c.l.b16 %v250
    %v1468 = vunpack.c.h.b16 %v250
    %v1469 = vunpack.c.l.b16 %v251
    %v1470 = vunpack.c.h.b16 %v251
    %v1471 = vunpack.c.l.b16 %v252
    %v1472 = vunpack.c.h.b16 %v252
    %v1473 = vunpack.c.l.b16 %v253
    %v1474 = vunpack.c.h.b16 %v253
    %v1475 = vunpack.c.l.b16 %v254
    %v1476 = vunpack.c.h.b16 %v254
    %v1477 = vunpack.c.l.b16 %v255
    %v1478 = vunpack.c.h.b16 %v255
    %v1479 = vunpack.c.l.b16 %v256
    %v1480 = vunpack.c.h.b16 %v256
    %v1481 = vunpack.c.l.b16 %v257
    %v1482 = vunpack.c.h.b16 %v257
    %v1483 = vunpack.c.l.b16 %v258
    %v1484 = vunpack.c.h.b16 %v258
    %v1485 = vunpack.c.l.b16 %v259
    %v1486 = vunpack.c.h.b16 %v259
    %v1487 = vunpack.c.l.b16 %v260
    %v1488 = vunpack.c.h.b16 %v260
    %v1489 = vunpack.c.l.b16 %v261
    %v1490 = vunpack.c.h.b16 %v261
    %v1491 = vunpack.c.l.b16 %v262
    %v1492 = vunpack.c.h.b16 %v262
    %v1493 = vunpack.c.l.b16 %v263
    %v1494 = vunpack.c.h.b16 %v263
    %v1495 = vunpack.c.l.b16 %v264
    %v1496 = vunpack.c.h.b16 %v264
    %v1497 = vunpack.c.l.b16 %v265
    %v1498 = vunpack.c.h.b16 %v265
    %v1499 = vunpack.c.l.b16 %v266
    %v1500 = vunpack.c.h.b16 %v266
    %v1501 = vunpack.c.l.b16 %v267
    %v1502 = vunpack.c.h.b16 %v267
    %v1503 = vunpack.c.l.b16 %v268
    %v1504 = vunpack.c.h.b16 %v268
    %v1505 = vunpack.c.l.b16 %v269
    %v1506 = vunpack.c.h.b16 %v269
    %v1507 = vunpack.c.l.b16 %v270
    %v1508 = vunpack.c.h.b16 %v270
    %v1509 = vunpack.c.l.b16 %v271
    %v1510 = vunpack.c.h.b16 %v271
    %v1511 = vunpack.c.l.b16 %v272
    %v1512 = vunpack.c.h.b16 %v272
    %v1513 = vunpack.c.l.b16 %v273
    %v1514 = vunpack.c.h.b16 %v273
    %v1515 = vunpack.c.l.b16 %v274
    %v1516 = vunpack.c.h.b16 %v274
    %v1517 = vunpack.c.l.b16 %v275
    %v1518 = vunpack.c.h.b16 %v275
    %v1519 = vunpack.c.l.b16 %v276
    %v1520 = vunpack.c.h.b16 %v276
    %v1521 = vunpack.c.l.b16 %v277
    %v1522 = vunpack.c.h.b16 %v277
    %v1523 = vunpack.c.l.b16 %v278
    %v1524 = vunpack.c.h.b16 %v278
    %v1525 = vunpack.c.l.b16 %v279
    %v1526 = vunpack.c.h.b16 %v279
    %v1527 = vunpack.c.l.b16 %v280
    %v1528 = vunpack.c.h.b16 %v280
    %v1529 = vunpack.c.l.b16 %v281
    %v1530 = vunpack.c.h.b16 %v281
    %v1531 = vunpack.c.l.b16 %v282
    %v1532 = vunpack.c.h.b16 %v282
    %v1533 = vunpack.c.l.b16 %v283
    %v1534 = vunpack.c.h.b16 %v283
    %v1535 = vunpack.c.l.b16 %v284
    %v1536 = vunpack.c.h.b16 %v284
    %v1537 = vunpack.c.l.b16 %v285
    %v1538 = vunpack.c.h.b16 %v285
    %v1539 = vunpack.c.l.b16 %v286
    %v1540 = vunpack.c.h.b16 %v286
    %v1541 = vunpack.c.l.b16 %v287
    %v1542 = vunpack.c.h.b16 %v287
    %v1543 = vunpack.c.l.b16 %v288
    %v1544 = vunpack.c.h.b16 %v288
    %v1545 = vunpack.c.l.b16 %v289
    %v1546 = vunpack.c.h.b16 %v289
    %v1547 = vunpack.c.l.b16 %v290
    %v1548 = vunpack.c.h.b16 %v290
    %v1549 = vunpack.c.l.b16 %v291
    %v1550 = vunpack.c.h.b16 %v291
    %v1551 = vunpack.c.l.b16 %v292
    %v1552 = vunpack.c.h.b16 %v292
    %v1553 = vunpack.c.l.b16 %v293
    %v1554 = vunpack.c.h.b16 %v293
    %v1555 = vunpack.c.l.b16 %v294
    %v1556 = vunpack.c.h.b16 %v294
    %v1557 = vunpack.c.l.b16 %v295
    %v1558 = vunpack.c.h.b16 %v295
    %v1559 = vunpack.c.l.b16 %v296
    %v1560 = vunpack.c.h.b16 %v296
    %v1561 = vunpack.c.l.b16 %v297
    %v1562 = vunpack.c.h.b16 %v297
    %v1563 = vunpack.c.l.b16 %v298
    %v1564 = vunpack.c.h.b16 %v298
    %v1565 = vunpack.c.l.b16 %v299
    %v1566 = vunpack.c.h.b16 %v299
    %v1567 = vunpack.c.l.b16 %v300
    %v1568 = vunpack.c.h.b16 %v300
    %v1569 = vunpack.c.l.b16 %v301
    %v1570 = vunpack.c.h.b16 %v301
    %v1571 = vunpack.c.l.b16 %v302
    %v1572 = vunpack.c.h.b16 %v302
    %v1573 = vunpack.c.l.b16 %v303
    %v1574 = vunpack.c.h.b16 %v303
    %v1575 = vunpack.c.l.b16 %v304
    %v1576 = vunpack.c.h.b16 %v304
    %v1577 = vunpack.c.l.b16 %v305
    %v1578 = vunpack.c.h.b16 %v305
    %v1579 = vunpack.c.l.b16 %v306
    %v1580 = vunpack.c.h.b16 %v306
    %v1581 = vunpack.c.l.b16 %v307
    %v1582 = vunpack.c.h.b16 %v307
    %v1583 = vunpack.c.l.b16 %v308
    %v1584 = vunpack.c.h.b16 %v308
    %v1585 = vunpack.c.l.b16 %v309
    %v1586 = vunpack.c.h.b16 %v309
    %v1587 = vunpack.c.l.b16 %v310
    %v1588 = vunpack.c.h.b16 %v310
    %v1589 = vunpack.c.l.b16 %v311
    %v1590 = vunpack.c.h.b16 %v311
    %v1591 = vunpack.c.l.b16 %v312
    %v1592 = vunpack.c.h.b16 %v312
    %v1593 = vunpack.c.l.b16 %v313
    %v1594 = vunpack.c.h.b16 %v313
    %v1595 = vunpack.c.l.b16 %v314
    %v1596 = vunpack.c.h.b16 %v314
    %v1597 = vunpack.c.l.b16 %v315
    %v1598 = vunpack.c.h.b16 %v315
    %v1599 = vunpack.c.l.b16 %v316
    %v1600 = vunpack.c.h.b16 %v316
    %v1601 = vunpack.c.l.b16 %v317
    %v1602 = vunpack.c.h.b16 %v317
    %v1603 = vunpack.c.l.b16 %v318
    %v1604 = vunpack.c.h.b16 %v318
    %v1605 = vunpack.c.l.b16 %v319
    %v1606 = vunpack.c.h.b16 %v319
    %v1607 = vunpack.c.l.b16 %v320
    %v1608 = vunpack.c.h.b16 %v320
    %v1609 = vunpack.c.l.b16 %v321
    %v1610 = vunpack.c.h.b16 %v321
    %v1611 = vunpack.c.l.b16 %v322
    %v1612 = vunpack.c.h.b16 %v322
    %v1613 = vunpack.c.l.b16 %v323
    %v1614 = vunpack.c.h.b16 %v323
    %v1615 = vunpack.c.l.b16 %v324
    %v1616 = vunpack.c.h.b16 %v324
    %v1617 = vunpack.c.l.b16 %v325
    %v1618 = vunpack.c.h.b16 %v325
    %v1619 = vunpack.c.l.b16 %v326
    %v1620 = vunpack.c.h.b16 %v326
    %v1621 = vunpack.c.l.b16 %v327
    %v1622 = vunpack.c.h.b16 %v327
    %v1623 = vunpack.c.l.b16 %v328
    %v1624 = vunpack.c.h.b16 %v328
    %v1625 = vunpack.c.l.b16 %v329
    %v1626 = vunpack.c.h.b16 %v329
    %v1627 = vunpack.c.l.b16 %v330
    %v1628 = vunpack.c.h.b16 %v330
    %v1629 = vunpack.c.l.b16 %v331
    %v1630 = vunpack.c.h.b16 %v331
    %v1631 = vunpack.c.l.b16 %v332
    %v1632 = vunpack.c.h.b16 %v332
    %v1633 = vunpack.c.l.b16 %v333
    %v1634 = vunpack.c.h.b16 %v333
    %v1635 = vunpack.c.l.b16 %v334
    %v1636 = vunpack.c.h.b16 %v334
    %v1637 = vunpack.c.l.b16 %v335
    %v1638 = vunpack.c.h.b16 %v335
    %v1639 = vunpack.c.l.b16 %v336
    %v1640 = vunpack.c.h.b16 %v336
    %v1641 = vunpack.c.l.b16 %v337
    %v1642 = vunpack.c.h.b16 %v337
    %v1643 = vunpack.c.l.b16 %v338
    %v1644 = vunpack.c.h.b16 %v338
    %v1645 = vunpack.c.l.b16 %v339
    %v1646 = vunpack.c.h.b16 %v339
    %v1647 = vunpack.c.l.b16 %v340
    %v1648 = vunpack.c.h.b16 %v340
    %v1649 = vunpack.c.l.b16 %v341
    %v1650 = vunpack.c.h.b16 %v341
    %v1651 = vunpack.c.l.b16 %v342
    %v1652 = vunpack.c.h.b16 %v342
    %v1653 = vunpack.c.l.b16 %v343
    %v1654 = vunpack.c.h.b16 %v343
    %v1655 = vunpack.c.l.b16 %v344
    %v1656 = vunpack.c.h.b16 %v344
    %v1657 = vunpack.c.l.b16 %v345
    %v1658 = vunpack.c.h.b16 %v345
    %v1659 = vunpack.c.l.b16 %v346
    %v1660 = vunpack.c.h.b16 %v346
    %v1661 = vunpack.c.l.b16 %v347
    %v1662 = vunpack.c.h.b16 %v347
    %v1663 = vunpack.c.l.b16 %v348
    %v1664 = vunpack.c.h.b16 %v348
    %v1665 = vunpack.c.l.b16 %v349
    %v1666 = vunpack.c.h.b16 %v349
    %v1667 = vunpack.c.l.b16 %v350
    %v1668 = vunpack.c.h.b16 %v350
    %v1669 = vunpack.c.l.b16 %v351
    %v1670 = vunpack.c.h.b16 %v351
    %v1671 = vunpack.c.l.b16 %v352
    %v1672 = vunpack.c.h.b16 %v352
    %v1673 = vunpack.c.l.b16 %v353
    %v1674 = vunpack.c.h.b16 %v353
    %v1675 = vunpack.c.l.b16 %v354
    %v1676 = vunpack.c.h.b16 %v354
    %v1677 = vunpack.c.l.b16 %v355
    %v1678 = vunpack.c.h.b16 %v355
    %v1679 = vunpack.c.l.b16 %v356
    %v1680 = vunpack.c.h.b16 %v356
    %v1681 = vunpack.c.l.b16 %v357
    %v1682 = vunpack.c.h.b16 %v357
    %v1683 = vunpack.c.l.b16 %v358
    %v1684 = vunpack.c.h.b16 %v358
    %v1685 = vunpack.c.l.b16 %v359
    %v1686 = vunpack.c.h.b16 %v359
    %v1687 = vunpack.c.l.b16 %v360
    %v1688 = vunpack.c.h.b16 %v360
    %v1689 = vunpack.c.l.b16 %v361
    %v1690 = vunpack.c.h.b16 %v361
    %v1691 = vunpack.c.l.b16 %v362
    %v1692 = vunpack.c.h.b16 %v362
    %v1693 = vunpack.c.l.b16 %v363
    %v1694 = vunpack.c.h.b16 %v363
    %v1695 = vunpack.c.l.b16 %v364
    %v1696 = vunpack.c.h.b16 %v364
    %v1697 = vunpack.c.l.b16 %v365
    %v1698 = vunpack.c.h.b16 %v365
    %v1699 = vunpack.c.l.b16 %v366
    %v1700 = vunpack.c.h.b16 %v366
    %v1701 = vunpack.c.l.b16 %v367
    %v1702 = vunpack.c.h.b16 %v367
    %v1703 = vunpack.c.l.b16 %v368
    %v1704 = vunpack.c.h.b16 %v368
    %v1705 = vunpack.c.l.b16 %v369
    %v1706 = vunpack.c.h.b16 %v369
    %v1707 = vunpack.c.l.b16 %v370
    %v1708 = vunpack.c.h.b16 %v370
    %v1709 = vunpack.c.l.b16 %v371
    %v1710 = vunpack.c.h.b16 %v371
    %v1711 = vunpack.c.l.b16 %v372
    %v1712 = vunpack.c.h.b16 %v372
    %v1713 = vunpack.c.l.b16 %v373
    %v1714 = vunpack.c.h.b16 %v373
    %v1715 = vunpack.c.l.b16 %v374
    %v1716 = vunpack.c.h.b16 %v374
    %v1717 = vunpack.c.l.b16 %v375
    %v1718 = vunpack.c.h.b16 %v375
    %v1719 = vunpack.c.l.b16 %v376
    %v1720 = vunpack.c.h.b16 %v376
    %v1721 = vunpack.c.l.b16 %v377
    %v1722 = vunpack.c.h.b16 %v377
    %v1723 = vunpack.c.l.b16 %v378
    %v1724 = vunpack.c.h.b16 %v378
    %v1725 = vunpack.c.l.b16 %v379
    %v1726 = vunpack.c.h.b16 %v379
    %v1727 = vunpack.c.l.b16 %v380
    %v1728 = vunpack.c.h.b16 %v380
    %v1729 = vunpack.c.l.b16 %v381
    %v1730 = vunpack.c.h.b16 %v381
    %v1731 = vunpack.c.l.b16 %v382
    %v1732 = vunpack.c.h.b16 %v382
    %v1733 = vunpack.c.l.b16 %v383
    %v1734 = vunpack.c.h.b16 %v383
    %v1735 = vunpack.c.l.b16 %v384
    %v1736 = vunpack.c.h.b16 %v384
    %v1737 = vunpack.c.l.b16 %v385
    %v1738 = vunpack.c.h.b16 %v385
    %v1739 = vunpack.c.l.b16 %v386
    %v1740 = vunpack.c.h.b16 %v386
    %v1741 = vunpack.c.l.b16 %v387
    %v1742 = vunpack.c.h.b16 %v387
    %v1743 = vunpack.c.l.b16 %v388
    %v1744 = vunpack.c.h.b16 %v388
    %v1745 = vunpack.c.l.b16 %v389
    %v1746 = vunpack.c.h.b16 %v389
    %v1747 = vunpack.c.l.b16 %v390
    %v1748 = vunpack.c.h.b16 %v390
    %v1749 = vunpack.c.l.b16 %v391
    %v1750 = vunpack.c.h.b16 %v391
    %v1751 = vunpack.c.l.b16 %v392
    %v1752 = vunpack.c.h.b16 %v392
    %v1753 = vunpack.c.l.b16 %v393
    %v1754 = vunpack.c.h.b16 %v393
    %v1755 = vunpack.c.l.b16 %v394
    %v1756 = vunpack.c.h.b16 %v394
    %v1757 = vunpack.c.l.b16 %v395
    %v1758 = vunpack.c.h.b16 %v395
    %v1759 = vunpack.c.l.b16 %v396
    %v1760 = vunpack.c.h.b16 %v396
    %v1761 = vunpack.c.l.b16 %v397
    %v1762 = vunpack.c.h.b16 %v397
    %v1763 = vunpack.c.l.b16 %v398
    %v1764 = vunpack.c.h.b16 %v398
    %v1765 = vunpack.c.l.b16 %v399
    %v1766 = vunpack.c.h.b16 %v399
    %v1767 = vunpack.c.l.b16 %v400
    %v1768 = vunpack.c.h.b16 %v400
    %v1769 = vunpack.c.l.b16 %v401
    %v1770 = vunpack.c.h.b16 %v401
    %v1771 = vunpack.c.l.b16 %v402
    %v1772 = vunpack.c.h.b16 %v402
    %v1773 = vunpack.c.l.b16 %v403
    %v1774 = vunpack.c.h.b16 %v403
    %v1775 = vunpack.c.l.b16 %v404
    %v1776 = vunpack.c.h.b16 %v404
    %v1777 = vunpack.c.l.b16 %v405
    %v1778 = vunpack.c.h.b16 %v405
    %v1779 = vunpack.c.l.b16 %v406
    %v1780 = vunpack.c.h.b16 %v406
    %v1781 = vunpack.c.l.b16 %v407
    %v1782 = vunpack.c.h.b16 %v407
    %v1783 = vunpack.c.l.b16 %v408
    %v1784 = vunpack.c.h.b16 %v408
    %v1785 = vunpack.c.l.b16 %v409
    %v1786 = vunpack.c.h.b16 %v409
    %v1787 = vunpack.c.l.b16 %v410
    %v1788 = vunpack.c.h.b16 %v410
    %v1789 = vunpack.c.l.b16 %v411
    %v1790 = vunpack.c.h.b16 %v411
    %v1791 = vunpack.c.l.b16 %v412
    %v1792 = vunpack.c.h.b16 %v412
    %v1793 = vunpack.c.l.b16 %v413
    %v1794 = vunpack.c.h.b16 %v413
    %v1795 = vunpack.c.l.b16 %v414
    %v1796 = vunpack.c.h.b16 %v414
    %v1797 = vunpack.c.l.b16 %v415
    %v1798 = vunpack.c.h.b16 %v415
    %v1799 = vunpack.c.l.b16 %v416
    %v1800 = vunpack.c.h.b16 %v416
    %v1801 = vunpack.c.l.b16 %v417
    %v1802 = vunpack.c.h.b16 %v417
    %v1803 = vunpack.c.l.b16 %v418
    %v1804 = vunpack.c.h.b16 %v418
    %v1805 = vunpack.c.l.b16 %v419
    %v1806 = vunpack.c.h.b16 %v419
    %v1807 = vunpack.c.l.b16 %v420
    %v1808 = vunpack.c.h.b16 %v420
    %v1809 = vunpack.c.l.b16 %v421
    %v1810 = vunpack.c.h.b16 %v421
    %v1811 = vunpack.c.l.b16 %v422
    %v1812 = vunpack.c.h.b16 %v422
    %v1813 = vunpack.c.l.b16 %v423
    %v1814 = vunpack.c.h.b16 %v423
    %v1815 = vunpack.c.l.b16 %v424
    %v1816 = vunpack.c.h.b16 %v424
    %v1817 = vunpack.c.l.b16 %v425
    %v1818 = vunpack.c.h.b16 %v425
    %v1819 = vunpack.c.l.b16 %v426
    %v1820 = vunpack.c.h.b16 %v426
    %v1821 = vunpack.c.l.b16 %v427
    %v1822 = vunpack.c.h.b16 %v427
    %v1823 = vunpack.c.l.b16 %v428
    %v1824 = vunpack.c.h.b16 %v428
    %v1825 = vunpack.c.l.b16 %v429
    %v1826 = vunpack.c.h.b16 %v429
    %v1827 = vunpack.c.l.b16 %v430
    %v1828 = vunpack.c.h.b16 %v430
    %v1829 = vunpack.c.l.b16 %v431
    %v1830 = vunpack.c.h.b16 %v431
    %v1831 = vunpack.c.l.b16 %v432
    %v1832 = vunpack.c.h.b16 %v432
    %v1833 = vunpack.c.l.b16 %v433
    %v1834 = vunpack.c.h.b16 %v433
    %v1835 = vunpack.c.l.b16 %v434
    %v1836 = vunpack.c.h.b16 %v434
    %v1837 = vunpack.c.l.b16 %v435
    %v1838 = vunpack.c.h.b16 %v435
    %v1839 = vunpack.c.l.b16 %v436
    %v1840 = vunpack.c.h.b16 %v436
    %v1841 = vunpack.c.l.b16 %v437
    %v1842 = vunpack.c.h.b16 %v437
    %v1843 = vunpack.c.l.b16 %v438
    %v1844 = vunpack.c.h.b16 %v438
    %v1845 = vunpack.c.l.b16 %v439
    %v1846 = vunpack.c.h.b16 %v439
    %v1847 = vunpack.c.l.b16 %v440
    %v1848 = vunpack.c.h.b16 %v440
    %v1849 = vunpack.c.l.b16 %v441
    %v1850 = vunpack.c.h.b16 %v441
    %v1851 = vunpack.c.l.b16 %v442
    %v1852 = vunpack.c.h.b16 %v442
    %v1853 = vunpack.c.l.b16 %v443
    %v1854 = vunpack.c.h.b16 %v443
    %v1855 = vunpack.c.l.b16 %v444
    %v1856 = vunpack.c.h.b16 %v444
    %v1857 = vunpack.c.l.b16 %v445
    %v1858 = vunpack.c.h.b16 %v445
    %v1859 = vunpack.c.l.b16 %v446
    %v1860 = vunpack.c.h.b16 %v446
    %v1861 = vunpack.c.l.b16 %v447
    %v1862 = vunpack.c.h.b16 %v447
    %v1863 = vunpack.c.l.b16 %v448
    %v1864 = vunpack.c.h.b16 %v448
    %v1865 = vunpack.c.l.b16 %v449
    %v1866 = vunpack.c.h.b16 %v449
    %v1867 = vunpack.c.l.b16 %v450
    %v1868 = vunpack.c.h.b16 %v450
    %v1869 = vunpack.c.l.b16 %v451
    %v1870 = vunpack.c.h.b16 %v451
    %v1871 = vunpack.c.l.b16 %v452
    %v1872 = vunpack.c.h.b16 %v452
    %v1873 = vunpack.c.l.b16 %v453
    %v1874 = vunpack.c.h.b16 %v453
    %v1875 = vunpack.c.l.b16 %v454
    %v1876 = vunpack.c.h.b16 %v454
    %v1877 = vunpack.c.l.b16 %v455
    %v1878 = vunpack.c.h.b16 %v455
    %v1879 = vunpack.c.l.b16 %v456
    %v1880 = vunpack.c.h.b16 %v456
    %v1881 = vunpack.c.l.b16 %v457
    %v1882 = vunpack.c.h.b16 %v457
    %v1883 = vunpack.c.l.b16 %v458
    %v1884 = vunpack.c.h.b16 %v458
    %v1885 = vunpack.c.l.b16 %v459
    %v1886 = vunpack.c.h.b16 %v459
    %v1887 = vunpack.c.l.b16 %v460
    %v1888 = vunpack.c.h.b16 %v460
    %v1889 = vunpack.c.l.b16 %v461
    %v1890 = vunpack.c.h.b16 %v461
    %v1891 = vunpack.c.l.b16 %v462
    %v1892 = vunpack.c.h.b16 %v462
    %v1893 = vunpack.c.l.b16 %v463
    %v1894 = vunpack.c.h.b16 %v463
    %v1895 = vunpack.c.l.b16 %v464
    %v1896 = vunpack.c.h.b16 %v464
    %v1897 = vunpack.c.l.b16 %v465
    %v1898 = vunpack.c.h.b16 %v465
    %v1899 = vunpack.c.l.b16 %v466
    %v1900 = vunpack.c.h.b16 %v466
    %v1901 = vunpack.c.l.b16 %v467
    %v1902 = vunpack.c.h.b16 %v467
    %v1903 = vunpack.c.l.b16 %v468
    %v1904 = vunpack.c.h.b16 %v468
    %v1905 = vunpack.c.l.b16 %v469
    %v1906 = vunpack.c.h.b16 %v469
    %v1907 = vunpack.c.l.b16 %v470
    %v1908 = vunpack.c.h.b16 %v470
    %v1909 = vunpack.c.l.b16 %v471
    %v1910 = vunpack.c.h.b16 %v471
    %v1911 = vunpack.c.l.b16 %v472
    %v1912 = vunpack.c.h.b16 %v472
    %v1913 = vunpack.c.l.b16 %v473
    %v1914 = vunpack.c.h.b16 %v473
    %v1915 = vunpack.c.l.b16 %v474
    %v1916 = vunpack.c.h.b16 %v474
    %v1917 = vunpack.c.l.b16 %v475
    %v1918 = vunpack.c.h.b16 %v475
    %v1919 = vunpack.c.l.b16 %v476
    %v1920 = vunpack.c.h.b16 %v476
    %v1921 = vunpack.c.l.b16 %v477
    %v1922 = vunpack.c.h.b16 %v477
    %v1923 = vunpack.c.l.b16 %v478
    %v1924 = vunpack.c.h.b16 %v478
    %v1925 = vunpack.c.l.b16 %v479
    %v1926 = vunpack.c.h.b16 %v479
    %v1927 = vunpack.c.l.b16 %v480
    %v1928 = vunpack.c.h.b16 %v480
    %v1929 = vunpack.c.l.b16 %v481
    %v1930 = vunpack.c.h.b16 %v481
    %v1931 = vunpack.c.l.b16 %v482
    %v1932 = vunpack.c.h.b16 %v482
    %v1933 = vunpack.c.l.b16 %v483
    %v1934 = vunpack.c.h.b16 %v483
    %v1935 = vunpack.c.l.b16 %v484
    %v1936 = vunpack.c.h.b16 %v484
    %v1937 = vunpack.c.l.b16 %v485
    %v1938 = vunpack.c.h.b16 %v485
    %v1939 = vunpack.c.l.b16 %v486
    %v1940 = vunpack.c.h.b16 %v486
    %v1941 = vunpack.c.l.b16 %v487
    %v1942 = vunpack.c.h.b16 %v487
    %v1943 = vunpack.c.l.b16 %v488
    %v1944 = vunpack.c.h.b16 %v488
    %v1945 = vunpack.c.l.b16 %v489
    %v1946 = vunpack.c.h.b16 %v489
    %v1947 = vunpack.c.l.b16 %v490
    %v1948 = vunpack.c.h.b16 %v490
    %v1949 = vunpack.c.l.b16 %v491
    %v1950 = vunpack.c.h.b16 %v491
    %v1951 = vunpack.c.l.b16 %v492
    %v1952 = vunpack.c.h.b16 %v492
    %v1953 = vunpack.c.l.b16 %v493
    %v1954 = vunpack.c.h.b16 %v493
    %v1955 = vunpack.c.l.b16 %v494
    %v1956 = vunpack.c.h.b16 %v494
    %v1957 = vunpack.c.l.b16 %v495
    %v1958 = vunpack.c.h.b16 %v495
    %v1959 = vunpack.c.l.b16 %v496
    %v1960 = vunpack.c.h.b16 %v496
    %v1961 = vunpack.c.l.b16 %v497
    %v1962 = vunpack.c.h.b16 %v497
    %v1963 = vunpack.c.l.b16 %v498
    %v1964 = vunpack.c.h.b16 %v498
    %v1965 = vunpack.c.l.b16 %v499
    %v1966 = vunpack.c.h.b16 %v499
    %v1967 = vunpack.c.l.b16 %v500
    %v1968 = vunpack.c.h.b16 %v500
    %v1969 = vunpack.c.l.b16 %v501
    %v1970 = vunpack.c.h.b16 %v501
    %v1971 = vunpack.c.l.b16 %v502
    %v1972 = vunpack.c.h.b16 %v502
    %v1973 = vunpack.c.l.b16 %v503
    %v1974 = vunpack.c.h.b16 %v503
    %v1975 = vunpack.c.l.b16 %v504
    %v1976 = vunpack.c.h.b16 %v504
    %v1977 = vunpack.c.l.b16 %v505
    %v1978 = vunpack.c.h.b16 %v505
    %v1979 = vunpack.c.l.b16 %v506
    %v1980 = vunpack.c.h.b16 %v506
    %v1981 = vunpack.c.l.b16 %v507
    %v1982 = vunpack.c.h.b16 %v507
    %v1983 = vunpack.c.l.b16 %v508
    %v1984 = vunpack.c.h.b16 %v508
    %v1985 = vunpack.c.l.b16 %v509
    %v1986 = vunpack.c.h.b16 %v509
    %v1987 = vunpack.c.l.b16 %v510
    %v1988 = vunpack.c.h.b16 %v510
    %v1989 = vunpack.c.l.b16 %v511
    %v1990 = vunpack.c.h.b16 %v511
    %v1991 = vunpack.c.l.b16 %v512
    %v1992 = vunpack.c.h.b16 %v512
    %v1993 = vunpack.c.l.b16 %v513
    %v1994 = vunpack.c.h.b16 %v513
    %v1995 = vunpack.c.l.b16 %v514
    %v1996 = vunpack.c.h.b16 %v514
    %v1997 = vunpack.c.l.b16 %v515
    %v1998 = vunpack.c.h.b16 %v515
    %v1999 = vunpack.c.l.b16 %v516
    %v2000 = vunpack.c.h.b16 %v516
    %v2001 = vunpack.c.l.b16 %v517
    %v2002 = vunpack.c.h.b16 %v517
    %v2003 = vunpack.c.l.b16 %v518
    %v2004 = vunpack.c.h.b16 %v518
    %v2005 = vunpack.c.l.b16 %v519
    %v2006 = vunpack.c.h.b16 %v519
    %v2007 = vunpack.c.l.b16 %v520
    %v2008 = vunpack.c.h.b16 %v520
    %v2009 = vunpack.c.l.b16 %v521
    %v2010 = vunpack.c.h.b16 %v521
    %v2011 = vunpack.c.l.b16 %v522
    %v2012 = vunpack.c.h.b16 %v522
    %v2013 = vunpack.c.l.b16 %v523
    %v2014 = vunpack.c.h.b16 %v523
    %v2015 = vunpack.c.l.b16 %v524
    %v2016 = vunpack.c.h.b16 %v524
    %v2017 = vunpack.c.l.b16 %v525
    %v2018 = vunpack.c.h.b16 %v525
    %v2019 = vunpack.c.l.b16 %v526
    %v2020 = vunpack.c.h.b16 %v526
    %v2021 = vunpack.c.l.b16 %v527
    %v2022 = vunpack.c.h.b16 %v527
    %v2023 = vunpack.c.l.b16 %v528
    %v2024 = vunpack.c.h.b16 %v528
    %v2025 = vunpack.c.l.b16 %v529
    %v2026 = vunpack.c.h.b16 %v529
    %v2027 = vunpack.c.l.b16 %v530
    %v2028 = vunpack.c.h.b16 %v530
    %v2029 = vunpack.c.l.b16 %v531
    %v2030 = vunpack.c.h.b16 %v531
    %v2031 = vunpack.c.l.b16 %v532
    %v2032 = vunpack.c.h.b16 %v532
    %v2033 = vunpack.c.l.b16 %v533
    %v2034 = vunpack.c.h.b16 %v533
    %v2035 = vunpack.c.l.b16 %v534
    %v2036 = vunpack.c.h.b16 %v534
    %v2037 = vunpack.c.l.b16 %v535
    %v2038 = vunpack.c.h.b16 %v535
    %v2039 = vunpack.c.l.b16 %v536
    %v2040 = vunpack.c.h.b16 %v536
    %v2041 = vunpack.c.l.b16 %v537
    %v2042 = vunpack.c.h.b16 %v537
    %v2043 = vunpack.c.l.b16 %v538
    %v2044 = vunpack.c.h.b16 %v538
    %v2045 = vunpack.c.l.b16 %v539
    %v2046 = vunpack.c.h.b16 %v539
    %v2047 = vunpack.c.l.b16 %v540
    %v2048 = vunpack.c.h.b16 %v540
    %v2049 = vunpack.c.l.b16 %v541
    %v2050 = vunpack.c.h.b16 %v541
    %v2051 = vunpack.c.l.b16 %v542
    %v2052 = vunpack.c.h.b16 %v542
    %v2053 = vunpack.c.l.b16 %v543
    %v2054 = vunpack.c.h.b16 %v543
    %v2055 = vunpack.c.l.b16 %v544
    %v2056 = vunpack.c.h.b16 %v544
    %v2057 = vunpack.c.l.b16 %v545
    %v2058 = vunpack.c.h.b16 %v545
    %v2059 = vunpack.c.l.b16 %v546
    %v2060 = vunpack.c.h.b16 %v546
    %v2061 = vunpack.c.l.b16 %v547
    %v2062 = vunpack.c.h.b16 %v547
    %v2063 = vunpack.c.l.b16 %v548
    %v2064 = vunpack.c.h.b16 %v548
    %v2065 = vunpack.c.l.b16 %v549
    %v2066 = vunpack.c.h.b16 %v549
    %v2067 = vunpack.c.l.b16 %v550
    %v2068 = vunpack.c.h.b16 %v550
    %v2069 = vunpack.c.l.b16 %v551
    %v2070 = vunpack.c.h.b16 %v551
    %v2071 = vunpack.c.l.b16 %v552
    %v2072 = vunpack.c.h.b16 %v552
    %v2073 = vunpack.c.l.b16 %v553
    %v2074 = vunpack.c.h.b16 %v553
    %v2075 = vunpack.c.l.b16 %v554
    %v2076 = vunpack.c.h.b16 %v554
    %v2077 = vunpack.c.l.b16 %v555
    %v2078 = vunpack.c.h.b16 %v555
    %v2079 = vunpack.c.l.b16 %v556
    %v2080 = vunpack.c.h.b16 %v556
    %v2081 = vunpack.c.l.b16 %v557
    %v2082 = vunpack.c.h.b16 %v557
    %v2083 = vunpack.c.l.b16 %v558
    %v2084 = vunpack.c.h.b16 %v558
    %v2085 = vunpack.c.l.b16 %v559
    %v2086 = vunpack.c.h.b16 %v559
    %v2087 = vunpack.c.l.b16 %v560
    %v2088 = vunpack.c.h.b16 %v560
    %v2089 = vunpack.c.l.b16 %v561
    %v2090 = vunpack.c.h.b16 %v561
    %v2091 = vunpack.c.l.b16 %v562
    %v2092 = vunpack.c.h.b16 %v562
    %v2093 = vunpack.c.l.b16 %v563
    %v2094 = vunpack.c.h.b16 %v563
    %v2095 = vunpack.c.l.b16 %v564
    %v2096 = vunpack.c.h.b16 %v564
    %v2097 = vunpack.c.l.b16 %v565
    %v2098 = vunpack.c.h.b16 %v565
    %v2099 = vunpack.c.l.b16 %v566
    %v2100 = vunpack.c.h.b16 %v566
    %v2101 = vunpack.c.l.b16 %v567
    %v2102 = vunpack.c.h.b16 %v567
    %v2103 = vunpack.c.l.b16 %v568
    %v2104 = vunpack.c.h.b16 %v568
    %v2105 = vunpack.c.l.b16 %v569
    %v2106 = vunpack.c.h.b16 %v569
    %v2107 = vunpack.c.l.b16 %v570
    %v2108 = vunpack.c.h.b16 %v570
    %v2109 = vunpack.c.l.b16 %v571
    %v2110 = vunpack.c.h.b16 %v571
    %v2111 = vunpack.c.l.b16 %v572
    %v2112 = vunpack.c.h.b16 %v572
    %v2113 = vunpack.c.l.b16 %v573
    %v2114 = vunpack.c.h.b16 %v573
    %v2115 = vunpack.c.l.b16 %v574
    %v2116 = vunpack.c.h.b16 %v574
    %v2117 = vunpack.c.l.b16 %v575
    %v2118 = vunpack.c.h.b16 %v575
    %v2119 = vunpack.c.l.b16 %v576
    %v2120 = vunpack.c.h.b16 %v576
    %v2121 = vunpack.c.l.b16 %v577
    %v2122 = vunpack.c.h.b16 %v577
    %v2123 = vunpack.c.l.b16 %v578
    %v2124 = vunpack.c.h.b16 %v578
    %v2125 = vunpack.c.l.b16 %v579
    %v2126 = vunpack.c.h.b16 %v579
    %v2127 = vunpack.c.l.b16 %v580
    %v2128 = vunpack.c.h.b16 %v580
    %v2129 = vunpack.c.l.b16 %v581
    %v2130 = vunpack.c.h.b16 %v581
    %v2131 = vunpack.c.l.b16 %v582
    %v2132 = vunpack.c.h.b16 %v582
    %v2133 = vunpack.c.l.b16 %v583
    %v2134 = vunpack.c.h.b16 %v583
    %v2135 = vunpack.c.l.b16 %v584
    %v2136 = vunpack.c.h.b16 %v584
    %v2137 = vunpack.c.l.b16 %v585
    %v2138 = vunpack.c.h.b16 %v585
    %v2139 = vunpack.c.l.b16 %v586
    %v2140 = vunpack.c.h.b16 %v586
    %v2141 = vunpack.c.l.b16 %v587
    %v2142 = vunpack.c.h.b16 %v587
    %v2143 = vunpack.c.l.b16 %v588
    %v2144 = vunpack.c.h.b16 %v588
    %v2145 = vunpack.c.l.b16 %v589
    %v2146 = vunpack.c.h.b16 %v589
    %v2147 = vunpack.c.l.b16 %v590
    %v2148 = vunpack.c.h.b16 %v590
    %v2149 = vunpack.c.l.b16 %v591
    %v2150 = vunpack.c.h.b16 %v591
    %v2151 = vunpack.c.l.b16 %v592
    %v2152 = vunpack.c.h.b16 %v592
    %v2153 = vunpack.c.l.b16 %v593
    %v2154 = vunpack.c.h.b16 %v593
    %v2155 = vunpack.c.l.b16 %v594
    %v2156 = vunpack.c.h.b16 %v594
    %v2157 = vunpack.c.l.b16 %v595
    %v2158 = vunpack.c.h.b16 %v595
    %v2159 = vunpack.c.l.b16 %v596
    %v2160 = vunpack.c.h.b16 %v596
    %v2161 = vunpack.c.l.b16 %v597
    %v2162 = vunpack.c.h.b16 %v597
    %v2163 = vunpack.c.l.b16 %v598
    %v2164 = vunpack.c.h.b16 %v598
    %v2165 = vunpack.c.l.b16 %v599
    %v2166 = vunpack.c.h.b16 %v599
    %v2167 = vunpack.c.l.b16 %v600
    %v2168 = vunpack.c.h.b16 %v600
    %v2169 = vunpack.c.l.b16 %v601
    %v2170 = vunpack.c.h.b16 %v601
    %v2171 = vunpack.c.l.b16 %v602
    %v2172 = vunpack.c.h.b16 %v602
    %v2173 = vunpack.c.l.b16 %v603
    %v2174 = vunpack.c.h.b16 %v603
    %v2175 = vunpack.c.l.b16 %v604
    %v2176 = vunpack.c.h.b16 %v604
    %v2177 = vunpack.c.l.b16 %v605
    %v2178 = vunpack.c.h.b16 %v605
    %v2179 = vunpack.c.l.b16 %v606
    %v2180 = vunpack.c.h.b16 %v606
    %v2181 = vunpack.c.l.b16 %v607
    %v2182 = vunpack.c.h.b16 %v607
    %v2183 = vunpack.c.l.b16 %v608
    %v2184 = vunpack.c.h.b16 %v608
    %v2185 = vunpack.c.l.b16 %v609
    %v2186 = vunpack.c.h.b16 %v609
    %v2187 = vunpack.c.l.b16 %v610
    %v2188 = vunpack.c.h.b16 %v610
    %v2189 = vunpack.c.l.b16 %v611
    %v2190 = vunpack.c.h.b16 %v611
    %v2191 = vunpack.c.l.b16 %v612
    %v2192 = vunpack.c.h.b16 %v612
    %v2193 = vunpack.c.l.b16 %v613
    %v2194 = vunpack.c.h.b16 %v613
    %v2195 = vunpack.c.l.b16 %v614
    %v2196 = vunpack.c.h.b16 %v614
    %v2197 = vunpack.c.l.b16 %v615
    %v2198 = vunpack.c.h.b16 %v615
    %v2199 = vunpack.c.l.b16 %v616
    %v2200 = vunpack.c.h.b16 %v616
    %v2201 = vunpack.c.l.b16 %v617
    %v2202 = vunpack.c.h.b16 %v617
    %v2203 = vunpack.c.l.b16 %v618
    %v2204 = vunpack.c.h.b16 %v618
    %v2205 = vunpack.c.l.b16 %v619
    %v2206 = vunpack.c.h.b16 %v619
    %v2207 = vunpack.c.l.b16 %v620
    %v2208 = vunpack.c.h.b16 %v620
    %v2209 = vunpack.c.l.b16 %v621
    %v2210 = vunpack.c.h.b16 %v621
    %v2211 = vunpack.c.l.b16 %v622
    %v2212 = vunpack.c.h.b16 %v622
    %v2213 = vunpack.c.l.b16 %v623
    %v2214 = vunpack.c.h.b16 %v623
    %v2215 = vunpack.c.l.b16 %v624
    %v2216 = vunpack.c.h.b16 %v624
    %v2217 = vunpack.c.l.b16 %v625
    %v2218 = vunpack.c.h.b16 %v625
    %v2219 = vunpack.c.l.b16 %v626
    %v2220 = vunpack.c.h.b16 %v626
    %v2221 = vpack.c.b16 %v1205, %v1197
    %v2222 = vpack.c.b16 %v1206, %v1198
    %v2223 = vpack.c.b16 %v1207, %v1199
    %v2224 = vpack.c.b16 %v1208, %v1200
    %v2225 = vpack.c.b16 %v1209, %v1201
    %v2226 = vpack.c.b16 %v1210, %v1202
    %v2227 = vpack.c.b16 %v1211, %v1203
    %v2228 = vpack.c.b16 %v1212, %v1204
    %v2229 = vpack.c.b16 %v1221, %v1213
    %v2230 = vpack.c.b16 %v1222, %v1214
    %v2231 = vpack.c.b16 %v1223, %v1215
    %v2232 = vpack.c.b16 %v1224, %v1216
    %v2233 = vpack.c.b16 %v1225, %v1217
    %v2234 = vpack.c.b16 %v1226, %v1218
    %v2235 = vpack.c.b16 %v1227, %v1219
    %v2236 = vpack.c.b16 %v1228, %v1220
    %v2237 = vpack.c.b16 %v1237, %v1229
    %v2238 = vpack.c.b16 %v1238, %v1230
    %v2239 = vpack.c.b16 %v1239, %v1231
    %v2240 = vpack.c.b16 %v1240, %v1232
    %v2241 = vpack.c.b16 %v1241, %v1233
    %v2242 = vpack.c.b16 %v1242, %v1234
    %v2243 = vpack.c.b16 %v1243, %v1235
    %v2244 = vpack.c.b16 %v1244, %v1236
    %v2245 = vpack.c.b16 %v1253, %v1245
    %v2246 = vpack.c.b16 %v1254, %v1246
    %v2247 = vpack.c.b16 %v1255, %v1247
    %v2248 = vpack.c.b16 %v1256, %v1248
    %v2249 = vpack.c.b16 %v1257, %v1249
    %v2250 = vpack.c.b16 %v1258, %v1250
    %v2251 = vpack.c.b16 %v1259, %v1251
    %v2252 = vpack.c.b16 %v1260, %v1252
    %v2253 = vpack.c.b16 %v1269, %v1261
    %v2254 = vpack.c.b16 %v1270, %v1262
    %v2255 = vpack.c.b16 %v1271, %v1263
    %v2256 = vpack.c.b16 %v1272, %v1264
    %v2257 = vpack.c.b16 %v1273, %v1265
    %v2258 = vpack.c.b16 %v1274, %v1266
    %v2259 = vpack.c.b16 %v1275, %v1267
    %v2260 = vpack.c.b16 %v1276, %v1268
    %v2261 = vpack.c.b16 %v1285, %v1277
    %v2262 = vpack.c.b16 %v1286, %v1278
    %v2263 = vpack.c.b16 %v1287, %v1279
    %v2264 = vpack.c.b16 %v1288, %v1280
    %v2265 = vpack.c.b16 %v1289, %v1281
    %v2266 = vpack.c.b16 %v1290, %v1282
    %v2267 = vpack.c.b16 %v1291, %v1283
    %v2268 = vpack.c.b16 %v1292, %v1284
    %v2269 = vpack.c.b16 %v1301, %v1293
    %v2270 = vpack.c.b16 %v1302, %v1294
    %v2271 = vpack.c.b16 %v1303, %v1295
    %v2272 = vpack.c.b16 %v1304, %v1296
    %v2273 = vpack.c.b16 %v1305, %v1297
    %v2274 = vpack.c.b16 %v1306, %v1298
    %v2275 = vpack.c.b16 %v1307, %v1299
    %v2276 = vpack.c.b16 %v1308, %v1300
    %v2277 = vpack.c.b16 %v1317, %v1309
    %v2278 = vpack.c.b16 %v1318, %v1310
    %v2279 = vpack.c.b16 %v1319, %v1311
    %v2280 = vpack.c.b16 %v1320, %v1312
    %v2281 = vpack.c.b16 %v1321, %v1313
    %v2282 = vpack.c.b16 %v1322, %v1314
    %v2283 = vpack.c.b16 %v1323, %v1315
    %v2284 = vpack.c.b16 %v1324, %v1316
    %v2285 = vpack.c.b16 %v1333, %v1325
    %v2286 = vpack.c.b16 %v1334, %v1326
    %v2287 = vpack.c.b16 %v1335, %v1327
    %v2288 = vpack.c.b16 %v1336, %v1328
    %v2289 = vpack.c.b16 %v1337, %v1329
    %v2290 = vpack.c.b16 %v1338, %v1330
    %v2291 = vpack.c.b16 %v1339, %v1331
    %v2292 = vpack.c.b16 %v1340, %v1332
    %v2293 = vpack.c.b16 %v1349, %v1341
    %v2294 = vpack.c.b16 %v1350, %v1342
    %v2295 = vpack.c.b16 %v1351, %v1343
    %v2296 = vpack.c.b16 %v1352, %v1344
    %v2297 = vpack.c.b16 %v1353, %v1345
    %v2298 = vpack.c.b16 %v1354, %v1346
    %v2299 = vpack.c.b16 %v1355, %v1347
    %v2300 = vpack.c.b16 %v1356, %v1348
    %v2301 = vpack.c.b16 %v1365, %v1357
    %v2302 = vpack.c.b16 %v1366, %v1358
    %v2303 = vpack.c.b16 %v1367, %v1359
    %v2304 = vpack.c.b16 %v1368, %v1360
    %v2305 = vpack.c.b16 %v1369, %v1361
    %v2306 = vpack.c.b16 %v1370, %v1362
    %v2307 = vpack.c.b16 %v1371, %v1363
    %v2308 = vpack.c.b16 %v1372, %v1364
    %v2309 = vpack.c.b16 %v1381, %v1373
    %v2310 = vpack.c.b16 %v1382, %v1374
    %v2311 = vpack.c.b16 %v1383, %v1375
    %v2312 = vpack.c.b16 %v1384, %v1376
    %v2313 = vpack.c.b16 %v1385, %v1377
    %v2314 = vpack.c.b16 %v1386, %v1378
    %v2315 = vpack.c.b16 %v1387, %v1379
    %v2316 = vpack.c.b16 %v1388, %v1380
    %v2317 = vpack.c.b16 %v1397, %v1389
    %v2318 = vpack.c.b16 %v1398, %v1390
    %v2319 = vpack.c.b16 %v1399, %v1391
    %v2320 = vpack.c.b16 %v1400, %v1392
    %v2321 = vpack.c.b16 %v1401, %v1393
    %v2322 = vpack.c.b16 %v1402, %v1394
    %v2323 = vpack.c.b16 %v1403, %v1395
    %v2324 = vpack.c.b16 %v1404, %v1396
    %v2325 = vpack.c.b16 %v1413, %v1405
    %v2326 = vpack.c.b16 %v1414, %v1406
    %v2327 = vpack.c.b16 %v1415, %v1407
    %v2328 = vpack.c.b16 %v1416, %v1408
    %v2329 = vpack.c.b16 %v1417, %v1409
    %v2330 = vpack.c.b16 %v1418, %v1410
    %v2331 = vpack.c.b16 %v1419, %v1411
    %v2332 = vpack.c.b16 %v1420, %v1412
    %v2333 = vpack.c.b16 %v1429, %v1421
    %v2334 = vpack.c.b16 %v1430, %v1422
    %v2335 = vpack.c.b16 %v1431, %v1423
    %v2336 = vpack.c.b16 %v1432, %v1424
    %v2337 = vpack.c.b16 %v1433, %v1425
    %v2338 = vpack.c.b16 %v1434, %v1426
    %v2339 = vpack.c.b16 %v1435, %v1427
    %v2340 = vpack.c.b16 %v1436, %v1428
    %v2341 = vpack.c.b16 %v1445, %v1437
    %v2342 = vpack.c.b16 %v1446, %v1438
    %v2343 = vpack.c.b16 %v1447, %v1439
    %v2344 = vpack.c.b16 %v1448, %v1440
    %v2345 = vpack.c.b16 %v1449, %v1441
    %v2346 = vpack.c.b16 %v1450, %v1442
    %v2347 = vpack.c.b16 %v1451, %v1443
    %v2348 = vpack.c.b16 %v1452, %v1444
    %v2349 = vpack.c.b16 %v1461, %v1453
    %v2350 = vpack.c.b16 %v1462, %v1454
    %v2351 = vpack.c.b16 %v1463, %v1455
    %v2352 = vpack.c.b16 %v1464, %v1456
    %v2353 = vpack.c.b16 %v1465, %v1457
    %v2354 = vpack.c.b16 %v1466, %v1458
    %v2355 = vpack.c.b16 %v1467, %v1459
    %v2356 = vpack.c.b16 %v1468, %v1460
    %v2357 = vpack.c.b16 %v1477, %v1469
    %v2358 = vpack.c.b16 %v1478, %v1470
    %v2359 = vpack.c.b16 %v1479, %v1471
    %v2360 = vpack.c.b16 %v1480, %v1472
    %v2361 = vpack.c.b16 %v1481, %v1473
    %v2362 = vpack.c.b16 %v1482, %v1474
    %v2363 = vpack.c.b16 %v1483, %v1475
    %v2364 = vpack.c.b16 %v1484, %v1476
    %v2365 = vpack.c.b16 %v1493, %v1485
    %v2366 = vpack.c.b16 %v1494, %v1486
    %v2367 = vpack.c.b16 %v1495, %v1487
    %v2368 = vpack.c.b16 %v1496, %v1488
    %v2369 = vpack.c.b16 %v1497, %v1489
    %v2370 = vpack.c.b16 %v1498, %v1490
    %v2371 = vpack.c.b16 %v1499, %v1491
    %v2372 = vpack.c.b16 %v1500, %v1492
    %v2373 = vpack.c.b16 %v1509, %v1501
    %v2374 = vpack.c.b16 %v1510, %v1502
    %v2375 = vpack.c.b16 %v1511, %v1503
    %v2376 = vpack.c.b16 %v1512, %v1504
    %v2377 = vpack.c.b16 %v1513, %v1505
    %v2378 = vpack.c.b16 %v1514, %v1506
    %v2379 = vpack.c.b16 %v1515, %v1507
    %v2380 = vpack.c.b16 %v1516, %v1508
    %v2381 = vpack.c.b16 %v1525, %v1517
    %v2382 = vpack.c.b16 %v1526, %v1518
    %v2383 = vpack.c.b16 %v1527, %v1519
    %v2384 = vpack.c.b16 %v1528, %v1520
    %v2385 = vpack.c.b16 %v1529, %v1521
    %v2386 = vpack.c.b16 %v1530, %v1522
    %v2387 = vpack.c.b16 %v1531, %v1523
    %v2388 = vpack.c.b16 %v1532, %v1524
    %v2389 = vpack.c.b16 %v1541, %v1533
    %v2390 = vpack.c.b16 %v1542, %v1534
    %v2391 = vpack.c.b16 %v1543, %v1535
    %v2392 = vpack.c.b16 %v1544, %v1536
    %v2393 = vpack.c.b16 %v1545, %v1537
    %v2394 = vpack.c.b16 %v1546, %v1538
    %v2395 = vpack.c.b16 %v1547, %v1539
    %v2396 = vpack.c.b16 %v1548, %v1540
    %v2397 = vpack.c.b16 %v1557, %v1549
    %v2398 = vpack.c.b16 %v1558, %v1550
    %v2399 = vpack.c.b16 %v1559, %v1551
    %v2400 = vpack.c.b16 %v1560, %v1552
    %v2401 = vpack.c.b16 %v1561, %v1553
    %v2402 = vpack.c.b16 %v1562, %v1554
    %v2403 = vpack.c.b16 %v1563, %v1555
    %v2404 = vpack.c.b16 %v1564, %v1556
    %v2405 = vpack.c.b16 %v1573, %v1565
    %v2406 = vpack.c.b16 %v1574, %v1566
    %v2407 = vpack.c.b16 %v1575, %v1567
    %v2408 = vpack.c.b16 %v1576, %v1568
    %v2409 = vpack.c.b16 %v1577, %v1569
    %v2410 = vpack.c.b16 %v1578, %v1570
    %v2411 = vpack.c.b16 %v1579, %v1571
    %v2412 = vpack.c.b16 %v1580, %v1572
    %v2413 = vpack.c.b16 %v1589, %v1581
    %v2414 = vpack.c.b16 %v1590, %v1582
    %v2415 = vpack.c.b16 %v1591, %v1583
    %v2416 = vpack.c.b16 %v1592, %v1584
    %v2417 = vpack.c.b16 %v1593, %v1585
    %v2418 = vpack.c.b16 %v1594, %v1586
    %v2419 = vpack.c.b16 %v1595, %v1587
    %v2420 = vpack.c.b16 %v1596, %v1588
    %v2421 = vpack.c.b16 %v1605, %v1597
    %v2422 = vpack.c.b16 %v1606, %v1598
    %v2423 = vpack.c.b16 %v1607, %v1599
    %v2424 = vpack.c.b16 %v1608, %v1600
    %v2425 = vpack.c.b16 %v1609, %v1601
    %v2426 = vpack.c.b16 %v1610, %v1602
    %v2427 = vpack.c.b16 %v1611, %v1603
    %v2428 = vpack.c.b16 %v1612, %v1604
    %v2429 = vpack.c.b16 %v1621, %v1613
    %v2430 = vpack.c.b16 %v1622, %v1614
    %v2431 = vpack.c.b16 %v1623, %v1615
    %v2432 = vpack.c.b16 %v1624, %v1616
    %v2433 = vpack.c.b16 %v1625, %v1617
    %v2434 = vpack.c.b16 %v1626, %v1618
    %v2435 = vpack.c.b16 %v1627, %v1619
    %v2436 = vpack.c.b16 %v1628, %v1620
    %v2437 = vpack.c.b16 %v1637, %v1629
    %v2438 = vpack.c.b16 %v1638, %v1630
    %v2439 = vpack.c.b16 %v1639, %v1631
    %v2440 = vpack.c.b16 %v1640, %v1632
    %v2441 = vpack.c.b16 %v1641, %v1633
    %v2442 = vpack.c.b16 %v1642, %v1634
    %v2443 = vpack.c.b16 %v1643, %v1635
    %v2444 = vpack.c.b16 %v1644, %v1636
    %v2445 = vpack.c.b16 %v1653, %v1645
    %v2446 = vpack.c.b16 %v1654, %v1646
    %v2447 = vpack.c.b16 %v1655, %v1647
    %v2448 = vpack.c.b16 %v1656, %v1648
    %v2449 = vpack.c.b16 %v1657, %v1649
    %v2450 = vpack.c.b16 %v1658, %v1650
    %v2451 = vpack.c.b16 %v1659, %v1651
    %v2452 = vpack.c.b16 %v1660, %v1652
    %v2453 = vpack.c.b16 %v1669, %v1661
    %v2454 = vpack.c.b16 %v1670, %v1662
    %v2455 = vpack.c.b16 %v1671, %v1663
    %v2456 = vpack.c.b16 %v1672, %v1664
    %v2457 = vpack.c.b16 %v1673, %v1665
    %v2458 = vpack.c.b16 %v1674, %v1666
    %v2459 = vpack.c.b16 %v1675, %v1667
    %v2460 = vpack.c.b16 %v1676, %v1668
    %v2461 = vpack.c.b16 %v1685, %v1677
    %v2462 = vpack.c.b16 %v1686, %v1678
    %v2463 = vpack.c.b16 %v1687, %v1679
    %v2464 = vpack.c.b16 %v1688, %v1680
    %v2465 = vpack.c.b16 %v1689, %v1681
    %v2466 = vpack.c.b16 %v1690, %v1682
    %v2467 = vpack.c.b16 %v1691, %v1683
    %v2468 = vpack.c.b16 %v1692, %v1684
    %v2469 = vpack.c.b16 %v1701, %v1693
    %v2470 = vpack.c.b16 %v1702, %v1694
    %v2471 = vpack.c.b16 %v1703, %v1695
    %v2472 = vpack.c.b16 %v1704, %v1696
    %v2473 = vpack.c.b16 %v1705, %v1697
    %v2474 = vpack.c.b16 %v1706, %v1698
    %v2475 = vpack.c.b16 %v1707, %v1699
    %v2476 = vpack.c.b16 %v1708, %v1700
    %v2477 = vpack.c.b16 %v1717, %v1709
    %v2478 = vpack.c.b16 %v1718, %v1710
    %v2479 = vpack.c.b16 %v1719, %v1711
    %v2480 = vpack.c.b16 %v1720, %v1712
    %v2481 = vpack.c.b16 %v1721, %v1713
    %v2482 = vpack.c.b16 %v1722, %v1714
    %v2483 = vpack.c.b16 %v1723, %v1715
    %v2484 = vpack.c.b16 %v1724, %v1716
    %v2485 = vpack.c.b16 %v1733, %v1725
    %v2486 = vpack.c.b16 %v1734, %v1726
    %v2487 = vpack.c.b16 %v1735, %v1727
    %v2488 = vpack.c.b16 %v1736, %v1728
    %v2489 = vpack.c.b16 %v1737, %v1729
    %v2490 = vpack.c.b16 %v1738, %v1730
    %v2491 = vpack.c.b16 %v1739, %v1731
    %v2492 = vpack.c.b16 %v1740, %v1732
    %v2493 = vpack.c.b16 %v1749, %v1741
    %v2494 = vpack.c.b16 %v1750, %v1742
    %v2495 = vpack.c.b16 %v1751, %v1743
    %v2496 = vpack.c.b16 %v1752, %v1744
    %v2497 = vpack.c.b16 %v1753, %v1745
    %v2498 = vpack.c.b16 %v1754, %v1746
    %v2499 = vpack.c.b16 %v1755, %v1747
    %v2500 = vpack.c.b16 %v1756, %v1748
    %v2501 = vpack.c.b16 %v1765, %v1757
    %v2502 = vpack.c.b16 %v1766, %v1758
    %v2503 = vpack.c.b16 %v1767, %v1759
    %v2504 = vpack.c.b16 %v1768, %v1760
    %v2505 = vpack.c.b16 %v1769, %v1761
    %v2506 = vpack.c.b16 %v1770, %v1762
    %v2507 = vpack.c.b16 %v1771, %v1763
    %v2508 = vpack.c.b16 %v1772, %v1764
    %v2509 = vpack.c.b16 %v1781, %v1773
    %v2510 = vpack.c.b16 %v1782, %v1774
    %v2511 = vpack.c.b16 %v1783, %v1775
    %v2512 = vpack.c.b16 %v1784, %v1776
    %v2513 = vpack.c.b16 %v1785, %v1777
    %v2514 = vpack.c.b16 %v1786, %v1778
    %v2515 = vpack.c.b16 %v1787, %v1779
    %v2516 = vpack.c.b16 %v1788, %v1780
    %v2517 = vpack.c.b16 %v1797, %v1789
    %v2518 = vpack.c.b16 %v1798, %v1790
    %v2519 = vpack.c.b16 %v1799, %v1791
    %v2520 = vpack.c.b16 %v1800, %v1792
    %v2521 = vpack.c.b16 %v1801, %v1793
    %v2522 = vpack.c.b16 %v1802, %v1794
    %v2523 = vpack.c.b16 %v1803, %v1795
    %v2524 = vpack.c.b16 %v1804, %v1796
    %v2525 = vpack.c.b16 %v1813, %v1805
    %v2526 = vpack.c.b16 %v1814, %v1806
    %v2527 = vpack.c.b16 %v1815, %v1807
    %v2528 = vpack.c.b16 %v1816, %v1808
    %v2529 = vpack.c.b16 %v1817, %v1809
    %v2530 = vpack.c.b16 %v1818, %v1810
    %v2531 = vpack.c.b16 %v1819, %v1811
    %v2532 = vpack.c.b16 %v1820, %v1812
    %v2533 = vpack.c.b16 %v1829, %v1821
    %v2534 = vpack.c.b16 %v1830, %v1822
    %v2535 = vpack.c.b16 %v1831, %v1823
    %v2536 = vpack.c.b16 %v1832, %v1824
    %v2537 = vpack.c.b16 %v1833, %v1825
    %v2538 = vpack.c.b16 %v1834, %v1826
    %v2539 = vpack.c.b16 %v1835, %v1827
    %v2540 = vpack.c.b16 %v1836, %v1828
    %v2541 = vpack.c.b16 %v1845, %v1837
    %v2542 = vpack.c.b16 %v1846, %v1838
    %v2543 = vpack.c.b16 %v1847, %v1839
    %v2544 = vpack.c.b16 %v1848, %v1840
    %v2545 = vpack.c.b16 %v1849, %v1841
    %v2546 = vpack.c.b16 %v1850, %v1842
    %v2547 = vpack.c.b16 %v1851, %v1843
    %v2548 = vpack.c.b16 %v1852, %v1844
    %v2549 = vpack.c.b16 %v1861, %v1853
    %v2550 = vpack.c.b16 %v1862, %v1854
    %v2551 = vpack.c.b16 %v1863, %v1855
    %v2552 = vpack.c.b16 %v1864, %v1856
    %v2553 = vpack.c.b16 %v1865, %v1857
    %v2554 = vpack.c.b16 %v1866, %v1858
    %v2555 = vpack.c.b16 %v1867, %v1859
    %v2556 = vpack.c.b16 %v1868, %v1860
    %v2557 = vpack.c.b16 %v1877, %v1869
    %v2558 = vpack.c.b16 %v1878, %v1870
    %v2559 = vpack.c.b16 %v1879, %v1871
    %v2560 = vpack.c.b16 %v1880, %v1872
    %v2561 = vpack.c.b16 %v1881, %v1873
    %v2562 = vpack.c.b16 %v1882, %v1874
    %v2563 = vpack.c.b16 %v1883, %v1875
    %v2564 = vpack.c.b16 %v1884, %v1876
    %v2565 = vpack.c.b16 %v1893, %v1885
    %v2566 = vpack.c.b16 %v1894, %v1886
    %v2567 = vpack.c.b16 %v1895, %v1887
    %v2568 = vpack.c.b16 %v1896, %v1888
    %v2569 = vpack.c.b16 %v1897, %v1889
    %v2570 = vpack.c.b16 %v1898, %v1890
    %v2571 = vpack.c.b16 %v1899, %v1891
    %v2572 = vpack.c.b16 %v1900, %v1892
    %v2573 = vpack.c.b16 %v1909, %v1901
    %v2574 = vpack.c.b16 %v1910, %v1902
    %v2575 = vpack.c.b16 %v1911, %v1903
    %v2576 = vpack.c.b16 %v1912, %v1904
    %v2577 = vpack.c.b16 %v1913, %v1905
    %v2578 = vpack.c.b16 %v1914, %v1906
    %v2579 = vpack.c.b16 %v1915, %v1907
    %v2580 = vpack.c.b16 %v1916, %v1908
    %v2581 = vpack.c.b16 %v1925, %v1917
    %v2582 = vpack.c.b16 %v1926, %v1918
    %v2583 = vpack.c.b16 %v1927, %v1919
    %v2584 = vpack.c.b16 %v1928, %v1920
    %v2585 = vpack.c.b16 %v1929, %v1921
    %v2586 = vpack.c.b16 %v1930, %v1922
    %v2587 = vpack.c.b16 %v1931, %v1923
    %v2588 = vpack.c.b16 %v1932, %v1924
    %v2589 = vpack.c.b16 %v1941, %v1933
    %v2590 = vpack.c.b16 %v1942, %v1934
    %v2591 = vpack.c.b16 %v1943, %v1935
    %v2592 = vpack.c.b16 %v1944, %v1936
    %v2593 = vpack.c.b16 %v1945, %v1937
    %v2594 = vpack.c.b16 %v1946, %v1938
    %v2595 = vpack.c.b16 %v1947, %v1939
    %v2596 = vpack.c.b16 %v1948, %v1940
    %v2597 = vpack.c.b16 %v1957, %v1949
    %v2598 = vpack.c.b16 %v1958, %v1950
    %v2599 = vpack.c.b16 %v1959, %v1951
    %v2600 = vpack.c.b16 %v1960, %v1952
    %v2601 = vpack.c.b16 %v1961, %v1953
    %v2602 = vpack.c.b16 %v1962, %v1954
    %v2603 = vpack.c.b16 %v1963, %v1955
    %v2604 = vpack.c.b16 %v1964, %v1956
    %v2605 = vpack.c.b16 %v1973, %v1965
    %v2606 = vpack.c.b16 %v1974, %v1966
    %v2607 = vpack.c.b16 %v1975, %v1967
    %v2608 = vpack.c.b16 %v1976, %v1968
    %v2609 = vpack.c.b16 %v1977, %v1969
    %v2610 = vpack.c.b16 %v1978, %v1970
    %v2611 = vpack.c.b16 %v1979, %v1971
    %v2612 = vpack.c.b16 %v1980, %v1972
    %v2613 = vpack.c.b16 %v1989, %v1981
    %v2614 = vpack.c.b16 %v1990, %v1982
    %v2615 = vpack.c.b16 %v1991, %v1983
    %v2616 = vpack.c.b16 %v1992, %v1984
    %v2617 = vpack.c.b16 %v1993, %v1985
    %v2618 = vpack.c.b16 %v1994, %v1986
    %v2619 = vpack.c.b16 %v1995, %v1987
    %v2620 = vpack.c.b16 %v1996, %v1988
    %v2621 = vpack.c.b16 %v2005, %v1997
    %v2622 = vpack.c.b16 %v2006, %v1998
    %v2623 = vpack.c.b16 %v2007, %v1999
    %v2624 = vpack.c.b16 %v2008, %v2000
    %v2625 = vpack.c.b16 %v2009, %v2001
    %v2626 = vpack.c.b16 %v2010, %v2002
    %v2627 = vpack.c.b16 %v2011, %v2003
    %v2628 = vpack.c.b16 %v2012, %v2004
    %v2629 = vpack.c.b16 %v2021, %v2013
    %v2630 = vpack.c.b16 %v2022, %v2014
    %v2631 = vpack.c.b16 %v2023, %v2015
    %v2632 = vpack.c.b16 %v2024, %v2016
    %v2633 = vpack.c.b16 %v2025, %v2017
    %v2634 = vpack.c.b16 %v2026, %v2018
    %v2635 = vpack.c.b16 %v2027, %v2019
    %v2636 = vpack.c.b16 %v2028, %v2020
    %v2637 = vpack.c.b16 %v2037, %v2029
    %v2638 = vpack.c.b16 %v2038, %v2030
    %v2639 = vpack.c.b16 %v2039, %v2031
    %v2640 = vpack.c.b16 %v2040, %v2032
    %v2641 = vpack.c.b16 %v2041, %v2033
    %v2642 = vpack.c.b16 %v2042, %v2034
    %v2643 = vpack.c.b16 %v2043, %v2035
    %v2644 = vpack.c.b16 %v2044, %v2036
    %v2645 = vpack.c.b16 %v2053, %v2045
    %v2646 = vpack.c.b16 %v2054, %v2046
    %v2647 = vpack.c.b16 %v2055, %v2047
    %v2648 = vpack.c.b16 %v2056, %v2048
    %v2649 = vpack.c.b16 %v2057, %v2049
    %v2650 = vpack.c.b16 %v2058, %v2050
    %v2651 = vpack.c.b16 %v2059, %v2051
    %v2652 = vpack.c.b16 %v2060, %v2052
    %v2653 = vpack.c.b16 %v2069, %v2061
    %v2654 = vpack.c.b16 %v2070, %v2062
    %v2655 = vpack.c.b16 %v2071, %v2063
    %v2656 = vpack.c.b16 %v2072, %v2064
    %v2657 = vpack.c.b16 %v2073, %v2065
    %v2658 = vpack.c.b16 %v2074, %v2066
    %v2659 = vpack.c.b16 %v2075, %v2067
    %v2660 = vpack.c.b16 %v2076, %v2068
    %v2661 = vpack.c.b16 %v2085, %v2077
    %v2662 = vpack.c.b16 %v2086, %v2078
    %v2663 = vpack.c.b16 %v2087, %v2079
    %v2664 = vpack.c.b16 %v2088, %v2080
    %v2665 = vpack.c.b16 %v2089, %v2081
    %v2666 = vpack.c.b16 %v2090, %v2082
    %v2667 = vpack.c.b16 %v2091, %v2083
    %v2668 = vpack.c.b16 %v2092, %v2084
    %v2669 = vpack.c.b16 %v2101, %v2093
    %v2670 = vpack.c.b16 %v2102, %v2094
    %v2671 = vpack.c.b16 %v2103, %v2095
    %v2672 = vpack.c.b16 %v2104, %v2096
    %v2673 = vpack.c.b16 %v2105, %v2097
    %v2674 = vpack.c.b16 %v2106, %v2098
    %v2675 = vpack.c.b16 %v2107, %v2099
    %v2676 = vpack.c.b16 %v2108, %v2100
    %v2677 = vpack.c.b16 %v2117, %v2109
    %v2678 = vpack.c.b16 %v2118, %v2110
    %v2679 = vpack.c.b16 %v2119, %v2111
    %v2680 = vpack.c.b16 %v2120, %v2112
    %v2681 = vpack.c.b16 %v2121, %v2113
    %v2682 = vpack.c.b16 %v2122, %v2114
    %v2683 = vpack.c.b16 %v2123, %v2115
    %v2684 = vpack.c.b16 %v2124, %v2116
    %v2685 = vpack.c.b16 %v2133, %v2125
    %v2686 = vpack.c.b16 %v2134, %v2126
    %v2687 = vpack.c.b16 %v2135, %v2127
    %v2688 = vpack.c.b16 %v2136, %v2128
    %v2689 = vpack.c.b16 %v2137, %v2129
    %v2690 = vpack.c.b16 %v2138, %v2130
    %v2691 = vpack.c.b16 %v2139, %v2131
    %v2692 = vpack.c.b16 %v2140, %v2132
    %v2693 = vpack.c.b16 %v2149, %v2141
    %v2694 = vpack.c.b16 %v2150, %v2142
    %v2695 = vpack.c.b16 %v2151, %v2143
    %v2696 = vpack.c.b16 %v2152, %v2144
    %v2697 = vpack.c.b16 %v2153, %v2145
    %v2698 = vpack.c.b16 %v2154, %v2146
    %v2699 = vpack.c.b16 %v2155, %v2147
    %v2700 = vpack.c.b16 %v2156, %v2148
    %v2701 = vpack.c.b16 %v2165, %v2157
    %v2702 = vpack.c.b16 %v2166, %v2158
    %v2703 = vpack.c.b16 %v2167, %v2159
    %v2704 = vpack.c.b16 %v2168, %v2160
    %v2705 = vpack.c.b16 %v2169, %v2161
    %v2706 = vpack.c.b16 %v2170, %v2162
    %v2707 = vpack.c.b16 %v2171, %v2163
    %v2708 = vpack.c.b16 %v2172, %v2164
    %v2709 = vpack.c.b16 %v2181, %v2173
    %v2710 = vpack.c.b16 %v2182, %v2174
    %v2711 = vpack.c.b16 %v2183, %v2175
    %v2712 = vpack.c.b16 %v2184, %v2176
    %v2713 = vpack.c.b16 %v2185, %v2177
    %v2714 = vpack.c.b16 %v2186, %v2178
    %v2715 = vpack.c.b16 %v2187, %v2179
    %v2716 = vpack.c.b16 %v2188, %v2180
    %v2717 = vpack.c.b16 %v2197, %v2189
    %v2718 = vpack.c.b16 %v2198, %v2190
    %v2719 = vpack.c.b16 %v2199, %v2191
    %v2720 = vpack.c.b16 %v2200, %v2192
    %v2721 = vpack.c.b16 %v2201, %v2193
    %v2722 = vpack.c.b16 %v2202, %v2194
    %v2723 = vpack.c.b16 %v2203, %v2195
    %v2724 = vpack.c.b16 %v2204, %v2196
    %v2725 = vpack.c.b16 %v2213, %v2205
    %v2726 = vpack.c.b16 %v2214, %v2206
    %v2727 = vpack.c.b16 %v2215, %v2207
    %v2728 = vpack.c.b16 %v2216, %v2208
    %v2729 = vpack.c.b16 %v2217, %v2209
    %v2730 = vpack.c.b16 %v2218, %v2210
    %v2731 = vpack.c.b16 %v2219, %v2211
    %v2732 = vpack.c.b16 %v2220, %v2212
    %3245 = vmatprep.subr.bf16.mxu0 %v2278
    %3246 = vmatpush1.bf16.msra.mxu0 %v2277
    %3247 = vmatprep.subr.bf16.mxu0 %v2270
    %3248 = vmatpush1.bf16.msra.mxu0 %v2269
    %3249 = vmatprep.subr.bf16.mxu0 %v2262
    %3250 = vmatpush1.bf16.msra.mxu0 %v2261
    %3251 = vmatprep.subr.bf16.mxu0 %v2254
    %3252 = vmatpush1.bf16.msra.mxu0 %v2253
    %3253 = vmatprep.subr.bf16.mxu0 %v2246
    %3254 = vmatpush1.bf16.msra.mxu0 %v2245
    %3255 = vmatprep.subr.bf16.mxu0 %v2238
    %3256 = vmatpush1.bf16.msra.mxu0 %v2237
    %3257 = vmatprep.subr.bf16.mxu0 %v2230
    %3258 = vmatpush1.bf16.msra.mxu0 %v2229
    %3259 = vmatprep.subr.bf16.mxu0 %v2222
    %3260 = vmatpush1.bf16.msra.mxu0 %v2221
    %3261 = vmatprep.subr.bf16.mxu0 %v2342
    %3262 = vmatpush2.bf16.msra.mxu0 %v2341
    %3263 = vmatprep.subr.bf16.mxu0 %v2334
    %3264 = vmatpush2.bf16.msra.mxu0 %v2333
    %3265 = vmatprep.subr.bf16.mxu0 %v2326
    %3266 = vmatpush2.bf16.msra.mxu0 %v2325
    %3267 = vmatprep.subr.bf16.mxu0 %v2318
    %3268 = vmatpush2.bf16.msra.mxu0 %v2317
    %3269 = vmatprep.subr.bf16.mxu0 %v2310
    %3270 = vmatpush2.bf16.msra.mxu0 %v2309
    %3271 = vmatprep.subr.bf16.mxu0 %v2302
    %3272 = vmatpush2.bf16.msra.mxu0 %v2301
    %3273 = vmatprep.subr.bf16.mxu0 %v2294
    %3274 = vmatpush2.bf16.msra.mxu0 %v2293
    %3275 = vmatprep.subr.bf16.mxu0 %v2286
    %3276 = vmatpush2.bf16.msra.mxu0 %v2285
    %3277 = vmatprep.mubr.bf16.mxu0 %v665
    %3278 = vmatmul.mubr.bf16.gmra.mxu0 %v651
    %v3279 = vpop.f32.mrf.mxu0
    %v3280 = vadd.f32 0.0, %v3279
    %v3281 = vpop.f32.mrf.mxu0
    %v3282 = vadd.f32 0.0, %v3281
    %v3283 = vpop.f32.mrf.mxu0
    %v3284 = vpop.f32.mrf.mxu0
    %3285 = vdwg.mxu0
    %3286 = vmatprep.subr.bf16.mxu0 %v2406
    %3287 = vmatpush1.bf16.msra.mxu0 %v2405
    %3288 = vmatprep.subr.bf16.mxu0 %v2398
    %3289 = vmatpush1.bf16.msra.mxu0 %v2397
    %3290 = vmatprep.subr.bf16.mxu0 %v2390
    %3291 = vmatpush1.bf16.msra.mxu0 %v2389
    %3292 = vmatprep.subr.bf16.mxu0 %v2382
    %3293 = vmatpush1.bf16.msra.mxu0 %v2381
    %3294 = vmatprep.subr.bf16.mxu0 %v2374
    %3295 = vmatpush1.bf16.msra.mxu0 %v2373
    %3296 = vmatprep.subr.bf16.mxu0 %v2366
    %3297 = vmatpush1.bf16.msra.mxu0 %v2365
    %3298 = vmatprep.subr.bf16.mxu0 %v2358
    %3299 = vmatpush1.bf16.msra.mxu0 %v2357
    %3300 = vmatprep.subr.bf16.mxu0 %v2350
    %3301 = vmatpush1.bf16.msra.mxu0 %v2349
    %3302 = vmatprep.subr.bf16.mxu0 %v2470
    %3303 = vmatpush2.bf16.msra.mxu0 %v2469
    %3304 = vmatprep.subr.bf16.mxu0 %v2462
    %3305 = vmatpush2.bf16.msra.mxu0 %v2461
    %3306 = vmatprep.subr.bf16.mxu0 %v2454
    %3307 = vmatpush2.bf16.msra.mxu0 %v2453
    %3308 = vmatprep.subr.bf16.mxu0 %v2446
    %3309 = vmatpush2.bf16.msra.mxu0 %v2445
    %3310 = vmatprep.subr.bf16.mxu0 %v2438
    %3311 = vmatpush2.bf16.msra.mxu0 %v2437
    %3312 = vmatprep.subr.bf16.mxu0 %v2430
    %3313 = vmatpush2.bf16.msra.mxu0 %v2429
    %3314 = vmatprep.subr.bf16.mxu0 %v2422
    %3315 = vmatpush2.bf16.msra.mxu0 %v2421
    %3316 = vmatprep.subr.bf16.mxu0 %v2414
    %3317 = vmatpush2.bf16.msra.mxu0 %v2413
    %3318 = vmatprep.mubr.bf16.mxu0 %v675
    %3319 = vmatmul.mubr.bf16.gmra.mxu0 %v673
    %v3320 = vpop.f32.mrf.mxu0
    %v3321 = vadd.f32 %v3280, %v3320
    %v3322 = vpop.f32.mrf.mxu0
    %v3323 = vadd.f32 %v3282, %v3322
    %v3324 = vpop.f32.mrf.mxu0
    %v3325 = vpop.f32.mrf.mxu0
    %3326 = vdwg.mxu0
    %3327 = vmatprep.subr.bf16.mxu0 %v2534
    %3328 = vmatpush1.bf16.msra.mxu0 %v2533
    %3329 = vmatprep.subr.bf16.mxu0 %v2526
    %3330 = vmatpush1.bf16.msra.mxu0 %v2525
    %3331 = vmatprep.subr.bf16.mxu0 %v2518
    %3332 = vmatpush1.bf16.msra.mxu0 %v2517
    %3333 = vmatprep.subr.bf16.mxu0 %v2510
    %3334 = vmatpush1.bf16.msra.mxu0 %v2509
    %3335 = vmatprep.subr.bf16.mxu0 %v2502
    %3336 = vmatpush1.bf16.msra.mxu0 %v2501
    %3337 = vmatprep.subr.bf16.mxu0 %v2494
    %3338 = vmatpush1.bf16.msra.mxu0 %v2493
    %3339 = vmatprep.subr.bf16.mxu0 %v2486
    %3340 = vmatpush1.bf16.msra.mxu0 %v2485
    %3341 = vmatprep.subr.bf16.mxu0 %v2478
    %3342 = vmatpush1.bf16.msra.mxu0 %v2477
    %3343 = vmatprep.subr.bf16.mxu0 %v2598
    %3344 = vmatpush2.bf16.msra.mxu0 %v2597
    %3345 = vmatprep.subr.bf16.mxu0 %v2590
    %3346 = vmatpush2.bf16.msra.mxu0 %v2589
    %3347 = vmatprep.subr.bf16.mxu0 %v2582
    %3348 = vmatpush2.bf16.msra.mxu0 %v2581
    %3349 = vmatprep.subr.bf16.mxu0 %v2574
    %3350 = vmatpush2.bf16.msra.mxu0 %v2573
    %3351 = vmatprep.subr.bf16.mxu0 %v2566
    %3352 = vmatpush2.bf16.msra.mxu0 %v2565
    %3353 = vmatprep.subr.bf16.mxu0 %v2558
    %3354 = vmatpush2.bf16.msra.mxu0 %v2557
    %3355 = vmatprep.subr.bf16.mxu0 %v2550
    %3356 = vmatpush2.bf16.msra.mxu0 %v2549
    %3357 = vmatprep.subr.bf16.mxu0 %v2542
    %3358 = vmatpush2.bf16.msra.mxu0 %v2541
    %3359 = vmatprep.mubr.bf16.mxu0 %v672
    %3360 = vmatmul.mubr.bf16.gmra.mxu0 %v658
    %v3361 = vpop.f32.mrf.mxu0
    %v3362 = vadd.f32 %v3321, %v3361
    %v3363 = vpop.f32.mrf.mxu0
    %v3364 = vadd.f32 %v3323, %v3363
    %v3365 = vpop.f32.mrf.mxu0
    %v3366 = vpop.f32.mrf.mxu0
    %3367 = vdwg.mxu0
    %3368 = vmatprep.subr.bf16.mxu0 %v2662
    %3369 = vmatpush1.bf16.msra.mxu0 %v2661
    %3370 = vmatprep.subr.bf16.mxu0 %v2654
    %3371 = vmatpush1.bf16.msra.mxu0 %v2653
    %3372 = vmatprep.subr.bf16.mxu0 %v2646
    %3373 = vmatpush1.bf16.msra.mxu0 %v2645
    %3374 = vmatprep.subr.bf16.mxu0 %v2638
    %3375 = vmatpush1.bf16.msra.mxu0 %v2637
    %3376 = vmatprep.subr.bf16.mxu0 %v2630
    %3377 = vmatpush1.bf16.msra.mxu0 %v2629
    %3378 = vmatprep.subr.bf16.mxu0 %v2622
    %3379 = vmatpush1.bf16.msra.mxu0 %v2621
    %3380 = vmatprep.subr.bf16.mxu0 %v2614
    %3381 = vmatpush1.bf16.msra.mxu0 %v2613
    %3382 = vmatprep.subr.bf16.mxu0 %v2606
    %3383 = vmatpush1.bf16.msra.mxu0 %v2605
    %3384 = vmatprep.subr.bf16.mxu0 %v2726
    %3385 = vmatpush2.bf16.msra.mxu0 %v2725
    %3386 = vmatprep.subr.bf16.mxu0 %v2718
    %3387 = vmatpush2.bf16.msra.mxu0 %v2717
    %3388 = vmatprep.subr.bf16.mxu0 %v2710
    %3389 = vmatpush2.bf16.msra.mxu0 %v2709
    %3390 = vmatprep.subr.bf16.mxu0 %v2702
    %3391 = vmatpush2.bf16.msra.mxu0 %v2701
    %3392 = vmatprep.subr.bf16.mxu0 %v2694
    %3393 = vmatpush2.bf16.msra.mxu0 %v2693
    %3394 = vmatprep.subr.bf16.mxu0 %v2686
    %3395 = vmatpush2.bf16.msra.mxu0 %v2685
    %3396 = vmatprep.subr.bf16.mxu0 %v2678
    %3397 = vmatpush2.bf16.msra.mxu0 %v2677
    %3398 = vmatprep.subr.bf16.mxu0 %v2670
    %3399 = vmatpush2.bf16.msra.mxu0 %v2669
    %3400 = vmatprep.mubr.bf16.mxu0 %v676
    %3401 = vmatmul.mubr.bf16.gmra.mxu0 %v674
    %v3402 = vpop.f32.mrf.mxu0
    %v3403 = vadd.f32 %v3362, %v3402
    %v3404 = vpop.f32.mrf.mxu0
    %v3405 = vadd.f32 %v3364, %v3404
    %v3406 = vpop.f32.mrf.mxu0
    %v3407 = vpop.f32.mrf.mxu0
    %3408 = vdwg.mxu0
    %3409 = vmatprep.subr.bf16.mxu0 %v2280
    %3410 = vmatpush1.bf16.msra.mxu0 %v2279
    %3411 = vmatprep.subr.bf16.mxu0 %v2272
    %3412 = vmatpush1.bf16.msra.mxu0 %v2271
    %3413 = vmatprep.subr.bf16.mxu0 %v2264
    %3414 = vmatpush1.bf16.msra.mxu0 %v2263
    %3415 = vmatprep.subr.bf16.mxu0 %v2256
    %3416 = vmatpush1.bf16.msra.mxu0 %v2255
    %3417 = vmatprep.subr.bf16.mxu0 %v2248
    %3418 = vmatpush1.bf16.msra.mxu0 %v2247
    %3419 = vmatprep.subr.bf16.mxu0 %v2240
    %3420 = vmatpush1.bf16.msra.mxu0 %v2239
    %3421 = vmatprep.subr.bf16.mxu0 %v2232
    %3422 = vmatpush1.bf16.msra.mxu0 %v2231
    %3423 = vmatprep.subr.bf16.mxu0 %v2224
    %3424 = vmatpush1.bf16.msra.mxu0 %v2223
    %3425 = vmatprep.subr.bf16.mxu0 %v2344
    %3426 = vmatpush2.bf16.msra.mxu0 %v2343
    %3427 = vmatprep.subr.bf16.mxu0 %v2336
    %3428 = vmatpush2.bf16.msra.mxu0 %v2335
    %3429 = vmatprep.subr.bf16.mxu0 %v2328
    %3430 = vmatpush2.bf16.msra.mxu0 %v2327
    %3431 = vmatprep.subr.bf16.mxu0 %v2320
    %3432 = vmatpush2.bf16.msra.mxu0 %v2319
    %3433 = vmatprep.subr.bf16.mxu0 %v2312
    %3434 = vmatpush2.bf16.msra.mxu0 %v2311
    %3435 = vmatprep.subr.bf16.mxu0 %v2304
    %3436 = vmatpush2.bf16.msra.mxu0 %v2303
    %3437 = vmatprep.subr.bf16.mxu0 %v2296
    %3438 = vmatpush2.bf16.msra.mxu0 %v2295
    %3439 = vmatprep.subr.bf16.mxu0 %v2288
    %3440 = vmatpush2.bf16.msra.mxu0 %v2287
    %3441 = vmatprep.mubr.bf16.mxu0 %v665
    %3442 = vmatmul.mubr.bf16.gmra.mxu0 %v651
    %v3443 = vpop.f32.mrf.mxu0
    %v3444 = vadd.f32 0.0, %v3443
    %v3445 = vpop.f32.mrf.mxu0
    %v3446 = vadd.f32 0.0, %v3445
    %v3447 = vpop.f32.mrf.mxu0
    %v3448 = vpop.f32.mrf.mxu0
    %3449 = vdwg.mxu0
    %3450 = vmatprep.subr.bf16.mxu0 %v2408
    %3451 = vmatpush1.bf16.msra.mxu0 %v2407
    %3452 = vmatprep.subr.bf16.mxu0 %v2400
    %3453 = vmatpush1.bf16.msra.mxu0 %v2399
    %3454 = vmatprep.subr.bf16.mxu0 %v2392
    %3455 = vmatpush1.bf16.msra.mxu0 %v2391
    %3456 = vmatprep.subr.bf16.mxu0 %v2384
    %3457 = vmatpush1.bf16.msra.mxu0 %v2383
    %3458 = vmatprep.subr.bf16.mxu0 %v2376
    %3459 = vmatpush1.bf16.msra.mxu0 %v2375
    %3460 = vmatprep.subr.bf16.mxu0 %v2368
    %3461 = vmatpush1.bf16.msra.mxu0 %v2367
    %3462 = vmatprep.subr.bf16.mxu0 %v2360
    %3463 = vmatpush1.bf16.msra.mxu0 %v2359
    %3464 = vmatprep.subr.bf16.mxu0 %v2352
    %3465 = vmatpush1.bf16.msra.mxu0 %v2351
    %3466 = vmatprep.subr.bf16.mxu0 %v2472
    %3467 = vmatpush2.bf16.msra.mxu0 %v2471
    %3468 = vmatprep.subr.bf16.mxu0 %v2464
    %3469 = vmatpush2.bf16.msra.mxu0 %v2463
    %3470 = vmatprep.subr.bf16.mxu0 %v2456
    %3471 = vmatpush2.bf16.msra.mxu0 %v2455
    %3472 = vmatprep.subr.bf16.mxu0 %v2448
    %3473 = vmatpush2.bf16.msra.mxu0 %v2447
    %3474 = vmatprep.subr.bf16.mxu0 %v2440
    %3475 = vmatpush2.bf16.msra.mxu0 %v2439
    %3476 = vmatprep.subr.bf16.mxu0 %v2432
    %3477 = vmatpush2.bf16.msra.mxu0 %v2431
    %3478 = vmatprep.subr.bf16.mxu0 %v2424
    %3479 = vmatpush2.bf16.msra.mxu0 %v2423
    %3480 = vmatprep.subr.bf16.mxu0 %v2416
    %3481 = vmatpush2.bf16.msra.mxu0 %v2415
    %3482 = vmatprep.mubr.bf16.mxu0 %v675
    %3483 = vmatmul.mubr.bf16.gmra.mxu0 %v673
    %v3484 = vpop.f32.mrf.mxu0
    %v3485 = vadd.f32 %v3444, %v3484
    %v3486 = vpop.f32.mrf.mxu0
    %v3487 = vadd.f32 %v3446, %v3486
    %v3488 = vpop.f32.mrf.mxu0
    %v3489 = vpop.f32.mrf.mxu0
    %3490 = vdwg.mxu0
    %3491 = vmatprep.subr.bf16.mxu0 %v2536
    %3492 = vmatpush1.bf16.msra.mxu0 %v2535
    %3493 = vmatprep.subr.bf16.mxu0 %v2528
    %3494 = vmatpush1.bf16.msra.mxu0 %v2527
    %3495 = vmatprep.subr.bf16.mxu0 %v2520
    %3496 = vmatpush1.bf16.msra.mxu0 %v2519
    %3497 = vmatprep.subr.bf16.mxu0 %v2512
    %3498 = vmatpush1.bf16.msra.mxu0 %v2511
    %3499 = vmatprep.subr.bf16.mxu0 %v2504
    %3500 = vmatpush1.bf16.msra.mxu0 %v2503
    %3501 = vmatprep.subr.bf16.mxu0 %v2496
    %3502 = vmatpush1.bf16.msra.mxu0 %v2495
    %3503 = vmatprep.subr.bf16.mxu0 %v2488
    %3504 = vmatpush1.bf16.msra.mxu0 %v2487
    %3505 = vmatprep.subr.bf16.mxu0 %v2480
    %3506 = vmatpush1.bf16.msra.mxu0 %v2479
    %3507 = vmatprep.subr.bf16.mxu0 %v2600
    %3508 = vmatpush2.bf16.msra.mxu0 %v2599
    %3509 = vmatprep.subr.bf16.mxu0 %v2592
    %3510 = vmatpush2.bf16.msra.mxu0 %v2591
    %3511 = vmatprep.subr.bf16.mxu0 %v2584
    %3512 = vmatpush2.bf16.msra.mxu0 %v2583
    %3513 = vmatprep.subr.bf16.mxu0 %v2576
    %3514 = vmatpush2.bf16.msra.mxu0 %v2575
    %3515 = vmatprep.subr.bf16.mxu0 %v2568
    %3516 = vmatpush2.bf16.msra.mxu0 %v2567
    %3517 = vmatprep.subr.bf16.mxu0 %v2560
    %3518 = vmatpush2.bf16.msra.mxu0 %v2559
    %3519 = vmatprep.subr.bf16.mxu0 %v2552
    %3520 = vmatpush2.bf16.msra.mxu0 %v2551
    %3521 = vmatprep.subr.bf16.mxu0 %v2544
    %3522 = vmatpush2.bf16.msra.mxu0 %v2543
    %3523 = vmatprep.mubr.bf16.mxu0 %v672
    %3524 = vmatmul.mubr.bf16.gmra.mxu0 %v658
    %v3525 = vpop.f32.mrf.mxu0
    %v3526 = vadd.f32 %v3485, %v3525
    %v3527 = vpop.f32.mrf.mxu0
    %v3528 = vadd.f32 %v3487, %v3527
    %v3529 = vpop.f32.mrf.mxu0
    %v3530 = vpop.f32.mrf.mxu0
    %3531 = vdwg.mxu0
    %3532 = vmatprep.subr.bf16.mxu0 %v2664
    %3533 = vmatpush1.bf16.msra.mxu0 %v2663
    %3534 = vmatprep.subr.bf16.mxu0 %v2656
    %3535 = vmatpush1.bf16.msra.mxu0 %v2655
    %3536 = vmatprep.subr.bf16.mxu0 %v2648
    %3537 = vmatpush1.bf16.msra.mxu0 %v2647
    %3538 = vmatprep.subr.bf16.mxu0 %v2640
    %3539 = vmatpush1.bf16.msra.mxu0 %v2639
    %3540 = vmatprep.subr.bf16.mxu0 %v2632
    %3541 = vmatpush1.bf16.msra.mxu0 %v2631
    %3542 = vmatprep.subr.bf16.mxu0 %v2624
    %3543 = vmatpush1.bf16.msra.mxu0 %v2623
    %3544 = vmatprep.subr.bf16.mxu0 %v2616
    %3545 = vmatpush1.bf16.msra.mxu0 %v2615
    %3546 = vmatprep.subr.bf16.mxu0 %v2608
    %3547 = vmatpush1.bf16.msra.mxu0 %v2607
    %3548 = vmatprep.subr.bf16.mxu0 %v2728
    %3549 = vmatpush2.bf16.msra.mxu0 %v2727
    %3550 = vmatprep.subr.bf16.mxu0 %v2720
    %3551 = vmatpush2.bf16.msra.mxu0 %v2719
    %3552 = vmatprep.subr.bf16.mxu0 %v2712
    %3553 = vmatpush2.bf16.msra.mxu0 %v2711
    %3554 = vmatprep.subr.bf16.mxu0 %v2704
    %3555 = vmatpush2.bf16.msra.mxu0 %v2703
    %3556 = vmatprep.subr.bf16.mxu0 %v2696
    %3557 = vmatpush2.bf16.msra.mxu0 %v2695
    %3558 = vmatprep.subr.bf16.mxu0 %v2688
    %3559 = vmatpush2.bf16.msra.mxu0 %v2687
    %3560 = vmatprep.subr.bf16.mxu0 %v2680
    %3561 = vmatpush2.bf16.msra.mxu0 %v2679
    %3562 = vmatprep.subr.bf16.mxu0 %v2672
    %3563 = vmatpush2.bf16.msra.mxu0 %v2671
    %3564 = vmatprep.mubr.bf16.mxu0 %v676
    %3565 = vmatmul.mubr.bf16.gmra.mxu0 %v674
    %v3566 = vpop.f32.mrf.mxu0
    %v3567 = vadd.f32 %v3526, %v3566
    %v3568 = vpop.f32.mrf.mxu0
    %v3569 = vadd.f32 %v3528, %v3568
    %v3570 = vpop.f32.mrf.mxu0
    %v3571 = vpop.f32.mrf.mxu0
    %3572 = vdwg.mxu0
    %3573 = vmatprep.subr.bf16.mxu0 %v2282
    %3574 = vmatpush1.bf16.msra.mxu0 %v2281
    %3575 = vmatprep.subr.bf16.mxu0 %v2274
    %3576 = vmatpush1.bf16.msra.mxu0 %v2273
    %3577 = vmatprep.subr.bf16.mxu0 %v2266
    %3578 = vmatpush1.bf16.msra.mxu0 %v2265
    %3579 = vmatprep.subr.bf16.mxu0 %v2258
    %3580 = vmatpush1.bf16.msra.mxu0 %v2257
    %3581 = vmatprep.subr.bf16.mxu0 %v2250
    %3582 = vmatpush1.bf16.msra.mxu0 %v2249
    %3583 = vmatprep.subr.bf16.mxu0 %v2242
    %3584 = vmatpush1.bf16.msra.mxu0 %v2241
    %3585 = vmatprep.subr.bf16.mxu0 %v2234
    %3586 = vmatpush1.bf16.msra.mxu0 %v2233
    %3587 = vmatprep.subr.bf16.mxu0 %v2226
    %3588 = vmatpush1.bf16.msra.mxu0 %v2225
    %3589 = vmatprep.subr.bf16.mxu0 %v2346
    %3590 = vmatpush2.bf16.msra.mxu0 %v2345
    %3591 = vmatprep.subr.bf16.mxu0 %v2338
    %3592 = vmatpush2.bf16.msra.mxu0 %v2337
    %3593 = vmatprep.subr.bf16.mxu0 %v2330
    %3594 = vmatpush2.bf16.msra.mxu0 %v2329
    %3595 = vmatprep.subr.bf16.mxu0 %v2322
    %3596 = vmatpush2.bf16.msra.mxu0 %v2321
    %3597 = vmatprep.subr.bf16.mxu0 %v2314
    %3598 = vmatpush2.bf16.msra.mxu0 %v2313
    %3599 = vmatprep.subr.bf16.mxu0 %v2306
    %3600 = vmatpush2.bf16.msra.mxu0 %v2305
    %3601 = vmatprep.subr.bf16.mxu0 %v2298
    %3602 = vmatpush2.bf16.msra.mxu0 %v2297
    %3603 = vmatprep.subr.bf16.mxu0 %v2290
    %3604 = vmatpush2.bf16.msra.mxu0 %v2289
    %3605 = vmatprep.mubr.bf16.mxu0 %v665
    %3606 = vmatmul.mubr.bf16.gmra.mxu0 %v651
    %v3607 = vpop.f32.mrf.mxu0
    %v3608 = vadd.f32 0.0, %v3607
    %v3609 = vpop.f32.mrf.mxu0
    %v3610 = vadd.f32 0.0, %v3609
    %v3611 = vpop.f32.mrf.mxu0
    %v3612 = vpop.f32.mrf.mxu0
    %3613 = vdwg.mxu0
    %3614 = vmatprep.subr.bf16.mxu0 %v2410
    %3615 = vmatpush1.bf16.msra.mxu0 %v2409
    %3616 = vmatprep.subr.bf16.mxu0 %v2402
    %3617 = vmatpush1.bf16.msra.mxu0 %v2401
    %3618 = vmatprep.subr.bf16.mxu0 %v2394
    %3619 = vmatpush1.bf16.msra.mxu0 %v2393
    %3620 = vmatprep.subr.bf16.mxu0 %v2386
    %3621 = vmatpush1.bf16.msra.mxu0 %v2385
    %3622 = vmatprep.subr.bf16.mxu0 %v2378
    %3623 = vmatpush1.bf16.msra.mxu0 %v2377
    %3624 = vmatprep.subr.bf16.mxu0 %v2370
    %3625 = vmatpush1.bf16.msra.mxu0 %v2369
    %3626 = vmatprep.subr.bf16.mxu0 %v2362
    %3627 = vmatpush1.bf16.msra.mxu0 %v2361
    %3628 = vmatprep.subr.bf16.mxu0 %v2354
    %3629 = vmatpush1.bf16.msra.mxu0 %v2353
    %3630 = vmatprep.subr.bf16.mxu0 %v2474
    %3631 = vmatpush2.bf16.msra.mxu0 %v2473
    %3632 = vmatprep.subr.bf16.mxu0 %v2466
    %3633 = vmatpush2.bf16.msra.mxu0 %v2465
    %3634 = vmatprep.subr.bf16.mxu0 %v2458
    %3635 = vmatpush2.bf16.msra.mxu0 %v2457
    %3636 = vmatprep.subr.bf16.mxu0 %v2450
    %3637 = vmatpush2.bf16.msra.mxu0 %v2449
    %3638 = vmatprep.subr.bf16.mxu0 %v2442
    %3639 = vmatpush2.bf16.msra.mxu0 %v2441
    %3640 = vmatprep.subr.bf16.mxu0 %v2434
    %3641 = vmatpush2.bf16.msra.mxu0 %v2433
    %3642 = vmatprep.subr.bf16.mxu0 %v2426
    %3643 = vmatpush2.bf16.msra.mxu0 %v2425
    %3644 = vmatprep.subr.bf16.mxu0 %v2418
    %3645 = vmatpush2.bf16.msra.mxu0 %v2417
    %3646 = vmatprep.mubr.bf16.mxu0 %v675
    %3647 = vmatmul.mubr.bf16.gmra.mxu0 %v673
    %v3648 = vpop.f32.mrf.mxu0
    %v3649 = vadd.f32 %v3608, %v3648
    %v3650 = vpop.f32.mrf.mxu0
    %v3651 = vadd.f32 %v3610, %v3650
    %v3652 = vpop.f32.mrf.mxu0
    %v3653 = vpop.f32.mrf.mxu0
    %3654 = vdwg.mxu0
    %3655 = vmatprep.subr.bf16.mxu0 %v2538
    %3656 = vmatpush1.bf16.msra.mxu0 %v2537
    %3657 = vmatprep.subr.bf16.mxu0 %v2530
    %3658 = vmatpush1.bf16.msra.mxu0 %v2529
    %3659 = vmatprep.subr.bf16.mxu0 %v2522
    %3660 = vmatpush1.bf16.msra.mxu0 %v2521
    %3661 = vmatprep.subr.bf16.mxu0 %v2514
    %3662 = vmatpush1.bf16.msra.mxu0 %v2513
    %3663 = vmatprep.subr.bf16.mxu0 %v2506
    %3664 = vmatpush1.bf16.msra.mxu0 %v2505
    %3665 = vmatprep.subr.bf16.mxu0 %v2498
    %3666 = vmatpush1.bf16.msra.mxu0 %v2497
    %3667 = vmatprep.subr.bf16.mxu0 %v2490
    %3668 = vmatpush1.bf16.msra.mxu0 %v2489
    %3669 = vmatprep.subr.bf16.mxu0 %v2482
    %3670 = vmatpush1.bf16.msra.mxu0 %v2481
    %3671 = vmatprep.subr.bf16.mxu0 %v2602
    %3672 = vmatpush2.bf16.msra.mxu0 %v2601
    %3673 = vmatprep.subr.bf16.mxu0 %v2594
    %3674 = vmatpush2.bf16.msra.mxu0 %v2593
    %3675 = vmatprep.subr.bf16.mxu0 %v2586
    %3676 = vmatpush2.bf16.msra.mxu0 %v2585
    %3677 = vmatprep.subr.bf16.mxu0 %v2578
    %3678 = vmatpush2.bf16.msra.mxu0 %v2577
    %3679 = vmatprep.subr.bf16.mxu0 %v2570
    %3680 = vmatpush2.bf16.msra.mxu0 %v2569
    %3681 = vmatprep.subr.bf16.mxu0 %v2562
    %3682 = vmatpush2.bf16.msra.mxu0 %v2561
    %3683 = vmatprep.subr.bf16.mxu0 %v2554
    %3684 = vmatpush2.bf16.msra.mxu0 %v2553
    %3685 = vmatprep.subr.bf16.mxu0 %v2546
    %3686 = vmatpush2.bf16.msra.mxu0 %v2545
    %3687 = vmatprep.mubr.bf16.mxu0 %v672
    %3688 = vmatmul.mubr.bf16.gmra.mxu0 %v658
    %v3689 = vpop.f32.mrf.mxu0
    %v3690 = vadd.f32 %v3649, %v3689
    %v3691 = vpop.f32.mrf.mxu0
    %v3692 = vadd.f32 %v3651, %v3691
    %v3693 = vpop.f32.mrf.mxu0
    %v3694 = vpop.f32.mrf.mxu0
    %3695 = vdwg.mxu0
    %3696 = vmatprep.subr.bf16.mxu0 %v2666
    %3697 = vmatpush1.bf16.msra.mxu0 %v2665
    %3698 = vmatprep.subr.bf16.mxu0 %v2658
    %3699 = vmatpush1.bf16.msra.mxu0 %v2657
    %3700 = vmatprep.subr.bf16.mxu0 %v2650
    %3701 = vmatpush1.bf16.msra.mxu0 %v2649
    %3702 = vmatprep.subr.bf16.mxu0 %v2642
    %3703 = vmatpush1.bf16.msra.mxu0 %v2641
    %3704 = vmatprep.subr.bf16.mxu0 %v2634
    %3705 = vmatpush1.bf16.msra.mxu0 %v2633
    %3706 = vmatprep.subr.bf16.mxu0 %v2626
    %3707 = vmatpush1.bf16.msra.mxu0 %v2625
    %3708 = vmatprep.subr.bf16.mxu0 %v2618
    %3709 = vmatpush1.bf16.msra.mxu0 %v2617
    %3710 = vmatprep.subr.bf16.mxu0 %v2610
    %3711 = vmatpush1.bf16.msra.mxu0 %v2609
    %3712 = vmatprep.subr.bf16.mxu0 %v2730
    %3713 = vmatpush2.bf16.msra.mxu0 %v2729
    %3714 = vmatprep.subr.bf16.mxu0 %v2722
    %3715 = vmatpush2.bf16.msra.mxu0 %v2721
    %3716 = vmatprep.subr.bf16.mxu0 %v2714
    %3717 = vmatpush2.bf16.msra.mxu0 %v2713
    %3718 = vmatprep.subr.bf16.mxu0 %v2706
    %3719 = vmatpush2.bf16.msra.mxu0 %v2705
    %3720 = vmatprep.subr.bf16.mxu0 %v2698
    %3721 = vmatpush2.bf16.msra.mxu0 %v2697
    %3722 = vmatprep.subr.bf16.mxu0 %v2690
    %3723 = vmatpush2.bf16.msra.mxu0 %v2689
    %3724 = vmatprep.subr.bf16.mxu0 %v2682
    %3725 = vmatpush2.bf16.msra.mxu0 %v2681
    %3726 = vmatprep.subr.bf16.mxu0 %v2674
    %3727 = vmatpush2.bf16.msra.mxu0 %v2673
    %3728 = vmatprep.mubr.bf16.mxu0 %v676
    %3729 = vmatmul.mubr.bf16.gmra.mxu0 %v674
    %v3730 = vpop.f32.mrf.mxu0
    %v3731 = vadd.f32 %v3690, %v3730
    %v3732 = vpop.f32.mrf.mxu0
    %v3733 = vadd.f32 %v3692, %v3732
    %v3734 = vpop.f32.mrf.mxu0
    %v3735 = vpop.f32.mrf.mxu0
    %3736 = vdwg.mxu0
    %3737 = vmatprep.subr.bf16.mxu0 %v2284
    %3738 = vmatpush1.bf16.msra.mxu0 %v2283
    %3739 = vmatprep.subr.bf16.mxu0 %v2276
    %3740 = vmatpush1.bf16.msra.mxu0 %v2275
    %3741 = vmatprep.subr.bf16.mxu0 %v2268
    %3742 = vmatpush1.bf16.msra.mxu0 %v2267
    %3743 = vmatprep.subr.bf16.mxu0 %v2260
    %3744 = vmatpush1.bf16.msra.mxu0 %v2259
    %3745 = vmatprep.subr.bf16.mxu0 %v2252
    %3746 = vmatpush1.bf16.msra.mxu0 %v2251
    %3747 = vmatprep.subr.bf16.mxu0 %v2244
    %3748 = vmatpush1.bf16.msra.mxu0 %v2243
    %3749 = vmatprep.subr.bf16.mxu0 %v2236
    %3750 = vmatpush1.bf16.msra.mxu0 %v2235
    %3751 = vmatprep.subr.bf16.mxu0 %v2228
    %3752 = vmatpush1.bf16.msra.mxu0 %v2227
    %3753 = vmatprep.subr.bf16.mxu0 %v2348
    %3754 = vmatpush2.bf16.msra.mxu0 %v2347
    %3755 = vmatprep.subr.bf16.mxu0 %v2340
    %3756 = vmatpush2.bf16.msra.mxu0 %v2339
    %3757 = vmatprep.subr.bf16.mxu0 %v2332
    %3758 = vmatpush2.bf16.msra.mxu0 %v2331
    %3759 = vmatprep.subr.bf16.mxu0 %v2324
    %3760 = vmatpush2.bf16.msra.mxu0 %v2323
    %3761 = vmatprep.subr.bf16.mxu0 %v2316
    %3762 = vmatpush2.bf16.msra.mxu0 %v2315
    %3763 = vmatprep.subr.bf16.mxu0 %v2308
    %3764 = vmatpush2.bf16.msra.mxu0 %v2307
    %3765 = vmatprep.subr.bf16.mxu0 %v2300
    %3766 = vmatpush2.bf16.msra.mxu0 %v2299
    %3767 = vmatprep.subr.bf16.mxu0 %v2292
    %3768 = vmatpush2.bf16.msra.mxu0 %v2291
    %3769 = vmatprep.mubr.bf16.mxu0 %v665
    %3770 = vmatmul.mubr.bf16.gmra.mxu0 %v651
    %v3771 = vpop.f32.mrf.mxu0
    %v3772 = vadd.f32 0.0, %v3771
    %v3773 = vpop.f32.mrf.mxu0
    %v3774 = vadd.f32 0.0, %v3773
    %v3775 = vpop.f32.mrf.mxu0
    %v3776 = vpop.f32.mrf.mxu0
    %3777 = vdwg.mxu0
    %3778 = vmatprep.subr.bf16.mxu0 %v2412
    %3779 = vmatpush1.bf16.msra.mxu0 %v2411
    %3780 = vmatprep.subr.bf16.mxu0 %v2404
    %3781 = vmatpush1.bf16.msra.mxu0 %v2403
    %3782 = vmatprep.subr.bf16.mxu0 %v2396
    %3783 = vmatpush1.bf16.msra.mxu0 %v2395
    %3784 = vmatprep.subr.bf16.mxu0 %v2388
    %3785 = vmatpush1.bf16.msra.mxu0 %v2387
    %3786 = vmatprep.subr.bf16.mxu0 %v2380
    %3787 = vmatpush1.bf16.msra.mxu0 %v2379
    %3788 = vmatprep.subr.bf16.mxu0 %v2372
    %3789 = vmatpush1.bf16.msra.mxu0 %v2371
    %3790 = vmatprep.subr.bf16.mxu0 %v2364
    %3791 = vmatpush1.bf16.msra.mxu0 %v2363
    %3792 = vmatprep.subr.bf16.mxu0 %v2356
    %3793 = vmatpush1.bf16.msra.mxu0 %v2355
    %3794 = vmatprep.subr.bf16.mxu0 %v2476
    %3795 = vmatpush2.bf16.msra.mxu0 %v2475
    %3796 = vmatprep.subr.bf16.mxu0 %v2468
    %3797 = vmatpush2.bf16.msra.mxu0 %v2467
    %3798 = vmatprep.subr.bf16.mxu0 %v2460
    %3799 = vmatpush2.bf16.msra.mxu0 %v2459
    %3800 = vmatprep.subr.bf16.mxu0 %v2452
    %3801 = vmatpush2.bf16.msra.mxu0 %v2451
    %3802 = vmatprep.subr.bf16.mxu0 %v2444
    %3803 = vmatpush2.bf16.msra.mxu0 %v2443
    %3804 = vmatprep.subr.bf16.mxu0 %v2436
    %3805 = vmatpush2.bf16.msra.mxu0 %v2435
    %3806 = vmatprep.subr.bf16.mxu0 %v2428
    %3807 = vmatpush2.bf16.msra.mxu0 %v2427
    %3808 = vmatprep.subr.bf16.mxu0 %v2420
    %3809 = vmatpush2.bf16.msra.mxu0 %v2419
    %3810 = vmatprep.mubr.bf16.mxu0 %v675
    %3811 = vmatmul.mubr.bf16.gmra.mxu0 %v673
    %v3812 = vpop.f32.mrf.mxu0
    %v3813 = vadd.f32 %v3772, %v3812
    %v3814 = vpop.f32.mrf.mxu0
    %v3815 = vadd.f32 %v3774, %v3814
    %v3816 = vpop.f32.mrf.mxu0
    %v3817 = vpop.f32.mrf.mxu0
    %3818 = vdwg.mxu0
    %3819 = vmatprep.subr.bf16.mxu0 %v2540
    %3820 = vmatpush1.bf16.msra.mxu0 %v2539
    %3821 = vmatprep.subr.bf16.mxu0 %v2532
    %3822 = vmatpush1.bf16.msra.mxu0 %v2531
    %3823 = vmatprep.subr.bf16.mxu0 %v2524
    %3824 = vmatpush1.bf16.msra.mxu0 %v2523
    %3825 = vmatprep.subr.bf16.mxu0 %v2516
    %3826 = vmatpush1.bf16.msra.mxu0 %v2515
    %3827 = vmatprep.subr.bf16.mxu0 %v2508
    %3828 = vmatpush1.bf16.msra.mxu0 %v2507
    %3829 = vmatprep.subr.bf16.mxu0 %v2500
    %3830 = vmatpush1.bf16.msra.mxu0 %v2499
    %3831 = vmatprep.subr.bf16.mxu0 %v2492
    %3832 = vmatpush1.bf16.msra.mxu0 %v2491
    %3833 = vmatprep.subr.bf16.mxu0 %v2484
    %3834 = vmatpush1.bf16.msra.mxu0 %v2483
    %3835 = vmatprep.subr.bf16.mxu0 %v2604
    %3836 = vmatpush2.bf16.msra.mxu0 %v2603
    %3837 = vmatprep.subr.bf16.mxu0 %v2596
    %3838 = vmatpush2.bf16.msra.mxu0 %v2595
    %3839 = vmatprep.subr.bf16.mxu0 %v2588
    %3840 = vmatpush2.bf16.msra.mxu0 %v2587
    %3841 = vmatprep.subr.bf16.mxu0 %v2580
    %3842 = vmatpush2.bf16.msra.mxu0 %v2579
    %3843 = vmatprep.subr.bf16.mxu0 %v2572
    %3844 = vmatpush2.bf16.msra.mxu0 %v2571
    %3845 = vmatprep.subr.bf16.mxu0 %v2564
    %3846 = vmatpush2.bf16.msra.mxu0 %v2563
    %3847 = vmatprep.subr.bf16.mxu0 %v2556
    %3848 = vmatpush2.bf16.msra.mxu0 %v2555
    %3849 = vmatprep.subr.bf16.mxu0 %v2548
    %3850 = vmatpush2.bf16.msra.mxu0 %v2547
    %3851 = vmatprep.mubr.bf16.mxu0 %v672
    %3852 = vmatmul.mubr.bf16.gmra.mxu0 %v658
    %v3853 = vpop.f32.mrf.mxu0
    %v3854 = vadd.f32 %v3813, %v3853
    %v3855 = vpop.f32.mrf.mxu0
    %v3856 = vadd.f32 %v3815, %v3855
    %v3857 = vpop.f32.mrf.mxu0
    %v3858 = vpop.f32.mrf.mxu0
    %3859 = vdwg.mxu0
    %3860 = vmatprep.subr.bf16.mxu0 %v2668
    %3861 = vmatpush1.bf16.msra.mxu0 %v2667
    %3862 = vmatprep.subr.bf16.mxu0 %v2660
    %3863 = vmatpush1.bf16.msra.mxu0 %v2659
    %3864 = vmatprep.subr.bf16.mxu0 %v2652
    %3865 = vmatpush1.bf16.msra.mxu0 %v2651
    %3866 = vmatprep.subr.bf16.mxu0 %v2644
    %3867 = vmatpush1.bf16.msra.mxu0 %v2643
    %3868 = vmatprep.subr.bf16.mxu0 %v2636
    %3869 = vmatpush1.bf16.msra.mxu0 %v2635
    %3870 = vmatprep.subr.bf16.mxu0 %v2628
    %3871 = vmatpush1.bf16.msra.mxu0 %v2627
    %3872 = vmatprep.subr.bf16.mxu0 %v2620
    %3873 = vmatpush1.bf16.msra.mxu0 %v2619
    %3874 = vmatprep.subr.bf16.mxu0 %v2612
    %3875 = vmatpush1.bf16.msra.mxu0 %v2611
    %3876 = vmatprep.subr.bf16.mxu0 %v2732
    %3877 = vmatpush2.bf16.msra.mxu0 %v2731
    %3878 = vmatprep.subr.bf16.mxu0 %v2724
    %3879 = vmatpush2.bf16.msra.mxu0 %v2723
    %3880 = vmatprep.subr.bf16.mxu0 %v2716
    %3881 = vmatpush2.bf16.msra.mxu0 %v2715
    %3882 = vmatprep.subr.bf16.mxu0 %v2708
    %3883 = vmatpush2.bf16.msra.mxu0 %v2707
    %3884 = vmatprep.subr.bf16.mxu0 %v2700
    %3885 = vmatpush2.bf16.msra.mxu0 %v2699
    %3886 = vmatprep.subr.bf16.mxu0 %v2692
    %3887 = vmatpush2.bf16.msra.mxu0 %v2691
    %3888 = vmatprep.subr.bf16.mxu0 %v2684
    %3889 = vmatpush2.bf16.msra.mxu0 %v2683
    %3890 = vmatprep.subr.bf16.mxu0 %v2676
    %3891 = vmatpush2.bf16.msra.mxu0 %v2675
    %3892 = vmatprep.mubr.bf16.mxu0 %v676
    %3893 = vmatmul.mubr.bf16.gmra.mxu0 %v674
    %v3894 = vpop.f32.mrf.mxu0
    %v3895 = vadd.f32 %v3854, %v3894
    %v3896 = vpop.f32.mrf.mxu0
    %v3897 = vadd.f32 %v3856, %v3896
    %v3898 = vpop.f32.mrf.mxu0
    %v3899 = vpop.f32.mrf.mxu0
    %3900 = vdwg.mxu0
    %v3901 = vld [vmem:[#allocation10] sm:$0xff]
    %v3902 = vld [vmem:[#allocation10 + $0x8] sm:$0xff]
    %v3903 = vld [vmem:[#allocation10 + $0x10] sm:$0xff]
    %v3904 = vld [vmem:[#allocation10 + $0x18] sm:$0xff]
    %v3905 = vmul.f32 %v3403, %v3403
    %v3906 = vmul.f32 %v3405, %v3405
    %v3907 = vmul.f32 %v3567, %v3567
    %v3908 = vmul.f32 %v3569, %v3569
    %v3909 = vmul.f32 %v3731, %v3731
    %v3910 = vmul.f32 %v3733, %v3733
    %v3911 = vmul.f32 %v3895, %v3895
    %v3912 = vmul.f32 %v3897, %v3897
    %v3921 = vrot.slane %v3905, 6
    %v3922 = vrot.slane %v3906, 6
    %v3923 = vrot.slane %v3907, 6
    %v3924 = vrot.slane %v3908, 6
    %v3925 = vrot.slane %v3909, 6
    %v3926 = vrot.slane %v3910, 6
    %v3927 = vrot.slane %v3911, 6
    %v3928 = vrot.slane %v3912, 6
    %vm3937 = vcmask 1041408
    %v3938 = vsel %vm3937, %v3403, %v3921
    %v3939 = vsel %vm3937, %v3405, %v3922
    %v3940 = vsel %vm3937, %v3567, %v3923
    %v3941 = vsel %vm3937, %v3569, %v3924
    %v3942 = vsel %vm3937, %v3731, %v3925
    %v3943 = vsel %vm3937, %v3733, %v3926
    %v3944 = vsel %vm3937, %v3895, %v3927
    %v3945 = vsel %vm3937, %v3897, %v3928
    %v3950 = vcombine.high %v3901, %v3901
    %v3951 = vcombine.high %v3902, %v3902
    %v3952 = vcombine.high %v3903, %v3903
    %v3953 = vcombine.high %v3904, %v3904
    %3958 = vmatprep.subr.mxu0 0.0
    %3959 = vmatpush1.xpose.msra.mxu0 0.0
    %3960 = vmatprep.subr.mxu0 0.0
    %3961 = vmatpush1.xpose.msra.mxu0 0.0
    %3962 = vmatprep.subr.mxu0 0.0
    %3963 = vmatpush1.xpose.msra.mxu0 0.0
    %3964 = vmatprep.subr.mxu0 0.0
    %3965 = vmatpush1.xpose.msra.mxu0 0.0
    %3966 = vmatprep.subr.mxu0 0.0
    %3967 = vmatpush1.xpose.msra.mxu0 0.0
    %3968 = vmatprep.subr.mxu0 0.0
    %3969 = vmatpush1.xpose.msra.mxu0 0.0
    %3970 = vmatprep.subr.mxu0 0.0
    %3971 = vmatpush1.xpose.msra.mxu0 0.0
    %3972 = vmatprep.subr.mxu0 0.0
    %3973 = vmatpush1.xpose.msra.mxu0 0.0
    %3974 = vmatprep.subr.mxu0 0.0
    %3975 = vmatpush1.xpose.msra.mxu0 0.0
    %3976 = vmatprep.subr.mxu0 0.0
    %3977 = vmatpush1.xpose.msra.mxu0 0.0
    %3978 = vmatprep.subr.mxu0 0.0
    %3979 = vmatpush1.xpose.msra.mxu0 0.0
    %3980 = vmatprep.subr.mxu0 0.0
    %3981 = vmatpush1.xpose.msra.mxu0 0.0
    %3982 = vmatprep.subr.mxu0 0.0
    %3983 = vmatpush1.xpose.msra.mxu0 0.0
    %3984 = vmatprep.subr.mxu0 0.0
    %3985 = vmatpush1.xpose.msra.mxu0 0.0
    %3986 = vmatprep.subr.mxu0 0.0
    %3987 = vmatpush1.xpose.msra.mxu0 0.0
    %v3988 = vand.u32 %v3950, 4294901760
    %3989 = vmatprep.subr.mxu0 %v3988
    %v3990 = vand.u32 %v3901, 4294901760
    %3991 = vmatpush1.xpose.msra.mxu0 %v3990
    %3992 = vmatprep.subr.mxu0 0.0
    %3993 = vmatpush2.xpose.msra.mxu0 0.0
    %3994 = vmatprep.subr.mxu0 0.0
    %3995 = vmatpush2.xpose.msra.mxu0 0.0
    %3996 = vmatprep.subr.mxu0 0.0
    %3997 = vmatpush2.xpose.msra.mxu0 0.0
    %3998 = vmatprep.subr.mxu0 0.0
    %3999 = vmatpush2.xpose.msra.mxu0 0.0
    %4000 = vmatprep.subr.mxu0 0.0
    %4001 = vmatpush2.xpose.msra.mxu0 0.0
    %4002 = vmatprep.subr.mxu0 0.0
    %4003 = vmatpush2.xpose.msra.mxu0 0.0
    %4004 = vmatprep.subr.mxu0 0.0
    %4005 = vmatpush2.xpose.msra.mxu0 0.0
    %4006 = vmatprep.subr.mxu0 0.0
    %4007 = vmatpush2.xpose.msra.mxu0 0.0
    %4008 = vmatprep.subr.mxu0 0.0
    %4009 = vmatpush2.xpose.msra.mxu0 0.0
    %4010 = vmatprep.subr.mxu0 0.0
    %4011 = vmatpush2.xpose.msra.mxu0 0.0
    %4012 = vmatprep.subr.mxu0 0.0
    %4013 = vmatpush2.xpose.msra.mxu0 0.0
    %4014 = vmatprep.subr.mxu0 0.0
    %4015 = vmatpush2.xpose.msra.mxu0 0.0
    %4016 = vmatprep.subr.mxu0 0.0
    %4017 = vmatpush2.xpose.msra.mxu0 0.0
    %4018 = vmatprep.subr.mxu0 0.0
    %4019 = vmatpush2.xpose.msra.mxu0 0.0
    %4020 = vmatprep.subr.mxu0 0.0
    %4021 = vmatpush2.xpose.msra.mxu0 0.0
    %4022 = vmatprep.subr.mxu0 0.0
    %4023 = vmatpush2.xpose.msra.mxu0 0.0
    %v4024 = vand.u32 %v3939, 4294901760
    %v4025 = vsub.f32 %v3939, %v4024
    %v4026 = vand.u32 %v4025, 4294901760
    %v4027 = vsub.f32 %v4025, %v4026
    %v4028 = vand.u32 %v4027, 4294901760
    %4029 = vmatprep.mubr.f32.mxu0 %v4028
    %v4030 = vand.u32 %v3938, 4294901760
    %v4031 = vsub.f32 %v3938, %v4030
    %v4032 = vand.u32 %v4031, 4294901760
    %v4033 = vsub.f32 %v4031, %v4032
    %v4034 = vand.u32 %v4033, 4294901760
    %4035 = vmatmul.mubr.f32.gmra.mxu0 %v4034
    %v4036 = vpop.f32.mrf.mxu0
    %v4037 = vadd.f32 0.0, %v4036
    %v4038 = vpop.f32.mrf.mxu0
    %4039 = vdwg.mxu0
    %4040 = vmatprep.subr.mxu0 0.0
    %4041 = vmatpush1.xpose.msra.mxu0 0.0
    %4042 = vmatprep.subr.mxu0 0.0
    %4043 = vmatpush1.xpose.msra.mxu0 0.0
    %4044 = vmatprep.subr.mxu0 0.0
    %4045 = vmatpush1.xpose.msra.mxu0 0.0
    %4046 = vmatprep.subr.mxu0 0.0
    %4047 = vmatpush1.xpose.msra.mxu0 0.0
    %4048 = vmatprep.subr.mxu0 0.0
    %4049 = vmatpush1.xpose.msra.mxu0 0.0
    %4050 = vmatprep.subr.mxu0 0.0
    %4051 = vmatpush1.xpose.msra.mxu0 0.0
    %4052 = vmatprep.subr.mxu0 0.0
    %4053 = vmatpush1.xpose.msra.mxu0 0.0
    %4054 = vmatprep.subr.mxu0 0.0
    %4055 = vmatpush1.xpose.msra.mxu0 0.0
    %4056 = vmatprep.subr.mxu0 0.0
    %4057 = vmatpush1.xpose.msra.mxu0 0.0
    %4058 = vmatprep.subr.mxu0 0.0
    %4059 = vmatpush1.xpose.msra.mxu0 0.0
    %4060 = vmatprep.subr.mxu0 0.0
    %4061 = vmatpush1.xpose.msra.mxu0 0.0
    %4062 = vmatprep.subr.mxu0 0.0
    %4063 = vmatpush1.xpose.msra.mxu0 0.0
    %4064 = vmatprep.subr.mxu0 0.0
    %4065 = vmatpush1.xpose.msra.mxu0 0.0
    %4066 = vmatprep.subr.mxu0 0.0
    %4067 = vmatpush1.xpose.msra.mxu0 0.0
    %4068 = vmatprep.subr.mxu0 0.0
    %4069 = vmatpush1.xpose.msra.mxu0 0.0
    %v4070 = vand.u32 %v3950, 4294901760
    %v4071 = vsub.f32 %v3950, %v4070
    %v4072 = vand.u32 %v4071, 4294901760
    %v4073 = vsub.f32 %v4071, %v4072
    %v4074 = vand.u32 %v4073, 4294901760
    %4075 = vmatprep.subr.mxu0 %v4074
    %v4076 = vand.u32 %v3901, 4294901760
    %v4077 = vsub.f32 %v3901, %v4076
    %v4078 = vand.u32 %v4077, 4294901760
    %v4079 = vsub.f32 %v4077, %v4078
    %v4080 = vand.u32 %v4079, 4294901760
    %4081 = vmatpush1.xpose.msra.mxu0 %v4080
    %4082 = vmatprep.subr.mxu0 0.0
    %4083 = vmatpush2.xpose.msra.mxu0 0.0
    %4084 = vmatprep.subr.mxu0 0.0
    %4085 = vmatpush2.xpose.msra.mxu0 0.0
    %4086 = vmatprep.subr.mxu0 0.0
    %4087 = vmatpush2.xpose.msra.mxu0 0.0
    %4088 = vmatprep.subr.mxu0 0.0
    %4089 = vmatpush2.xpose.msra.mxu0 0.0
    %4090 = vmatprep.subr.mxu0 0.0
    %4091 = vmatpush2.xpose.msra.mxu0 0.0
    %4092 = vmatprep.subr.mxu0 0.0
    %4093 = vmatpush2.xpose.msra.mxu0 0.0
    %4094 = vmatprep.subr.mxu0 0.0
    %4095 = vmatpush2.xpose.msra.mxu0 0.0
    %4096 = vmatprep.subr.mxu0 0.0
    %4097 = vmatpush2.xpose.msra.mxu0 0.0
    %4098 = vmatprep.subr.mxu0 0.0
    %4099 = vmatpush2.xpose.msra.mxu0 0.0
    %4100 = vmatprep.subr.mxu0 0.0
    %4101 = vmatpush2.xpose.msra.mxu0 0.0
    %4102 = vmatprep.subr.mxu0 0.0
    %4103 = vmatpush2.xpose.msra.mxu0 0.0
    %4104 = vmatprep.subr.mxu0 0.0
    %4105 = vmatpush2.xpose.msra.mxu0 0.0
    %4106 = vmatprep.subr.mxu0 0.0
    %4107 = vmatpush2.xpose.msra.mxu0 0.0
    %4108 = vmatprep.subr.mxu0 0.0
    %4109 = vmatpush2.xpose.msra.mxu0 0.0
    %4110 = vmatprep.subr.mxu0 0.0
    %4111 = vmatpush2.xpose.msra.mxu0 0.0
    %4112 = vmatprep.subr.mxu0 0.0
    %4113 = vmatpush2.xpose.msra.mxu0 0.0
    %v4114 = vand.u32 %v3939, 4294901760
    %4115 = vmatprep.mubr.f32.mxu0 %v4114
    %v4116 = vand.u32 %v3938, 4294901760
    %4117 = vmatmul.mubr.f32.gmra.mxu0 %v4116
    %v4118 = vpop.f32.mrf.mxu0
    %v4119 = vadd.f32 %v4037, %v4118
    %v4120 = vpop.f32.mrf.mxu0
    %4121 = vdwg.mxu0
    %4122 = vmatprep.subr.mxu0 0.0
    %4123 = vmatpush1.xpose.msra.mxu0 0.0
    %4124 = vmatprep.subr.mxu0 0.0
    %4125 = vmatpush1.xpose.msra.mxu0 0.0
    %4126 = vmatprep.subr.mxu0 0.0
    %4127 = vmatpush1.xpose.msra.mxu0 0.0
    %4128 = vmatprep.subr.mxu0 0.0
    %4129 = vmatpush1.xpose.msra.mxu0 0.0
    %4130 = vmatprep.subr.mxu0 0.0
    %4131 = vmatpush1.xpose.msra.mxu0 0.0
    %4132 = vmatprep.subr.mxu0 0.0
    %4133 = vmatpush1.xpose.msra.mxu0 0.0
    %4134 = vmatprep.subr.mxu0 0.0
    %4135 = vmatpush1.xpose.msra.mxu0 0.0
    %4136 = vmatprep.subr.mxu0 0.0
    %4137 = vmatpush1.xpose.msra.mxu0 0.0
    %4138 = vmatprep.subr.mxu0 0.0
    %4139 = vmatpush1.xpose.msra.mxu0 0.0
    %4140 = vmatprep.subr.mxu0 0.0
    %4141 = vmatpush1.xpose.msra.mxu0 0.0
    %4142 = vmatprep.subr.mxu0 0.0
    %4143 = vmatpush1.xpose.msra.mxu0 0.0
    %4144 = vmatprep.subr.mxu0 0.0
    %4145 = vmatpush1.xpose.msra.mxu0 0.0
    %4146 = vmatprep.subr.mxu0 0.0
    %4147 = vmatpush1.xpose.msra.mxu0 0.0
    %4148 = vmatprep.subr.mxu0 0.0
    %4149 = vmatpush1.xpose.msra.mxu0 0.0
    %4150 = vmatprep.subr.mxu0 0.0
    %4151 = vmatpush1.xpose.msra.mxu0 0.0
    %v4152 = vand.u32 %v3950, 4294901760
    %v4153 = vsub.f32 %v3950, %v4152
    %4154 = vmatprep.subr.mxu0 %v4153
    %v4155 = vand.u32 %v3901, 4294901760
    %v4156 = vsub.f32 %v3901, %v4155
    %4157 = vmatpush1.xpose.msra.mxu0 %v4156
    %4158 = vmatprep.subr.mxu0 0.0
    %4159 = vmatpush2.xpose.msra.mxu0 0.0
    %4160 = vmatprep.subr.mxu0 0.0
    %4161 = vmatpush2.xpose.msra.mxu0 0.0
    %4162 = vmatprep.subr.mxu0 0.0
    %4163 = vmatpush2.xpose.msra.mxu0 0.0
    %4164 = vmatprep.subr.mxu0 0.0
    %4165 = vmatpush2.xpose.msra.mxu0 0.0
    %4166 = vmatprep.subr.mxu0 0.0
    %4167 = vmatpush2.xpose.msra.mxu0 0.0
    %4168 = vmatprep.subr.mxu0 0.0
    %4169 = vmatpush2.xpose.msra.mxu0 0.0
    %4170 = vmatprep.subr.mxu0 0.0
    %4171 = vmatpush2.xpose.msra.mxu0 0.0
    %4172 = vmatprep.subr.mxu0 0.0
    %4173 = vmatpush2.xpose.msra.mxu0 0.0
    %4174 = vmatprep.subr.mxu0 0.0
    %4175 = vmatpush2.xpose.msra.mxu0 0.0
    %4176 = vmatprep.subr.mxu0 0.0
    %4177 = vmatpush2.xpose.msra.mxu0 0.0
    %4178 = vmatprep.subr.mxu0 0.0
    %4179 = vmatpush2.xpose.msra.mxu0 0.0
    %4180 = vmatprep.subr.mxu0 0.0
    %4181 = vmatpush2.xpose.msra.mxu0 0.0
    %4182 = vmatprep.subr.mxu0 0.0
    %4183 = vmatpush2.xpose.msra.mxu0 0.0
    %4184 = vmatprep.subr.mxu0 0.0
    %4185 = vmatpush2.xpose.msra.mxu0 0.0
    %4186 = vmatprep.subr.mxu0 0.0
    %4187 = vmatpush2.xpose.msra.mxu0 0.0
    %4188 = vmatprep.subr.mxu0 0.0
    %4189 = vmatpush2.xpose.msra.mxu0 0.0
    %v4190 = vand.u32 %v3939, 4294901760
    %v4191 = vsub.f32 %v3939, %v4190
    %4192 = vmatprep.mubr.f32.mxu0 %v4191
    %v4193 = vand.u32 %v3938, 4294901760
    %v4194 = vsub.f32 %v3938, %v4193
    %4195 = vmatmul.mubr.f32.gmra.mxu0 %v4194
    %v4196 = vpop.f32.mrf.mxu0
    %v4197 = vadd.f32 %v4119, %v4196
    %v4198 = vpop.f32.mrf.mxu0
    %4199 = vdwg.mxu0
    %4200 = vmatprep.subr.mxu0 0.0
    %4201 = vmatpush1.xpose.msra.mxu0 0.0
    %4202 = vmatprep.subr.mxu0 0.0
    %4203 = vmatpush1.xpose.msra.mxu0 0.0
    %4204 = vmatprep.subr.mxu0 0.0
    %4205 = vmatpush1.xpose.msra.mxu0 0.0
    %4206 = vmatprep.subr.mxu0 0.0
    %4207 = vmatpush1.xpose.msra.mxu0 0.0
    %4208 = vmatprep.subr.mxu0 0.0
    %4209 = vmatpush1.xpose.msra.mxu0 0.0
    %4210 = vmatprep.subr.mxu0 0.0
    %4211 = vmatpush1.xpose.msra.mxu0 0.0
    %4212 = vmatprep.subr.mxu0 0.0
    %4213 = vmatpush1.xpose.msra.mxu0 0.0
    %4214 = vmatprep.subr.mxu0 0.0
    %4215 = vmatpush1.xpose.msra.mxu0 0.0
    %4216 = vmatprep.subr.mxu0 0.0
    %4217 = vmatpush1.xpose.msra.mxu0 0.0
    %4218 = vmatprep.subr.mxu0 0.0
    %4219 = vmatpush1.xpose.msra.mxu0 0.0
    %4220 = vmatprep.subr.mxu0 0.0
    %4221 = vmatpush1.xpose.msra.mxu0 0.0
    %4222 = vmatprep.subr.mxu0 0.0
    %4223 = vmatpush1.xpose.msra.mxu0 0.0
    %4224 = vmatprep.subr.mxu0 0.0
    %4225 = vmatpush1.xpose.msra.mxu0 0.0
    %4226 = vmatprep.subr.mxu0 0.0
    %4227 = vmatpush1.xpose.msra.mxu0 0.0
    %4228 = vmatprep.subr.mxu0 0.0
    %4229 = vmatpush1.xpose.msra.mxu0 0.0
    %v4230 = vand.u32 %v3950, 4294901760
    %4231 = vmatprep.subr.mxu0 %v4230
    %v4232 = vand.u32 %v3901, 4294901760
    %4233 = vmatpush1.xpose.msra.mxu0 %v4232
    %4234 = vmatprep.subr.mxu0 0.0
    %4235 = vmatpush2.xpose.msra.mxu0 0.0
    %4236 = vmatprep.subr.mxu0 0.0
    %4237 = vmatpush2.xpose.msra.mxu0 0.0
    %4238 = vmatprep.subr.mxu0 0.0
    %4239 = vmatpush2.xpose.msra.mxu0 0.0
    %4240 = vmatprep.subr.mxu0 0.0
    %4241 = vmatpush2.xpose.msra.mxu0 0.0
    %4242 = vmatprep.subr.mxu0 0.0
    %4243 = vmatpush2.xpose.msra.mxu0 0.0
    %4244 = vmatprep.subr.mxu0 0.0
    %4245 = vmatpush2.xpose.msra.mxu0 0.0
    %4246 = vmatprep.subr.mxu0 0.0
    %4247 = vmatpush2.xpose.msra.mxu0 0.0
    %4248 = vmatprep.subr.mxu0 0.0
    %4249 = vmatpush2.xpose.msra.mxu0 0.0
    %4250 = vmatprep.subr.mxu0 0.0
    %4251 = vmatpush2.xpose.msra.mxu0 0.0
    %4252 = vmatprep.subr.mxu0 0.0
    %4253 = vmatpush2.xpose.msra.mxu0 0.0
    %4254 = vmatprep.subr.mxu0 0.0
    %4255 = vmatpush2.xpose.msra.mxu0 0.0
    %4256 = vmatprep.subr.mxu0 0.0
    %4257 = vmatpush2.xpose.msra.mxu0 0.0
    %4258 = vmatprep.subr.mxu0 0.0
    %4259 = vmatpush2.xpose.msra.mxu0 0.0
    %4260 = vmatprep.subr.mxu0 0.0
    %4261 = vmatpush2.xpose.msra.mxu0 0.0
    %4262 = vmatprep.subr.mxu0 0.0
    %4263 = vmatpush2.xpose.msra.mxu0 0.0
    %4264 = vmatprep.subr.mxu0 0.0
    %4265 = vmatpush2.xpose.msra.mxu0 0.0
    %v4266 = vand.u32 %v3939, 4294901760
    %v4267 = vsub.f32 %v3939, %v4266
    %v4268 = vand.u32 %v4267, 4294901760
    %4269 = vmatprep.mubr.f32.mxu0 %v4268
    %v4270 = vand.u32 %v3938, 4294901760
    %v4271 = vsub.f32 %v3938, %v4270
    %v4272 = vand.u32 %v4271, 4294901760
    %4273 = vmatmul.mubr.f32.gmra.mxu0 %v4272
    %v4274 = vpop.f32.mrf.mxu0
    %v4275 = vadd.f32 %v4197, %v4274
    %v4276 = vpop.f32.mrf.mxu0
    %4277 = vdwg.mxu0
    %4278 = vmatprep.subr.mxu0 0.0
    %4279 = vmatpush1.xpose.msra.mxu0 0.0
    %4280 = vmatprep.subr.mxu0 0.0
    %4281 = vmatpush1.xpose.msra.mxu0 0.0
    %4282 = vmatprep.subr.mxu0 0.0
    %4283 = vmatpush1.xpose.msra.mxu0 0.0
    %4284 = vmatprep.subr.mxu0 0.0
    %4285 = vmatpush1.xpose.msra.mxu0 0.0
    %4286 = vmatprep.subr.mxu0 0.0
    %4287 = vmatpush1.xpose.msra.mxu0 0.0
    %4288 = vmatprep.subr.mxu0 0.0
    %4289 = vmatpush1.xpose.msra.mxu0 0.0
    %4290 = vmatprep.subr.mxu0 0.0
    %4291 = vmatpush1.xpose.msra.mxu0 0.0
    %4292 = vmatprep.subr.mxu0 0.0
    %4293 = vmatpush1.xpose.msra.mxu0 0.0
    %4294 = vmatprep.subr.mxu0 0.0
    %4295 = vmatpush1.xpose.msra.mxu0 0.0
    %4296 = vmatprep.subr.mxu0 0.0
    %4297 = vmatpush1.xpose.msra.mxu0 0.0
    %4298 = vmatprep.subr.mxu0 0.0
    %4299 = vmatpush1.xpose.msra.mxu0 0.0
    %4300 = vmatprep.subr.mxu0 0.0
    %4301 = vmatpush1.xpose.msra.mxu0 0.0
    %4302 = vmatprep.subr.mxu0 0.0
    %4303 = vmatpush1.xpose.msra.mxu0 0.0
    %4304 = vmatprep.subr.mxu0 0.0
    %4305 = vmatpush1.xpose.msra.mxu0 0.0
    %4306 = vmatprep.subr.mxu0 0.0
    %4307 = vmatpush1.xpose.msra.mxu0 0.0
    %v4308 = vand.u32 %v3950, 4294901760
    %v4309 = vsub.f32 %v3950, %v4308
    %v4310 = vand.u32 %v4309, 4294901760
    %4311 = vmatprep.subr.mxu0 %v4310
    %v4312 = vand.u32 %v3901, 4294901760
    %v4313 = vsub.f32 %v3901, %v4312
    %v4314 = vand.u32 %v4313, 4294901760
    %4315 = vmatpush1.xpose.msra.mxu0 %v4314
    %4316 = vmatprep.subr.mxu0 0.0
    %4317 = vmatpush2.xpose.msra.mxu0 0.0
    %4318 = vmatprep.subr.mxu0 0.0
    %4319 = vmatpush2.xpose.msra.mxu0 0.0
    %4320 = vmatprep.subr.mxu0 0.0
    %4321 = vmatpush2.xpose.msra.mxu0 0.0
    %4322 = vmatprep.subr.mxu0 0.0
    %4323 = vmatpush2.xpose.msra.mxu0 0.0
    %4324 = vmatprep.subr.mxu0 0.0
    %4325 = vmatpush2.xpose.msra.mxu0 0.0
    %4326 = vmatprep.subr.mxu0 0.0
    %4327 = vmatpush2.xpose.msra.mxu0 0.0
    %4328 = vmatprep.subr.mxu0 0.0
    %4329 = vmatpush2.xpose.msra.mxu0 0.0
    %4330 = vmatprep.subr.mxu0 0.0
    %4331 = vmatpush2.xpose.msra.mxu0 0.0
    %4332 = vmatprep.subr.mxu0 0.0
    %4333 = vmatpush2.xpose.msra.mxu0 0.0
    %4334 = vmatprep.subr.mxu0 0.0
    %4335 = vmatpush2.xpose.msra.mxu0 0.0
    %4336 = vmatprep.subr.mxu0 0.0
    %4337 = vmatpush2.xpose.msra.mxu0 0.0
    %4338 = vmatprep.subr.mxu0 0.0
    %4339 = vmatpush2.xpose.msra.mxu0 0.0
    %4340 = vmatprep.subr.mxu0 0.0
    %4341 = vmatpush2.xpose.msra.mxu0 0.0
    %4342 = vmatprep.subr.mxu0 0.0
    %4343 = vmatpush2.xpose.msra.mxu0 0.0
    %4344 = vmatprep.subr.mxu0 0.0
    %4345 = vmatpush2.xpose.msra.mxu0 0.0
    %4346 = vmatprep.subr.mxu0 0.0
    %4347 = vmatpush2.xpose.msra.mxu0 0.0
    %v4348 = vand.u32 %v3939, 4294901760
    %4349 = vmatprep.mubr.f32.mxu0 %v4348
    %v4350 = vand.u32 %v3938, 4294901760
    %4351 = vmatmul.mubr.f32.gmra.mxu0 %v4350
    %v4352 = vpop.f32.mrf.mxu0
    %v4353 = vadd.f32 %v4275, %v4352
    %v4354 = vpop.f32.mrf.mxu0
    %4355 = vdwg.mxu0
    %4356 = vmatprep.subr.mxu0 0.0
    %4357 = vmatpush1.xpose.msra.mxu0 0.0
    %4358 = vmatprep.subr.mxu0 0.0
    %4359 = vmatpush1.xpose.msra.mxu0 0.0
    %4360 = vmatprep.subr.mxu0 0.0
    %4361 = vmatpush1.xpose.msra.mxu0 0.0
    %4362 = vmatprep.subr.mxu0 0.0
    %4363 = vmatpush1.xpose.msra.mxu0 0.0
    %4364 = vmatprep.subr.mxu0 0.0
    %4365 = vmatpush1.xpose.msra.mxu0 0.0
    %4366 = vmatprep.subr.mxu0 0.0
    %4367 = vmatpush1.xpose.msra.mxu0 0.0
    %4368 = vmatprep.subr.mxu0 0.0
    %4369 = vmatpush1.xpose.msra.mxu0 0.0
    %4370 = vmatprep.subr.mxu0 0.0
    %4371 = vmatpush1.xpose.msra.mxu0 0.0
    %4372 = vmatprep.subr.mxu0 0.0
    %4373 = vmatpush1.xpose.msra.mxu0 0.0
    %4374 = vmatprep.subr.mxu0 0.0
    %4375 = vmatpush1.xpose.msra.mxu0 0.0
    %4376 = vmatprep.subr.mxu0 0.0
    %4377 = vmatpush1.xpose.msra.mxu0 0.0
    %4378 = vmatprep.subr.mxu0 0.0
    %4379 = vmatpush1.xpose.msra.mxu0 0.0
    %4380 = vmatprep.subr.mxu0 0.0
    %4381 = vmatpush1.xpose.msra.mxu0 0.0
    %4382 = vmatprep.subr.mxu0 0.0
    %4383 = vmatpush1.xpose.msra.mxu0 0.0
    %4384 = vmatprep.subr.mxu0 0.0
    %4385 = vmatpush1.xpose.msra.mxu0 0.0
    %v4386 = vand.u32 %v3950, 4294901760
    %4387 = vmatprep.subr.mxu0 %v4386
    %v4388 = vand.u32 %v3901, 4294901760
    %4389 = vmatpush1.xpose.msra.mxu0 %v4388
    %4390 = vmatprep.subr.mxu0 0.0
    %4391 = vmatpush2.xpose.msra.mxu0 0.0
    %4392 = vmatprep.subr.mxu0 0.0
    %4393 = vmatpush2.xpose.msra.mxu0 0.0
    %4394 = vmatprep.subr.mxu0 0.0
    %4395 = vmatpush2.xpose.msra.mxu0 0.0
    %4396 = vmatprep.subr.mxu0 0.0
    %4397 = vmatpush2.xpose.msra.mxu0 0.0
    %4398 = vmatprep.subr.mxu0 0.0
    %4399 = vmatpush2.xpose.msra.mxu0 0.0
    %4400 = vmatprep.subr.mxu0 0.0
    %4401 = vmatpush2.xpose.msra.mxu0 0.0
    %4402 = vmatprep.subr.mxu0 0.0
    %4403 = vmatpush2.xpose.msra.mxu0 0.0
    %4404 = vmatprep.subr.mxu0 0.0
    %4405 = vmatpush2.xpose.msra.mxu0 0.0
    %4406 = vmatprep.subr.mxu0 0.0
    %4407 = vmatpush2.xpose.msra.mxu0 0.0
    %4408 = vmatprep.subr.mxu0 0.0
    %4409 = vmatpush2.xpose.msra.mxu0 0.0
    %4410 = vmatprep.subr.mxu0 0.0
    %4411 = vmatpush2.xpose.msra.mxu0 0.0
    %4412 = vmatprep.subr.mxu0 0.0
    %4413 = vmatpush2.xpose.msra.mxu0 0.0
    %4414 = vmatprep.subr.mxu0 0.0
    %4415 = vmatpush2.xpose.msra.mxu0 0.0
    %4416 = vmatprep.subr.mxu0 0.0
    %4417 = vmatpush2.xpose.msra.mxu0 0.0
    %4418 = vmatprep.subr.mxu0 0.0
    %4419 = vmatpush2.xpose.msra.mxu0 0.0
    %4420 = vmatprep.subr.mxu0 0.0
    %4421 = vmatpush2.xpose.msra.mxu0 0.0
    %v4422 = vand.u32 %v3939, 4294901760
    %4423 = vmatprep.mubr.f32.mxu0 %v4422
    %v4424 = vand.u32 %v3938, 4294901760
    %4425 = vmatmul.mubr.f32.gmra.mxu0 %v4424
    %v4426 = vpop.f32.mrf.mxu0
    %v4427 = vadd.f32 %v4353, %v4426
    %v4428 = vpop.f32.mrf.mxu0
    %4429 = vdwg.mxu0
    %4430 = vmatprep.subr.mxu0 0.0
    %4431 = vmatpush1.xpose.msra.mxu0 0.0
    %4432 = vmatprep.subr.mxu0 0.0
    %4433 = vmatpush1.xpose.msra.mxu0 0.0
    %4434 = vmatprep.subr.mxu0 0.0
    %4435 = vmatpush1.xpose.msra.mxu0 0.0
    %4436 = vmatprep.subr.mxu0 0.0
    %4437 = vmatpush1.xpose.msra.mxu0 0.0
    %4438 = vmatprep.subr.mxu0 0.0
    %4439 = vmatpush1.xpose.msra.mxu0 0.0
    %4440 = vmatprep.subr.mxu0 0.0
    %4441 = vmatpush1.xpose.msra.mxu0 0.0
    %4442 = vmatprep.subr.mxu0 0.0
    %4443 = vmatpush1.xpose.msra.mxu0 0.0
    %4444 = vmatprep.subr.mxu0 0.0
    %4445 = vmatpush1.xpose.msra.mxu0 0.0
    %4446 = vmatprep.subr.mxu0 0.0
    %4447 = vmatpush1.xpose.msra.mxu0 0.0
    %4448 = vmatprep.subr.mxu0 0.0
    %4449 = vmatpush1.xpose.msra.mxu0 0.0
    %4450 = vmatprep.subr.mxu0 0.0
    %4451 = vmatpush1.xpose.msra.mxu0 0.0
    %4452 = vmatprep.subr.mxu0 0.0
    %4453 = vmatpush1.xpose.msra.mxu0 0.0
    %4454 = vmatprep.subr.mxu0 0.0
    %4455 = vmatpush1.xpose.msra.mxu0 0.0
    %4456 = vmatprep.subr.mxu0 0.0
    %4457 = vmatpush1.xpose.msra.mxu0 0.0
    %4458 = vmatprep.subr.mxu0 0.0
    %4459 = vmatpush1.xpose.msra.mxu0 0.0
    %v4460 = vand.u32 %v3951, 4294901760
    %4461 = vmatprep.subr.mxu0 %v4460
    %v4462 = vand.u32 %v3902, 4294901760
    %4463 = vmatpush1.xpose.msra.mxu0 %v4462
    %4464 = vmatprep.subr.mxu0 0.0
    %4465 = vmatpush2.xpose.msra.mxu0 0.0
    %4466 = vmatprep.subr.mxu0 0.0
    %4467 = vmatpush2.xpose.msra.mxu0 0.0
    %4468 = vmatprep.subr.mxu0 0.0
    %4469 = vmatpush2.xpose.msra.mxu0 0.0
    %4470 = vmatprep.subr.mxu0 0.0
    %4471 = vmatpush2.xpose.msra.mxu0 0.0
    %4472 = vmatprep.subr.mxu0 0.0
    %4473 = vmatpush2.xpose.msra.mxu0 0.0
    %4474 = vmatprep.subr.mxu0 0.0
    %4475 = vmatpush2.xpose.msra.mxu0 0.0
    %4476 = vmatprep.subr.mxu0 0.0
    %4477 = vmatpush2.xpose.msra.mxu0 0.0
    %4478 = vmatprep.subr.mxu0 0.0
    %4479 = vmatpush2.xpose.msra.mxu0 0.0
    %4480 = vmatprep.subr.mxu0 0.0
    %4481 = vmatpush2.xpose.msra.mxu0 0.0
    %4482 = vmatprep.subr.mxu0 0.0
    %4483 = vmatpush2.xpose.msra.mxu0 0.0
    %4484 = vmatprep.subr.mxu0 0.0
    %4485 = vmatpush2.xpose.msra.mxu0 0.0
    %4486 = vmatprep.subr.mxu0 0.0
    %4487 = vmatpush2.xpose.msra.mxu0 0.0
    %4488 = vmatprep.subr.mxu0 0.0
    %4489 = vmatpush2.xpose.msra.mxu0 0.0
    %4490 = vmatprep.subr.mxu0 0.0
    %4491 = vmatpush2.xpose.msra.mxu0 0.0
    %4492 = vmatprep.subr.mxu0 0.0
    %4493 = vmatpush2.xpose.msra.mxu0 0.0
    %4494 = vmatprep.subr.mxu0 0.0
    %4495 = vmatpush2.xpose.msra.mxu0 0.0
    %v4496 = vand.u32 %v3941, 4294901760
    %v4497 = vsub.f32 %v3941, %v4496
    %v4498 = vand.u32 %v4497, 4294901760
    %v4499 = vsub.f32 %v4497, %v4498
    %v4500 = vand.u32 %v4499, 4294901760
    %4501 = vmatprep.mubr.f32.mxu0 %v4500
    %v4502 = vand.u32 %v3940, 4294901760
    %v4503 = vsub.f32 %v3940, %v4502
    %v4504 = vand.u32 %v4503, 4294901760
    %v4505 = vsub.f32 %v4503, %v4504
    %v4506 = vand.u32 %v4505, 4294901760
    %4507 = vmatmul.mubr.f32.gmra.mxu0 %v4506
    %v4508 = vpop.f32.mrf.mxu0
    %v4509 = vadd.f32 %v4427, %v4508
    %v4510 = vpop.f32.mrf.mxu0
    %4511 = vdwg.mxu0
    %4512 = vmatprep.subr.mxu0 0.0
    %4513 = vmatpush1.xpose.msra.mxu0 0.0
    %4514 = vmatprep.subr.mxu0 0.0
    %4515 = vmatpush1.xpose.msra.mxu0 0.0
    %4516 = vmatprep.subr.mxu0 0.0
    %4517 = vmatpush1.xpose.msra.mxu0 0.0
    %4518 = vmatprep.subr.mxu0 0.0
    %4519 = vmatpush1.xpose.msra.mxu0 0.0
    %4520 = vmatprep.subr.mxu0 0.0
    %4521 = vmatpush1.xpose.msra.mxu0 0.0
    %4522 = vmatprep.subr.mxu0 0.0
    %4523 = vmatpush1.xpose.msra.mxu0 0.0
    %4524 = vmatprep.subr.mxu0 0.0
    %4525 = vmatpush1.xpose.msra.mxu0 0.0
    %4526 = vmatprep.subr.mxu0 0.0
    %4527 = vmatpush1.xpose.msra.mxu0 0.0
    %4528 = vmatprep.subr.mxu0 0.0
    %4529 = vmatpush1.xpose.msra.mxu0 0.0
    %4530 = vmatprep.subr.mxu0 0.0
    %4531 = vmatpush1.xpose.msra.mxu0 0.0
    %4532 = vmatprep.subr.mxu0 0.0
    %4533 = vmatpush1.xpose.msra.mxu0 0.0
    %4534 = vmatprep.subr.mxu0 0.0
    %4535 = vmatpush1.xpose.msra.mxu0 0.0
    %4536 = vmatprep.subr.mxu0 0.0
    %4537 = vmatpush1.xpose.msra.mxu0 0.0
    %4538 = vmatprep.subr.mxu0 0.0
    %4539 = vmatpush1.xpose.msra.mxu0 0.0
    %4540 = vmatprep.subr.mxu0 0.0
    %4541 = vmatpush1.xpose.msra.mxu0 0.0
    %v4542 = vand.u32 %v3951, 4294901760
    %v4543 = vsub.f32 %v3951, %v4542
    %v4544 = vand.u32 %v4543, 4294901760
    %v4545 = vsub.f32 %v4543, %v4544
    %v4546 = vand.u32 %v4545, 4294901760
    %4547 = vmatprep.subr.mxu0 %v4546
    %v4548 = vand.u32 %v3902, 4294901760
    %v4549 = vsub.f32 %v3902, %v4548
    %v4550 = vand.u32 %v4549, 4294901760
    %v4551 = vsub.f32 %v4549, %v4550
    %v4552 = vand.u32 %v4551, 4294901760
    %4553 = vmatpush1.xpose.msra.mxu0 %v4552
    %4554 = vmatprep.subr.mxu0 0.0
    %4555 = vmatpush2.xpose.msra.mxu0 0.0
    %4556 = vmatprep.subr.mxu0 0.0
    %4557 = vmatpush2.xpose.msra.mxu0 0.0
    %4558 = vmatprep.subr.mxu0 0.0
    %4559 = vmatpush2.xpose.msra.mxu0 0.0
    %4560 = vmatprep.subr.mxu0 0.0
    %4561 = vmatpush2.xpose.msra.mxu0 0.0
    %4562 = vmatprep.subr.mxu0 0.0
    %4563 = vmatpush2.xpose.msra.mxu0 0.0
    %4564 = vmatprep.subr.mxu0 0.0
    %4565 = vmatpush2.xpose.msra.mxu0 0.0
    %4566 = vmatprep.subr.mxu0 0.0
    %4567 = vmatpush2.xpose.msra.mxu0 0.0
    %4568 = vmatprep.subr.mxu0 0.0
    %4569 = vmatpush2.xpose.msra.mxu0 0.0
    %4570 = vmatprep.subr.mxu0 0.0
    %4571 = vmatpush2.xpose.msra.mxu0 0.0
    %4572 = vmatprep.subr.mxu0 0.0
    %4573 = vmatpush2.xpose.msra.mxu0 0.0
    %4574 = vmatprep.subr.mxu0 0.0
    %4575 = vmatpush2.xpose.msra.mxu0 0.0
    %4576 = vmatprep.subr.mxu0 0.0
    %4577 = vmatpush2.xpose.msra.mxu0 0.0
    %4578 = vmatprep.subr.mxu0 0.0
    %4579 = vmatpush2.xpose.msra.mxu0 0.0
    %4580 = vmatprep.subr.mxu0 0.0
    %4581 = vmatpush2.xpose.msra.mxu0 0.0
    %4582 = vmatprep.subr.mxu0 0.0
    %4583 = vmatpush2.xpose.msra.mxu0 0.0
    %4584 = vmatprep.subr.mxu0 0.0
    %4585 = vmatpush2.xpose.msra.mxu0 0.0
    %v4586 = vand.u32 %v3941, 4294901760
    %4587 = vmatprep.mubr.f32.mxu0 %v4586
    %v4588 = vand.u32 %v3940, 4294901760
    %4589 = vmatmul.mubr.f32.gmra.mxu0 %v4588
    %v4590 = vpop.f32.mrf.mxu0
    %v4591 = vadd.f32 %v4509, %v4590
    %v4592 = vpop.f32.mrf.mxu0
    %4593 = vdwg.mxu0
    %4594 = vmatprep.subr.mxu0 0.0
    %4595 = vmatpush1.xpose.msra.mxu0 0.0
    %4596 = vmatprep.subr.mxu0 0.0
    %4597 = vmatpush1.xpose.msra.mxu0 0.0
    %4598 = vmatprep.subr.mxu0 0.0
    %4599 = vmatpush1.xpose.msra.mxu0 0.0
    %4600 = vmatprep.subr.mxu0 0.0
    %4601 = vmatpush1.xpose.msra.mxu0 0.0
    %4602 = vmatprep.subr.mxu0 0.0
    %4603 = vmatpush1.xpose.msra.mxu0 0.0
    %4604 = vmatprep.subr.mxu0 0.0
    %4605 = vmatpush1.xpose.msra.mxu0 0.0
    %4606 = vmatprep.subr.mxu0 0.0
    %4607 = vmatpush1.xpose.msra.mxu0 0.0
    %4608 = vmatprep.subr.mxu0 0.0
    %4609 = vmatpush1.xpose.msra.mxu0 0.0
    %4610 = vmatprep.subr.mxu0 0.0
    %4611 = vmatpush1.xpose.msra.mxu0 0.0
    %4612 = vmatprep.subr.mxu0 0.0
    %4613 = vmatpush1.xpose.msra.mxu0 0.0
    %4614 = vmatprep.subr.mxu0 0.0
    %4615 = vmatpush1.xpose.msra.mxu0 0.0
    %4616 = vmatprep.subr.mxu0 0.0
    %4617 = vmatpush1.xpose.msra.mxu0 0.0
    %4618 = vmatprep.subr.mxu0 0.0
    %4619 = vmatpush1.xpose.msra.mxu0 0.0
    %4620 = vmatprep.subr.mxu0 0.0
    %4621 = vmatpush1.xpose.msra.mxu0 0.0
    %4622 = vmatprep.subr.mxu0 0.0
    %4623 = vmatpush1.xpose.msra.mxu0 0.0
    %v4624 = vand.u32 %v3951, 4294901760
    %v4625 = vsub.f32 %v3951, %v4624
    %4626 = vmatprep.subr.mxu0 %v4625
    %v4627 = vand.u32 %v3902, 4294901760
    %v4628 = vsub.f32 %v3902, %v4627
    %4629 = vmatpush1.xpose.msra.mxu0 %v4628
    %4630 = vmatprep.subr.mxu0 0.0
    %4631 = vmatpush2.xpose.msra.mxu0 0.0
    %4632 = vmatprep.subr.mxu0 0.0
    %4633 = vmatpush2.xpose.msra.mxu0 0.0
    %4634 = vmatprep.subr.mxu0 0.0
    %4635 = vmatpush2.xpose.msra.mxu0 0.0
    %4636 = vmatprep.subr.mxu0 0.0
    %4637 = vmatpush2.xpose.msra.mxu0 0.0
    %4638 = vmatprep.subr.mxu0 0.0
    %4639 = vmatpush2.xpose.msra.mxu0 0.0
    %4640 = vmatprep.subr.mxu0 0.0
    %4641 = vmatpush2.xpose.msra.mxu0 0.0
    %4642 = vmatprep.subr.mxu0 0.0
    %4643 = vmatpush2.xpose.msra.mxu0 0.0
    %4644 = vmatprep.subr.mxu0 0.0
    %4645 = vmatpush2.xpose.msra.mxu0 0.0
    %4646 = vmatprep.subr.mxu0 0.0
    %4647 = vmatpush2.xpose.msra.mxu0 0.0
    %4648 = vmatprep.subr.mxu0 0.0
    %4649 = vmatpush2.xpose.msra.mxu0 0.0
    %4650 = vmatprep.subr.mxu0 0.0
    %4651 = vmatpush2.xpose.msra.mxu0 0.0
    %4652 = vmatprep.subr.mxu0 0.0
    %4653 = vmatpush2.xpose.msra.mxu0 0.0
    %4654 = vmatprep.subr.mxu0 0.0
    %4655 = vmatpush2.xpose.msra.mxu0 0.0
    %4656 = vmatprep.subr.mxu0 0.0
    %4657 = vmatpush2.xpose.msra.mxu0 0.0
    %4658 = vmatprep.subr.mxu0 0.0
    %4659 = vmatpush2.xpose.msra.mxu0 0.0
    %4660 = vmatprep.subr.mxu0 0.0
    %4661 = vmatpush2.xpose.msra.mxu0 0.0
    %v4662 = vand.u32 %v3941, 4294901760
    %v4663 = vsub.f32 %v3941, %v4662
    %4664 = vmatprep.mubr.f32.mxu0 %v4663
    %v4665 = vand.u32 %v3940, 4294901760
    %v4666 = vsub.f32 %v3940, %v4665
    %4667 = vmatmul.mubr.f32.gmra.mxu0 %v4666
    %v4668 = vpop.f32.mrf.mxu0
    %v4669 = vadd.f32 %v4591, %v4668
    %v4670 = vpop.f32.mrf.mxu0
    %4671 = vdwg.mxu0
    %4672 = vmatprep.subr.mxu0 0.0
    %4673 = vmatpush1.xpose.msra.mxu0 0.0
    %4674 = vmatprep.subr.mxu0 0.0
    %4675 = vmatpush1.xpose.msra.mxu0 0.0
    %4676 = vmatprep.subr.mxu0 0.0
    %4677 = vmatpush1.xpose.msra.mxu0 0.0
    %4678 = vmatprep.subr.mxu0 0.0
    %4679 = vmatpush1.xpose.msra.mxu0 0.0
    %4680 = vmatprep.subr.mxu0 0.0
    %4681 = vmatpush1.xpose.msra.mxu0 0.0
    %4682 = vmatprep.subr.mxu0 0.0
    %4683 = vmatpush1.xpose.msra.mxu0 0.0
    %4684 = vmatprep.subr.mxu0 0.0
    %4685 = vmatpush1.xpose.msra.mxu0 0.0
    %4686 = vmatprep.subr.mxu0 0.0
    %4687 = vmatpush1.xpose.msra.mxu0 0.0
    %4688 = vmatprep.subr.mxu0 0.0
    %4689 = vmatpush1.xpose.msra.mxu0 0.0
    %4690 = vmatprep.subr.mxu0 0.0
    %4691 = vmatpush1.xpose.msra.mxu0 0.0
    %4692 = vmatprep.subr.mxu0 0.0
    %4693 = vmatpush1.xpose.msra.mxu0 0.0
    %4694 = vmatprep.subr.mxu0 0.0
    %4695 = vmatpush1.xpose.msra.mxu0 0.0
    %4696 = vmatprep.subr.mxu0 0.0
    %4697 = vmatpush1.xpose.msra.mxu0 0.0
    %4698 = vmatprep.subr.mxu0 0.0
    %4699 = vmatpush1.xpose.msra.mxu0 0.0
    %4700 = vmatprep.subr.mxu0 0.0
    %4701 = vmatpush1.xpose.msra.mxu0 0.0
    %v4702 = vand.u32 %v3951, 4294901760
    %4703 = vmatprep.subr.mxu0 %v4702
    %v4704 = vand.u32 %v3902, 4294901760
    %4705 = vmatpush1.xpose.msra.mxu0 %v4704
    %4706 = vmatprep.subr.mxu0 0.0
    %4707 = vmatpush2.xpose.msra.mxu0 0.0
    %4708 = vmatprep.subr.mxu0 0.0
    %4709 = vmatpush2.xpose.msra.mxu0 0.0
    %4710 = vmatprep.subr.mxu0 0.0
    %4711 = vmatpush2.xpose.msra.mxu0 0.0
    %4712 = vmatprep.subr.mxu0 0.0
    %4713 = vmatpush2.xpose.msra.mxu0 0.0
    %4714 = vmatprep.subr.mxu0 0.0
    %4715 = vmatpush2.xpose.msra.mxu0 0.0
    %4716 = vmatprep.subr.mxu0 0.0
    %4717 = vmatpush2.xpose.msra.mxu0 0.0
    %4718 = vmatprep.subr.mxu0 0.0
    %4719 = vmatpush2.xpose.msra.mxu0 0.0
    %4720 = vmatprep.subr.mxu0 0.0
    %4721 = vmatpush2.xpose.msra.mxu0 0.0
    %4722 = vmatprep.subr.mxu0 0.0
    %4723 = vmatpush2.xpose.msra.mxu0 0.0
    %4724 = vmatprep.subr.mxu0 0.0
    %4725 = vmatpush2.xpose.msra.mxu0 0.0
    %4726 = vmatprep.subr.mxu0 0.0
    %4727 = vmatpush2.xpose.msra.mxu0 0.0
    %4728 = vmatprep.subr.mxu0 0.0
    %4729 = vmatpush2.xpose.msra.mxu0 0.0
    %4730 = vmatprep.subr.mxu0 0.0
    %4731 = vmatpush2.xpose.msra.mxu0 0.0
    %4732 = vmatprep.subr.mxu0 0.0
    %4733 = vmatpush2.xpose.msra.mxu0 0.0
    %4734 = vmatprep.subr.mxu0 0.0
    %4735 = vmatpush2.xpose.msra.mxu0 0.0
    %4736 = vmatprep.subr.mxu0 0.0
    %4737 = vmatpush2.xpose.msra.mxu0 0.0
    %v4738 = vand.u32 %v3941, 4294901760
    %v4739 = vsub.f32 %v3941, %v4738
    %v4740 = vand.u32 %v4739, 4294901760
    %4741 = vmatprep.mubr.f32.mxu0 %v4740
    %v4742 = vand.u32 %v3940, 4294901760
    %v4743 = vsub.f32 %v3940, %v4742
    %v4744 = vand.u32 %v4743, 4294901760
    %4745 = vmatmul.mubr.f32.gmra.mxu0 %v4744
    %v4746 = vpop.f32.mrf.mxu0
    %v4747 = vadd.f32 %v4669, %v4746
    %v4748 = vpop.f32.mrf.mxu0
    %4749 = vdwg.mxu0
    %4750 = vmatprep.subr.mxu0 0.0
    %4751 = vmatpush1.xpose.msra.mxu0 0.0
    %4752 = vmatprep.subr.mxu0 0.0
    %4753 = vmatpush1.xpose.msra.mxu0 0.0
    %4754 = vmatprep.subr.mxu0 0.0
    %4755 = vmatpush1.xpose.msra.mxu0 0.0
    %4756 = vmatprep.subr.mxu0 0.0
    %4757 = vmatpush1.xpose.msra.mxu0 0.0
    %4758 = vmatprep.subr.mxu0 0.0
    %4759 = vmatpush1.xpose.msra.mxu0 0.0
    %4760 = vmatprep.subr.mxu0 0.0
    %4761 = vmatpush1.xpose.msra.mxu0 0.0
    %4762 = vmatprep.subr.mxu0 0.0
    %4763 = vmatpush1.xpose.msra.mxu0 0.0
    %4764 = vmatprep.subr.mxu0 0.0
    %4765 = vmatpush1.xpose.msra.mxu0 0.0
    %4766 = vmatprep.subr.mxu0 0.0
    %4767 = vmatpush1.xpose.msra.mxu0 0.0
    %4768 = vmatprep.subr.mxu0 0.0
    %4769 = vmatpush1.xpose.msra.mxu0 0.0
    %4770 = vmatprep.subr.mxu0 0.0
    %4771 = vmatpush1.xpose.msra.mxu0 0.0
    %4772 = vmatprep.subr.mxu0 0.0
    %4773 = vmatpush1.xpose.msra.mxu0 0.0
    %4774 = vmatprep.subr.mxu0 0.0
    %4775 = vmatpush1.xpose.msra.mxu0 0.0
    %4776 = vmatprep.subr.mxu0 0.0
    %4777 = vmatpush1.xpose.msra.mxu0 0.0
    %4778 = vmatprep.subr.mxu0 0.0
    %4779 = vmatpush1.xpose.msra.mxu0 0.0
    %v4780 = vand.u32 %v3951, 4294901760
    %v4781 = vsub.f32 %v3951, %v4780
    %v4782 = vand.u32 %v4781, 4294901760
    %4783 = vmatprep.subr.mxu0 %v4782
    %v4784 = vand.u32 %v3902, 4294901760
    %v4785 = vsub.f32 %v3902, %v4784
    %v4786 = vand.u32 %v4785, 4294901760
    %4787 = vmatpush1.xpose.msra.mxu0 %v4786
    %4788 = vmatprep.subr.mxu0 0.0
    %4789 = vmatpush2.xpose.msra.mxu0 0.0
    %4790 = vmatprep.subr.mxu0 0.0
    %4791 = vmatpush2.xpose.msra.mxu0 0.0
    %4792 = vmatprep.subr.mxu0 0.0
    %4793 = vmatpush2.xpose.msra.mxu0 0.0
    %4794 = vmatprep.subr.mxu0 0.0
    %4795 = vmatpush2.xpose.msra.mxu0 0.0
    %4796 = vmatprep.subr.mxu0 0.0
    %4797 = vmatpush2.xpose.msra.mxu0 0.0
    %4798 = vmatprep.subr.mxu0 0.0
    %4799 = vmatpush2.xpose.msra.mxu0 0.0
    %4800 = vmatprep.subr.mxu0 0.0
    %4801 = vmatpush2.xpose.msra.mxu0 0.0
    %4802 = vmatprep.subr.mxu0 0.0
    %4803 = vmatpush2.xpose.msra.mxu0 0.0
    %4804 = vmatprep.subr.mxu0 0.0
    %4805 = vmatpush2.xpose.msra.mxu0 0.0
    %4806 = vmatprep.subr.mxu0 0.0
    %4807 = vmatpush2.xpose.msra.mxu0 0.0
    %4808 = vmatprep.subr.mxu0 0.0
    %4809 = vmatpush2.xpose.msra.mxu0 0.0
    %4810 = vmatprep.subr.mxu0 0.0
    %4811 = vmatpush2.xpose.msra.mxu0 0.0
    %4812 = vmatprep.subr.mxu0 0.0
    %4813 = vmatpush2.xpose.msra.mxu0 0.0
    %4814 = vmatprep.subr.mxu0 0.0
    %4815 = vmatpush2.xpose.msra.mxu0 0.0
    %4816 = vmatprep.subr.mxu0 0.0
    %4817 = vmatpush2.xpose.msra.mxu0 0.0
    %4818 = vmatprep.subr.mxu0 0.0
    %4819 = vmatpush2.xpose.msra.mxu0 0.0
    %v4820 = vand.u32 %v3941, 4294901760
    %4821 = vmatprep.mubr.f32.mxu0 %v4820
    %v4822 = vand.u32 %v3940, 4294901760
    %4823 = vmatmul.mubr.f32.gmra.mxu0 %v4822
    %v4824 = vpop.f32.mrf.mxu0
    %v4825 = vadd.f32 %v4747, %v4824
    %v4826 = vpop.f32.mrf.mxu0
    %4827 = vdwg.mxu0
    %4828 = vmatprep.subr.mxu0 0.0
    %4829 = vmatpush1.xpose.msra.mxu0 0.0
    %4830 = vmatprep.subr.mxu0 0.0
    %4831 = vmatpush1.xpose.msra.mxu0 0.0
    %4832 = vmatprep.subr.mxu0 0.0
    %4833 = vmatpush1.xpose.msra.mxu0 0.0
    %4834 = vmatprep.subr.mxu0 0.0
    %4835 = vmatpush1.xpose.msra.mxu0 0.0
    %4836 = vmatprep.subr.mxu0 0.0
    %4837 = vmatpush1.xpose.msra.mxu0 0.0
    %4838 = vmatprep.subr.mxu0 0.0
    %4839 = vmatpush1.xpose.msra.mxu0 0.0
    %4840 = vmatprep.subr.mxu0 0.0
    %4841 = vmatpush1.xpose.msra.mxu0 0.0
    %4842 = vmatprep.subr.mxu0 0.0
    %4843 = vmatpush1.xpose.msra.mxu0 0.0
    %4844 = vmatprep.subr.mxu0 0.0
    %4845 = vmatpush1.xpose.msra.mxu0 0.0
    %4846 = vmatprep.subr.mxu0 0.0
    %4847 = vmatpush1.xpose.msra.mxu0 0.0
    %4848 = vmatprep.subr.mxu0 0.0
    %4849 = vmatpush1.xpose.msra.mxu0 0.0
    %4850 = vmatprep.subr.mxu0 0.0
    %4851 = vmatpush1.xpose.msra.mxu0 0.0
    %4852 = vmatprep.subr.mxu0 0.0
    %4853 = vmatpush1.xpose.msra.mxu0 0.0
    %4854 = vmatprep.subr.mxu0 0.0
    %4855 = vmatpush1.xpose.msra.mxu0 0.0
    %4856 = vmatprep.subr.mxu0 0.0
    %4857 = vmatpush1.xpose.msra.mxu0 0.0
    %v4858 = vand.u32 %v3951, 4294901760
    %4859 = vmatprep.subr.mxu0 %v4858
    %v4860 = vand.u32 %v3902, 4294901760
    %4861 = vmatpush1.xpose.msra.mxu0 %v4860
    %4862 = vmatprep.subr.mxu0 0.0
    %4863 = vmatpush2.xpose.msra.mxu0 0.0
    %4864 = vmatprep.subr.mxu0 0.0
    %4865 = vmatpush2.xpose.msra.mxu0 0.0
    %4866 = vmatprep.subr.mxu0 0.0
    %4867 = vmatpush2.xpose.msra.mxu0 0.0
    %4868 = vmatprep.subr.mxu0 0.0
    %4869 = vmatpush2.xpose.msra.mxu0 0.0
    %4870 = vmatprep.subr.mxu0 0.0
    %4871 = vmatpush2.xpose.msra.mxu0 0.0
    %4872 = vmatprep.subr.mxu0 0.0
    %4873 = vmatpush2.xpose.msra.mxu0 0.0
    %4874 = vmatprep.subr.mxu0 0.0
    %4875 = vmatpush2.xpose.msra.mxu0 0.0
    %4876 = vmatprep.subr.mxu0 0.0
    %4877 = vmatpush2.xpose.msra.mxu0 0.0
    %4878 = vmatprep.subr.mxu0 0.0
    %4879 = vmatpush2.xpose.msra.mxu0 0.0
    %4880 = vmatprep.subr.mxu0 0.0
    %4881 = vmatpush2.xpose.msra.mxu0 0.0
    %4882 = vmatprep.subr.mxu0 0.0
    %4883 = vmatpush2.xpose.msra.mxu0 0.0
    %4884 = vmatprep.subr.mxu0 0.0
    %4885 = vmatpush2.xpose.msra.mxu0 0.0
    %4886 = vmatprep.subr.mxu0 0.0
    %4887 = vmatpush2.xpose.msra.mxu0 0.0
    %4888 = vmatprep.subr.mxu0 0.0
    %4889 = vmatpush2.xpose.msra.mxu0 0.0
    %4890 = vmatprep.subr.mxu0 0.0
    %4891 = vmatpush2.xpose.msra.mxu0 0.0
    %4892 = vmatprep.subr.mxu0 0.0
    %4893 = vmatpush2.xpose.msra.mxu0 0.0
    %v4894 = vand.u32 %v3941, 4294901760
    %4895 = vmatprep.mubr.f32.mxu0 %v4894
    %v4896 = vand.u32 %v3940, 4294901760
    %4897 = vmatmul.mubr.f32.gmra.mxu0 %v4896
    %v4898 = vpop.f32.mrf.mxu0
    %v4899 = vadd.f32 %v4825, %v4898
    %v4900 = vpop.f32.mrf.mxu0
    %4901 = vdwg.mxu0
    %4902 = vmatprep.subr.mxu0 0.0
    %4903 = vmatpush1.xpose.msra.mxu0 0.0
    %4904 = vmatprep.subr.mxu0 0.0
    %4905 = vmatpush1.xpose.msra.mxu0 0.0
    %4906 = vmatprep.subr.mxu0 0.0
    %4907 = vmatpush1.xpose.msra.mxu0 0.0
    %4908 = vmatprep.subr.mxu0 0.0
    %4909 = vmatpush1.xpose.msra.mxu0 0.0
    %4910 = vmatprep.subr.mxu0 0.0
    %4911 = vmatpush1.xpose.msra.mxu0 0.0
    %4912 = vmatprep.subr.mxu0 0.0
    %4913 = vmatpush1.xpose.msra.mxu0 0.0
    %4914 = vmatprep.subr.mxu0 0.0
    %4915 = vmatpush1.xpose.msra.mxu0 0.0
    %4916 = vmatprep.subr.mxu0 0.0
    %4917 = vmatpush1.xpose.msra.mxu0 0.0
    %4918 = vmatprep.subr.mxu0 0.0
    %4919 = vmatpush1.xpose.msra.mxu0 0.0
    %4920 = vmatprep.subr.mxu0 0.0
    %4921 = vmatpush1.xpose.msra.mxu0 0.0
    %4922 = vmatprep.subr.mxu0 0.0
    %4923 = vmatpush1.xpose.msra.mxu0 0.0
    %4924 = vmatprep.subr.mxu0 0.0
    %4925 = vmatpush1.xpose.msra.mxu0 0.0
    %4926 = vmatprep.subr.mxu0 0.0
    %4927 = vmatpush1.xpose.msra.mxu0 0.0
    %4928 = vmatprep.subr.mxu0 0.0
    %4929 = vmatpush1.xpose.msra.mxu0 0.0
    %4930 = vmatprep.subr.mxu0 0.0
    %4931 = vmatpush1.xpose.msra.mxu0 0.0
    %v4932 = vand.u32 %v3952, 4294901760
    %4933 = vmatprep.subr.mxu0 %v4932
    %v4934 = vand.u32 %v3903, 4294901760
    %4935 = vmatpush1.xpose.msra.mxu0 %v4934
    %4936 = vmatprep.subr.mxu0 0.0
    %4937 = vmatpush2.xpose.msra.mxu0 0.0
    %4938 = vmatprep.subr.mxu0 0.0
    %4939 = vmatpush2.xpose.msra.mxu0 0.0
    %4940 = vmatprep.subr.mxu0 0.0
    %4941 = vmatpush2.xpose.msra.mxu0 0.0
    %4942 = vmatprep.subr.mxu0 0.0
    %4943 = vmatpush2.xpose.msra.mxu0 0.0
    %4944 = vmatprep.subr.mxu0 0.0
    %4945 = vmatpush2.xpose.msra.mxu0 0.0
    %4946 = vmatprep.subr.mxu0 0.0
    %4947 = vmatpush2.xpose.msra.mxu0 0.0
    %4948 = vmatprep.subr.mxu0 0.0
    %4949 = vmatpush2.xpose.msra.mxu0 0.0
    %4950 = vmatprep.subr.mxu0 0.0
    %4951 = vmatpush2.xpose.msra.mxu0 0.0
    %4952 = vmatprep.subr.mxu0 0.0
    %4953 = vmatpush2.xpose.msra.mxu0 0.0
    %4954 = vmatprep.subr.mxu0 0.0
    %4955 = vmatpush2.xpose.msra.mxu0 0.0
    %4956 = vmatprep.subr.mxu0 0.0
    %4957 = vmatpush2.xpose.msra.mxu0 0.0
    %4958 = vmatprep.subr.mxu0 0.0
    %4959 = vmatpush2.xpose.msra.mxu0 0.0
    %4960 = vmatprep.subr.mxu0 0.0
    %4961 = vmatpush2.xpose.msra.mxu0 0.0
    %4962 = vmatprep.subr.mxu0 0.0
    %4963 = vmatpush2.xpose.msra.mxu0 0.0
    %4964 = vmatprep.subr.mxu0 0.0
    %4965 = vmatpush2.xpose.msra.mxu0 0.0
    %4966 = vmatprep.subr.mxu0 0.0
    %4967 = vmatpush2.xpose.msra.mxu0 0.0
    %v4968 = vand.u32 %v3943, 4294901760
    %v4969 = vsub.f32 %v3943, %v4968
    %v4970 = vand.u32 %v4969, 4294901760
    %v4971 = vsub.f32 %v4969, %v4970
    %v4972 = vand.u32 %v4971, 4294901760
    %4973 = vmatprep.mubr.f32.mxu0 %v4972
    %v4974 = vand.u32 %v3942, 4294901760
    %v4975 = vsub.f32 %v3942, %v4974
    %v4976 = vand.u32 %v4975, 4294901760
    %v4977 = vsub.f32 %v4975, %v4976
    %v4978 = vand.u32 %v4977, 4294901760
    %4979 = vmatmul.mubr.f32.gmra.mxu0 %v4978
    %v4980 = vpop.f32.mrf.mxu0
    %v4981 = vadd.f32 %v4899, %v4980
    %v4982 = vpop.f32.mrf.mxu0
    %4983 = vdwg.mxu0
    %4984 = vmatprep.subr.mxu0 0.0
    %4985 = vmatpush1.xpose.msra.mxu0 0.0
    %4986 = vmatprep.subr.mxu0 0.0
    %4987 = vmatpush1.xpose.msra.mxu0 0.0
    %4988 = vmatprep.subr.mxu0 0.0
    %4989 = vmatpush1.xpose.msra.mxu0 0.0
    %4990 = vmatprep.subr.mxu0 0.0
    %4991 = vmatpush1.xpose.msra.mxu0 0.0
    %4992 = vmatprep.subr.mxu0 0.0
    %4993 = vmatpush1.xpose.msra.mxu0 0.0
    %4994 = vmatprep.subr.mxu0 0.0
    %4995 = vmatpush1.xpose.msra.mxu0 0.0
    %4996 = vmatprep.subr.mxu0 0.0
    %4997 = vmatpush1.xpose.msra.mxu0 0.0
    %4998 = vmatprep.subr.mxu0 0.0
    %4999 = vmatpush1.xpose.msra.mxu0 0.0
    %5000 = vmatprep.subr.mxu0 0.0
    %5001 = vmatpush1.xpose.msra.mxu0 0.0
    %5002 = vmatprep.subr.mxu0 0.0
    %5003 = vmatpush1.xpose.msra.mxu0 0.0
    %5004 = vmatprep.subr.mxu0 0.0
    %5005 = vmatpush1.xpose.msra.mxu0 0.0
    %5006 = vmatprep.subr.mxu0 0.0
    %5007 = vmatpush1.xpose.msra.mxu0 0.0
    %5008 = vmatprep.subr.mxu0 0.0
    %5009 = vmatpush1.xpose.msra.mxu0 0.0
    %5010 = vmatprep.subr.mxu0 0.0
    %5011 = vmatpush1.xpose.msra.mxu0 0.0
    %5012 = vmatprep.subr.mxu0 0.0
    %5013 = vmatpush1.xpose.msra.mxu0 0.0
    %v5014 = vand.u32 %v3952, 4294901760
    %v5015 = vsub.f32 %v3952, %v5014
    %v5016 = vand.u32 %v5015, 4294901760
    %v5017 = vsub.f32 %v5015, %v5016
    %v5018 = vand.u32 %v5017, 4294901760
    %5019 = vmatprep.subr.mxu0 %v5018
    %v5020 = vand.u32 %v3903, 4294901760
    %v5021 = vsub.f32 %v3903, %v5020
    %v5022 = vand.u32 %v5021, 4294901760
    %v5023 = vsub.f32 %v5021, %v5022
    %v5024 = vand.u32 %v5023, 4294901760
    %5025 = vmatpush1.xpose.msra.mxu0 %v5024
    %5026 = vmatprep.subr.mxu0 0.0
    %5027 = vmatpush2.xpose.msra.mxu0 0.0
    %5028 = vmatprep.subr.mxu0 0.0
    %5029 = vmatpush2.xpose.msra.mxu0 0.0
    %5030 = vmatprep.subr.mxu0 0.0
    %5031 = vmatpush2.xpose.msra.mxu0 0.0
    %5032 = vmatprep.subr.mxu0 0.0
    %5033 = vmatpush2.xpose.msra.mxu0 0.0
    %5034 = vmatprep.subr.mxu0 0.0
    %5035 = vmatpush2.xpose.msra.mxu0 0.0
    %5036 = vmatprep.subr.mxu0 0.0
    %5037 = vmatpush2.xpose.msra.mxu0 0.0
    %5038 = vmatprep.subr.mxu0 0.0
    %5039 = vmatpush2.xpose.msra.mxu0 0.0
    %5040 = vmatprep.subr.mxu0 0.0
    %5041 = vmatpush2.xpose.msra.mxu0 0.0
    %5042 = vmatprep.subr.mxu0 0.0
    %5043 = vmatpush2.xpose.msra.mxu0 0.0
    %5044 = vmatprep.subr.mxu0 0.0
    %5045 = vmatpush2.xpose.msra.mxu0 0.0
    %5046 = vmatprep.subr.mxu0 0.0
    %5047 = vmatpush2.xpose.msra.mxu0 0.0
    %5048 = vmatprep.subr.mxu0 0.0
    %5049 = vmatpush2.xpose.msra.mxu0 0.0
    %5050 = vmatprep.subr.mxu0 0.0
    %5051 = vmatpush2.xpose.msra.mxu0 0.0
    %5052 = vmatprep.subr.mxu0 0.0
    %5053 = vmatpush2.xpose.msra.mxu0 0.0
    %5054 = vmatprep.subr.mxu0 0.0
    %5055 = vmatpush2.xpose.msra.mxu0 0.0
    %5056 = vmatprep.subr.mxu0 0.0
    %5057 = vmatpush2.xpose.msra.mxu0 0.0
    %v5058 = vand.u32 %v3943, 4294901760
    %5059 = vmatprep.mubr.f32.mxu0 %v5058
    %v5060 = vand.u32 %v3942, 4294901760
    %5061 = vmatmul.mubr.f32.gmra.mxu0 %v5060
    %v5062 = vpop.f32.mrf.mxu0
    %v5063 = vadd.f32 %v4981, %v5062
    %v5064 = vpop.f32.mrf.mxu0
    %5065 = vdwg.mxu0
    %5066 = vmatprep.subr.mxu0 0.0
    %5067 = vmatpush1.xpose.msra.mxu0 0.0
    %5068 = vmatprep.subr.mxu0 0.0
    %5069 = vmatpush1.xpose.msra.mxu0 0.0
    %5070 = vmatprep.subr.mxu0 0.0
    %5071 = vmatpush1.xpose.msra.mxu0 0.0
    %5072 = vmatprep.subr.mxu0 0.0
    %5073 = vmatpush1.xpose.msra.mxu0 0.0
    %5074 = vmatprep.subr.mxu0 0.0
    %5075 = vmatpush1.xpose.msra.mxu0 0.0
    %5076 = vmatprep.subr.mxu0 0.0
    %5077 = vmatpush1.xpose.msra.mxu0 0.0
    %5078 = vmatprep.subr.mxu0 0.0
    %5079 = vmatpush1.xpose.msra.mxu0 0.0
    %5080 = vmatprep.subr.mxu0 0.0
    %5081 = vmatpush1.xpose.msra.mxu0 0.0
    %5082 = vmatprep.subr.mxu0 0.0
    %5083 = vmatpush1.xpose.msra.mxu0 0.0
    %5084 = vmatprep.subr.mxu0 0.0
    %5085 = vmatpush1.xpose.msra.mxu0 0.0
    %5086 = vmatprep.subr.mxu0 0.0
    %5087 = vmatpush1.xpose.msra.mxu0 0.0
    %5088 = vmatprep.subr.mxu0 0.0
    %5089 = vmatpush1.xpose.msra.mxu0 0.0
    %5090 = vmatprep.subr.mxu0 0.0
    %5091 = vmatpush1.xpose.msra.mxu0 0.0
    %5092 = vmatprep.subr.mxu0 0.0
    %5093 = vmatpush1.xpose.msra.mxu0 0.0
    %5094 = vmatprep.subr.mxu0 0.0
    %5095 = vmatpush1.xpose.msra.mxu0 0.0
    %v5096 = vand.u32 %v3952, 4294901760
    %v5097 = vsub.f32 %v3952, %v5096
    %5098 = vmatprep.subr.mxu0 %v5097
    %v5099 = vand.u32 %v3903, 4294901760
    %v5100 = vsub.f32 %v3903, %v5099
    %5101 = vmatpush1.xpose.msra.mxu0 %v5100
    %5102 = vmatprep.subr.mxu0 0.0
    %5103 = vmatpush2.xpose.msra.mxu0 0.0
    %5104 = vmatprep.subr.mxu0 0.0
    %5105 = vmatpush2.xpose.msra.mxu0 0.0
    %5106 = vmatprep.subr.mxu0 0.0
    %5107 = vmatpush2.xpose.msra.mxu0 0.0
    %5108 = vmatprep.subr.mxu0 0.0
    %5109 = vmatpush2.xpose.msra.mxu0 0.0
    %5110 = vmatprep.subr.mxu0 0.0
    %5111 = vmatpush2.xpose.msra.mxu0 0.0
    %5112 = vmatprep.subr.mxu0 0.0
    %5113 = vmatpush2.xpose.msra.mxu0 0.0
    %5114 = vmatprep.subr.mxu0 0.0
    %5115 = vmatpush2.xpose.msra.mxu0 0.0
    %5116 = vmatprep.subr.mxu0 0.0
    %5117 = vmatpush2.xpose.msra.mxu0 0.0
    %5118 = vmatprep.subr.mxu0 0.0
    %5119 = vmatpush2.xpose.msra.mxu0 0.0
    %5120 = vmatprep.subr.mxu0 0.0
    %5121 = vmatpush2.xpose.msra.mxu0 0.0
    %5122 = vmatprep.subr.mxu0 0.0
    %5123 = vmatpush2.xpose.msra.mxu0 0.0
    %5124 = vmatprep.subr.mxu0 0.0
    %5125 = vmatpush2.xpose.msra.mxu0 0.0
    %5126 = vmatprep.subr.mxu0 0.0
    %5127 = vmatpush2.xpose.msra.mxu0 0.0
    %5128 = vmatprep.subr.mxu0 0.0
    %5129 = vmatpush2.xpose.msra.mxu0 0.0
    %5130 = vmatprep.subr.mxu0 0.0
    %5131 = vmatpush2.xpose.msra.mxu0 0.0
    %5132 = vmatprep.subr.mxu0 0.0
    %5133 = vmatpush2.xpose.msra.mxu0 0.0
    %v5134 = vand.u32 %v3943, 4294901760
    %v5135 = vsub.f32 %v3943, %v5134
    %5136 = vmatprep.mubr.f32.mxu0 %v5135
    %v5137 = vand.u32 %v3942, 4294901760
    %v5138 = vsub.f32 %v3942, %v5137
    %5139 = vmatmul.mubr.f32.gmra.mxu0 %v5138
    %v5140 = vpop.f32.mrf.mxu0
    %v5141 = vadd.f32 %v5063, %v5140
    %v5142 = vpop.f32.mrf.mxu0
    %5143 = vdwg.mxu0
    %5144 = vmatprep.subr.mxu0 0.0
    %5145 = vmatpush1.xpose.msra.mxu0 0.0
    %5146 = vmatprep.subr.mxu0 0.0
    %5147 = vmatpush1.xpose.msra.mxu0 0.0
    %5148 = vmatprep.subr.mxu0 0.0
    %5149 = vmatpush1.xpose.msra.mxu0 0.0
    %5150 = vmatprep.subr.mxu0 0.0
    %5151 = vmatpush1.xpose.msra.mxu0 0.0
    %5152 = vmatprep.subr.mxu0 0.0
    %5153 = vmatpush1.xpose.msra.mxu0 0.0
    %5154 = vmatprep.subr.mxu0 0.0
    %5155 = vmatpush1.xpose.msra.mxu0 0.0
    %5156 = vmatprep.subr.mxu0 0.0
    %5157 = vmatpush1.xpose.msra.mxu0 0.0
    %5158 = vmatprep.subr.mxu0 0.0
    %5159 = vmatpush1.xpose.msra.mxu0 0.0
    %5160 = vmatprep.subr.mxu0 0.0
    %5161 = vmatpush1.xpose.msra.mxu0 0.0
    %5162 = vmatprep.subr.mxu0 0.0
    %5163 = vmatpush1.xpose.msra.mxu0 0.0
    %5164 = vmatprep.subr.mxu0 0.0
    %5165 = vmatpush1.xpose.msra.mxu0 0.0
    %5166 = vmatprep.subr.mxu0 0.0
    %5167 = vmatpush1.xpose.msra.mxu0 0.0
    %5168 = vmatprep.subr.mxu0 0.0
    %5169 = vmatpush1.xpose.msra.mxu0 0.0
    %5170 = vmatprep.subr.mxu0 0.0
    %5171 = vmatpush1.xpose.msra.mxu0 0.0
    %5172 = vmatprep.subr.mxu0 0.0
    %5173 = vmatpush1.xpose.msra.mxu0 0.0
    %v5174 = vand.u32 %v3952, 4294901760
    %5175 = vmatprep.subr.mxu0 %v5174
    %v5176 = vand.u32 %v3903, 4294901760
    %5177 = vmatpush1.xpose.msra.mxu0 %v5176
    %5178 = vmatprep.subr.mxu0 0.0
    %5179 = vmatpush2.xpose.msra.mxu0 0.0
    %5180 = vmatprep.subr.mxu0 0.0
    %5181 = vmatpush2.xpose.msra.mxu0 0.0
    %5182 = vmatprep.subr.mxu0 0.0
    %5183 = vmatpush2.xpose.msra.mxu0 0.0
    %5184 = vmatprep.subr.mxu0 0.0
    %5185 = vmatpush2.xpose.msra.mxu0 0.0
    %5186 = vmatprep.subr.mxu0 0.0
    %5187 = vmatpush2.xpose.msra.mxu0 0.0
    %5188 = vmatprep.subr.mxu0 0.0
    %5189 = vmatpush2.xpose.msra.mxu0 0.0
    %5190 = vmatprep.subr.mxu0 0.0
    %5191 = vmatpush2.xpose.msra.mxu0 0.0
    %5192 = vmatprep.subr.mxu0 0.0
    %5193 = vmatpush2.xpose.msra.mxu0 0.0
    %5194 = vmatprep.subr.mxu0 0.0
    %5195 = vmatpush2.xpose.msra.mxu0 0.0
    %5196 = vmatprep.subr.mxu0 0.0
    %5197 = vmatpush2.xpose.msra.mxu0 0.0
    %5198 = vmatprep.subr.mxu0 0.0
    %5199 = vmatpush2.xpose.msra.mxu0 0.0
    %5200 = vmatprep.subr.mxu0 0.0
    %5201 = vmatpush2.xpose.msra.mxu0 0.0
    %5202 = vmatprep.subr.mxu0 0.0
    %5203 = vmatpush2.xpose.msra.mxu0 0.0
    %5204 = vmatprep.subr.mxu0 0.0
    %5205 = vmatpush2.xpose.msra.mxu0 0.0
    %5206 = vmatprep.subr.mxu0 0.0
    %5207 = vmatpush2.xpose.msra.mxu0 0.0
    %5208 = vmatprep.subr.mxu0 0.0
    %5209 = vmatpush2.xpose.msra.mxu0 0.0
    %v5210 = vand.u32 %v3943, 4294901760
    %v5211 = vsub.f32 %v3943, %v5210
    %v5212 = vand.u32 %v5211, 4294901760
    %5213 = vmatprep.mubr.f32.mxu0 %v5212
    %v5214 = vand.u32 %v3942, 4294901760
    %v5215 = vsub.f32 %v3942, %v5214
    %v5216 = vand.u32 %v5215, 4294901760
    %5217 = vmatmul.mubr.f32.gmra.mxu0 %v5216
    %v5218 = vpop.f32.mrf.mxu0
    %v5219 = vadd.f32 %v5141, %v5218
    %v5220 = vpop.f32.mrf.mxu0
    %5221 = vdwg.mxu0
    %5222 = vmatprep.subr.mxu0 0.0
    %5223 = vmatpush1.xpose.msra.mxu0 0.0
    %5224 = vmatprep.subr.mxu0 0.0
    %5225 = vmatpush1.xpose.msra.mxu0 0.0
    %5226 = vmatprep.subr.mxu0 0.0
    %5227 = vmatpush1.xpose.msra.mxu0 0.0
    %5228 = vmatprep.subr.mxu0 0.0
    %5229 = vmatpush1.xpose.msra.mxu0 0.0
    %5230 = vmatprep.subr.mxu0 0.0
    %5231 = vmatpush1.xpose.msra.mxu0 0.0
    %5232 = vmatprep.subr.mxu0 0.0
    %5233 = vmatpush1.xpose.msra.mxu0 0.0
    %5234 = vmatprep.subr.mxu0 0.0
    %5235 = vmatpush1.xpose.msra.mxu0 0.0
    %5236 = vmatprep.subr.mxu0 0.0
    %5237 = vmatpush1.xpose.msra.mxu0 0.0
    %5238 = vmatprep.subr.mxu0 0.0
    %5239 = vmatpush1.xpose.msra.mxu0 0.0
    %5240 = vmatprep.subr.mxu0 0.0
    %5241 = vmatpush1.xpose.msra.mxu0 0.0
    %5242 = vmatprep.subr.mxu0 0.0
    %5243 = vmatpush1.xpose.msra.mxu0 0.0
    %5244 = vmatprep.subr.mxu0 0.0
    %5245 = vmatpush1.xpose.msra.mxu0 0.0
    %5246 = vmatprep.subr.mxu0 0.0
    %5247 = vmatpush1.xpose.msra.mxu0 0.0
    %5248 = vmatprep.subr.mxu0 0.0
    %5249 = vmatpush1.xpose.msra.mxu0 0.0
    %5250 = vmatprep.subr.mxu0 0.0
    %5251 = vmatpush1.xpose.msra.mxu0 0.0
    %v5252 = vand.u32 %v3952, 4294901760
    %v5253 = vsub.f32 %v3952, %v5252
    %v5254 = vand.u32 %v5253, 4294901760
    %5255 = vmatprep.subr.mxu0 %v5254
    %v5256 = vand.u32 %v3903, 4294901760
    %v5257 = vsub.f32 %v3903, %v5256
    %v5258 = vand.u32 %v5257, 4294901760
    %5259 = vmatpush1.xpose.msra.mxu0 %v5258
    %5260 = vmatprep.subr.mxu0 0.0
    %5261 = vmatpush2.xpose.msra.mxu0 0.0
    %5262 = vmatprep.subr.mxu0 0.0
    %5263 = vmatpush2.xpose.msra.mxu0 0.0
    %5264 = vmatprep.subr.mxu0 0.0
    %5265 = vmatpush2.xpose.msra.mxu0 0.0
    %5266 = vmatprep.subr.mxu0 0.0
    %5267 = vmatpush2.xpose.msra.mxu0 0.0
    %5268 = vmatprep.subr.mxu0 0.0
    %5269 = vmatpush2.xpose.msra.mxu0 0.0
    %5270 = vmatprep.subr.mxu0 0.0
    %5271 = vmatpush2.xpose.msra.mxu0 0.0
    %5272 = vmatprep.subr.mxu0 0.0
    %5273 = vmatpush2.xpose.msra.mxu0 0.0
    %5274 = vmatprep.subr.mxu0 0.0
    %5275 = vmatpush2.xpose.msra.mxu0 0.0
    %5276 = vmatprep.subr.mxu0 0.0
    %5277 = vmatpush2.xpose.msra.mxu0 0.0
    %5278 = vmatprep.subr.mxu0 0.0
    %5279 = vmatpush2.xpose.msra.mxu0 0.0
    %5280 = vmatprep.subr.mxu0 0.0
    %5281 = vmatpush2.xpose.msra.mxu0 0.0
    %5282 = vmatprep.subr.mxu0 0.0
    %5283 = vmatpush2.xpose.msra.mxu0 0.0
    %5284 = vmatprep.subr.mxu0 0.0
    %5285 = vmatpush2.xpose.msra.mxu0 0.0
    %5286 = vmatprep.subr.mxu0 0.0
    %5287 = vmatpush2.xpose.msra.mxu0 0.0
    %5288 = vmatprep.subr.mxu0 0.0
    %5289 = vmatpush2.xpose.msra.mxu0 0.0
    %5290 = vmatprep.subr.mxu0 0.0
    %5291 = vmatpush2.xpose.msra.mxu0 0.0
    %v5292 = vand.u32 %v3943, 4294901760
    %5293 = vmatprep.mubr.f32.mxu0 %v5292
    %v5294 = vand.u32 %v3942, 4294901760
    %5295 = vmatmul.mubr.f32.gmra.mxu0 %v5294
    %v5296 = vpop.f32.mrf.mxu0
    %v5297 = vadd.f32 %v5219, %v5296
    %v5298 = vpop.f32.mrf.mxu0
    %5299 = vdwg.mxu0
    %5300 = vmatprep.subr.mxu0 0.0
    %5301 = vmatpush1.xpose.msra.mxu0 0.0
    %5302 = vmatprep.subr.mxu0 0.0
    %5303 = vmatpush1.xpose.msra.mxu0 0.0
    %5304 = vmatprep.subr.mxu0 0.0
    %5305 = vmatpush1.xpose.msra.mxu0 0.0
    %5306 = vmatprep.subr.mxu0 0.0
    %5307 = vmatpush1.xpose.msra.mxu0 0.0
    %5308 = vmatprep.subr.mxu0 0.0
    %5309 = vmatpush1.xpose.msra.mxu0 0.0
    %5310 = vmatprep.subr.mxu0 0.0
    %5311 = vmatpush1.xpose.msra.mxu0 0.0
    %5312 = vmatprep.subr.mxu0 0.0
    %5313 = vmatpush1.xpose.msra.mxu0 0.0
    %5314 = vmatprep.subr.mxu0 0.0
    %5315 = vmatpush1.xpose.msra.mxu0 0.0
    %5316 = vmatprep.subr.mxu0 0.0
    %5317 = vmatpush1.xpose.msra.mxu0 0.0
    %5318 = vmatprep.subr.mxu0 0.0
    %5319 = vmatpush1.xpose.msra.mxu0 0.0
    %5320 = vmatprep.subr.mxu0 0.0
    %5321 = vmatpush1.xpose.msra.mxu0 0.0
    %5322 = vmatprep.subr.mxu0 0.0
    %5323 = vmatpush1.xpose.msra.mxu0 0.0
    %5324 = vmatprep.subr.mxu0 0.0
    %5325 = vmatpush1.xpose.msra.mxu0 0.0
    %5326 = vmatprep.subr.mxu0 0.0
    %5327 = vmatpush1.xpose.msra.mxu0 0.0
    %5328 = vmatprep.subr.mxu0 0.0
    %5329 = vmatpush1.xpose.msra.mxu0 0.0
    %v5330 = vand.u32 %v3952, 4294901760
    %5331 = vmatprep.subr.mxu0 %v5330
    %v5332 = vand.u32 %v3903, 4294901760
    %5333 = vmatpush1.xpose.msra.mxu0 %v5332
    %5334 = vmatprep.subr.mxu0 0.0
    %5335 = vmatpush2.xpose.msra.mxu0 0.0
    %5336 = vmatprep.subr.mxu0 0.0
    %5337 = vmatpush2.xpose.msra.mxu0 0.0
    %5338 = vmatprep.subr.mxu0 0.0
    %5339 = vmatpush2.xpose.msra.mxu0 0.0
    %5340 = vmatprep.subr.mxu0 0.0
    %5341 = vmatpush2.xpose.msra.mxu0 0.0
    %5342 = vmatprep.subr.mxu0 0.0
    %5343 = vmatpush2.xpose.msra.mxu0 0.0
    %5344 = vmatprep.subr.mxu0 0.0
    %5345 = vmatpush2.xpose.msra.mxu0 0.0
    %5346 = vmatprep.subr.mxu0 0.0
    %5347 = vmatpush2.xpose.msra.mxu0 0.0
    %5348 = vmatprep.subr.mxu0 0.0
    %5349 = vmatpush2.xpose.msra.mxu0 0.0
    %5350 = vmatprep.subr.mxu0 0.0
    %5351 = vmatpush2.xpose.msra.mxu0 0.0
    %5352 = vmatprep.subr.mxu0 0.0
    %5353 = vmatpush2.xpose.msra.mxu0 0.0
    %5354 = vmatprep.subr.mxu0 0.0
    %5355 = vmatpush2.xpose.msra.mxu0 0.0
    %5356 = vmatprep.subr.mxu0 0.0
    %5357 = vmatpush2.xpose.msra.mxu0 0.0
    %5358 = vmatprep.subr.mxu0 0.0
    %5359 = vmatpush2.xpose.msra.mxu0 0.0
    %5360 = vmatprep.subr.mxu0 0.0
    %5361 = vmatpush2.xpose.msra.mxu0 0.0
    %5362 = vmatprep.subr.mxu0 0.0
    %5363 = vmatpush2.xpose.msra.mxu0 0.0
    %5364 = vmatprep.subr.mxu0 0.0
    %5365 = vmatpush2.xpose.msra.mxu0 0.0
    %v5366 = vand.u32 %v3943, 4294901760
    %5367 = vmatprep.mubr.f32.mxu0 %v5366
    %v5368 = vand.u32 %v3942, 4294901760
    %5369 = vmatmul.mubr.f32.gmra.mxu0 %v5368
    %v5370 = vpop.f32.mrf.mxu0
    %v5371 = vadd.f32 %v5297, %v5370
    %v5372 = vpop.f32.mrf.mxu0
    %5373 = vdwg.mxu0
    %5374 = vmatprep.subr.mxu0 0.0
    %5375 = vmatpush1.xpose.msra.mxu0 0.0
    %5376 = vmatprep.subr.mxu0 0.0
    %5377 = vmatpush1.xpose.msra.mxu0 0.0
    %5378 = vmatprep.subr.mxu0 0.0
    %5379 = vmatpush1.xpose.msra.mxu0 0.0
    %5380 = vmatprep.subr.mxu0 0.0
    %5381 = vmatpush1.xpose.msra.mxu0 0.0
    %5382 = vmatprep.subr.mxu0 0.0
    %5383 = vmatpush1.xpose.msra.mxu0 0.0
    %5384 = vmatprep.subr.mxu0 0.0
    %5385 = vmatpush1.xpose.msra.mxu0 0.0
    %5386 = vmatprep.subr.mxu0 0.0
    %5387 = vmatpush1.xpose.msra.mxu0 0.0
    %5388 = vmatprep.subr.mxu0 0.0
    %5389 = vmatpush1.xpose.msra.mxu0 0.0
    %5390 = vmatprep.subr.mxu0 0.0
    %5391 = vmatpush1.xpose.msra.mxu0 0.0
    %5392 = vmatprep.subr.mxu0 0.0
    %5393 = vmatpush1.xpose.msra.mxu0 0.0
    %5394 = vmatprep.subr.mxu0 0.0
    %5395 = vmatpush1.xpose.msra.mxu0 0.0
    %5396 = vmatprep.subr.mxu0 0.0
    %5397 = vmatpush1.xpose.msra.mxu0 0.0
    %5398 = vmatprep.subr.mxu0 0.0
    %5399 = vmatpush1.xpose.msra.mxu0 0.0
    %5400 = vmatprep.subr.mxu0 0.0
    %5401 = vmatpush1.xpose.msra.mxu0 0.0
    %5402 = vmatprep.subr.mxu0 0.0
    %5403 = vmatpush1.xpose.msra.mxu0 0.0
    %v5404 = vand.u32 %v3953, 4294901760
    %5405 = vmatprep.subr.mxu0 %v5404
    %v5406 = vand.u32 %v3904, 4294901760
    %5407 = vmatpush1.xpose.msra.mxu0 %v5406
    %5408 = vmatprep.subr.mxu0 0.0
    %5409 = vmatpush2.xpose.msra.mxu0 0.0
    %5410 = vmatprep.subr.mxu0 0.0
    %5411 = vmatpush2.xpose.msra.mxu0 0.0
    %5412 = vmatprep.subr.mxu0 0.0
    %5413 = vmatpush2.xpose.msra.mxu0 0.0
    %5414 = vmatprep.subr.mxu0 0.0
    %5415 = vmatpush2.xpose.msra.mxu0 0.0
    %5416 = vmatprep.subr.mxu0 0.0
    %5417 = vmatpush2.xpose.msra.mxu0 0.0
    %5418 = vmatprep.subr.mxu0 0.0
    %5419 = vmatpush2.xpose.msra.mxu0 0.0
    %5420 = vmatprep.subr.mxu0 0.0
    %5421 = vmatpush2.xpose.msra.mxu0 0.0
    %5422 = vmatprep.subr.mxu0 0.0
    %5423 = vmatpush2.xpose.msra.mxu0 0.0
    %5424 = vmatprep.subr.mxu0 0.0
    %5425 = vmatpush2.xpose.msra.mxu0 0.0
    %5426 = vmatprep.subr.mxu0 0.0
    %5427 = vmatpush2.xpose.msra.mxu0 0.0
    %5428 = vmatprep.subr.mxu0 0.0
    %5429 = vmatpush2.xpose.msra.mxu0 0.0
    %5430 = vmatprep.subr.mxu0 0.0
    %5431 = vmatpush2.xpose.msra.mxu0 0.0
    %5432 = vmatprep.subr.mxu0 0.0
    %5433 = vmatpush2.xpose.msra.mxu0 0.0
    %5434 = vmatprep.subr.mxu0 0.0
    %5435 = vmatpush2.xpose.msra.mxu0 0.0
    %5436 = vmatprep.subr.mxu0 0.0
    %5437 = vmatpush2.xpose.msra.mxu0 0.0
    %5438 = vmatprep.subr.mxu0 0.0
    %5439 = vmatpush2.xpose.msra.mxu0 0.0
    %v5440 = vand.u32 %v3945, 4294901760
    %v5441 = vsub.f32 %v3945, %v5440
    %v5442 = vand.u32 %v5441, 4294901760
    %v5443 = vsub.f32 %v5441, %v5442
    %v5444 = vand.u32 %v5443, 4294901760
    %5445 = vmatprep.mubr.f32.mxu0 %v5444
    %v5446 = vand.u32 %v3944, 4294901760
    %v5447 = vsub.f32 %v3944, %v5446
    %v5448 = vand.u32 %v5447, 4294901760
    %v5449 = vsub.f32 %v5447, %v5448
    %v5450 = vand.u32 %v5449, 4294901760
    %5451 = vmatmul.mubr.f32.gmra.mxu0 %v5450
    %v5452 = vpop.f32.mrf.mxu0
    %v5453 = vadd.f32 %v5371, %v5452
    %v5454 = vpop.f32.mrf.mxu0
    %5455 = vdwg.mxu0
    %5456 = vmatprep.subr.mxu0 0.0
    %5457 = vmatpush1.xpose.msra.mxu0 0.0
    %5458 = vmatprep.subr.mxu0 0.0
    %5459 = vmatpush1.xpose.msra.mxu0 0.0
    %5460 = vmatprep.subr.mxu0 0.0
    %5461 = vmatpush1.xpose.msra.mxu0 0.0
    %5462 = vmatprep.subr.mxu0 0.0
    %5463 = vmatpush1.xpose.msra.mxu0 0.0
    %5464 = vmatprep.subr.mxu0 0.0
    %5465 = vmatpush1.xpose.msra.mxu0 0.0
    %5466 = vmatprep.subr.mxu0 0.0
    %5467 = vmatpush1.xpose.msra.mxu0 0.0
    %5468 = vmatprep.subr.mxu0 0.0
    %5469 = vmatpush1.xpose.msra.mxu0 0.0
    %5470 = vmatprep.subr.mxu0 0.0
    %5471 = vmatpush1.xpose.msra.mxu0 0.0
    %5472 = vmatprep.subr.mxu0 0.0
    %5473 = vmatpush1.xpose.msra.mxu0 0.0
    %5474 = vmatprep.subr.mxu0 0.0
    %5475 = vmatpush1.xpose.msra.mxu0 0.0
    %5476 = vmatprep.subr.mxu0 0.0
    %5477 = vmatpush1.xpose.msra.mxu0 0.0
    %5478 = vmatprep.subr.mxu0 0.0
    %5479 = vmatpush1.xpose.msra.mxu0 0.0
    %5480 = vmatprep.subr.mxu0 0.0
    %5481 = vmatpush1.xpose.msra.mxu0 0.0
    %5482 = vmatprep.subr.mxu0 0.0
    %5483 = vmatpush1.xpose.msra.mxu0 0.0
    %5484 = vmatprep.subr.mxu0 0.0
    %5485 = vmatpush1.xpose.msra.mxu0 0.0
    %v5486 = vand.u32 %v3953, 4294901760
    %v5487 = vsub.f32 %v3953, %v5486
    %v5488 = vand.u32 %v5487, 4294901760
    %v5489 = vsub.f32 %v5487, %v5488
    %v5490 = vand.u32 %v5489, 4294901760
    %5491 = vmatprep.subr.mxu0 %v5490
    %v5492 = vand.u32 %v3904, 4294901760
    %v5493 = vsub.f32 %v3904, %v5492
    %v5494 = vand.u32 %v5493, 4294901760
    %v5495 = vsub.f32 %v5493, %v5494
    %v5496 = vand.u32 %v5495, 4294901760
    %5497 = vmatpush1.xpose.msra.mxu0 %v5496
    %5498 = vmatprep.subr.mxu0 0.0
    %5499 = vmatpush2.xpose.msra.mxu0 0.0
    %5500 = vmatprep.subr.mxu0 0.0
    %5501 = vmatpush2.xpose.msra.mxu0 0.0
    %5502 = vmatprep.subr.mxu0 0.0
    %5503 = vmatpush2.xpose.msra.mxu0 0.0
    %5504 = vmatprep.subr.mxu0 0.0
    %5505 = vmatpush2.xpose.msra.mxu0 0.0
    %5506 = vmatprep.subr.mxu0 0.0
    %5507 = vmatpush2.xpose.msra.mxu0 0.0
    %5508 = vmatprep.subr.mxu0 0.0
    %5509 = vmatpush2.xpose.msra.mxu0 0.0
    %5510 = vmatprep.subr.mxu0 0.0
    %5511 = vmatpush2.xpose.msra.mxu0 0.0
    %5512 = vmatprep.subr.mxu0 0.0
    %5513 = vmatpush2.xpose.msra.mxu0 0.0
    %5514 = vmatprep.subr.mxu0 0.0
    %5515 = vmatpush2.xpose.msra.mxu0 0.0
    %5516 = vmatprep.subr.mxu0 0.0
    %5517 = vmatpush2.xpose.msra.mxu0 0.0
    %5518 = vmatprep.subr.mxu0 0.0
    %5519 = vmatpush2.xpose.msra.mxu0 0.0
    %5520 = vmatprep.subr.mxu0 0.0
    %5521 = vmatpush2.xpose.msra.mxu0 0.0
    %5522 = vmatprep.subr.mxu0 0.0
    %5523 = vmatpush2.xpose.msra.mxu0 0.0
    %5524 = vmatprep.subr.mxu0 0.0
    %5525 = vmatpush2.xpose.msra.mxu0 0.0
    %5526 = vmatprep.subr.mxu0 0.0
    %5527 = vmatpush2.xpose.msra.mxu0 0.0
    %5528 = vmatprep.subr.mxu0 0.0
    %5529 = vmatpush2.xpose.msra.mxu0 0.0
    %v5530 = vand.u32 %v3945, 4294901760
    %5531 = vmatprep.mubr.f32.mxu0 %v5530
    %v5532 = vand.u32 %v3944, 4294901760
    %5533 = vmatmul.mubr.f32.gmra.mxu0 %v5532
    %v5534 = vpop.f32.mrf.mxu0
    %v5535 = vadd.f32 %v5453, %v5534
    %v5536 = vpop.f32.mrf.mxu0
    %5537 = vdwg.mxu0
    %5538 = vmatprep.subr.mxu0 0.0
    %5539 = vmatpush1.xpose.msra.mxu0 0.0
    %5540 = vmatprep.subr.mxu0 0.0
    %5541 = vmatpush1.xpose.msra.mxu0 0.0
    %5542 = vmatprep.subr.mxu0 0.0
    %5543 = vmatpush1.xpose.msra.mxu0 0.0
    %5544 = vmatprep.subr.mxu0 0.0
    %5545 = vmatpush1.xpose.msra.mxu0 0.0
    %5546 = vmatprep.subr.mxu0 0.0
    %5547 = vmatpush1.xpose.msra.mxu0 0.0
    %5548 = vmatprep.subr.mxu0 0.0
    %5549 = vmatpush1.xpose.msra.mxu0 0.0
    %5550 = vmatprep.subr.mxu0 0.0
    %5551 = vmatpush1.xpose.msra.mxu0 0.0
    %5552 = vmatprep.subr.mxu0 0.0
    %5553 = vmatpush1.xpose.msra.mxu0 0.0
    %5554 = vmatprep.subr.mxu0 0.0
    %5555 = vmatpush1.xpose.msra.mxu0 0.0
    %5556 = vmatprep.subr.mxu0 0.0
    %5557 = vmatpush1.xpose.msra.mxu0 0.0
    %5558 = vmatprep.subr.mxu0 0.0
    %5559 = vmatpush1.xpose.msra.mxu0 0.0
    %5560 = vmatprep.subr.mxu0 0.0
    %5561 = vmatpush1.xpose.msra.mxu0 0.0
    %5562 = vmatprep.subr.mxu0 0.0
    %5563 = vmatpush1.xpose.msra.mxu0 0.0
    %5564 = vmatprep.subr.mxu0 0.0
    %5565 = vmatpush1.xpose.msra.mxu0 0.0
    %5566 = vmatprep.subr.mxu0 0.0
    %5567 = vmatpush1.xpose.msra.mxu0 0.0
    %v5568 = vand.u32 %v3953, 4294901760
    %v5569 = vsub.f32 %v3953, %v5568
    %5570 = vmatprep.subr.mxu0 %v5569
    %v5571 = vand.u32 %v3904, 4294901760
    %v5572 = vsub.f32 %v3904, %v5571
    %5573 = vmatpush1.xpose.msra.mxu0 %v5572
    %5574 = vmatprep.subr.mxu0 0.0
    %5575 = vmatpush2.xpose.msra.mxu0 0.0
    %5576 = vmatprep.subr.mxu0 0.0
    %5577 = vmatpush2.xpose.msra.mxu0 0.0
    %5578 = vmatprep.subr.mxu0 0.0
    %5579 = vmatpush2.xpose.msra.mxu0 0.0
    %5580 = vmatprep.subr.mxu0 0.0
    %5581 = vmatpush2.xpose.msra.mxu0 0.0
    %5582 = vmatprep.subr.mxu0 0.0
    %5583 = vmatpush2.xpose.msra.mxu0 0.0
    %5584 = vmatprep.subr.mxu0 0.0
    %5585 = vmatpush2.xpose.msra.mxu0 0.0
    %5586 = vmatprep.subr.mxu0 0.0
    %5587 = vmatpush2.xpose.msra.mxu0 0.0
    %5588 = vmatprep.subr.mxu0 0.0
    %5589 = vmatpush2.xpose.msra.mxu0 0.0
    %5590 = vmatprep.subr.mxu0 0.0
    %5591 = vmatpush2.xpose.msra.mxu0 0.0
    %5592 = vmatprep.subr.mxu0 0.0
    %5593 = vmatpush2.xpose.msra.mxu0 0.0
    %5594 = vmatprep.subr.mxu0 0.0
    %5595 = vmatpush2.xpose.msra.mxu0 0.0
    %5596 = vmatprep.subr.mxu0 0.0
    %5597 = vmatpush2.xpose.msra.mxu0 0.0
    %5598 = vmatprep.subr.mxu0 0.0
    %5599 = vmatpush2.xpose.msra.mxu0 0.0
    %5600 = vmatprep.subr.mxu0 0.0
    %5601 = vmatpush2.xpose.msra.mxu0 0.0
    %5602 = vmatprep.subr.mxu0 0.0
    %5603 = vmatpush2.xpose.msra.mxu0 0.0
    %5604 = vmatprep.subr.mxu0 0.0
    %5605 = vmatpush2.xpose.msra.mxu0 0.0
    %v5606 = vand.u32 %v3945, 4294901760
    %v5607 = vsub.f32 %v3945, %v5606
    %5608 = vmatprep.mubr.f32.mxu0 %v5607
    %v5609 = vand.u32 %v3944, 4294901760
    %v5610 = vsub.f32 %v3944, %v5609
    %5611 = vmatmul.mubr.f32.gmra.mxu0 %v5610
    %v5612 = vpop.f32.mrf.mxu0
    %v5613 = vadd.f32 %v5535, %v5612
    %v5614 = vpop.f32.mrf.mxu0
    %5615 = vdwg.mxu0
    %5616 = vmatprep.subr.mxu0 0.0
    %5617 = vmatpush1.xpose.msra.mxu0 0.0
    %5618 = vmatprep.subr.mxu0 0.0
    %5619 = vmatpush1.xpose.msra.mxu0 0.0
    %5620 = vmatprep.subr.mxu0 0.0
    %5621 = vmatpush1.xpose.msra.mxu0 0.0
    %5622 = vmatprep.subr.mxu0 0.0
    %5623 = vmatpush1.xpose.msra.mxu0 0.0
    %5624 = vmatprep.subr.mxu0 0.0
    %5625 = vmatpush1.xpose.msra.mxu0 0.0
    %5626 = vmatprep.subr.mxu0 0.0
    %5627 = vmatpush1.xpose.msra.mxu0 0.0
    %5628 = vmatprep.subr.mxu0 0.0
    %5629 = vmatpush1.xpose.msra.mxu0 0.0
    %5630 = vmatprep.subr.mxu0 0.0
    %5631 = vmatpush1.xpose.msra.mxu0 0.0
    %5632 = vmatprep.subr.mxu0 0.0
    %5633 = vmatpush1.xpose.msra.mxu0 0.0
    %5634 = vmatprep.subr.mxu0 0.0
    %5635 = vmatpush1.xpose.msra.mxu0 0.0
    %5636 = vmatprep.subr.mxu0 0.0
    %5637 = vmatpush1.xpose.msra.mxu0 0.0
    %5638 = vmatprep.subr.mxu0 0.0
    %5639 = vmatpush1.xpose.msra.mxu0 0.0
    %5640 = vmatprep.subr.mxu0 0.0
    %5641 = vmatpush1.xpose.msra.mxu0 0.0
    %5642 = vmatprep.subr.mxu0 0.0
    %5643 = vmatpush1.xpose.msra.mxu0 0.0
    %5644 = vmatprep.subr.mxu0 0.0
    %5645 = vmatpush1.xpose.msra.mxu0 0.0
    %v5646 = vand.u32 %v3953, 4294901760
    %5647 = vmatprep.subr.mxu0 %v5646
    %v5648 = vand.u32 %v3904, 4294901760
    %5649 = vmatpush1.xpose.msra.mxu0 %v5648
    %5650 = vmatprep.subr.mxu0 0.0
    %5651 = vmatpush2.xpose.msra.mxu0 0.0
    %5652 = vmatprep.subr.mxu0 0.0
    %5653 = vmatpush2.xpose.msra.mxu0 0.0
    %5654 = vmatprep.subr.mxu0 0.0
    %5655 = vmatpush2.xpose.msra.mxu0 0.0
    %5656 = vmatprep.subr.mxu0 0.0
    %5657 = vmatpush2.xpose.msra.mxu0 0.0
    %5658 = vmatprep.subr.mxu0 0.0
    %5659 = vmatpush2.xpose.msra.mxu0 0.0
    %5660 = vmatprep.subr.mxu0 0.0
    %5661 = vmatpush2.xpose.msra.mxu0 0.0
    %5662 = vmatprep.subr.mxu0 0.0
    %5663 = vmatpush2.xpose.msra.mxu0 0.0
    %5664 = vmatprep.subr.mxu0 0.0
    %5665 = vmatpush2.xpose.msra.mxu0 0.0
    %5666 = vmatprep.subr.mxu0 0.0
    %5667 = vmatpush2.xpose.msra.mxu0 0.0
    %5668 = vmatprep.subr.mxu0 0.0
    %5669 = vmatpush2.xpose.msra.mxu0 0.0
    %5670 = vmatprep.subr.mxu0 0.0
    %5671 = vmatpush2.xpose.msra.mxu0 0.0
    %5672 = vmatprep.subr.mxu0 0.0
    %5673 = vmatpush2.xpose.msra.mxu0 0.0
    %5674 = vmatprep.subr.mxu0 0.0
    %5675 = vmatpush2.xpose.msra.mxu0 0.0
    %5676 = vmatprep.subr.mxu0 0.0
    %5677 = vmatpush2.xpose.msra.mxu0 0.0
    %5678 = vmatprep.subr.mxu0 0.0
    %5679 = vmatpush2.xpose.msra.mxu0 0.0
    %5680 = vmatprep.subr.mxu0 0.0
    %5681 = vmatpush2.xpose.msra.mxu0 0.0
    %v5682 = vand.u32 %v3945, 4294901760
    %v5683 = vsub.f32 %v3945, %v5682
    %v5684 = vand.u32 %v5683, 4294901760
    %5685 = vmatprep.mubr.f32.mxu0 %v5684
    %v5686 = vand.u32 %v3944, 4294901760
    %v5687 = vsub.f32 %v3944, %v5686
    %v5688 = vand.u32 %v5687, 4294901760
    %5689 = vmatmul.mubr.f32.gmra.mxu0 %v5688
    %v5690 = vpop.f32.mrf.mxu0
    %v5691 = vadd.f32 %v5613, %v5690
    %v5692 = vpop.f32.mrf.mxu0
    %5693 = vdwg.mxu0
    %5694 = vmatprep.subr.mxu0 0.0
    %5695 = vmatpush1.xpose.msra.mxu0 0.0
    %5696 = vmatprep.subr.mxu0 0.0
    %5697 = vmatpush1.xpose.msra.mxu0 0.0
    %5698 = vmatprep.subr.mxu0 0.0
    %5699 = vmatpush1.xpose.msra.mxu0 0.0
    %5700 = vmatprep.subr.mxu0 0.0
    %5701 = vmatpush1.xpose.msra.mxu0 0.0
    %5702 = vmatprep.subr.mxu0 0.0
    %5703 = vmatpush1.xpose.msra.mxu0 0.0
    %5704 = vmatprep.subr.mxu0 0.0
    %5705 = vmatpush1.xpose.msra.mxu0 0.0
    %5706 = vmatprep.subr.mxu0 0.0
    %5707 = vmatpush1.xpose.msra.mxu0 0.0
    %5708 = vmatprep.subr.mxu0 0.0
    %5709 = vmatpush1.xpose.msra.mxu0 0.0
    %5710 = vmatprep.subr.mxu0 0.0
    %5711 = vmatpush1.xpose.msra.mxu0 0.0
    %5712 = vmatprep.subr.mxu0 0.0
    %5713 = vmatpush1.xpose.msra.mxu0 0.0
    %5714 = vmatprep.subr.mxu0 0.0
    %5715 = vmatpush1.xpose.msra.mxu0 0.0
    %5716 = vmatprep.subr.mxu0 0.0
    %5717 = vmatpush1.xpose.msra.mxu0 0.0
    %5718 = vmatprep.subr.mxu0 0.0
    %5719 = vmatpush1.xpose.msra.mxu0 0.0
    %5720 = vmatprep.subr.mxu0 0.0
    %5721 = vmatpush1.xpose.msra.mxu0 0.0
    %5722 = vmatprep.subr.mxu0 0.0
    %5723 = vmatpush1.xpose.msra.mxu0 0.0
    %v5724 = vand.u32 %v3953, 4294901760
    %v5725 = vsub.f32 %v3953, %v5724
    %v5726 = vand.u32 %v5725, 4294901760
    %5727 = vmatprep.subr.mxu0 %v5726
    %v5728 = vand.u32 %v3904, 4294901760
    %v5729 = vsub.f32 %v3904, %v5728
    %v5730 = vand.u32 %v5729, 4294901760
    %5731 = vmatpush1.xpose.msra.mxu0 %v5730
    %5732 = vmatprep.subr.mxu0 0.0
    %5733 = vmatpush2.xpose.msra.mxu0 0.0
    %5734 = vmatprep.subr.mxu0 0.0
    %5735 = vmatpush2.xpose.msra.mxu0 0.0
    %5736 = vmatprep.subr.mxu0 0.0
    %5737 = vmatpush2.xpose.msra.mxu0 0.0
    %5738 = vmatprep.subr.mxu0 0.0
    %5739 = vmatpush2.xpose.msra.mxu0 0.0
    %5740 = vmatprep.subr.mxu0 0.0
    %5741 = vmatpush2.xpose.msra.mxu0 0.0
    %5742 = vmatprep.subr.mxu0 0.0
    %5743 = vmatpush2.xpose.msra.mxu0 0.0
    %5744 = vmatprep.subr.mxu0 0.0
    %5745 = vmatpush2.xpose.msra.mxu0 0.0
    %5746 = vmatprep.subr.mxu0 0.0
    %5747 = vmatpush2.xpose.msra.mxu0 0.0
    %5748 = vmatprep.subr.mxu0 0.0
    %5749 = vmatpush2.xpose.msra.mxu0 0.0
    %5750 = vmatprep.subr.mxu0 0.0
    %5751 = vmatpush2.xpose.msra.mxu0 0.0
    %5752 = vmatprep.subr.mxu0 0.0
    %5753 = vmatpush2.xpose.msra.mxu0 0.0
    %5754 = vmatprep.subr.mxu0 0.0
    %5755 = vmatpush2.xpose.msra.mxu0 0.0
    %5756 = vmatprep.subr.mxu0 0.0
    %5757 = vmatpush2.xpose.msra.mxu0 0.0
    %5758 = vmatprep.subr.mxu0 0.0
    %5759 = vmatpush2.xpose.msra.mxu0 0.0
    %5760 = vmatprep.subr.mxu0 0.0
    %5761 = vmatpush2.xpose.msra.mxu0 0.0
    %5762 = vmatprep.subr.mxu0 0.0
    %5763 = vmatpush2.xpose.msra.mxu0 0.0
    %v5764 = vand.u32 %v3945, 4294901760
    %5765 = vmatprep.mubr.f32.mxu0 %v5764
    %v5766 = vand.u32 %v3944, 4294901760
    %5767 = vmatmul.mubr.f32.gmra.mxu0 %v5766
    %v5768 = vpop.f32.mrf.mxu0
    %v5769 = vadd.f32 %v5691, %v5768
    %v5770 = vpop.f32.mrf.mxu0
    %5771 = vdwg.mxu0
    %5772 = vmatprep.subr.mxu0 0.0
    %5773 = vmatpush1.xpose.msra.mxu0 0.0
    %5774 = vmatprep.subr.mxu0 0.0
    %5775 = vmatpush1.xpose.msra.mxu0 0.0
    %5776 = vmatprep.subr.mxu0 0.0
    %5777 = vmatpush1.xpose.msra.mxu0 0.0
    %5778 = vmatprep.subr.mxu0 0.0
    %5779 = vmatpush1.xpose.msra.mxu0 0.0
    %5780 = vmatprep.subr.mxu0 0.0
    %5781 = vmatpush1.xpose.msra.mxu0 0.0
    %5782 = vmatprep.subr.mxu0 0.0
    %5783 = vmatpush1.xpose.msra.mxu0 0.0
    %5784 = vmatprep.subr.mxu0 0.0
    %5785 = vmatpush1.xpose.msra.mxu0 0.0
    %5786 = vmatprep.subr.mxu0 0.0
    %5787 = vmatpush1.xpose.msra.mxu0 0.0
    %5788 = vmatprep.subr.mxu0 0.0
    %5789 = vmatpush1.xpose.msra.mxu0 0.0
    %5790 = vmatprep.subr.mxu0 0.0
    %5791 = vmatpush1.xpose.msra.mxu0 0.0
    %5792 = vmatprep.subr.mxu0 0.0
    %5793 = vmatpush1.xpose.msra.mxu0 0.0
    %5794 = vmatprep.subr.mxu0 0.0
    %5795 = vmatpush1.xpose.msra.mxu0 0.0
    %5796 = vmatprep.subr.mxu0 0.0
    %5797 = vmatpush1.xpose.msra.mxu0 0.0
    %5798 = vmatprep.subr.mxu0 0.0
    %5799 = vmatpush1.xpose.msra.mxu0 0.0
    %5800 = vmatprep.subr.mxu0 0.0
    %5801 = vmatpush1.xpose.msra.mxu0 0.0
    %v5802 = vand.u32 %v3953, 4294901760
    %5803 = vmatprep.subr.mxu0 %v5802
    %v5804 = vand.u32 %v3904, 4294901760
    %5805 = vmatpush1.xpose.msra.mxu0 %v5804
    %5806 = vmatprep.subr.mxu0 0.0
    %5807 = vmatpush2.xpose.msra.mxu0 0.0
    %5808 = vmatprep.subr.mxu0 0.0
    %5809 = vmatpush2.xpose.msra.mxu0 0.0
    %5810 = vmatprep.subr.mxu0 0.0
    %5811 = vmatpush2.xpose.msra.mxu0 0.0
    %5812 = vmatprep.subr.mxu0 0.0
    %5813 = vmatpush2.xpose.msra.mxu0 0.0
    %5814 = vmatprep.subr.mxu0 0.0
    %5815 = vmatpush2.xpose.msra.mxu0 0.0
    %5816 = vmatprep.subr.mxu0 0.0
    %5817 = vmatpush2.xpose.msra.mxu0 0.0
    %5818 = vmatprep.subr.mxu0 0.0
    %5819 = vmatpush2.xpose.msra.mxu0 0.0
    %5820 = vmatprep.subr.mxu0 0.0
    %5821 = vmatpush2.xpose.msra.mxu0 0.0
    %5822 = vmatprep.subr.mxu0 0.0
    %5823 = vmatpush2.xpose.msra.mxu0 0.0
    %5824 = vmatprep.subr.mxu0 0.0
    %5825 = vmatpush2.xpose.msra.mxu0 0.0
    %5826 = vmatprep.subr.mxu0 0.0
    %5827 = vmatpush2.xpose.msra.mxu0 0.0
    %5828 = vmatprep.subr.mxu0 0.0
    %5829 = vmatpush2.xpose.msra.mxu0 0.0
    %5830 = vmatprep.subr.mxu0 0.0
    %5831 = vmatpush2.xpose.msra.mxu0 0.0
    %5832 = vmatprep.subr.mxu0 0.0
    %5833 = vmatpush2.xpose.msra.mxu0 0.0
    %5834 = vmatprep.subr.mxu0 0.0
    %5835 = vmatpush2.xpose.msra.mxu0 0.0
    %5836 = vmatprep.subr.mxu0 0.0
    %5837 = vmatpush2.xpose.msra.mxu0 0.0
    %v5838 = vand.u32 %v3945, 4294901760
    %5839 = vmatprep.mubr.f32.mxu0 %v5838
    %v5840 = vand.u32 %v3944, 4294901760
    %5841 = vmatmul.mubr.f32.gmra.mxu0 %v5840
    %v5842 = vpop.f32.mrf.mxu0
    %v5843 = vadd.f32 %v5769, %v5842
    %v5844 = vpop.f32.mrf.mxu0
    %5845 = vdwg.mxu0
    %vm5846 = vcmask 25600
    %v5847 = vsel %vm5846, %v5843, 0.0
    %v5848 = vrot.slane %v5847, 4
    %v5849 = vadd.f32 %v5847, %v5848
    %v5850 = vrot.slane %v5849, 2
    %v5851 = vadd.f32 %v5849, %v5850
    %v5852 = vrot.slane %v5851, 1
    %v5853 = vadd.f32 %v5851, %v5852
    %v5854 = vmul.f32 %v5853, 0.0025510204
    %v5856 = vrot.slane %v5843, 2
    %v5858 = vsel %vm5846, %v5856, 0.0
    %v5859 = vrot.slane %v5858, 4
    %v5860 = vadd.f32 %v5858, %v5859
    %v5861 = vrot.slane %v5860, 2
    %v5862 = vadd.f32 %v5860, %v5861
    %v5863 = vrot.slane %v5862, 1
    %v5864 = vadd.f32 %v5862, %v5863
    %v5865 = vmul.f32 %v5864, 0.0025510204
    %v5866 = vmul.f32 %v5854, %v5854
    %v5867 = vsub.f32 %v5865, %v5866
    %v5868 = vmax.f32 %v5867, 0.0
    %v5869 = vadd.f32 %v5868, 1e-05
    %v5870 = vrsqrt.pop %v5869
    %v5871 = vmul.f32 %v5870, %v113
    %v5872 = vmul.f32 %v5854, %v5871
    %v5874 = vrot.slane %v5872, 7
    %v5876 = vsub.f32 %v113, %v5874
    %vm5877 = vcmask 1040384
    %v5878 = vsel %vm5877, %v5871, %v5876
    %vm5879 = vcmask 31744
    %v5881 = vsel %vm5879, %v5878, 0
    %vm5883 = vcmask 1043456
    %v5884 = vsel %vm5883, %v3901, 0
    %v5886 = vsel %vm5883, %v3950, 0
    %v5888 = vsel %vm5883, %v3902, 0
    %v5890 = vsel %vm5883, %v3951, 0
    %v5892 = vsel %vm5883, %v3903, 0
    %v5894 = vsel %vm5883, %v3952, 0
    %v5896 = vsel %vm5883, %v3904, 0
    %v5898 = vsel %vm5883, %v3953, 0
    %5900 = vmatprep.subr.mxu0 0.0
    %5901 = vmatpush1.msra.mxu0 0.0
    %5902 = vmatprep.subr.mxu0 0.0
    %5903 = vmatpush1.msra.mxu0 0.0
    %5904 = vmatprep.subr.mxu0 0.0
    %5905 = vmatpush1.msra.mxu0 0.0
    %5906 = vmatprep.subr.mxu0 0.0
    %5907 = vmatpush1.msra.mxu0 0.0
    %5908 = vmatprep.subr.mxu0 0.0
    %5909 = vmatpush1.msra.mxu0 0.0
    %5910 = vmatprep.subr.mxu0 0.0
    %5911 = vmatpush1.msra.mxu0 0.0
    %5912 = vmatprep.subr.mxu0 0.0
    %5913 = vmatpush1.msra.mxu0 0.0
    %5914 = vmatprep.subr.mxu0 0.0
    %5915 = vmatpush1.msra.mxu0 0.0
    %5916 = vmatprep.subr.mxu0 0.0
    %5917 = vmatpush1.msra.mxu0 0.0
    %5918 = vmatprep.subr.mxu0 0.0
    %5919 = vmatpush1.msra.mxu0 0.0
    %5920 = vmatprep.subr.mxu0 0.0
    %5921 = vmatpush1.msra.mxu0 0.0
    %5922 = vmatprep.subr.mxu0 0.0
    %5923 = vmatpush1.msra.mxu0 0.0
    %5924 = vmatprep.subr.mxu0 0.0
    %5925 = vmatpush1.msra.mxu0 0.0
    %5926 = vmatprep.subr.mxu0 0.0
    %5927 = vmatpush1.msra.mxu0 0.0
    %5928 = vmatprep.subr.mxu0 0.0
    %5929 = vmatpush1.msra.mxu0 0.0
    %v5930 = vand.u32 %v5886, 4294901760
    %5931 = vmatprep.subr.mxu0 %v5930
    %v5932 = vand.u32 %v5884, 4294901760
    %5933 = vmatpush1.msra.mxu0 %v5932
    %5934 = vmatprep.subr.mxu0 0.0
    %5935 = vmatpush2.msra.mxu0 0.0
    %5936 = vmatprep.subr.mxu0 0.0
    %5937 = vmatpush2.msra.mxu0 0.0
    %5938 = vmatprep.subr.mxu0 0.0
    %5939 = vmatpush2.msra.mxu0 0.0
    %5940 = vmatprep.subr.mxu0 0.0
    %5941 = vmatpush2.msra.mxu0 0.0
    %5942 = vmatprep.subr.mxu0 0.0
    %5943 = vmatpush2.msra.mxu0 0.0
    %5944 = vmatprep.subr.mxu0 0.0
    %5945 = vmatpush2.msra.mxu0 0.0
    %5946 = vmatprep.subr.mxu0 0.0
    %5947 = vmatpush2.msra.mxu0 0.0
    %5948 = vmatprep.subr.mxu0 0.0
    %5949 = vmatpush2.msra.mxu0 0.0
    %5950 = vmatprep.subr.mxu0 0.0
    %5951 = vmatpush2.msra.mxu0 0.0
    %5952 = vmatprep.subr.mxu0 0.0
    %5953 = vmatpush2.msra.mxu0 0.0
    %5954 = vmatprep.subr.mxu0 0.0
    %5955 = vmatpush2.msra.mxu0 0.0
    %5956 = vmatprep.subr.mxu0 0.0
    %5957 = vmatpush2.msra.mxu0 0.0
    %5958 = vmatprep.subr.mxu0 0.0
    %5959 = vmatpush2.msra.mxu0 0.0
    %5960 = vmatprep.subr.mxu0 0.0
    %5961 = vmatpush2.msra.mxu0 0.0
    %5962 = vmatprep.subr.mxu0 0.0
    %5963 = vmatpush2.msra.mxu0 0.0
    %5964 = vmatprep.subr.mxu0 0.0
    %5965 = vmatpush2.msra.mxu0 0.0
    %5966 = vmatprep.mubr.f32.mxu0 0.0
    %v5967 = vand.u32 %v5881, 4294901760
    %v5968 = vsub.f32 %v5881, %v5967
    %v5969 = vand.u32 %v5968, 4294901760
    %v5970 = vsub.f32 %v5968, %v5969
    %v5971 = vand.u32 %v5970, 4294901760
    %5972 = vmatmul.mubr.f32.gmra.mxu0 %v5971
    %v5973 = vpop.f32.mrf.mxu0
    %v5974 = vadd.f32 0.0, %v5973
    %v5975 = vpop.f32.mrf.mxu0
    %v5976 = vadd.f32 0.0, %v5975
    %5977 = vdwg.mxu0
    %5978 = vmatprep.subr.mxu0 0.0
    %5979 = vmatpush1.msra.mxu0 0.0
    %5980 = vmatprep.subr.mxu0 0.0
    %5981 = vmatpush1.msra.mxu0 0.0
    %5982 = vmatprep.subr.mxu0 0.0
    %5983 = vmatpush1.msra.mxu0 0.0
    %5984 = vmatprep.subr.mxu0 0.0
    %5985 = vmatpush1.msra.mxu0 0.0
    %5986 = vmatprep.subr.mxu0 0.0
    %5987 = vmatpush1.msra.mxu0 0.0
    %5988 = vmatprep.subr.mxu0 0.0
    %5989 = vmatpush1.msra.mxu0 0.0
    %5990 = vmatprep.subr.mxu0 0.0
    %5991 = vmatpush1.msra.mxu0 0.0
    %5992 = vmatprep.subr.mxu0 0.0
    %5993 = vmatpush1.msra.mxu0 0.0
    %5994 = vmatprep.subr.mxu0 0.0
    %5995 = vmatpush1.msra.mxu0 0.0
    %5996 = vmatprep.subr.mxu0 0.0
    %5997 = vmatpush1.msra.mxu0 0.0
    %5998 = vmatprep.subr.mxu0 0.0
    %5999 = vmatpush1.msra.mxu0 0.0
    %6000 = vmatprep.subr.mxu0 0.0
    %6001 = vmatpush1.msra.mxu0 0.0
    %6002 = vmatprep.subr.mxu0 0.0
    %6003 = vmatpush1.msra.mxu0 0.0
    %6004 = vmatprep.subr.mxu0 0.0
    %6005 = vmatpush1.msra.mxu0 0.0
    %6006 = vmatprep.subr.mxu0 0.0
    %6007 = vmatpush1.msra.mxu0 0.0
    %v6008 = vand.u32 %v5886, 4294901760
    %v6009 = vsub.f32 %v5886, %v6008
    %v6010 = vand.u32 %v6009, 4294901760
    %v6011 = vsub.f32 %v6009, %v6010
    %v6012 = vand.u32 %v6011, 4294901760
    %6013 = vmatprep.subr.mxu0 %v6012
    %v6014 = vand.u32 %v5884, 4294901760
    %v6015 = vsub.f32 %v5884, %v6014
    %v6016 = vand.u32 %v6015, 4294901760
    %v6017 = vsub.f32 %v6015, %v6016
    %v6018 = vand.u32 %v6017, 4294901760
    %6019 = vmatpush1.msra.mxu0 %v6018
    %6020 = vmatprep.subr.mxu0 0.0
    %6021 = vmatpush2.msra.mxu0 0.0
    %6022 = vmatprep.subr.mxu0 0.0
    %6023 = vmatpush2.msra.mxu0 0.0
    %6024 = vmatprep.subr.mxu0 0.0
    %6025 = vmatpush2.msra.mxu0 0.0
    %6026 = vmatprep.subr.mxu0 0.0
    %6027 = vmatpush2.msra.mxu0 0.0
    %6028 = vmatprep.subr.mxu0 0.0
    %6029 = vmatpush2.msra.mxu0 0.0
    %6030 = vmatprep.subr.mxu0 0.0
    %6031 = vmatpush2.msra.mxu0 0.0
    %6032 = vmatprep.subr.mxu0 0.0
    %6033 = vmatpush2.msra.mxu0 0.0
    %6034 = vmatprep.subr.mxu0 0.0
    %6035 = vmatpush2.msra.mxu0 0.0
    %6036 = vmatprep.subr.mxu0 0.0
    %6037 = vmatpush2.msra.mxu0 0.0
    %6038 = vmatprep.subr.mxu0 0.0
    %6039 = vmatpush2.msra.mxu0 0.0
    %6040 = vmatprep.subr.mxu0 0.0
    %6041 = vmatpush2.msra.mxu0 0.0
    %6042 = vmatprep.subr.mxu0 0.0
    %6043 = vmatpush2.msra.mxu0 0.0
    %6044 = vmatprep.subr.mxu0 0.0
    %6045 = vmatpush2.msra.mxu0 0.0
    %6046 = vmatprep.subr.mxu0 0.0
    %6047 = vmatpush2.msra.mxu0 0.0
    %6048 = vmatprep.subr.mxu0 0.0
    %6049 = vmatpush2.msra.mxu0 0.0
    %6050 = vmatprep.subr.mxu0 0.0
    %6051 = vmatpush2.msra.mxu0 0.0
    %6052 = vmatprep.mubr.f32.mxu0 0.0
    %v6053 = vand.u32 %v5881, 4294901760
    %6054 = vmatmul.mubr.f32.gmra.mxu0 %v6053
    %v6055 = vpop.f32.mrf.mxu0
    %v6056 = vadd.f32 %v5974, %v6055
    %v6057 = vpop.f32.mrf.mxu0
    %v6058 = vadd.f32 %v5976, %v6057
    %6059 = vdwg.mxu0
    %6060 = vmatprep.subr.mxu0 0.0
    %6061 = vmatpush1.msra.mxu0 0.0
    %6062 = vmatprep.subr.mxu0 0.0
    %6063 = vmatpush1.msra.mxu0 0.0
    %6064 = vmatprep.subr.mxu0 0.0
    %6065 = vmatpush1.msra.mxu0 0.0
    %6066 = vmatprep.subr.mxu0 0.0
    %6067 = vmatpush1.msra.mxu0 0.0
    %6068 = vmatprep.subr.mxu0 0.0
    %6069 = vmatpush1.msra.mxu0 0.0
    %6070 = vmatprep.subr.mxu0 0.0
    %6071 = vmatpush1.msra.mxu0 0.0
    %6072 = vmatprep.subr.mxu0 0.0
    %6073 = vmatpush1.msra.mxu0 0.0
    %6074 = vmatprep.subr.mxu0 0.0
    %6075 = vmatpush1.msra.mxu0 0.0
    %6076 = vmatprep.subr.mxu0 0.0
    %6077 = vmatpush1.msra.mxu0 0.0
    %6078 = vmatprep.subr.mxu0 0.0
    %6079 = vmatpush1.msra.mxu0 0.0
    %6080 = vmatprep.subr.mxu0 0.0
    %6081 = vmatpush1.msra.mxu0 0.0
    %6082 = vmatprep.subr.mxu0 0.0
    %6083 = vmatpush1.msra.mxu0 0.0
    %6084 = vmatprep.subr.mxu0 0.0
    %6085 = vmatpush1.msra.mxu0 0.0
    %6086 = vmatprep.subr.mxu0 0.0
    %6087 = vmatpush1.msra.mxu0 0.0
    %6088 = vmatprep.subr.mxu0 0.0
    %6089 = vmatpush1.msra.mxu0 0.0
    %v6090 = vand.u32 %v5886, 4294901760
    %v6091 = vsub.f32 %v5886, %v6090
    %6092 = vmatprep.subr.mxu0 %v6091
    %v6093 = vand.u32 %v5884, 4294901760
    %v6094 = vsub.f32 %v5884, %v6093
    %6095 = vmatpush1.msra.mxu0 %v6094
    %6096 = vmatprep.subr.mxu0 0.0
    %6097 = vmatpush2.msra.mxu0 0.0
    %6098 = vmatprep.subr.mxu0 0.0
    %6099 = vmatpush2.msra.mxu0 0.0
    %6100 = vmatprep.subr.mxu0 0.0
    %6101 = vmatpush2.msra.mxu0 0.0
    %6102 = vmatprep.subr.mxu0 0.0
    %6103 = vmatpush2.msra.mxu0 0.0
    %6104 = vmatprep.subr.mxu0 0.0
    %6105 = vmatpush2.msra.mxu0 0.0
    %6106 = vmatprep.subr.mxu0 0.0
    %6107 = vmatpush2.msra.mxu0 0.0
    %6108 = vmatprep.subr.mxu0 0.0
    %6109 = vmatpush2.msra.mxu0 0.0
    %6110 = vmatprep.subr.mxu0 0.0
    %6111 = vmatpush2.msra.mxu0 0.0
    %6112 = vmatprep.subr.mxu0 0.0
    %6113 = vmatpush2.msra.mxu0 0.0
    %6114 = vmatprep.subr.mxu0 0.0
    %6115 = vmatpush2.msra.mxu0 0.0
    %6116 = vmatprep.subr.mxu0 0.0
    %6117 = vmatpush2.msra.mxu0 0.0
    %6118 = vmatprep.subr.mxu0 0.0
    %6119 = vmatpush2.msra.mxu0 0.0
    %6120 = vmatprep.subr.mxu0 0.0
    %6121 = vmatpush2.msra.mxu0 0.0
    %6122 = vmatprep.subr.mxu0 0.0
    %6123 = vmatpush2.msra.mxu0 0.0
    %6124 = vmatprep.subr.mxu0 0.0
    %6125 = vmatpush2.msra.mxu0 0.0
    %6126 = vmatprep.subr.mxu0 0.0
    %6127 = vmatpush2.msra.mxu0 0.0
    %6128 = vmatprep.mubr.f32.mxu0 0.0
    %v6129 = vand.u32 %v5881, 4294901760
    %v6130 = vsub.f32 %v5881, %v6129
    %6131 = vmatmul.mubr.f32.gmra.mxu0 %v6130
    %v6132 = vpop.f32.mrf.mxu0
    %v6133 = vadd.f32 %v6056, %v6132
    %v6134 = vpop.f32.mrf.mxu0
    %v6135 = vadd.f32 %v6058, %v6134
    %6136 = vdwg.mxu0
    %6137 = vmatprep.subr.mxu0 0.0
    %6138 = vmatpush1.msra.mxu0 0.0
    %6139 = vmatprep.subr.mxu0 0.0
    %6140 = vmatpush1.msra.mxu0 0.0
    %6141 = vmatprep.subr.mxu0 0.0
    %6142 = vmatpush1.msra.mxu0 0.0
    %6143 = vmatprep.subr.mxu0 0.0
    %6144 = vmatpush1.msra.mxu0 0.0
    %6145 = vmatprep.subr.mxu0 0.0
    %6146 = vmatpush1.msra.mxu0 0.0
    %6147 = vmatprep.subr.mxu0 0.0
    %6148 = vmatpush1.msra.mxu0 0.0
    %6149 = vmatprep.subr.mxu0 0.0
    %6150 = vmatpush1.msra.mxu0 0.0
    %6151 = vmatprep.subr.mxu0 0.0
    %6152 = vmatpush1.msra.mxu0 0.0
    %6153 = vmatprep.subr.mxu0 0.0
    %6154 = vmatpush1.msra.mxu0 0.0
    %6155 = vmatprep.subr.mxu0 0.0
    %6156 = vmatpush1.msra.mxu0 0.0
    %6157 = vmatprep.subr.mxu0 0.0
    %6158 = vmatpush1.msra.mxu0 0.0
    %6159 = vmatprep.subr.mxu0 0.0
    %6160 = vmatpush1.msra.mxu0 0.0
    %6161 = vmatprep.subr.mxu0 0.0
    %6162 = vmatpush1.msra.mxu0 0.0
    %6163 = vmatprep.subr.mxu0 0.0
    %6164 = vmatpush1.msra.mxu0 0.0
    %6165 = vmatprep.subr.mxu0 0.0
    %6166 = vmatpush1.msra.mxu0 0.0
    %v6167 = vand.u32 %v5886, 4294901760
    %6168 = vmatprep.subr.mxu0 %v6167
    %v6169 = vand.u32 %v5884, 4294901760
    %6170 = vmatpush1.msra.mxu0 %v6169
    %6171 = vmatprep.subr.mxu0 0.0
    %6172 = vmatpush2.msra.mxu0 0.0
    %6173 = vmatprep.subr.mxu0 0.0
    %6174 = vmatpush2.msra.mxu0 0.0
    %6175 = vmatprep.subr.mxu0 0.0
    %6176 = vmatpush2.msra.mxu0 0.0
    %6177 = vmatprep.subr.mxu0 0.0
    %6178 = vmatpush2.msra.mxu0 0.0
    %6179 = vmatprep.subr.mxu0 0.0
    %6180 = vmatpush2.msra.mxu0 0.0
    %6181 = vmatprep.subr.mxu0 0.0
    %6182 = vmatpush2.msra.mxu0 0.0
    %6183 = vmatprep.subr.mxu0 0.0
    %6184 = vmatpush2.msra.mxu0 0.0
    %6185 = vmatprep.subr.mxu0 0.0
    %6186 = vmatpush2.msra.mxu0 0.0
    %6187 = vmatprep.subr.mxu0 0.0
    %6188 = vmatpush2.msra.mxu0 0.0
    %6189 = vmatprep.subr.mxu0 0.0
    %6190 = vmatpush2.msra.mxu0 0.0
    %6191 = vmatprep.subr.mxu0 0.0
    %6192 = vmatpush2.msra.mxu0 0.0
    %6193 = vmatprep.subr.mxu0 0.0
    %6194 = vmatpush2.msra.mxu0 0.0
    %6195 = vmatprep.subr.mxu0 0.0
    %6196 = vmatpush2.msra.mxu0 0.0
    %6197 = vmatprep.subr.mxu0 0.0
    %6198 = vmatpush2.msra.mxu0 0.0
    %6199 = vmatprep.subr.mxu0 0.0
    %6200 = vmatpush2.msra.mxu0 0.0
    %6201 = vmatprep.subr.mxu0 0.0
    %6202 = vmatpush2.msra.mxu0 0.0
    %6203 = vmatprep.mubr.f32.mxu0 0.0
    %v6204 = vand.u32 %v5881, 4294901760
    %v6205 = vsub.f32 %v5881, %v6204
    %v6206 = vand.u32 %v6205, 4294901760
    %6207 = vmatmul.mubr.f32.gmra.mxu0 %v6206
    %v6208 = vpop.f32.mrf.mxu0
    %v6209 = vadd.f32 %v6133, %v6208
    %v6210 = vpop.f32.mrf.mxu0
    %v6211 = vadd.f32 %v6135, %v6210
    %6212 = vdwg.mxu0
    %6213 = vmatprep.subr.mxu0 0.0
    %6214 = vmatpush1.msra.mxu0 0.0
    %6215 = vmatprep.subr.mxu0 0.0
    %6216 = vmatpush1.msra.mxu0 0.0
    %6217 = vmatprep.subr.mxu0 0.0
    %6218 = vmatpush1.msra.mxu0 0.0
    %6219 = vmatprep.subr.mxu0 0.0
    %6220 = vmatpush1.msra.mxu0 0.0
    %6221 = vmatprep.subr.mxu0 0.0
    %6222 = vmatpush1.msra.mxu0 0.0
    %6223 = vmatprep.subr.mxu0 0.0
    %6224 = vmatpush1.msra.mxu0 0.0
    %6225 = vmatprep.subr.mxu0 0.0
    %6226 = vmatpush1.msra.mxu0 0.0
    %6227 = vmatprep.subr.mxu0 0.0
    %6228 = vmatpush1.msra.mxu0 0.0
    %6229 = vmatprep.subr.mxu0 0.0
    %6230 = vmatpush1.msra.mxu0 0.0
    %6231 = vmatprep.subr.mxu0 0.0
    %6232 = vmatpush1.msra.mxu0 0.0
    %6233 = vmatprep.subr.mxu0 0.0
    %6234 = vmatpush1.msra.mxu0 0.0
    %6235 = vmatprep.subr.mxu0 0.0
    %6236 = vmatpush1.msra.mxu0 0.0
    %6237 = vmatprep.subr.mxu0 0.0
    %6238 = vmatpush1.msra.mxu0 0.0
    %6239 = vmatprep.subr.mxu0 0.0
    %6240 = vmatpush1.msra.mxu0 0.0
    %6241 = vmatprep.subr.mxu0 0.0
    %6242 = vmatpush1.msra.mxu0 0.0
    %v6243 = vand.u32 %v5886, 4294901760
    %v6244 = vsub.f32 %v5886, %v6243
    %v6245 = vand.u32 %v6244, 4294901760
    %6246 = vmatprep.subr.mxu0 %v6245
    %v6247 = vand.u32 %v5884, 4294901760
    %v6248 = vsub.f32 %v5884, %v6247
    %v6249 = vand.u32 %v6248, 4294901760
    %6250 = vmatpush1.msra.mxu0 %v6249
    %6251 = vmatprep.subr.mxu0 0.0
    %6252 = vmatpush2.msra.mxu0 0.0
    %6253 = vmatprep.subr.mxu0 0.0
    %6254 = vmatpush2.msra.mxu0 0.0
    %6255 = vmatprep.subr.mxu0 0.0
    %6256 = vmatpush2.msra.mxu0 0.0
    %6257 = vmatprep.subr.mxu0 0.0
    %6258 = vmatpush2.msra.mxu0 0.0
    %6259 = vmatprep.subr.mxu0 0.0
    %6260 = vmatpush2.msra.mxu0 0.0
    %6261 = vmatprep.subr.mxu0 0.0
    %6262 = vmatpush2.msra.mxu0 0.0
    %6263 = vmatprep.subr.mxu0 0.0
    %6264 = vmatpush2.msra.mxu0 0.0
    %6265 = vmatprep.subr.mxu0 0.0
    %6266 = vmatpush2.msra.mxu0 0.0
    %6267 = vmatprep.subr.mxu0 0.0
    %6268 = vmatpush2.msra.mxu0 0.0
    %6269 = vmatprep.subr.mxu0 0.0
    %6270 = vmatpush2.msra.mxu0 0.0
    %6271 = vmatprep.subr.mxu0 0.0
    %6272 = vmatpush2.msra.mxu0 0.0
    %6273 = vmatprep.subr.mxu0 0.0
    %6274 = vmatpush2.msra.mxu0 0.0
    %6275 = vmatprep.subr.mxu0 0.0
    %6276 = vmatpush2.msra.mxu0 0.0
    %6277 = vmatprep.subr.mxu0 0.0
    %6278 = vmatpush2.msra.mxu0 0.0
    %6279 = vmatprep.subr.mxu0 0.0
    %6280 = vmatpush2.msra.mxu0 0.0
    %6281 = vmatprep.subr.mxu0 0.0
    %6282 = vmatpush2.msra.mxu0 0.0
    %6283 = vmatprep.mubr.f32.mxu0 0.0
    %v6284 = vand.u32 %v5881, 4294901760
    %6285 = vmatmul.mubr.f32.gmra.mxu0 %v6284
    %v6286 = vpop.f32.mrf.mxu0
    %v6287 = vadd.f32 %v6209, %v6286
    %v6288 = vpop.f32.mrf.mxu0
    %v6289 = vadd.f32 %v6211, %v6288
    %6290 = vdwg.mxu0
    %6291 = vmatprep.subr.mxu0 0.0
    %6292 = vmatpush1.msra.mxu0 0.0
    %6293 = vmatprep.subr.mxu0 0.0
    %6294 = vmatpush1.msra.mxu0 0.0
    %6295 = vmatprep.subr.mxu0 0.0
    %6296 = vmatpush1.msra.mxu0 0.0
    %6297 = vmatprep.subr.mxu0 0.0
    %6298 = vmatpush1.msra.mxu0 0.0
    %6299 = vmatprep.subr.mxu0 0.0
    %6300 = vmatpush1.msra.mxu0 0.0
    %6301 = vmatprep.subr.mxu0 0.0
    %6302 = vmatpush1.msra.mxu0 0.0
    %6303 = vmatprep.subr.mxu0 0.0
    %6304 = vmatpush1.msra.mxu0 0.0
    %6305 = vmatprep.subr.mxu0 0.0
    %6306 = vmatpush1.msra.mxu0 0.0
    %6307 = vmatprep.subr.mxu0 0.0
    %6308 = vmatpush1.msra.mxu0 0.0
    %6309 = vmatprep.subr.mxu0 0.0
    %6310 = vmatpush1.msra.mxu0 0.0
    %6311 = vmatprep.subr.mxu0 0.0
    %6312 = vmatpush1.msra.mxu0 0.0
    %6313 = vmatprep.subr.mxu0 0.0
    %6314 = vmatpush1.msra.mxu0 0.0
    %6315 = vmatprep.subr.mxu0 0.0
    %6316 = vmatpush1.msra.mxu0 0.0
    %6317 = vmatprep.subr.mxu0 0.0
    %6318 = vmatpush1.msra.mxu0 0.0
    %6319 = vmatprep.subr.mxu0 0.0
    %6320 = vmatpush1.msra.mxu0 0.0
    %v6321 = vand.u32 %v5886, 4294901760
    %6322 = vmatprep.subr.mxu0 %v6321
    %v6323 = vand.u32 %v5884, 4294901760
    %6324 = vmatpush1.msra.mxu0 %v6323
    %6325 = vmatprep.subr.mxu0 0.0
    %6326 = vmatpush2.msra.mxu0 0.0
    %6327 = vmatprep.subr.mxu0 0.0
    %6328 = vmatpush2.msra.mxu0 0.0
    %6329 = vmatprep.subr.mxu0 0.0
    %6330 = vmatpush2.msra.mxu0 0.0
    %6331 = vmatprep.subr.mxu0 0.0
    %6332 = vmatpush2.msra.mxu0 0.0
    %6333 = vmatprep.subr.mxu0 0.0
    %6334 = vmatpush2.msra.mxu0 0.0
    %6335 = vmatprep.subr.mxu0 0.0
    %6336 = vmatpush2.msra.mxu0 0.0
    %6337 = vmatprep.subr.mxu0 0.0
    %6338 = vmatpush2.msra.mxu0 0.0
    %6339 = vmatprep.subr.mxu0 0.0
    %6340 = vmatpush2.msra.mxu0 0.0
    %6341 = vmatprep.subr.mxu0 0.0
    %6342 = vmatpush2.msra.mxu0 0.0
    %6343 = vmatprep.subr.mxu0 0.0
    %6344 = vmatpush2.msra.mxu0 0.0
    %6345 = vmatprep.subr.mxu0 0.0
    %6346 = vmatpush2.msra.mxu0 0.0
    %6347 = vmatprep.subr.mxu0 0.0
    %6348 = vmatpush2.msra.mxu0 0.0
    %6349 = vmatprep.subr.mxu0 0.0
    %6350 = vmatpush2.msra.mxu0 0.0
    %6351 = vmatprep.subr.mxu0 0.0
    %6352 = vmatpush2.msra.mxu0 0.0
    %6353 = vmatprep.subr.mxu0 0.0
    %6354 = vmatpush2.msra.mxu0 0.0
    %6355 = vmatprep.subr.mxu0 0.0
    %6356 = vmatpush2.msra.mxu0 0.0
    %6357 = vmatprep.mubr.f32.mxu0 0.0
    %v6358 = vand.u32 %v5881, 4294901760
    %6359 = vmatmul.mubr.f32.gmra.mxu0 %v6358
    %v6360 = vpop.f32.mrf.mxu0
    %v6361 = vadd.f32 %v6287, %v6360
    %v6362 = vpop.f32.mrf.mxu0
    %v6363 = vadd.f32 %v6289, %v6362
    %6364 = vdwg.mxu0
    %6365 = vmatprep.subr.mxu0 0.0
    %6366 = vmatpush1.msra.mxu0 0.0
    %6367 = vmatprep.subr.mxu0 0.0
    %6368 = vmatpush1.msra.mxu0 0.0
    %6369 = vmatprep.subr.mxu0 0.0
    %6370 = vmatpush1.msra.mxu0 0.0
    %6371 = vmatprep.subr.mxu0 0.0
    %6372 = vmatpush1.msra.mxu0 0.0
    %6373 = vmatprep.subr.mxu0 0.0
    %6374 = vmatpush1.msra.mxu0 0.0
    %6375 = vmatprep.subr.mxu0 0.0
    %6376 = vmatpush1.msra.mxu0 0.0
    %6377 = vmatprep.subr.mxu0 0.0
    %6378 = vmatpush1.msra.mxu0 0.0
    %6379 = vmatprep.subr.mxu0 0.0
    %6380 = vmatpush1.msra.mxu0 0.0
    %6381 = vmatprep.subr.mxu0 0.0
    %6382 = vmatpush1.msra.mxu0 0.0
    %6383 = vmatprep.subr.mxu0 0.0
    %6384 = vmatpush1.msra.mxu0 0.0
    %6385 = vmatprep.subr.mxu0 0.0
    %6386 = vmatpush1.msra.mxu0 0.0
    %6387 = vmatprep.subr.mxu0 0.0
    %6388 = vmatpush1.msra.mxu0 0.0
    %6389 = vmatprep.subr.mxu0 0.0
    %6390 = vmatpush1.msra.mxu0 0.0
    %6391 = vmatprep.subr.mxu0 0.0
    %6392 = vmatpush1.msra.mxu0 0.0
    %6393 = vmatprep.subr.mxu0 0.0
    %6394 = vmatpush1.msra.mxu0 0.0
    %v6395 = vand.u32 %v5890, 4294901760
    %6396 = vmatprep.subr.mxu0 %v6395
    %v6397 = vand.u32 %v5888, 4294901760
    %6398 = vmatpush1.msra.mxu0 %v6397
    %6399 = vmatprep.subr.mxu0 0.0
    %6400 = vmatpush2.msra.mxu0 0.0
    %6401 = vmatprep.subr.mxu0 0.0
    %6402 = vmatpush2.msra.mxu0 0.0
    %6403 = vmatprep.subr.mxu0 0.0
    %6404 = vmatpush2.msra.mxu0 0.0
    %6405 = vmatprep.subr.mxu0 0.0
    %6406 = vmatpush2.msra.mxu0 0.0
    %6407 = vmatprep.subr.mxu0 0.0
    %6408 = vmatpush2.msra.mxu0 0.0
    %6409 = vmatprep.subr.mxu0 0.0
    %6410 = vmatpush2.msra.mxu0 0.0
    %6411 = vmatprep.subr.mxu0 0.0
    %6412 = vmatpush2.msra.mxu0 0.0
    %6413 = vmatprep.subr.mxu0 0.0
    %6414 = vmatpush2.msra.mxu0 0.0
    %6415 = vmatprep.subr.mxu0 0.0
    %6416 = vmatpush2.msra.mxu0 0.0
    %6417 = vmatprep.subr.mxu0 0.0
    %6418 = vmatpush2.msra.mxu0 0.0
    %6419 = vmatprep.subr.mxu0 0.0
    %6420 = vmatpush2.msra.mxu0 0.0
    %6421 = vmatprep.subr.mxu0 0.0
    %6422 = vmatpush2.msra.mxu0 0.0
    %6423 = vmatprep.subr.mxu0 0.0
    %6424 = vmatpush2.msra.mxu0 0.0
    %6425 = vmatprep.subr.mxu0 0.0
    %6426 = vmatpush2.msra.mxu0 0.0
    %6427 = vmatprep.subr.mxu0 0.0
    %6428 = vmatpush2.msra.mxu0 0.0
    %6429 = vmatprep.subr.mxu0 0.0
    %6430 = vmatpush2.msra.mxu0 0.0
    %6431 = vmatprep.mubr.f32.mxu0 0.0
    %v6432 = vand.u32 %v5881, 4294901760
    %v6433 = vsub.f32 %v5881, %v6432
    %v6434 = vand.u32 %v6433, 4294901760
    %v6435 = vsub.f32 %v6433, %v6434
    %v6436 = vand.u32 %v6435, 4294901760
    %6437 = vmatmul.mubr.f32.gmra.mxu0 %v6436
    %v6438 = vpop.f32.mrf.mxu0
    %v6439 = vadd.f32 0.0, %v6438
    %v6440 = vpop.f32.mrf.mxu0
    %v6441 = vadd.f32 0.0, %v6440
    %6442 = vdwg.mxu0
    %6443 = vmatprep.subr.mxu0 0.0
    %6444 = vmatpush1.msra.mxu0 0.0
    %6445 = vmatprep.subr.mxu0 0.0
    %6446 = vmatpush1.msra.mxu0 0.0
    %6447 = vmatprep.subr.mxu0 0.0
    %6448 = vmatpush1.msra.mxu0 0.0
    %6449 = vmatprep.subr.mxu0 0.0
    %6450 = vmatpush1.msra.mxu0 0.0
    %6451 = vmatprep.subr.mxu0 0.0
    %6452 = vmatpush1.msra.mxu0 0.0
    %6453 = vmatprep.subr.mxu0 0.0
    %6454 = vmatpush1.msra.mxu0 0.0
    %6455 = vmatprep.subr.mxu0 0.0
    %6456 = vmatpush1.msra.mxu0 0.0
    %6457 = vmatprep.subr.mxu0 0.0
    %6458 = vmatpush1.msra.mxu0 0.0
    %6459 = vmatprep.subr.mxu0 0.0
    %6460 = vmatpush1.msra.mxu0 0.0
    %6461 = vmatprep.subr.mxu0 0.0
    %6462 = vmatpush1.msra.mxu0 0.0
    %6463 = vmatprep.subr.mxu0 0.0
    %6464 = vmatpush1.msra.mxu0 0.0
    %6465 = vmatprep.subr.mxu0 0.0
    %6466 = vmatpush1.msra.mxu0 0.0
    %6467 = vmatprep.subr.mxu0 0.0
    %6468 = vmatpush1.msra.mxu0 0.0
    %6469 = vmatprep.subr.mxu0 0.0
    %6470 = vmatpush1.msra.mxu0 0.0
    %6471 = vmatprep.subr.mxu0 0.0
    %6472 = vmatpush1.msra.mxu0 0.0
    %v6473 = vand.u32 %v5890, 4294901760
    %v6474 = vsub.f32 %v5890, %v6473
    %v6475 = vand.u32 %v6474, 4294901760
    %v6476 = vsub.f32 %v6474, %v6475
    %v6477 = vand.u32 %v6476, 4294901760
    %6478 = vmatprep.subr.mxu0 %v6477
    %v6479 = vand.u32 %v5888, 4294901760
    %v6480 = vsub.f32 %v5888, %v6479
    %v6481 = vand.u32 %v6480, 4294901760
    %v6482 = vsub.f32 %v6480, %v6481
    %v6483 = vand.u32 %v6482, 4294901760
    %6484 = vmatpush1.msra.mxu0 %v6483
    %6485 = vmatprep.subr.mxu0 0.0
    %6486 = vmatpush2.msra.mxu0 0.0
    %6487 = vmatprep.subr.mxu0 0.0
    %6488 = vmatpush2.msra.mxu0 0.0
    %6489 = vmatprep.subr.mxu0 0.0
    %6490 = vmatpush2.msra.mxu0 0.0
    %6491 = vmatprep.subr.mxu0 0.0
    %6492 = vmatpush2.msra.mxu0 0.0
    %6493 = vmatprep.subr.mxu0 0.0
    %6494 = vmatpush2.msra.mxu0 0.0
    %6495 = vmatprep.subr.mxu0 0.0
    %6496 = vmatpush2.msra.mxu0 0.0
    %6497 = vmatprep.subr.mxu0 0.0
    %6498 = vmatpush2.msra.mxu0 0.0
    %6499 = vmatprep.subr.mxu0 0.0
    %6500 = vmatpush2.msra.mxu0 0.0
    %6501 = vmatprep.subr.mxu0 0.0
    %6502 = vmatpush2.msra.mxu0 0.0
    %6503 = vmatprep.subr.mxu0 0.0
    %6504 = vmatpush2.msra.mxu0 0.0
    %6505 = vmatprep.subr.mxu0 0.0
    %6506 = vmatpush2.msra.mxu0 0.0
    %6507 = vmatprep.subr.mxu0 0.0
    %6508 = vmatpush2.msra.mxu0 0.0
    %6509 = vmatprep.subr.mxu0 0.0
    %6510 = vmatpush2.msra.mxu0 0.0
    %6511 = vmatprep.subr.mxu0 0.0
    %6512 = vmatpush2.msra.mxu0 0.0
    %6513 = vmatprep.subr.mxu0 0.0
    %6514 = vmatpush2.msra.mxu0 0.0
    %6515 = vmatprep.subr.mxu0 0.0
    %6516 = vmatpush2.msra.mxu0 0.0
    %6517 = vmatprep.mubr.f32.mxu0 0.0
    %v6518 = vand.u32 %v5881, 4294901760
    %6519 = vmatmul.mubr.f32.gmra.mxu0 %v6518
    %v6520 = vpop.f32.mrf.mxu0
    %v6521 = vadd.f32 %v6439, %v6520
    %v6522 = vpop.f32.mrf.mxu0
    %v6523 = vadd.f32 %v6441, %v6522
    %6524 = vdwg.mxu0
    %6525 = vmatprep.subr.mxu0 0.0
    %6526 = vmatpush1.msra.mxu0 0.0
    %6527 = vmatprep.subr.mxu0 0.0
    %6528 = vmatpush1.msra.mxu0 0.0
    %6529 = vmatprep.subr.mxu0 0.0
    %6530 = vmatpush1.msra.mxu0 0.0
    %6531 = vmatprep.subr.mxu0 0.0
    %6532 = vmatpush1.msra.mxu0 0.0
    %6533 = vmatprep.subr.mxu0 0.0
    %6534 = vmatpush1.msra.mxu0 0.0
    %6535 = vmatprep.subr.mxu0 0.0
    %6536 = vmatpush1.msra.mxu0 0.0
    %6537 = vmatprep.subr.mxu0 0.0
    %6538 = vmatpush1.msra.mxu0 0.0
    %6539 = vmatprep.subr.mxu0 0.0
    %6540 = vmatpush1.msra.mxu0 0.0
    %6541 = vmatprep.subr.mxu0 0.0
    %6542 = vmatpush1.msra.mxu0 0.0
    %6543 = vmatprep.subr.mxu0 0.0
    %6544 = vmatpush1.msra.mxu0 0.0
    %6545 = vmatprep.subr.mxu0 0.0
    %6546 = vmatpush1.msra.mxu0 0.0
    %6547 = vmatprep.subr.mxu0 0.0
    %6548 = vmatpush1.msra.mxu0 0.0
    %6549 = vmatprep.subr.mxu0 0.0
    %6550 = vmatpush1.msra.mxu0 0.0
    %6551 = vmatprep.subr.mxu0 0.0
    %6552 = vmatpush1.msra.mxu0 0.0
    %6553 = vmatprep.subr.mxu0 0.0
    %6554 = vmatpush1.msra.mxu0 0.0
    %v6555 = vand.u32 %v5890, 4294901760
    %v6556 = vsub.f32 %v5890, %v6555
    %6557 = vmatprep.subr.mxu0 %v6556
    %v6558 = vand.u32 %v5888, 4294901760
    %v6559 = vsub.f32 %v5888, %v6558
    %6560 = vmatpush1.msra.mxu0 %v6559
    %6561 = vmatprep.subr.mxu0 0.0
    %6562 = vmatpush2.msra.mxu0 0.0
    %6563 = vmatprep.subr.mxu0 0.0
    %6564 = vmatpush2.msra.mxu0 0.0
    %6565 = vmatprep.subr.mxu0 0.0
    %6566 = vmatpush2.msra.mxu0 0.0
    %6567 = vmatprep.subr.mxu0 0.0
    %6568 = vmatpush2.msra.mxu0 0.0
    %6569 = vmatprep.subr.mxu0 0.0
    %6570 = vmatpush2.msra.mxu0 0.0
    %6571 = vmatprep.subr.mxu0 0.0
    %6572 = vmatpush2.msra.mxu0 0.0
    %6573 = vmatprep.subr.mxu0 0.0
    %6574 = vmatpush2.msra.mxu0 0.0
    %6575 = vmatprep.subr.mxu0 0.0
    %6576 = vmatpush2.msra.mxu0 0.0
    %6577 = vmatprep.subr.mxu0 0.0
    %6578 = vmatpush2.msra.mxu0 0.0
    %6579 = vmatprep.subr.mxu0 0.0
    %6580 = vmatpush2.msra.mxu0 0.0
    %6581 = vmatprep.subr.mxu0 0.0
    %6582 = vmatpush2.msra.mxu0 0.0
    %6583 = vmatprep.subr.mxu0 0.0
    %6584 = vmatpush2.msra.mxu0 0.0
    %6585 = vmatprep.subr.mxu0 0.0
    %6586 = vmatpush2.msra.mxu0 0.0
    %6587 = vmatprep.subr.mxu0 0.0
    %6588 = vmatpush2.msra.mxu0 0.0
    %6589 = vmatprep.subr.mxu0 0.0
    %6590 = vmatpush2.msra.mxu0 0.0
    %6591 = vmatprep.subr.mxu0 0.0
    %6592 = vmatpush2.msra.mxu0 0.0
    %6593 = vmatprep.mubr.f32.mxu0 0.0
    %v6594 = vand.u32 %v5881, 4294901760
    %v6595 = vsub.f32 %v5881, %v6594
    %6596 = vmatmul.mubr.f32.gmra.mxu0 %v6595
    %v6597 = vpop.f32.mrf.mxu0
    %v6598 = vadd.f32 %v6521, %v6597
    %v6599 = vpop.f32.mrf.mxu0
    %v6600 = vadd.f32 %v6523, %v6599
    %6601 = vdwg.mxu0
    %6602 = vmatprep.subr.mxu0 0.0
    %6603 = vmatpush1.msra.mxu0 0.0
    %6604 = vmatprep.subr.mxu0 0.0
    %6605 = vmatpush1.msra.mxu0 0.0
    %6606 = vmatprep.subr.mxu0 0.0
    %6607 = vmatpush1.msra.mxu0 0.0
    %6608 = vmatprep.subr.mxu0 0.0
    %6609 = vmatpush1.msra.mxu0 0.0
    %6610 = vmatprep.subr.mxu0 0.0
    %6611 = vmatpush1.msra.mxu0 0.0
    %6612 = vmatprep.subr.mxu0 0.0
    %6613 = vmatpush1.msra.mxu0 0.0
    %6614 = vmatprep.subr.mxu0 0.0
    %6615 = vmatpush1.msra.mxu0 0.0
    %6616 = vmatprep.subr.mxu0 0.0
    %6617 = vmatpush1.msra.mxu0 0.0
    %6618 = vmatprep.subr.mxu0 0.0
    %6619 = vmatpush1.msra.mxu0 0.0
    %6620 = vmatprep.subr.mxu0 0.0
    %6621 = vmatpush1.msra.mxu0 0.0
    %6622 = vmatprep.subr.mxu0 0.0
    %6623 = vmatpush1.msra.mxu0 0.0
    %6624 = vmatprep.subr.mxu0 0.0
    %6625 = vmatpush1.msra.mxu0 0.0
    %6626 = vmatprep.subr.mxu0 0.0
    %6627 = vmatpush1.msra.mxu0 0.0
    %6628 = vmatprep.subr.mxu0 0.0
    %6629 = vmatpush1.msra.mxu0 0.0
    %6630 = vmatprep.subr.mxu0 0.0
    %6631 = vmatpush1.msra.mxu0 0.0
    %v6632 = vand.u32 %v5890, 4294901760
    %6633 = vmatprep.subr.mxu0 %v6632
    %v6634 = vand.u32 %v5888, 4294901760
    %6635 = vmatpush1.msra.mxu0 %v6634
    %6636 = vmatprep.subr.mxu0 0.0
    %6637 = vmatpush2.msra.mxu0 0.0
    %6638 = vmatprep.subr.mxu0 0.0
    %6639 = vmatpush2.msra.mxu0 0.0
    %6640 = vmatprep.subr.mxu0 0.0
    %6641 = vmatpush2.msra.mxu0 0.0
    %6642 = vmatprep.subr.mxu0 0.0
    %6643 = vmatpush2.msra.mxu0 0.0
    %6644 = vmatprep.subr.mxu0 0.0
    %6645 = vmatpush2.msra.mxu0 0.0
    %6646 = vmatprep.subr.mxu0 0.0
    %6647 = vmatpush2.msra.mxu0 0.0
    %6648 = vmatprep.subr.mxu0 0.0
    %6649 = vmatpush2.msra.mxu0 0.0
    %6650 = vmatprep.subr.mxu0 0.0
    %6651 = vmatpush2.msra.mxu0 0.0
    %6652 = vmatprep.subr.mxu0 0.0
    %6653 = vmatpush2.msra.mxu0 0.0
    %6654 = vmatprep.subr.mxu0 0.0
    %6655 = vmatpush2.msra.mxu0 0.0
    %6656 = vmatprep.subr.mxu0 0.0
    %6657 = vmatpush2.msra.mxu0 0.0
    %6658 = vmatprep.subr.mxu0 0.0
    %6659 = vmatpush2.msra.mxu0 0.0
    %6660 = vmatprep.subr.mxu0 0.0
    %6661 = vmatpush2.msra.mxu0 0.0
    %6662 = vmatprep.subr.mxu0 0.0
    %6663 = vmatpush2.msra.mxu0 0.0
    %6664 = vmatprep.subr.mxu0 0.0
    %6665 = vmatpush2.msra.mxu0 0.0
    %6666 = vmatprep.subr.mxu0 0.0
    %6667 = vmatpush2.msra.mxu0 0.0
    %6668 = vmatprep.mubr.f32.mxu0 0.0
    %v6669 = vand.u32 %v5881, 4294901760
    %v6670 = vsub.f32 %v5881, %v6669
    %v6671 = vand.u32 %v6670, 4294901760
    %6672 = vmatmul.mubr.f32.gmra.mxu0 %v6671
    %v6673 = vpop.f32.mrf.mxu0
    %v6674 = vadd.f32 %v6598, %v6673
    %v6675 = vpop.f32.mrf.mxu0
    %v6676 = vadd.f32 %v6600, %v6675
    %6677 = vdwg.mxu0
    %6678 = vmatprep.subr.mxu0 0.0
    %6679 = vmatpush1.msra.mxu0 0.0
    %6680 = vmatprep.subr.mxu0 0.0
    %6681 = vmatpush1.msra.mxu0 0.0
    %6682 = vmatprep.subr.mxu0 0.0
    %6683 = vmatpush1.msra.mxu0 0.0
    %6684 = vmatprep.subr.mxu0 0.0
    %6685 = vmatpush1.msra.mxu0 0.0
    %6686 = vmatprep.subr.mxu0 0.0
    %6687 = vmatpush1.msra.mxu0 0.0
    %6688 = vmatprep.subr.mxu0 0.0
    %6689 = vmatpush1.msra.mxu0 0.0
    %6690 = vmatprep.subr.mxu0 0.0
    %6691 = vmatpush1.msra.mxu0 0.0
    %6692 = vmatprep.subr.mxu0 0.0
    %6693 = vmatpush1.msra.mxu0 0.0
    %6694 = vmatprep.subr.mxu0 0.0
    %6695 = vmatpush1.msra.mxu0 0.0
    %6696 = vmatprep.subr.mxu0 0.0
    %6697 = vmatpush1.msra.mxu0 0.0
    %6698 = vmatprep.subr.mxu0 0.0
    %6699 = vmatpush1.msra.mxu0 0.0
    %6700 = vmatprep.subr.mxu0 0.0
    %6701 = vmatpush1.msra.mxu0 0.0
    %6702 = vmatprep.subr.mxu0 0.0
    %6703 = vmatpush1.msra.mxu0 0.0
    %6704 = vmatprep.subr.mxu0 0.0
    %6705 = vmatpush1.msra.mxu0 0.0
    %6706 = vmatprep.subr.mxu0 0.0
    %6707 = vmatpush1.msra.mxu0 0.0
    %v6708 = vand.u32 %v5890, 4294901760
    %v6709 = vsub.f32 %v5890, %v6708
    %v6710 = vand.u32 %v6709, 4294901760
    %6711 = vmatprep.subr.mxu0 %v6710
    %v6712 = vand.u32 %v5888, 4294901760
    %v6713 = vsub.f32 %v5888, %v6712
    %v6714 = vand.u32 %v6713, 4294901760
    %6715 = vmatpush1.msra.mxu0 %v6714
    %6716 = vmatprep.subr.mxu0 0.0
    %6717 = vmatpush2.msra.mxu0 0.0
    %6718 = vmatprep.subr.mxu0 0.0
    %6719 = vmatpush2.msra.mxu0 0.0
    %6720 = vmatprep.subr.mxu0 0.0
    %6721 = vmatpush2.msra.mxu0 0.0
    %6722 = vmatprep.subr.mxu0 0.0
    %6723 = vmatpush2.msra.mxu0 0.0
    %6724 = vmatprep.subr.mxu0 0.0
    %6725 = vmatpush2.msra.mxu0 0.0
    %6726 = vmatprep.subr.mxu0 0.0
    %6727 = vmatpush2.msra.mxu0 0.0
    %6728 = vmatprep.subr.mxu0 0.0
    %6729 = vmatpush2.msra.mxu0 0.0
    %6730 = vmatprep.subr.mxu0 0.0
    %6731 = vmatpush2.msra.mxu0 0.0
    %6732 = vmatprep.subr.mxu0 0.0
    %6733 = vmatpush2.msra.mxu0 0.0
    %6734 = vmatprep.subr.mxu0 0.0
    %6735 = vmatpush2.msra.mxu0 0.0
    %6736 = vmatprep.subr.mxu0 0.0
    %6737 = vmatpush2.msra.mxu0 0.0
    %6738 = vmatprep.subr.mxu0 0.0
    %6739 = vmatpush2.msra.mxu0 0.0
    %6740 = vmatprep.subr.mxu0 0.0
    %6741 = vmatpush2.msra.mxu0 0.0
    %6742 = vmatprep.subr.mxu0 0.0
    %6743 = vmatpush2.msra.mxu0 0.0
    %6744 = vmatprep.subr.mxu0 0.0
    %6745 = vmatpush2.msra.mxu0 0.0
    %6746 = vmatprep.subr.mxu0 0.0
    %6747 = vmatpush2.msra.mxu0 0.0
    %6748 = vmatprep.mubr.f32.mxu0 0.0
    %v6749 = vand.u32 %v5881, 4294901760
    %6750 = vmatmul.mubr.f32.gmra.mxu0 %v6749
    %v6751 = vpop.f32.mrf.mxu0
    %v6752 = vadd.f32 %v6674, %v6751
    %v6753 = vpop.f32.mrf.mxu0
    %v6754 = vadd.f32 %v6676, %v6753
    %6755 = vdwg.mxu0
    %6756 = vmatprep.subr.mxu0 0.0
    %6757 = vmatpush1.msra.mxu0 0.0
    %6758 = vmatprep.subr.mxu0 0.0
    %6759 = vmatpush1.msra.mxu0 0.0
    %6760 = vmatprep.subr.mxu0 0.0
    %6761 = vmatpush1.msra.mxu0 0.0
    %6762 = vmatprep.subr.mxu0 0.0
    %6763 = vmatpush1.msra.mxu0 0.0
    %6764 = vmatprep.subr.mxu0 0.0
    %6765 = vmatpush1.msra.mxu0 0.0
    %6766 = vmatprep.subr.mxu0 0.0
    %6767 = vmatpush1.msra.mxu0 0.0
    %6768 = vmatprep.subr.mxu0 0.0
    %6769 = vmatpush1.msra.mxu0 0.0
    %6770 = vmatprep.subr.mxu0 0.0
    %6771 = vmatpush1.msra.mxu0 0.0
    %6772 = vmatprep.subr.mxu0 0.0
    %6773 = vmatpush1.msra.mxu0 0.0
    %6774 = vmatprep.subr.mxu0 0.0
    %6775 = vmatpush1.msra.mxu0 0.0
    %6776 = vmatprep.subr.mxu0 0.0
    %6777 = vmatpush1.msra.mxu0 0.0
    %6778 = vmatprep.subr.mxu0 0.0
    %6779 = vmatpush1.msra.mxu0 0.0
    %6780 = vmatprep.subr.mxu0 0.0
    %6781 = vmatpush1.msra.mxu0 0.0
    %6782 = vmatprep.subr.mxu0 0.0
    %6783 = vmatpush1.msra.mxu0 0.0
    %6784 = vmatprep.subr.mxu0 0.0
    %6785 = vmatpush1.msra.mxu0 0.0
    %v6786 = vand.u32 %v5890, 4294901760
    %6787 = vmatprep.subr.mxu0 %v6786
    %v6788 = vand.u32 %v5888, 4294901760
    %6789 = vmatpush1.msra.mxu0 %v6788
    %6790 = vmatprep.subr.mxu0 0.0
    %6791 = vmatpush2.msra.mxu0 0.0
    %6792 = vmatprep.subr.mxu0 0.0
    %6793 = vmatpush2.msra.mxu0 0.0
    %6794 = vmatprep.subr.mxu0 0.0
    %6795 = vmatpush2.msra.mxu0 0.0
    %6796 = vmatprep.subr.mxu0 0.0
    %6797 = vmatpush2.msra.mxu0 0.0
    %6798 = vmatprep.subr.mxu0 0.0
    %6799 = vmatpush2.msra.mxu0 0.0
    %6800 = vmatprep.subr.mxu0 0.0
    %6801 = vmatpush2.msra.mxu0 0.0
    %6802 = vmatprep.subr.mxu0 0.0
    %6803 = vmatpush2.msra.mxu0 0.0
    %6804 = vmatprep.subr.mxu0 0.0
    %6805 = vmatpush2.msra.mxu0 0.0
    %6806 = vmatprep.subr.mxu0 0.0
    %6807 = vmatpush2.msra.mxu0 0.0
    %6808 = vmatprep.subr.mxu0 0.0
    %6809 = vmatpush2.msra.mxu0 0.0
    %6810 = vmatprep.subr.mxu0 0.0
    %6811 = vmatpush2.msra.mxu0 0.0
    %6812 = vmatprep.subr.mxu0 0.0
    %6813 = vmatpush2.msra.mxu0 0.0
    %6814 = vmatprep.subr.mxu0 0.0
    %6815 = vmatpush2.msra.mxu0 0.0
    %6816 = vmatprep.subr.mxu0 0.0
    %6817 = vmatpush2.msra.mxu0 0.0
    %6818 = vmatprep.subr.mxu0 0.0
    %6819 = vmatpush2.msra.mxu0 0.0
    %6820 = vmatprep.subr.mxu0 0.0
    %6821 = vmatpush2.msra.mxu0 0.0
    %6822 = vmatprep.mubr.f32.mxu0 0.0
    %v6823 = vand.u32 %v5881, 4294901760
    %6824 = vmatmul.mubr.f32.gmra.mxu0 %v6823
    %v6825 = vpop.f32.mrf.mxu0
    %v6826 = vadd.f32 %v6752, %v6825
    %v6827 = vpop.f32.mrf.mxu0
    %v6828 = vadd.f32 %v6754, %v6827
    %6829 = vdwg.mxu0
    %6830 = vmatprep.subr.mxu0 0.0
    %6831 = vmatpush1.msra.mxu0 0.0
    %6832 = vmatprep.subr.mxu0 0.0
    %6833 = vmatpush1.msra.mxu0 0.0
    %6834 = vmatprep.subr.mxu0 0.0
    %6835 = vmatpush1.msra.mxu0 0.0
    %6836 = vmatprep.subr.mxu0 0.0
    %6837 = vmatpush1.msra.mxu0 0.0
    %6838 = vmatprep.subr.mxu0 0.0
    %6839 = vmatpush1.msra.mxu0 0.0
    %6840 = vmatprep.subr.mxu0 0.0
    %6841 = vmatpush1.msra.mxu0 0.0
    %6842 = vmatprep.subr.mxu0 0.0
    %6843 = vmatpush1.msra.mxu0 0.0
    %6844 = vmatprep.subr.mxu0 0.0
    %6845 = vmatpush1.msra.mxu0 0.0
    %6846 = vmatprep.subr.mxu0 0.0
    %6847 = vmatpush1.msra.mxu0 0.0
    %6848 = vmatprep.subr.mxu0 0.0
    %6849 = vmatpush1.msra.mxu0 0.0
    %6850 = vmatprep.subr.mxu0 0.0
    %6851 = vmatpush1.msra.mxu0 0.0
    %6852 = vmatprep.subr.mxu0 0.0
    %6853 = vmatpush1.msra.mxu0 0.0
    %6854 = vmatprep.subr.mxu0 0.0
    %6855 = vmatpush1.msra.mxu0 0.0
    %6856 = vmatprep.subr.mxu0 0.0
    %6857 = vmatpush1.msra.mxu0 0.0
    %6858 = vmatprep.subr.mxu0 0.0
    %6859 = vmatpush1.msra.mxu0 0.0
    %v6860 = vand.u32 %v5894, 4294901760
    %6861 = vmatprep.subr.mxu0 %v6860
    %v6862 = vand.u32 %v5892, 4294901760
    %6863 = vmatpush1.msra.mxu0 %v6862
    %6864 = vmatprep.subr.mxu0 0.0
    %6865 = vmatpush2.msra.mxu0 0.0
    %6866 = vmatprep.subr.mxu0 0.0
    %6867 = vmatpush2.msra.mxu0 0.0
    %6868 = vmatprep.subr.mxu0 0.0
    %6869 = vmatpush2.msra.mxu0 0.0
    %6870 = vmatprep.subr.mxu0 0.0
    %6871 = vmatpush2.msra.mxu0 0.0
    %6872 = vmatprep.subr.mxu0 0.0
    %6873 = vmatpush2.msra.mxu0 0.0
    %6874 = vmatprep.subr.mxu0 0.0
    %6875 = vmatpush2.msra.mxu0 0.0
    %6876 = vmatprep.subr.mxu0 0.0
    %6877 = vmatpush2.msra.mxu0 0.0
    %6878 = vmatprep.subr.mxu0 0.0
    %6879 = vmatpush2.msra.mxu0 0.0
    %6880 = vmatprep.subr.mxu0 0.0
    %6881 = vmatpush2.msra.mxu0 0.0
    %6882 = vmatprep.subr.mxu0 0.0
    %6883 = vmatpush2.msra.mxu0 0.0
    %6884 = vmatprep.subr.mxu0 0.0
    %6885 = vmatpush2.msra.mxu0 0.0
    %6886 = vmatprep.subr.mxu0 0.0
    %6887 = vmatpush2.msra.mxu0 0.0
    %6888 = vmatprep.subr.mxu0 0.0
    %6889 = vmatpush2.msra.mxu0 0.0
    %6890 = vmatprep.subr.mxu0 0.0
    %6891 = vmatpush2.msra.mxu0 0.0
    %6892 = vmatprep.subr.mxu0 0.0
    %6893 = vmatpush2.msra.mxu0 0.0
    %6894 = vmatprep.subr.mxu0 0.0
    %6895 = vmatpush2.msra.mxu0 0.0
    %6896 = vmatprep.mubr.f32.mxu0 0.0
    %v6897 = vand.u32 %v5881, 4294901760
    %v6898 = vsub.f32 %v5881, %v6897
    %v6899 = vand.u32 %v6898, 4294901760
    %v6900 = vsub.f32 %v6898, %v6899
    %v6901 = vand.u32 %v6900, 4294901760
    %6902 = vmatmul.mubr.f32.gmra.mxu0 %v6901
    %v6903 = vpop.f32.mrf.mxu0
    %v6904 = vadd.f32 0.0, %v6903
    %v6905 = vpop.f32.mrf.mxu0
    %v6906 = vadd.f32 0.0, %v6905
    %6907 = vdwg.mxu0
    %6908 = vmatprep.subr.mxu0 0.0
    %6909 = vmatpush1.msra.mxu0 0.0
    %6910 = vmatprep.subr.mxu0 0.0
    %6911 = vmatpush1.msra.mxu0 0.0
    %6912 = vmatprep.subr.mxu0 0.0
    %6913 = vmatpush1.msra.mxu0 0.0
    %6914 = vmatprep.subr.mxu0 0.0
    %6915 = vmatpush1.msra.mxu0 0.0
    %6916 = vmatprep.subr.mxu0 0.0
    %6917 = vmatpush1.msra.mxu0 0.0
    %6918 = vmatprep.subr.mxu0 0.0
    %6919 = vmatpush1.msra.mxu0 0.0
    %6920 = vmatprep.subr.mxu0 0.0
    %6921 = vmatpush1.msra.mxu0 0.0
    %6922 = vmatprep.subr.mxu0 0.0
    %6923 = vmatpush1.msra.mxu0 0.0
    %6924 = vmatprep.subr.mxu0 0.0
    %6925 = vmatpush1.msra.mxu0 0.0
    %6926 = vmatprep.subr.mxu0 0.0
    %6927 = vmatpush1.msra.mxu0 0.0
    %6928 = vmatprep.subr.mxu0 0.0
    %6929 = vmatpush1.msra.mxu0 0.0
    %6930 = vmatprep.subr.mxu0 0.0
    %6931 = vmatpush1.msra.mxu0 0.0
    %6932 = vmatprep.subr.mxu0 0.0
    %6933 = vmatpush1.msra.mxu0 0.0
    %6934 = vmatprep.subr.mxu0 0.0
    %6935 = vmatpush1.msra.mxu0 0.0
    %6936 = vmatprep.subr.mxu0 0.0
    %6937 = vmatpush1.msra.mxu0 0.0
    %v6938 = vand.u32 %v5894, 4294901760
    %v6939 = vsub.f32 %v5894, %v6938
    %v6940 = vand.u32 %v6939, 4294901760
    %v6941 = vsub.f32 %v6939, %v6940
    %v6942 = vand.u32 %v6941, 4294901760
    %6943 = vmatprep.subr.mxu0 %v6942
    %v6944 = vand.u32 %v5892, 4294901760
    %v6945 = vsub.f32 %v5892, %v6944
    %v6946 = vand.u32 %v6945, 4294901760
    %v6947 = vsub.f32 %v6945, %v6946
    %v6948 = vand.u32 %v6947, 4294901760
    %6949 = vmatpush1.msra.mxu0 %v6948
    %6950 = vmatprep.subr.mxu0 0.0
    %6951 = vmatpush2.msra.mxu0 0.0
    %6952 = vmatprep.subr.mxu0 0.0
    %6953 = vmatpush2.msra.mxu0 0.0
    %6954 = vmatprep.subr.mxu0 0.0
    %6955 = vmatpush2.msra.mxu0 0.0
    %6956 = vmatprep.subr.mxu0 0.0
    %6957 = vmatpush2.msra.mxu0 0.0
    %6958 = vmatprep.subr.mxu0 0.0
    %6959 = vmatpush2.msra.mxu0 0.0
    %6960 = vmatprep.subr.mxu0 0.0
    %6961 = vmatpush2.msra.mxu0 0.0
    %6962 = vmatprep.subr.mxu0 0.0
    %6963 = vmatpush2.msra.mxu0 0.0
    %6964 = vmatprep.subr.mxu0 0.0
    %6965 = vmatpush2.msra.mxu0 0.0
    %6966 = vmatprep.subr.mxu0 0.0
    %6967 = vmatpush2.msra.mxu0 0.0
    %6968 = vmatprep.subr.mxu0 0.0
    %6969 = vmatpush2.msra.mxu0 0.0
    %6970 = vmatprep.subr.mxu0 0.0
    %6971 = vmatpush2.msra.mxu0 0.0
    %6972 = vmatprep.subr.mxu0 0.0
    %6973 = vmatpush2.msra.mxu0 0.0
    %6974 = vmatprep.subr.mxu0 0.0
    %6975 = vmatpush2.msra.mxu0 0.0
    %6976 = vmatprep.subr.mxu0 0.0
    %6977 = vmatpush2.msra.mxu0 0.0
    %6978 = vmatprep.subr.mxu0 0.0
    %6979 = vmatpush2.msra.mxu0 0.0
    %6980 = vmatprep.subr.mxu0 0.0
    %6981 = vmatpush2.msra.mxu0 0.0
    %6982 = vmatprep.mubr.f32.mxu0 0.0
    %v6983 = vand.u32 %v5881, 4294901760
    %6984 = vmatmul.mubr.f32.gmra.mxu0 %v6983
    %v6985 = vpop.f32.mrf.mxu0
    %v6986 = vadd.f32 %v6904, %v6985
    %v6987 = vpop.f32.mrf.mxu0
    %v6988 = vadd.f32 %v6906, %v6987
    %6989 = vdwg.mxu0
    %6990 = vmatprep.subr.mxu0 0.0
    %6991 = vmatpush1.msra.mxu0 0.0
    %6992 = vmatprep.subr.mxu0 0.0
    %6993 = vmatpush1.msra.mxu0 0.0
    %6994 = vmatprep.subr.mxu0 0.0
    %6995 = vmatpush1.msra.mxu0 0.0
    %6996 = vmatprep.subr.mxu0 0.0
    %6997 = vmatpush1.msra.mxu0 0.0
    %6998 = vmatprep.subr.mxu0 0.0
    %6999 = vmatpush1.msra.mxu0 0.0
    %7000 = vmatprep.subr.mxu0 0.0
    %7001 = vmatpush1.msra.mxu0 0.0
    %7002 = vmatprep.subr.mxu0 0.0
    %7003 = vmatpush1.msra.mxu0 0.0
    %7004 = vmatprep.subr.mxu0 0.0
    %7005 = vmatpush1.msra.mxu0 0.0
    %7006 = vmatprep.subr.mxu0 0.0
    %7007 = vmatpush1.msra.mxu0 0.0
    %7008 = vmatprep.subr.mxu0 0.0
    %7009 = vmatpush1.msra.mxu0 0.0
    %7010 = vmatprep.subr.mxu0 0.0
    %7011 = vmatpush1.msra.mxu0 0.0
    %7012 = vmatprep.subr.mxu0 0.0
    %7013 = vmatpush1.msra.mxu0 0.0
    %7014 = vmatprep.subr.mxu0 0.0
    %7015 = vmatpush1.msra.mxu0 0.0
    %7016 = vmatprep.subr.mxu0 0.0
    %7017 = vmatpush1.msra.mxu0 0.0
    %7018 = vmatprep.subr.mxu0 0.0
    %7019 = vmatpush1.msra.mxu0 0.0
    %v7020 = vand.u32 %v5894, 4294901760
    %v7021 = vsub.f32 %v5894, %v7020
    %7022 = vmatprep.subr.mxu0 %v7021
    %v7023 = vand.u32 %v5892, 4294901760
    %v7024 = vsub.f32 %v5892, %v7023
    %7025 = vmatpush1.msra.mxu0 %v7024
    %7026 = vmatprep.subr.mxu0 0.0
    %7027 = vmatpush2.msra.mxu0 0.0
    %7028 = vmatprep.subr.mxu0 0.0
    %7029 = vmatpush2.msra.mxu0 0.0
    %7030 = vmatprep.subr.mxu0 0.0
    %7031 = vmatpush2.msra.mxu0 0.0
    %7032 = vmatprep.subr.mxu0 0.0
    %7033 = vmatpush2.msra.mxu0 0.0
    %7034 = vmatprep.subr.mxu0 0.0
    %7035 = vmatpush2.msra.mxu0 0.0
    %7036 = vmatprep.subr.mxu0 0.0
    %7037 = vmatpush2.msra.mxu0 0.0
    %7038 = vmatprep.subr.mxu0 0.0
    %7039 = vmatpush2.msra.mxu0 0.0
    %7040 = vmatprep.subr.mxu0 0.0
    %7041 = vmatpush2.msra.mxu0 0.0
    %7042 = vmatprep.subr.mxu0 0.0
    %7043 = vmatpush2.msra.mxu0 0.0
    %7044 = vmatprep.subr.mxu0 0.0
    %7045 = vmatpush2.msra.mxu0 0.0
    %7046 = vmatprep.subr.mxu0 0.0
    %7047 = vmatpush2.msra.mxu0 0.0
    %7048 = vmatprep.subr.mxu0 0.0
    %7049 = vmatpush2.msra.mxu0 0.0
    %7050 = vmatprep.subr.mxu0 0.0
    %7051 = vmatpush2.msra.mxu0 0.0
    %7052 = vmatprep.subr.mxu0 0.0
    %7053 = vmatpush2.msra.mxu0 0.0
    %7054 = vmatprep.subr.mxu0 0.0
    %7055 = vmatpush2.msra.mxu0 0.0
    %7056 = vmatprep.subr.mxu0 0.0
    %7057 = vmatpush2.msra.mxu0 0.0
    %7058 = vmatprep.mubr.f32.mxu0 0.0
    %v7059 = vand.u32 %v5881, 4294901760
    %v7060 = vsub.f32 %v5881, %v7059
    %7061 = vmatmul.mubr.f32.gmra.mxu0 %v7060
    %v7062 = vpop.f32.mrf.mxu0
    %v7063 = vadd.f32 %v6986, %v7062
    %v7064 = vpop.f32.mrf.mxu0
    %v7065 = vadd.f32 %v6988, %v7064
    %7066 = vdwg.mxu0
    %7067 = vmatprep.subr.mxu0 0.0
    %7068 = vmatpush1.msra.mxu0 0.0
    %7069 = vmatprep.subr.mxu0 0.0
    %7070 = vmatpush1.msra.mxu0 0.0
    %7071 = vmatprep.subr.mxu0 0.0
    %7072 = vmatpush1.msra.mxu0 0.0
    %7073 = vmatprep.subr.mxu0 0.0
    %7074 = vmatpush1.msra.mxu0 0.0
    %7075 = vmatprep.subr.mxu0 0.0
    %7076 = vmatpush1.msra.mxu0 0.0
    %7077 = vmatprep.subr.mxu0 0.0
    %7078 = vmatpush1.msra.mxu0 0.0
    %7079 = vmatprep.subr.mxu0 0.0
    %7080 = vmatpush1.msra.mxu0 0.0
    %7081 = vmatprep.subr.mxu0 0.0
    %7082 = vmatpush1.msra.mxu0 0.0
    %7083 = vmatprep.subr.mxu0 0.0
    %7084 = vmatpush1.msra.mxu0 0.0
    %7085 = vmatprep.subr.mxu0 0.0
    %7086 = vmatpush1.msra.mxu0 0.0
    %7087 = vmatprep.subr.mxu0 0.0
    %7088 = vmatpush1.msra.mxu0 0.0
    %7089 = vmatprep.subr.mxu0 0.0
    %7090 = vmatpush1.msra.mxu0 0.0
    %7091 = vmatprep.subr.mxu0 0.0
    %7092 = vmatpush1.msra.mxu0 0.0
    %7093 = vmatprep.subr.mxu0 0.0
    %7094 = vmatpush1.msra.mxu0 0.0
    %7095 = vmatprep.subr.mxu0 0.0
    %7096 = vmatpush1.msra.mxu0 0.0
    %v7097 = vand.u32 %v5894, 4294901760
    %7098 = vmatprep.subr.mxu0 %v7097
    %v7099 = vand.u32 %v5892, 4294901760
    %7100 = vmatpush1.msra.mxu0 %v7099
    %7101 = vmatprep.subr.mxu0 0.0
    %7102 = vmatpush2.msra.mxu0 0.0
    %7103 = vmatprep.subr.mxu0 0.0
    %7104 = vmatpush2.msra.mxu0 0.0
    %7105 = vmatprep.subr.mxu0 0.0
    %7106 = vmatpush2.msra.mxu0 0.0
    %7107 = vmatprep.subr.mxu0 0.0
    %7108 = vmatpush2.msra.mxu0 0.0
    %7109 = vmatprep.subr.mxu0 0.0
    %7110 = vmatpush2.msra.mxu0 0.0
    %7111 = vmatprep.subr.mxu0 0.0
    %7112 = vmatpush2.msra.mxu0 0.0
    %7113 = vmatprep.subr.mxu0 0.0
    %7114 = vmatpush2.msra.mxu0 0.0
    %7115 = vmatprep.subr.mxu0 0.0
    %7116 = vmatpush2.msra.mxu0 0.0
    %7117 = vmatprep.subr.mxu0 0.0
    %7118 = vmatpush2.msra.mxu0 0.0
    %7119 = vmatprep.subr.mxu0 0.0
    %7120 = vmatpush2.msra.mxu0 0.0
    %7121 = vmatprep.subr.mxu0 0.0
    %7122 = vmatpush2.msra.mxu0 0.0
    %7123 = vmatprep.subr.mxu0 0.0
    %7124 = vmatpush2.msra.mxu0 0.0
    %7125 = vmatprep.subr.mxu0 0.0
    %7126 = vmatpush2.msra.mxu0 0.0
    %7127 = vmatprep.subr.mxu0 0.0
    %7128 = vmatpush2.msra.mxu0 0.0
    %7129 = vmatprep.subr.mxu0 0.0
    %7130 = vmatpush2.msra.mxu0 0.0
    %7131 = vmatprep.subr.mxu0 0.0
    %7132 = vmatpush2.msra.mxu0 0.0
    %7133 = vmatprep.mubr.f32.mxu0 0.0
    %v7134 = vand.u32 %v5881, 4294901760
    %v7135 = vsub.f32 %v5881, %v7134
    %v7136 = vand.u32 %v7135, 4294901760
    %7137 = vmatmul.mubr.f32.gmra.mxu0 %v7136
    %v7138 = vpop.f32.mrf.mxu0
    %v7139 = vadd.f32 %v7063, %v7138
    %v7140 = vpop.f32.mrf.mxu0
    %v7141 = vadd.f32 %v7065, %v7140
    %7142 = vdwg.mxu0
    %7143 = vmatprep.subr.mxu0 0.0
    %7144 = vmatpush1.msra.mxu0 0.0
    %7145 = vmatprep.subr.mxu0 0.0
    %7146 = vmatpush1.msra.mxu0 0.0
    %7147 = vmatprep.subr.mxu0 0.0
    %7148 = vmatpush1.msra.mxu0 0.0
    %7149 = vmatprep.subr.mxu0 0.0
    %7150 = vmatpush1.msra.mxu0 0.0
    %7151 = vmatprep.subr.mxu0 0.0
    %7152 = vmatpush1.msra.mxu0 0.0
    %7153 = vmatprep.subr.mxu0 0.0
    %7154 = vmatpush1.msra.mxu0 0.0
    %7155 = vmatprep.subr.mxu0 0.0
    %7156 = vmatpush1.msra.mxu0 0.0
    %7157 = vmatprep.subr.mxu0 0.0
    %7158 = vmatpush1.msra.mxu0 0.0
    %7159 = vmatprep.subr.mxu0 0.0
    %7160 = vmatpush1.msra.mxu0 0.0
    %7161 = vmatprep.subr.mxu0 0.0
    %7162 = vmatpush1.msra.mxu0 0.0
    %7163 = vmatprep.subr.mxu0 0.0
    %7164 = vmatpush1.msra.mxu0 0.0
    %7165 = vmatprep.subr.mxu0 0.0
    %7166 = vmatpush1.msra.mxu0 0.0
    %7167 = vmatprep.subr.mxu0 0.0
    %7168 = vmatpush1.msra.mxu0 0.0
    %7169 = vmatprep.subr.mxu0 0.0
    %7170 = vmatpush1.msra.mxu0 0.0
    %7171 = vmatprep.subr.mxu0 0.0
    %7172 = vmatpush1.msra.mxu0 0.0
    %v7173 = vand.u32 %v5894, 4294901760
    %v7174 = vsub.f32 %v5894, %v7173
    %v7175 = vand.u32 %v7174, 4294901760
    %7176 = vmatprep.subr.mxu0 %v7175
    %v7177 = vand.u32 %v5892, 4294901760
    %v7178 = vsub.f32 %v5892, %v7177
    %v7179 = vand.u32 %v7178, 4294901760
    %7180 = vmatpush1.msra.mxu0 %v7179
    %7181 = vmatprep.subr.mxu0 0.0
    %7182 = vmatpush2.msra.mxu0 0.0
    %7183 = vmatprep.subr.mxu0 0.0
    %7184 = vmatpush2.msra.mxu0 0.0
    %7185 = vmatprep.subr.mxu0 0.0
    %7186 = vmatpush2.msra.mxu0 0.0
    %7187 = vmatprep.subr.mxu0 0.0
    %7188 = vmatpush2.msra.mxu0 0.0
    %7189 = vmatprep.subr.mxu0 0.0
    %7190 = vmatpush2.msra.mxu0 0.0
    %7191 = vmatprep.subr.mxu0 0.0
    %7192 = vmatpush2.msra.mxu0 0.0
    %7193 = vmatprep.subr.mxu0 0.0
    %7194 = vmatpush2.msra.mxu0 0.0
    %7195 = vmatprep.subr.mxu0 0.0
    %7196 = vmatpush2.msra.mxu0 0.0
    %7197 = vmatprep.subr.mxu0 0.0
    %7198 = vmatpush2.msra.mxu0 0.0
    %7199 = vmatprep.subr.mxu0 0.0
    %7200 = vmatpush2.msra.mxu0 0.0
    %7201 = vmatprep.subr.mxu0 0.0
    %7202 = vmatpush2.msra.mxu0 0.0
    %7203 = vmatprep.subr.mxu0 0.0
    %7204 = vmatpush2.msra.mxu0 0.0
    %7205 = vmatprep.subr.mxu0 0.0
    %7206 = vmatpush2.msra.mxu0 0.0
    %7207 = vmatprep.subr.mxu0 0.0
    %7208 = vmatpush2.msra.mxu0 0.0
    %7209 = vmatprep.subr.mxu0 0.0
    %7210 = vmatpush2.msra.mxu0 0.0
    %7211 = vmatprep.subr.mxu0 0.0
    %7212 = vmatpush2.msra.mxu0 0.0
    %7213 = vmatprep.mubr.f32.mxu0 0.0
    %v7214 = vand.u32 %v5881, 4294901760
    %7215 = vmatmul.mubr.f32.gmra.mxu0 %v7214
    %v7216 = vpop.f32.mrf.mxu0
    %v7217 = vadd.f32 %v7139, %v7216
    %v7218 = vpop.f32.mrf.mxu0
    %v7219 = vadd.f32 %v7141, %v7218
    %7220 = vdwg.mxu0
    %7221 = vmatprep.subr.mxu0 0.0
    %7222 = vmatpush1.msra.mxu0 0.0
    %7223 = vmatprep.subr.mxu0 0.0
    %7224 = vmatpush1.msra.mxu0 0.0
    %7225 = vmatprep.subr.mxu0 0.0
    %7226 = vmatpush1.msra.mxu0 0.0
    %7227 = vmatprep.subr.mxu0 0.0
    %7228 = vmatpush1.msra.mxu0 0.0
    %7229 = vmatprep.subr.mxu0 0.0
    %7230 = vmatpush1.msra.mxu0 0.0
    %7231 = vmatprep.subr.mxu0 0.0
    %7232 = vmatpush1.msra.mxu0 0.0
    %7233 = vmatprep.subr.mxu0 0.0
    %7234 = vmatpush1.msra.mxu0 0.0
    %7235 = vmatprep.subr.mxu0 0.0
    %7236 = vmatpush1.msra.mxu0 0.0
    %7237 = vmatprep.subr.mxu0 0.0
    %7238 = vmatpush1.msra.mxu0 0.0
    %7239 = vmatprep.subr.mxu0 0.0
    %7240 = vmatpush1.msra.mxu0 0.0
    %7241 = vmatprep.subr.mxu0 0.0
    %7242 = vmatpush1.msra.mxu0 0.0
    %7243 = vmatprep.subr.mxu0 0.0
    %7244 = vmatpush1.msra.mxu0 0.0
    %7245 = vmatprep.subr.mxu0 0.0
    %7246 = vmatpush1.msra.mxu0 0.0
    %7247 = vmatprep.subr.mxu0 0.0
    %7248 = vmatpush1.msra.mxu0 0.0
    %7249 = vmatprep.subr.mxu0 0.0
    %7250 = vmatpush1.msra.mxu0 0.0
    %v7251 = vand.u32 %v5894, 4294901760
    %7252 = vmatprep.subr.mxu0 %v7251
    %v7253 = vand.u32 %v5892, 4294901760
    %7254 = vmatpush1.msra.mxu0 %v7253
    %7255 = vmatprep.subr.mxu0 0.0
    %7256 = vmatpush2.msra.mxu0 0.0
    %7257 = vmatprep.subr.mxu0 0.0
    %7258 = vmatpush2.msra.mxu0 0.0
    %7259 = vmatprep.subr.mxu0 0.0
    %7260 = vmatpush2.msra.mxu0 0.0
    %7261 = vmatprep.subr.mxu0 0.0
    %7262 = vmatpush2.msra.mxu0 0.0
    %7263 = vmatprep.subr.mxu0 0.0
    %7264 = vmatpush2.msra.mxu0 0.0
    %7265 = vmatprep.subr.mxu0 0.0
    %7266 = vmatpush2.msra.mxu0 0.0
    %7267 = vmatprep.subr.mxu0 0.0
    %7268 = vmatpush2.msra.mxu0 0.0
    %7269 = vmatprep.subr.mxu0 0.0
    %7270 = vmatpush2.msra.mxu0 0.0
    %7271 = vmatprep.subr.mxu0 0.0
    %7272 = vmatpush2.msra.mxu0 0.0
    %7273 = vmatprep.subr.mxu0 0.0
    %7274 = vmatpush2.msra.mxu0 0.0
    %7275 = vmatprep.subr.mxu0 0.0
    %7276 = vmatpush2.msra.mxu0 0.0
    %7277 = vmatprep.subr.mxu0 0.0
    %7278 = vmatpush2.msra.mxu0 0.0
    %7279 = vmatprep.subr.mxu0 0.0
    %7280 = vmatpush2.msra.mxu0 0.0
    %7281 = vmatprep.subr.mxu0 0.0
    %7282 = vmatpush2.msra.mxu0 0.0
    %7283 = vmatprep.subr.mxu0 0.0
    %7284 = vmatpush2.msra.mxu0 0.0
    %7285 = vmatprep.subr.mxu0 0.0
    %7286 = vmatpush2.msra.mxu0 0.0
    %7287 = vmatprep.mubr.f32.mxu0 0.0
    %v7288 = vand.u32 %v5881, 4294901760
    %7289 = vmatmul.mubr.f32.gmra.mxu0 %v7288
    %v7290 = vpop.f32.mrf.mxu0
    %v7291 = vadd.f32 %v7217, %v7290
    %v7292 = vpop.f32.mrf.mxu0
    %v7293 = vadd.f32 %v7219, %v7292
    %7294 = vdwg.mxu0
    %7295 = vmatprep.subr.mxu0 0.0
    %7296 = vmatpush1.msra.mxu0 0.0
    %7297 = vmatprep.subr.mxu0 0.0
    %7298 = vmatpush1.msra.mxu0 0.0
    %7299 = vmatprep.subr.mxu0 0.0
    %7300 = vmatpush1.msra.mxu0 0.0
    %7301 = vmatprep.subr.mxu0 0.0
    %7302 = vmatpush1.msra.mxu0 0.0
    %7303 = vmatprep.subr.mxu0 0.0
    %7304 = vmatpush1.msra.mxu0 0.0
    %7305 = vmatprep.subr.mxu0 0.0
    %7306 = vmatpush1.msra.mxu0 0.0
    %7307 = vmatprep.subr.mxu0 0.0
    %7308 = vmatpush1.msra.mxu0 0.0
    %7309 = vmatprep.subr.mxu0 0.0
    %7310 = vmatpush1.msra.mxu0 0.0
    %7311 = vmatprep.subr.mxu0 0.0
    %7312 = vmatpush1.msra.mxu0 0.0
    %7313 = vmatprep.subr.mxu0 0.0
    %7314 = vmatpush1.msra.mxu0 0.0
    %7315 = vmatprep.subr.mxu0 0.0
    %7316 = vmatpush1.msra.mxu0 0.0
    %7317 = vmatprep.subr.mxu0 0.0
    %7318 = vmatpush1.msra.mxu0 0.0
    %7319 = vmatprep.subr.mxu0 0.0
    %7320 = vmatpush1.msra.mxu0 0.0
    %7321 = vmatprep.subr.mxu0 0.0
    %7322 = vmatpush1.msra.mxu0 0.0
    %7323 = vmatprep.subr.mxu0 0.0
    %7324 = vmatpush1.msra.mxu0 0.0
    %v7325 = vand.u32 %v5898, 4294901760
    %7326 = vmatprep.subr.mxu0 %v7325
    %v7327 = vand.u32 %v5896, 4294901760
    %7328 = vmatpush1.msra.mxu0 %v7327
    %7329 = vmatprep.subr.mxu0 0.0
    %7330 = vmatpush2.msra.mxu0 0.0
    %7331 = vmatprep.subr.mxu0 0.0
    %7332 = vmatpush2.msra.mxu0 0.0
    %7333 = vmatprep.subr.mxu0 0.0
    %7334 = vmatpush2.msra.mxu0 0.0
    %7335 = vmatprep.subr.mxu0 0.0
    %7336 = vmatpush2.msra.mxu0 0.0
    %7337 = vmatprep.subr.mxu0 0.0
    %7338 = vmatpush2.msra.mxu0 0.0
    %7339 = vmatprep.subr.mxu0 0.0
    %7340 = vmatpush2.msra.mxu0 0.0
    %7341 = vmatprep.subr.mxu0 0.0
    %7342 = vmatpush2.msra.mxu0 0.0
    %7343 = vmatprep.subr.mxu0 0.0
    %7344 = vmatpush2.msra.mxu0 0.0
    %7345 = vmatprep.subr.mxu0 0.0
    %7346 = vmatpush2.msra.mxu0 0.0
    %7347 = vmatprep.subr.mxu0 0.0
    %7348 = vmatpush2.msra.mxu0 0.0
    %7349 = vmatprep.subr.mxu0 0.0
    %7350 = vmatpush2.msra.mxu0 0.0
    %7351 = vmatprep.subr.mxu0 0.0
    %7352 = vmatpush2.msra.mxu0 0.0
    %7353 = vmatprep.subr.mxu0 0.0
    %7354 = vmatpush2.msra.mxu0 0.0
    %7355 = vmatprep.subr.mxu0 0.0
    %7356 = vmatpush2.msra.mxu0 0.0
    %7357 = vmatprep.subr.mxu0 0.0
    %7358 = vmatpush2.msra.mxu0 0.0
    %7359 = vmatprep.subr.mxu0 0.0
    %7360 = vmatpush2.msra.mxu0 0.0
    %7361 = vmatprep.mubr.f32.mxu0 0.0
    %v7362 = vand.u32 %v5881, 4294901760
    %v7363 = vsub.f32 %v5881, %v7362
    %v7364 = vand.u32 %v7363, 4294901760
    %v7365 = vsub.f32 %v7363, %v7364
    %v7366 = vand.u32 %v7365, 4294901760
    %7367 = vmatmul.mubr.f32.gmra.mxu0 %v7366
    %v7368 = vpop.f32.mrf.mxu0
    %v7369 = vadd.f32 0.0, %v7368
    %v7370 = vpop.f32.mrf.mxu0
    %v7371 = vadd.f32 0.0, %v7370
    %7372 = vdwg.mxu0
    %7373 = vmatprep.subr.mxu0 0.0
    %7374 = vmatpush1.msra.mxu0 0.0
    %7375 = vmatprep.subr.mxu0 0.0
    %7376 = vmatpush1.msra.mxu0 0.0
    %7377 = vmatprep.subr.mxu0 0.0
    %7378 = vmatpush1.msra.mxu0 0.0
    %7379 = vmatprep.subr.mxu0 0.0
    %7380 = vmatpush1.msra.mxu0 0.0
    %7381 = vmatprep.subr.mxu0 0.0
    %7382 = vmatpush1.msra.mxu0 0.0
    %7383 = vmatprep.subr.mxu0 0.0
    %7384 = vmatpush1.msra.mxu0 0.0
    %7385 = vmatprep.subr.mxu0 0.0
    %7386 = vmatpush1.msra.mxu0 0.0
    %7387 = vmatprep.subr.mxu0 0.0
    %7388 = vmatpush1.msra.mxu0 0.0
    %7389 = vmatprep.subr.mxu0 0.0
    %7390 = vmatpush1.msra.mxu0 0.0
    %7391 = vmatprep.subr.mxu0 0.0
    %7392 = vmatpush1.msra.mxu0 0.0
    %7393 = vmatprep.subr.mxu0 0.0
    %7394 = vmatpush1.msra.mxu0 0.0
    %7395 = vmatprep.subr.mxu0 0.0
    %7396 = vmatpush1.msra.mxu0 0.0
    %7397 = vmatprep.subr.mxu0 0.0
    %7398 = vmatpush1.msra.mxu0 0.0
    %7399 = vmatprep.subr.mxu0 0.0
    %7400 = vmatpush1.msra.mxu0 0.0
    %7401 = vmatprep.subr.mxu0 0.0
    %7402 = vmatpush1.msra.mxu0 0.0
    %v7403 = vand.u32 %v5898, 4294901760
    %v7404 = vsub.f32 %v5898, %v7403
    %v7405 = vand.u32 %v7404, 4294901760
    %v7406 = vsub.f32 %v7404, %v7405
    %v7407 = vand.u32 %v7406, 4294901760
    %7408 = vmatprep.subr.mxu0 %v7407
    %v7409 = vand.u32 %v5896, 4294901760
    %v7410 = vsub.f32 %v5896, %v7409
    %v7411 = vand.u32 %v7410, 4294901760
    %v7412 = vsub.f32 %v7410, %v7411
    %v7413 = vand.u32 %v7412, 4294901760
    %7414 = vmatpush1.msra.mxu0 %v7413
    %7415 = vmatprep.subr.mxu0 0.0
    %7416 = vmatpush2.msra.mxu0 0.0
    %7417 = vmatprep.subr.mxu0 0.0
    %7418 = vmatpush2.msra.mxu0 0.0
    %7419 = vmatprep.subr.mxu0 0.0
    %7420 = vmatpush2.msra.mxu0 0.0
    %7421 = vmatprep.subr.mxu0 0.0
    %7422 = vmatpush2.msra.mxu0 0.0
    %7423 = vmatprep.subr.mxu0 0.0
    %7424 = vmatpush2.msra.mxu0 0.0
    %7425 = vmatprep.subr.mxu0 0.0
    %7426 = vmatpush2.msra.mxu0 0.0
    %7427 = vmatprep.subr.mxu0 0.0
    %7428 = vmatpush2.msra.mxu0 0.0
    %7429 = vmatprep.subr.mxu0 0.0
    %7430 = vmatpush2.msra.mxu0 0.0
    %7431 = vmatprep.subr.mxu0 0.0
    %7432 = vmatpush2.msra.mxu0 0.0
    %7433 = vmatprep.subr.mxu0 0.0
    %7434 = vmatpush2.msra.mxu0 0.0
    %7435 = vmatprep.subr.mxu0 0.0
    %7436 = vmatpush2.msra.mxu0 0.0
    %7437 = vmatprep.subr.mxu0 0.0
    %7438 = vmatpush2.msra.mxu0 0.0
    %7439 = vmatprep.subr.mxu0 0.0
    %7440 = vmatpush2.msra.mxu0 0.0
    %7441 = vmatprep.subr.mxu0 0.0
    %7442 = vmatpush2.msra.mxu0 0.0
    %7443 = vmatprep.subr.mxu0 0.0
    %7444 = vmatpush2.msra.mxu0 0.0
    %7445 = vmatprep.subr.mxu0 0.0
    %7446 = vmatpush2.msra.mxu0 0.0
    %7447 = vmatprep.mubr.f32.mxu0 0.0
    %v7448 = vand.u32 %v5881, 4294901760
    %7449 = vmatmul.mubr.f32.gmra.mxu0 %v7448
    %v7450 = vpop.f32.mrf.mxu0
    %v7451 = vadd.f32 %v7369, %v7450
    %v7452 = vpop.f32.mrf.mxu0
    %v7453 = vadd.f32 %v7371, %v7452
    %7454 = vdwg.mxu0
    %7455 = vmatprep.subr.mxu0 0.0
    %7456 = vmatpush1.msra.mxu0 0.0
    %7457 = vmatprep.subr.mxu0 0.0
    %7458 = vmatpush1.msra.mxu0 0.0
    %7459 = vmatprep.subr.mxu0 0.0
    %7460 = vmatpush1.msra.mxu0 0.0
    %7461 = vmatprep.subr.mxu0 0.0
    %7462 = vmatpush1.msra.mxu0 0.0
    %7463 = vmatprep.subr.mxu0 0.0
    %7464 = vmatpush1.msra.mxu0 0.0
    %7465 = vmatprep.subr.mxu0 0.0
    %7466 = vmatpush1.msra.mxu0 0.0
    %7467 = vmatprep.subr.mxu0 0.0
    %7468 = vmatpush1.msra.mxu0 0.0
    %7469 = vmatprep.subr.mxu0 0.0
    %7470 = vmatpush1.msra.mxu0 0.0
    %7471 = vmatprep.subr.mxu0 0.0
    %7472 = vmatpush1.msra.mxu0 0.0
    %7473 = vmatprep.subr.mxu0 0.0
    %7474 = vmatpush1.msra.mxu0 0.0
    %7475 = vmatprep.subr.mxu0 0.0
    %7476 = vmatpush1.msra.mxu0 0.0
    %7477 = vmatprep.subr.mxu0 0.0
    %7478 = vmatpush1.msra.mxu0 0.0
    %7479 = vmatprep.subr.mxu0 0.0
    %7480 = vmatpush1.msra.mxu0 0.0
    %7481 = vmatprep.subr.mxu0 0.0
    %7482 = vmatpush1.msra.mxu0 0.0
    %7483 = vmatprep.subr.mxu0 0.0
    %7484 = vmatpush1.msra.mxu0 0.0
    %v7485 = vand.u32 %v5898, 4294901760
    %v7486 = vsub.f32 %v5898, %v7485
    %7487 = vmatprep.subr.mxu0 %v7486
    %v7488 = vand.u32 %v5896, 4294901760
    %v7489 = vsub.f32 %v5896, %v7488
    %7490 = vmatpush1.msra.mxu0 %v7489
    %7491 = vmatprep.subr.mxu0 0.0
    %7492 = vmatpush2.msra.mxu0 0.0
    %7493 = vmatprep.subr.mxu0 0.0
    %7494 = vmatpush2.msra.mxu0 0.0
    %7495 = vmatprep.subr.mxu0 0.0
    %7496 = vmatpush2.msra.mxu0 0.0
    %7497 = vmatprep.subr.mxu0 0.0
    %7498 = vmatpush2.msra.mxu0 0.0
    %7499 = vmatprep.subr.mxu0 0.0
    %7500 = vmatpush2.msra.mxu0 0.0
    %7501 = vmatprep.subr.mxu0 0.0
    %7502 = vmatpush2.msra.mxu0 0.0
    %7503 = vmatprep.subr.mxu0 0.0
    %7504 = vmatpush2.msra.mxu0 0.0
    %7505 = vmatprep.subr.mxu0 0.0
    %7506 = vmatpush2.msra.mxu0 0.0
    %7507 = vmatprep.subr.mxu0 0.0
    %7508 = vmatpush2.msra.mxu0 0.0
    %7509 = vmatprep.subr.mxu0 0.0
    %7510 = vmatpush2.msra.mxu0 0.0
    %7511 = vmatprep.subr.mxu0 0.0
    %7512 = vmatpush2.msra.mxu0 0.0
    %7513 = vmatprep.subr.mxu0 0.0
    %7514 = vmatpush2.msra.mxu0 0.0
    %7515 = vmatprep.subr.mxu0 0.0
    %7516 = vmatpush2.msra.mxu0 0.0
    %7517 = vmatprep.subr.mxu0 0.0
    %7518 = vmatpush2.msra.mxu0 0.0
    %7519 = vmatprep.subr.mxu0 0.0
    %7520 = vmatpush2.msra.mxu0 0.0
    %7521 = vmatprep.subr.mxu0 0.0
    %7522 = vmatpush2.msra.mxu0 0.0
    %7523 = vmatprep.mubr.f32.mxu0 0.0
    %v7524 = vand.u32 %v5881, 4294901760
    %v7525 = vsub.f32 %v5881, %v7524
    %7526 = vmatmul.mubr.f32.gmra.mxu0 %v7525
    %v7527 = vpop.f32.mrf.mxu0
    %v7528 = vadd.f32 %v7451, %v7527
    %v7529 = vpop.f32.mrf.mxu0
    %v7530 = vadd.f32 %v7453, %v7529
    %7531 = vdwg.mxu0
    %7532 = vmatprep.subr.mxu0 0.0
    %7533 = vmatpush1.msra.mxu0 0.0
    %7534 = vmatprep.subr.mxu0 0.0
    %7535 = vmatpush1.msra.mxu0 0.0
    %7536 = vmatprep.subr.mxu0 0.0
    %7537 = vmatpush1.msra.mxu0 0.0
    %7538 = vmatprep.subr.mxu0 0.0
    %7539 = vmatpush1.msra.mxu0 0.0
    %7540 = vmatprep.subr.mxu0 0.0
    %7541 = vmatpush1.msra.mxu0 0.0
    %7542 = vmatprep.subr.mxu0 0.0
    %7543 = vmatpush1.msra.mxu0 0.0
    %7544 = vmatprep.subr.mxu0 0.0
    %7545 = vmatpush1.msra.mxu0 0.0
    %7546 = vmatprep.subr.mxu0 0.0
    %7547 = vmatpush1.msra.mxu0 0.0
    %7548 = vmatprep.subr.mxu0 0.0
    %7549 = vmatpush1.msra.mxu0 0.0
    %7550 = vmatprep.subr.mxu0 0.0
    %7551 = vmatpush1.msra.mxu0 0.0
    %7552 = vmatprep.subr.mxu0 0.0
    %7553 = vmatpush1.msra.mxu0 0.0
    %7554 = vmatprep.subr.mxu0 0.0
    %7555 = vmatpush1.msra.mxu0 0.0
    %7556 = vmatprep.subr.mxu0 0.0
    %7557 = vmatpush1.msra.mxu0 0.0
    %7558 = vmatprep.subr.mxu0 0.0
    %7559 = vmatpush1.msra.mxu0 0.0
    %7560 = vmatprep.subr.mxu0 0.0
    %7561 = vmatpush1.msra.mxu0 0.0
    %v7562 = vand.u32 %v5898, 4294901760
    %7563 = vmatprep.subr.mxu0 %v7562
    %v7564 = vand.u32 %v5896, 4294901760
    %7565 = vmatpush1.msra.mxu0 %v7564
    %7566 = vmatprep.subr.mxu0 0.0
    %7567 = vmatpush2.msra.mxu0 0.0
    %7568 = vmatprep.subr.mxu0 0.0
    %7569 = vmatpush2.msra.mxu0 0.0
    %7570 = vmatprep.subr.mxu0 0.0
    %7571 = vmatpush2.msra.mxu0 0.0
    %7572 = vmatprep.subr.mxu0 0.0
    %7573 = vmatpush2.msra.mxu0 0.0
    %7574 = vmatprep.subr.mxu0 0.0
    %7575 = vmatpush2.msra.mxu0 0.0
    %7576 = vmatprep.subr.mxu0 0.0
    %7577 = vmatpush2.msra.mxu0 0.0
    %7578 = vmatprep.subr.mxu0 0.0
    %7579 = vmatpush2.msra.mxu0 0.0
    %7580 = vmatprep.subr.mxu0 0.0
    %7581 = vmatpush2.msra.mxu0 0.0
    %7582 = vmatprep.subr.mxu0 0.0
    %7583 = vmatpush2.msra.mxu0 0.0
    %7584 = vmatprep.subr.mxu0 0.0
    %7585 = vmatpush2.msra.mxu0 0.0
    %7586 = vmatprep.subr.mxu0 0.0
    %7587 = vmatpush2.msra.mxu0 0.0
    %7588 = vmatprep.subr.mxu0 0.0
    %7589 = vmatpush2.msra.mxu0 0.0
    %7590 = vmatprep.subr.mxu0 0.0
    %7591 = vmatpush2.msra.mxu0 0.0
    %7592 = vmatprep.subr.mxu0 0.0
    %7593 = vmatpush2.msra.mxu0 0.0
    %7594 = vmatprep.subr.mxu0 0.0
    %7595 = vmatpush2.msra.mxu0 0.0
    %7596 = vmatprep.subr.mxu0 0.0
    %7597 = vmatpush2.msra.mxu0 0.0
    %7598 = vmatprep.mubr.f32.mxu0 0.0
    %v7599 = vand.u32 %v5881, 4294901760
    %v7600 = vsub.f32 %v5881, %v7599
    %v7601 = vand.u32 %v7600, 4294901760
    %7602 = vmatmul.mubr.f32.gmra.mxu0 %v7601
    %v7603 = vpop.f32.mrf.mxu0
    %v7604 = vadd.f32 %v7528, %v7603
    %v7605 = vpop.f32.mrf.mxu0
    %v7606 = vadd.f32 %v7530, %v7605
    %7607 = vdwg.mxu0
    %7608 = vmatprep.subr.mxu0 0.0
    %7609 = vmatpush1.msra.mxu0 0.0
    %7610 = vmatprep.subr.mxu0 0.0
    %7611 = vmatpush1.msra.mxu0 0.0
    %7612 = vmatprep.subr.mxu0 0.0
    %7613 = vmatpush1.msra.mxu0 0.0
    %7614 = vmatprep.subr.mxu0 0.0
    %7615 = vmatpush1.msra.mxu0 0.0
    %7616 = vmatprep.subr.mxu0 0.0
    %7617 = vmatpush1.msra.mxu0 0.0
    %7618 = vmatprep.subr.mxu0 0.0
    %7619 = vmatpush1.msra.mxu0 0.0
    %7620 = vmatprep.subr.mxu0 0.0
    %7621 = vmatpush1.msra.mxu0 0.0
    %7622 = vmatprep.subr.mxu0 0.0
    %7623 = vmatpush1.msra.mxu0 0.0
    %7624 = vmatprep.subr.mxu0 0.0
    %7625 = vmatpush1.msra.mxu0 0.0
    %7626 = vmatprep.subr.mxu0 0.0
    %7627 = vmatpush1.msra.mxu0 0.0
    %7628 = vmatprep.subr.mxu0 0.0
    %7629 = vmatpush1.msra.mxu0 0.0
    %7630 = vmatprep.subr.mxu0 0.0
    %7631 = vmatpush1.msra.mxu0 0.0
    %7632 = vmatprep.subr.mxu0 0.0
    %7633 = vmatpush1.msra.mxu0 0.0
    %7634 = vmatprep.subr.mxu0 0.0
    %7635 = vmatpush1.msra.mxu0 0.0
    %7636 = vmatprep.subr.mxu0 0.0
    %7637 = vmatpush1.msra.mxu0 0.0
    %v7638 = vand.u32 %v5898, 4294901760
    %v7639 = vsub.f32 %v5898, %v7638
    %v7640 = vand.u32 %v7639, 4294901760
    %7641 = vmatprep.subr.mxu0 %v7640
    %v7642 = vand.u32 %v5896, 4294901760
    %v7643 = vsub.f32 %v5896, %v7642
    %v7644 = vand.u32 %v7643, 4294901760
    %7645 = vmatpush1.msra.mxu0 %v7644
    %7646 = vmatprep.subr.mxu0 0.0
    %7647 = vmatpush2.msra.mxu0 0.0
    %7648 = vmatprep.subr.mxu0 0.0
    %7649 = vmatpush2.msra.mxu0 0.0
    %7650 = vmatprep.subr.mxu0 0.0
    %7651 = vmatpush2.msra.mxu0 0.0
    %7652 = vmatprep.subr.mxu0 0.0
    %7653 = vmatpush2.msra.mxu0 0.0
    %7654 = vmatprep.subr.mxu0 0.0
    %7655 = vmatpush2.msra.mxu0 0.0
    %7656 = vmatprep.subr.mxu0 0.0
    %7657 = vmatpush2.msra.mxu0 0.0
    %7658 = vmatprep.subr.mxu0 0.0
    %7659 = vmatpush2.msra.mxu0 0.0
    %7660 = vmatprep.subr.mxu0 0.0
    %7661 = vmatpush2.msra.mxu0 0.0
    %7662 = vmatprep.subr.mxu0 0.0
    %7663 = vmatpush2.msra.mxu0 0.0
    %7664 = vmatprep.subr.mxu0 0.0
    %7665 = vmatpush2.msra.mxu0 0.0
    %7666 = vmatprep.subr.mxu0 0.0
    %7667 = vmatpush2.msra.mxu0 0.0
    %7668 = vmatprep.subr.mxu0 0.0
    %7669 = vmatpush2.msra.mxu0 0.0
    %7670 = vmatprep.subr.mxu0 0.0
    %7671 = vmatpush2.msra.mxu0 0.0
    %7672 = vmatprep.subr.mxu0 0.0
    %7673 = vmatpush2.msra.mxu0 0.0
    %7674 = vmatprep.subr.mxu0 0.0
    %7675 = vmatpush2.msra.mxu0 0.0
    %7676 = vmatprep.subr.mxu0 0.0
    %7677 = vmatpush2.msra.mxu0 0.0
    %7678 = vmatprep.mubr.f32.mxu0 0.0
    %v7679 = vand.u32 %v5881, 4294901760
    %7680 = vmatmul.mubr.f32.gmra.mxu0 %v7679
    %v7681 = vpop.f32.mrf.mxu0
    %v7682 = vadd.f32 %v7604, %v7681
    %v7683 = vpop.f32.mrf.mxu0
    %v7684 = vadd.f32 %v7606, %v7683
    %7685 = vdwg.mxu0
    %7686 = vmatprep.subr.mxu0 0.0
    %7687 = vmatpush1.msra.mxu0 0.0
    %7688 = vmatprep.subr.mxu0 0.0
    %7689 = vmatpush1.msra.mxu0 0.0
    %7690 = vmatprep.subr.mxu0 0.0
    %7691 = vmatpush1.msra.mxu0 0.0
    %7692 = vmatprep.subr.mxu0 0.0
    %7693 = vmatpush1.msra.mxu0 0.0
    %7694 = vmatprep.subr.mxu0 0.0
    %7695 = vmatpush1.msra.mxu0 0.0
    %7696 = vmatprep.subr.mxu0 0.0
    %7697 = vmatpush1.msra.mxu0 0.0
    %7698 = vmatprep.subr.mxu0 0.0
    %7699 = vmatpush1.msra.mxu0 0.0
    %7700 = vmatprep.subr.mxu0 0.0
    %7701 = vmatpush1.msra.mxu0 0.0
    %7702 = vmatprep.subr.mxu0 0.0
    %7703 = vmatpush1.msra.mxu0 0.0
    %7704 = vmatprep.subr.mxu0 0.0
    %7705 = vmatpush1.msra.mxu0 0.0
    %7706 = vmatprep.subr.mxu0 0.0
    %7707 = vmatpush1.msra.mxu0 0.0
    %7708 = vmatprep.subr.mxu0 0.0
    %7709 = vmatpush1.msra.mxu0 0.0
    %7710 = vmatprep.subr.mxu0 0.0
    %7711 = vmatpush1.msra.mxu0 0.0
    %7712 = vmatprep.subr.mxu0 0.0
    %7713 = vmatpush1.msra.mxu0 0.0
    %7714 = vmatprep.subr.mxu0 0.0
    %7715 = vmatpush1.msra.mxu0 0.0
    %v7716 = vand.u32 %v5898, 4294901760
    %7717 = vmatprep.subr.mxu0 %v7716
    %v7718 = vand.u32 %v5896, 4294901760
    %7719 = vmatpush1.msra.mxu0 %v7718
    %7720 = vmatprep.subr.mxu0 0.0
    %7721 = vmatpush2.msra.mxu0 0.0
    %7722 = vmatprep.subr.mxu0 0.0
    %7723 = vmatpush2.msra.mxu0 0.0
    %7724 = vmatprep.subr.mxu0 0.0
    %7725 = vmatpush2.msra.mxu0 0.0
    %7726 = vmatprep.subr.mxu0 0.0
    %7727 = vmatpush2.msra.mxu0 0.0
    %7728 = vmatprep.subr.mxu0 0.0
    %7729 = vmatpush2.msra.mxu0 0.0
    %7730 = vmatprep.subr.mxu0 0.0
    %7731 = vmatpush2.msra.mxu0 0.0
    %7732 = vmatprep.subr.mxu0 0.0
    %7733 = vmatpush2.msra.mxu0 0.0
    %7734 = vmatprep.subr.mxu0 0.0
    %7735 = vmatpush2.msra.mxu0 0.0
    %7736 = vmatprep.subr.mxu0 0.0
    %7737 = vmatpush2.msra.mxu0 0.0
    %7738 = vmatprep.subr.mxu0 0.0
    %7739 = vmatpush2.msra.mxu0 0.0
    %7740 = vmatprep.subr.mxu0 0.0
    %7741 = vmatpush2.msra.mxu0 0.0
    %7742 = vmatprep.subr.mxu0 0.0
    %7743 = vmatpush2.msra.mxu0 0.0
    %7744 = vmatprep.subr.mxu0 0.0
    %7745 = vmatpush2.msra.mxu0 0.0
    %7746 = vmatprep.subr.mxu0 0.0
    %7747 = vmatpush2.msra.mxu0 0.0
    %7748 = vmatprep.subr.mxu0 0.0
    %7749 = vmatpush2.msra.mxu0 0.0
    %7750 = vmatprep.subr.mxu0 0.0
    %7751 = vmatpush2.msra.mxu0 0.0
    %7752 = vmatprep.mubr.f32.mxu0 0.0
    %v7753 = vand.u32 %v5881, 4294901760
    %7754 = vmatmul.mubr.f32.gmra.mxu0 %v7753
    %v7755 = vpop.f32.mrf.mxu0
    %v7756 = vadd.f32 %v7682, %v7755
    %v7757 = vpop.f32.mrf.mxu0
    %v7758 = vadd.f32 %v7684, %v7757
    %7759 = vdwg.mxu0
    %v7760 = vlaneseq
    %v7761 = vshrl.u32 %v7760, 7
    %v7762 = vsub.s32 0, %v7761
    %v7763 = vrot.slane %v6361, %v7762
    %v7764 = vlaneseq
    %v7765 = vshrl.u32 %v7764, 7
    %v7766 = vsub.s32 0, %v7765
    %v7767 = vrot.slane %v6363, %v7766
    %v7768 = vlaneseq
    %v7769 = vshrl.u32 %v7768, 7
    %v7770 = vsub.s32 0, %v7769
    %v7771 = vrot.slane %v6826, %v7770
    %v7772 = vlaneseq
    %v7773 = vshrl.u32 %v7772, 7
    %v7774 = vsub.s32 0, %v7773
    %v7775 = vrot.slane %v6828, %v7774
    %v7776 = vlaneseq
    %v7777 = vshrl.u32 %v7776, 7
    %v7778 = vsub.s32 0, %v7777
    %v7779 = vrot.slane %v7291, %v7778
    %v7780 = vlaneseq
    %v7781 = vshrl.u32 %v7780, 7
    %v7782 = vsub.s32 0, %v7781
    %v7783 = vrot.slane %v7293, %v7782
    %v7784 = vlaneseq
    %v7785 = vshrl.u32 %v7784, 7
    %v7786 = vsub.s32 0, %v7785
    %v7787 = vrot.slane %v7756, %v7786
    %v7788 = vlaneseq
    %v7789 = vshrl.u32 %v7788, 7
    %v7790 = vsub.s32 0, %v7789
    %v7791 = vrot.slane %v7758, %v7790
    %v7792 = vmul.f32 %v3403, %v7763
    %v7793 = vmul.f32 %v3405, %v7767
    %v7794 = vmul.f32 %v3567, %v7771
    %v7795 = vmul.f32 %v3569, %v7775
    %v7796 = vmul.f32 %v3731, %v7779
    %v7797 = vmul.f32 %v3733, %v7783
    %v7798 = vmul.f32 %v3895, %v7787
    %v7799 = vmul.f32 %v3897, %v7791
    %v7800 = vlaneseq
    %v7801 = vshrl.u32 %v7800, 7
    %v7802 = vsub.s32 1, %v7801
    %v7803 = vrot.slane %v6361, %v7802
    %v7804 = vlaneseq
    %v7805 = vshrl.u32 %v7804, 7
    %v7806 = vsub.s32 1, %v7805
    %v7807 = vrot.slane %v6363, %v7806
    %v7808 = vlaneseq
    %v7809 = vshrl.u32 %v7808, 7
    %v7810 = vsub.s32 1, %v7809
    %v7811 = vrot.slane %v6826, %v7810
    %v7812 = vlaneseq
    %v7813 = vshrl.u32 %v7812, 7
    %v7814 = vsub.s32 1, %v7813
    %v7815 = vrot.slane %v6828, %v7814
    %v7816 = vlaneseq
    %v7817 = vshrl.u32 %v7816, 7
    %v7818 = vsub.s32 1, %v7817
    %v7819 = vrot.slane %v7291, %v7818
    %v7820 = vlaneseq
    %v7821 = vshrl.u32 %v7820, 7
    %v7822 = vsub.s32 1, %v7821
    %v7823 = vrot.slane %v7293, %v7822
    %v7824 = vlaneseq
    %v7825 = vshrl.u32 %v7824, 7
    %v7826 = vsub.s32 1, %v7825
    %v7827 = vrot.slane %v7756, %v7826
    %v7828 = vlaneseq
    %v7829 = vshrl.u32 %v7828, 7
    %v7830 = vsub.s32 1, %v7829
    %v7831 = vrot.slane %v7758, %v7830
    %v7832 = vadd.f32 %v7792, %v7803
    %v7833 = vadd.f32 %v7793, %v7807
    %v7834 = vadd.f32 %v7794, %v7811
    %v7835 = vadd.f32 %v7795, %v7815
    %v7836 = vadd.f32 %v7796, %v7819
    %v7837 = vadd.f32 %v7797, %v7823
    %v7838 = vadd.f32 %v7798, %v7827
    %v7839 = vadd.f32 %v7799, %v7831
    %v7840 = vmax.f32 %v7832, 0.0
    %v7841 = vmax.f32 %v7833, 0.0
    %v7842 = vmax.f32 %v7834, 0.0
    %v7843 = vmax.f32 %v7835, 0.0
    %v7844 = vmax.f32 %v7836, 0.0
    %v7845 = vmax.f32 %v7837, 0.0
    %v7846 = vmax.f32 %v7838, 0.0
    %v7847 = vmax.f32 %v7839, 0.0
    %v7848 = vpack.c.bf16 %v7840, %v7840
    %v7849 = vpack.c.bf16 %v7841, %v7841
    %v7850 = vpack.c.bf16 %v7842, %v7842
    %v7851 = vpack.c.bf16 %v7843, %v7843
    %v7852 = vpack.c.bf16 %v7844, %v7844
    %v7853 = vpack.c.bf16 %v7845, %v7845
    %v7854 = vpack.c.bf16 %v7846, %v7846
    %v7855 = vpack.c.bf16 %v7847, %v7847
    %v7856 = vld [vmem:[#allocation8] sm:$0xff]
    %v7857 = vld [vmem:[#allocation8 + $0x8] sm:$0xff]
    %v7858 = vld [vmem:[#allocation8 + $0x10] sm:$0xf]
    %v7859 = vld [vmem:[#allocation8 + $0x14] sm:$0xff]
    %v7860 = vld [vmem:[#allocation8 + $0x1c] sm:$0xff]
    %v7861 = vld [vmem:[#allocation8 + $0x24] sm:$0xf]
    %v7862 = vld [vmem:[#allocation8 + $0x28] sm:$0xff]
    %v7863 = vld [vmem:[#allocation8 + $0x30] sm:$0xff]
    %v7864 = vld [vmem:[#allocation8 + $0x38] sm:$0xf]
    %v7865 = vld [vmem:[#allocation8 + $0x3c] sm:$0xff]
    %v7866 = vld [vmem:[#allocation8 + $0x44] sm:$0xff]
    %v7867 = vld [vmem:[#allocation8 + $0x4c] sm:$0xf]
    %v7868 = vld [vmem:[#allocation8 + $0x50] sm:$0xff]
    %v7869 = vld [vmem:[#allocation8 + $0x58] sm:$0xff]
    %v7870 = vld [vmem:[#allocation8 + $0x60] sm:$0xf]
    %v7871 = vld [vmem:[#allocation8 + $0x64] sm:$0xff]
    %v7872 = vld [vmem:[#allocation8 + $0x6c] sm:$0xff]
    %v7873 = vld [vmem:[#allocation8 + $0x74] sm:$0xf]
    %v7874 = vld [vmem:[#allocation8 + $0x78] sm:$0xff]
    %v7875 = vld [vmem:[#allocation8 + $0x80] sm:$0xff]
    %v7876 = vld [vmem:[#allocation8 + $0x88] sm:$0xf]
    %v7877 = vld [vmem:[#allocation8 + $0x8c] sm:$0xff]
    %v7878 = vld [vmem:[#allocation8 + $0x94] sm:$0xff]
    %v7879 = vld [vmem:[#allocation8 + $0x9c] sm:$0xf]
    %v7880 = vld [vmem:[#allocation8 + $0xa0] sm:$0xff]
    %v7881 = vld [vmem:[#allocation8 + $0xa8] sm:$0xff]
    %v7882 = vld [vmem:[#allocation8 + $0xb0] sm:$0xf]
    %v7883 = vld [vmem:[#allocation8 + $0xb4] sm:$0xff]
    %v7884 = vld [vmem:[#allocation8 + $0xbc] sm:$0xff]
    %v7885 = vld [vmem:[#allocation8 + $0xc4] sm:$0xf]
    %v7886 = vld [vmem:[#allocation8 + $0xc8] sm:$0xff]
    %v7887 = vld [vmem:[#allocation8 + $0xd0] sm:$0xff]
    %v7888 = vld [vmem:[#allocation8 + $0xd8] sm:$0xf]
    %v7889 = vld [vmem:[#allocation8 + $0xdc] sm:$0xff]
    %v7890 = vld [vmem:[#allocation8 + $0xe4] sm:$0xff]
    %v7891 = vld [vmem:[#allocation8 + $0xec] sm:$0xf]
    %v7892 = vld [vmem:[#allocation8 + $0xf0] sm:$0xff]
    %v7893 = vld [vmem:[#allocation8 + $0xf8] sm:$0xff]
    %v7894 = vld [vmem:[#allocation8 + $0x100] sm:$0xf]
    %v7895 = vld [vmem:[#allocation8 + $0x104] sm:$0xff]
    %v7896 = vld [vmem:[#allocation8 + $0x10c] sm:$0xff]
    %v7897 = vld [vmem:[#allocation8 + $0x114] sm:$0xf]
    %v7898 = vld [vmem:[#allocation8 + $0x118] sm:$0xff]
    %v7899 = vld [vmem:[#allocation8 + $0x120] sm:$0xff]
    %v7900 = vld [vmem:[#allocation8 + $0x128] sm:$0xf]
    %v7901 = vld [vmem:[#allocation8 + $0x12c] sm:$0xff]
    %v7902 = vld [vmem:[#allocation8 + $0x134] sm:$0xff]
    %v7903 = vld [vmem:[#allocation8 + $0x13c] sm:$0xf]
    %v7904 = vld [vmem:[#allocation8 + $0x140] sm:$0xff]
    %v7905 = vld [vmem:[#allocation8 + $0x148] sm:$0xff]
    %v7906 = vld [vmem:[#allocation8 + $0x150] sm:$0xf]
    %v7907 = vld [vmem:[#allocation8 + $0x154] sm:$0xff]
    %v7908 = vld [vmem:[#allocation8 + $0x15c] sm:$0xff]
    %v7909 = vld [vmem:[#allocation8 + $0x164] sm:$0xf]
    %v7910 = vld [vmem:[#allocation8 + $0x168] sm:$0xff]
    %v7911 = vld [vmem:[#allocation8 + $0x170] sm:$0xff]
    %v7912 = vld [vmem:[#allocation8 + $0x178] sm:$0xf]
    %v7913 = vld [vmem:[#allocation8 + $0x17c] sm:$0xff]
    %v7914 = vld [vmem:[#allocation8 + $0x184] sm:$0xff]
    %v7915 = vld [vmem:[#allocation8 + $0x18c] sm:$0xf]
    %v7916 = vld [vmem:[#allocation8 + $0x190] sm:$0xff]
    %v7917 = vld [vmem:[#allocation8 + $0x198] sm:$0xff]
    %v7918 = vld [vmem:[#allocation8 + $0x1a0] sm:$0xf]
    %v7919 = vld [vmem:[#allocation8 + $0x1a4] sm:$0xff]
    %v7920 = vld [vmem:[#allocation8 + $0x1ac] sm:$0xff]
    %v7921 = vld [vmem:[#allocation8 + $0x1b4] sm:$0xf]
    %v7922 = vld [vmem:[#allocation8 + $0x1b8] sm:$0xff]
    %v7923 = vld [vmem:[#allocation8 + $0x1c0] sm:$0xff]
    %v7924 = vld [vmem:[#allocation8 + $0x1c8] sm:$0xf]
    %v7925 = vld [vmem:[#allocation8 + $0x1cc] sm:$0xff]
    %v7926 = vld [vmem:[#allocation8 + $0x1d4] sm:$0xff]
    %v7927 = vld [vmem:[#allocation8 + $0x1dc] sm:$0xf]
    %v7928 = vld [vmem:[#allocation8 + $0x1e0] sm:$0xff]
    %v7929 = vld [vmem:[#allocation8 + $0x1e8] sm:$0xff]
    %v7930 = vld [vmem:[#allocation8 + $0x1f0] sm:$0xf]
    %v7931 = vld [vmem:[#allocation8 + $0x1f4] sm:$0xff]
    %v7932 = vld [vmem:[#allocation8 + $0x1fc] sm:$0xff]
    %v7933 = vld [vmem:[#allocation8 + $0x204] sm:$0xf]
    %v7934 = vld [vmem:[#allocation8 + $0x208] sm:$0xff]
    %v7935 = vld [vmem:[#allocation8 + $0x210] sm:$0xff]
    %v7936 = vld [vmem:[#allocation8 + $0x218] sm:$0xf]
    %v7937 = vld [vmem:[#allocation8 + $0x21c] sm:$0xff]
    %v7938 = vld [vmem:[#allocation8 + $0x224] sm:$0xff]
    %v7939 = vld [vmem:[#allocation8 + $0x22c] sm:$0xf]
    %v7940 = vld [vmem:[#allocation8 + $0x230] sm:$0xff]
    %v7941 = vld [vmem:[#allocation8 + $0x238] sm:$0xff]
    %v7942 = vld [vmem:[#allocation8 + $0x240] sm:$0xf]
    %v7943 = vld [vmem:[#allocation8 + $0x244] sm:$0xff]
    %v7944 = vld [vmem:[#allocation8 + $0x24c] sm:$0xff]
    %v7945 = vld [vmem:[#allocation8 + $0x254] sm:$0xf]
    %v7946 = vld [vmem:[#allocation8 + $0x258] sm:$0xff]
    %v7947 = vld [vmem:[#allocation8 + $0x260] sm:$0xff]
    %v7948 = vld [vmem:[#allocation8 + $0x268] sm:$0xf]
    %v7949 = vld [vmem:[#allocation8 + $0x26c] sm:$0xff]
    %v7950 = vld [vmem:[#allocation8 + $0x274] sm:$0xff]
    %v7951 = vld [vmem:[#allocation8 + $0x27c] sm:$0xf]
    %v7952 = vld [vmem:[#allocation8 + $0x280] sm:$0xff]
    %v7953 = vld [vmem:[#allocation8 + $0x288] sm:$0xff]
    %v7954 = vld [vmem:[#allocation8 + $0x290] sm:$0xf]
    %v7955 = vld [vmem:[#allocation8 + $0x294] sm:$0xff]
    %v7956 = vld [vmem:[#allocation8 + $0x29c] sm:$0xff]
    %v7957 = vld [vmem:[#allocation8 + $0x2a4] sm:$0xf]
    %v7958 = vld [vmem:[#allocation8 + $0x2a8] sm:$0xff]
    %v7959 = vld [vmem:[#allocation8 + $0x2b0] sm:$0xff]
    %v7960 = vld [vmem:[#allocation8 + $0x2b8] sm:$0xf]
    %v7961 = vld [vmem:[#allocation8 + $0x2bc] sm:$0xff]
    %v7962 = vld [vmem:[#allocation8 + $0x2c4] sm:$0xff]
    %v7963 = vld [vmem:[#allocation8 + $0x2cc] sm:$0xf]
    %v7964 = vld [vmem:[#allocation8 + $0x2d0] sm:$0xff]
    %v7965 = vld [vmem:[#allocation8 + $0x2d8] sm:$0xff]
    %v7966 = vld [vmem:[#allocation8 + $0x2e0] sm:$0xf]
    %v7967 = vld [vmem:[#allocation8 + $0x2e4] sm:$0xff]
    %v7968 = vld [vmem:[#allocation8 + $0x2ec] sm:$0xff]
    %v7969 = vld [vmem:[#allocation8 + $0x2f4] sm:$0xf]
    %v7970 = vld [vmem:[#allocation8 + $0x2f8] sm:$0xff]
    %v7971 = vld [vmem:[#allocation8 + $0x300] sm:$0xff]
    %v7972 = vld [vmem:[#allocation8 + $0x308] sm:$0xf]
    %v7973 = vld [vmem:[#allocation8 + $0x30c] sm:$0xff]
    %v7974 = vld [vmem:[#allocation8 + $0x314] sm:$0xff]
    %v7975 = vld [vmem:[#allocation8 + $0x31c] sm:$0xf]
    %v7976 = vld [vmem:[#allocation8 + $0x320] sm:$0xff]
    %v7977 = vld [vmem:[#allocation8 + $0x328] sm:$0xff]
    %v7978 = vld [vmem:[#allocation8 + $0x330] sm:$0xf]
    %v7979 = vld [vmem:[#allocation8 + $0x334] sm:$0xff]
    %v7980 = vld [vmem:[#allocation8 + $0x33c] sm:$0xff]
    %v7981 = vld [vmem:[#allocation8 + $0x344] sm:$0xf]
    %v7982 = vld [vmem:[#allocation8 + $0x348] sm:$0xff]
    %v7983 = vld [vmem:[#allocation8 + $0x350] sm:$0xff]
    %v7984 = vld [vmem:[#allocation8 + $0x358] sm:$0xf]
    %v7985 = vld [vmem:[#allocation8 + $0x35c] sm:$0xff]
    %v7986 = vld [vmem:[#allocation8 + $0x364] sm:$0xff]
    %v7987 = vld [vmem:[#allocation8 + $0x36c] sm:$0xf]
    %v7988 = vld [vmem:[#allocation8 + $0x370] sm:$0xff]
    %v7989 = vld [vmem:[#allocation8 + $0x378] sm:$0xff]
    %v7990 = vld [vmem:[#allocation8 + $0x380] sm:$0xf]
    %v7991 = vld [vmem:[#allocation8 + $0x384] sm:$0xff]
    %v7992 = vld [vmem:[#allocation8 + $0x38c] sm:$0xff]
    %v7993 = vld [vmem:[#allocation8 + $0x394] sm:$0xf]
    %v7994 = vld [vmem:[#allocation8 + $0x398] sm:$0xff]
    %v7995 = vld [vmem:[#allocation8 + $0x3a0] sm:$0xff]
    %v7996 = vld [vmem:[#allocation8 + $0x3a8] sm:$0xf]
    %v7997 = vld [vmem:[#allocation8 + $0x3ac] sm:$0xff]
    %v7998 = vld [vmem:[#allocation8 + $0x3b4] sm:$0xff]
    %v7999 = vld [vmem:[#allocation8 + $0x3bc] sm:$0xf]
    %v8000 = vld [vmem:[#allocation8 + $0x3c0] sm:$0xff]
    %v8001 = vld [vmem:[#allocation8 + $0x3c8] sm:$0xff]
    %v8002 = vld [vmem:[#allocation8 + $0x3d0] sm:$0xf]
    %v8003 = vld [vmem:[#allocation8 + $0x3d4] sm:$0xff]
    %v8004 = vld [vmem:[#allocation8 + $0x3dc] sm:$0xff]
    %v8005 = vld [vmem:[#allocation8 + $0x3e4] sm:$0xf]
    %v8006 = vld [vmem:[#allocation8 + $0x3e8] sm:$0xff]
    %v8007 = vld [vmem:[#allocation8 + $0x3f0] sm:$0xff]
    %v8008 = vld [vmem:[#allocation8 + $0x3f8] sm:$0xf]
    %v8009 = vld [vmem:[#allocation8 + $0x3fc] sm:$0xff]
    %v8010 = vld [vmem:[#allocation8 + $0x404] sm:$0xff]
    %v8011 = vld [vmem:[#allocation8 + $0x40c] sm:$0xf]
    %v8012 = vld [vmem:[#allocation8 + $0x410] sm:$0xff]
    %v8013 = vld [vmem:[#allocation8 + $0x418] sm:$0xff]
    %v8014 = vld [vmem:[#allocation8 + $0x420] sm:$0xf]
    %v8015 = vld [vmem:[#allocation8 + $0x424] sm:$0xff]
    %v8016 = vld [vmem:[#allocation8 + $0x42c] sm:$0xff]
    %v8017 = vld [vmem:[#allocation8 + $0x434] sm:$0xf]
    %v8018 = vld [vmem:[#allocation8 + $0x438] sm:$0xff]
    %v8019 = vld [vmem:[#allocation8 + $0x440] sm:$0xff]
    %v8020 = vld [vmem:[#allocation8 + $0x448] sm:$0xf]
    %v8021 = vld [vmem:[#allocation8 + $0x44c] sm:$0xff]
    %v8022 = vld [vmem:[#allocation8 + $0x454] sm:$0xff]
    %v8023 = vld [vmem:[#allocation8 + $0x45c] sm:$0xf]
    %v8024 = vld [vmem:[#allocation8 + $0x460] sm:$0xff]
    %v8025 = vld [vmem:[#allocation8 + $0x468] sm:$0xff]
    %v8026 = vld [vmem:[#allocation8 + $0x470] sm:$0xf]
    %v8027 = vld [vmem:[#allocation8 + $0x474] sm:$0xff]
    %v8028 = vld [vmem:[#allocation8 + $0x47c] sm:$0xff]
    %v8029 = vld [vmem:[#allocation8 + $0x484] sm:$0xf]
    %v8030 = vld [vmem:[#allocation8 + $0x488] sm:$0xff]
    %v8031 = vld [vmem:[#allocation8 + $0x490] sm:$0xff]
    %v8032 = vld [vmem:[#allocation8 + $0x498] sm:$0xf]
    %v8033 = vld [vmem:[#allocation8 + $0x49c] sm:$0xff]
    %v8034 = vld [vmem:[#allocation8 + $0x4a4] sm:$0xff]
    %v8035 = vld [vmem:[#allocation8 + $0x4ac] sm:$0xf]
    %v8036 = vld [vmem:[#allocation8 + $0x4b0] sm:$0xff]
    %v8037 = vld [vmem:[#allocation8 + $0x4b8] sm:$0xff]
    %v8038 = vld [vmem:[#allocation8 + $0x4c0] sm:$0xf]
    %v8039 = vld [vmem:[#allocation8 + $0x4c4] sm:$0xff]
    %v8040 = vld [vmem:[#allocation8 + $0x4cc] sm:$0xff]
    %v8041 = vld [vmem:[#allocation8 + $0x4d4] sm:$0xf]
    %v8042 = vld [vmem:[#allocation8 + $0x4d8] sm:$0xff]
    %v8043 = vld [vmem:[#allocation8 + $0x4e0] sm:$0xff]
    %v8044 = vld [vmem:[#allocation8 + $0x4e8] sm:$0xf]
    %v8045 = vld [vmem:[#allocation8 + $0x4ec] sm:$0xff]
    %v8046 = vld [vmem:[#allocation8 + $0x4f4] sm:$0xff]
    %v8047 = vld [vmem:[#allocation8 + $0x4fc] sm:$0xf]
    %v8048 = vld [vmem:[#allocation8 + $0x500] sm:$0xff]
    %v8049 = vld [vmem:[#allocation8 + $0x508] sm:$0xff]
    %v8050 = vld [vmem:[#allocation8 + $0x510] sm:$0xf]
    %v8051 = vld [vmem:[#allocation8 + $0x514] sm:$0xff]
    %v8052 = vld [vmem:[#allocation8 + $0x51c] sm:$0xff]
    %v8053 = vld [vmem:[#allocation8 + $0x524] sm:$0xf]
    %v8054 = vld [vmem:[#allocation8 + $0x528] sm:$0xff]
    %v8055 = vld [vmem:[#allocation8 + $0x530] sm:$0xff]
    %v8056 = vld [vmem:[#allocation8 + $0x538] sm:$0xf]
    %v8057 = vld [vmem:[#allocation8 + $0x53c] sm:$0xff]
    %v8058 = vld [vmem:[#allocation8 + $0x544] sm:$0xff]
    %v8059 = vld [vmem:[#allocation8 + $0x54c] sm:$0xf]
    %v8060 = vld [vmem:[#allocation8 + $0x550] sm:$0xff]
    %v8061 = vld [vmem:[#allocation8 + $0x558] sm:$0xff]
    %v8062 = vld [vmem:[#allocation8 + $0x560] sm:$0xf]
    %v8063 = vld [vmem:[#allocation8 + $0x564] sm:$0xff]
    %v8064 = vld [vmem:[#allocation8 + $0x56c] sm:$0xff]
    %v8065 = vld [vmem:[#allocation8 + $0x574] sm:$0xf]
    %v8066 = vld [vmem:[#allocation8 + $0x578] sm:$0xff]
    %v8067 = vld [vmem:[#allocation8 + $0x580] sm:$0xff]
    %v8068 = vld [vmem:[#allocation8 + $0x588] sm:$0xf]
    %v8069 = vld [vmem:[#allocation8 + $0x58c] sm:$0xff]
    %v8070 = vld [vmem:[#allocation8 + $0x594] sm:$0xff]
    %v8071 = vld [vmem:[#allocation8 + $0x59c] sm:$0xf]
    %v8072 = vld [vmem:[#allocation8 + $0x5a0] sm:$0xff]
    %v8073 = vld [vmem:[#allocation8 + $0x5a8] sm:$0xff]
    %v8074 = vld [vmem:[#allocation8 + $0x5b0] sm:$0xf]
    %v8075 = vld [vmem:[#allocation8 + $0x5b4] sm:$0xff]
    %v8076 = vld [vmem:[#allocation8 + $0x5bc] sm:$0xff]
    %v8077 = vld [vmem:[#allocation8 + $0x5c4] sm:$0xf]
    %v8078 = vld [vmem:[#allocation8 + $0x5c8] sm:$0xff]
    %v8079 = vld [vmem:[#allocation8 + $0x5d0] sm:$0xff]
    %v8080 = vld [vmem:[#allocation8 + $0x5d8] sm:$0xf]
    %v8081 = vld [vmem:[#allocation8 + $0x5dc] sm:$0xff]
    %v8082 = vld [vmem:[#allocation8 + $0x5e4] sm:$0xff]
    %v8083 = vld [vmem:[#allocation8 + $0x5ec] sm:$0xf]
    %v8084 = vld [vmem:[#allocation8 + $0x5f0] sm:$0xff]
    %v8085 = vld [vmem:[#allocation8 + $0x5f8] sm:$0xff]
    %v8086 = vld [vmem:[#allocation8 + $0x600] sm:$0xf]
    %v8087 = vld [vmem:[#allocation8 + $0x604] sm:$0xff]
    %v8088 = vld [vmem:[#allocation8 + $0x60c] sm:$0xff]
    %v8089 = vld [vmem:[#allocation8 + $0x614] sm:$0xf]
    %v8090 = vld [vmem:[#allocation8 + $0x618] sm:$0xff]
    %v8091 = vld [vmem:[#allocation8 + $0x620] sm:$0xff]
    %v8092 = vld [vmem:[#allocation8 + $0x628] sm:$0xf]
    %v8093 = vld [vmem:[#allocation8 + $0x62c] sm:$0xff]
    %v8094 = vld [vmem:[#allocation8 + $0x634] sm:$0xff]
    %v8095 = vld [vmem:[#allocation8 + $0x63c] sm:$0xf]
    %v8096 = vld [vmem:[#allocation8 + $0x640] sm:$0xff]
    %v8097 = vld [vmem:[#allocation8 + $0x648] sm:$0xff]
    %v8098 = vld [vmem:[#allocation8 + $0x650] sm:$0xf]
    %v8099 = vld [vmem:[#allocation8 + $0x654] sm:$0xff]
    %v8100 = vld [vmem:[#allocation8 + $0x65c] sm:$0xff]
    %v8101 = vld [vmem:[#allocation8 + $0x664] sm:$0xf]
    %v8102 = vld [vmem:[#allocation8 + $0x668] sm:$0xff]
    %v8103 = vld [vmem:[#allocation8 + $0x670] sm:$0xff]
    %v8104 = vld [vmem:[#allocation8 + $0x678] sm:$0xf]
    %v8105 = vld [vmem:[#allocation8 + $0x67c] sm:$0xff]
    %v8106 = vld [vmem:[#allocation8 + $0x684] sm:$0xff]
    %v8107 = vld [vmem:[#allocation8 + $0x68c] sm:$0xf]
    %v8108 = vld [vmem:[#allocation8 + $0x690] sm:$0xff]
    %v8109 = vld [vmem:[#allocation8 + $0x698] sm:$0xff]
    %v8110 = vld [vmem:[#allocation8 + $0x6a0] sm:$0xf]
    %v8111 = vld [vmem:[#allocation8 + $0x6a4] sm:$0xff]
    %v8112 = vld [vmem:[#allocation8 + $0x6ac] sm:$0xff]
    %v8113 = vld [vmem:[#allocation8 + $0x6b4] sm:$0xf]
    %v8114 = vld [vmem:[#allocation8 + $0x6b8] sm:$0xff]
    %v8115 = vld [vmem:[#allocation8 + $0x6c0] sm:$0xff]
    %v8116 = vld [vmem:[#allocation8 + $0x6c8] sm:$0xf]
    %v8117 = vld [vmem:[#allocation8 + $0x6cc] sm:$0xff]
    %v8118 = vld [vmem:[#allocation8 + $0x6d4] sm:$0xff]
    %v8119 = vld [vmem:[#allocation8 + $0x6dc] sm:$0xf]
    %v8120 = vld [vmem:[#allocation8 + $0x6e0] sm:$0xff]
    %v8121 = vld [vmem:[#allocation8 + $0x6e8] sm:$0xff]
    %v8122 = vld [vmem:[#allocation8 + $0x6f0] sm:$0xf]
    %v8123 = vld [vmem:[#allocation8 + $0x6f4] sm:$0xff]
    %v8124 = vld [vmem:[#allocation8 + $0x6fc] sm:$0xff]
    %v8125 = vld [vmem:[#allocation8 + $0x704] sm:$0xf]
    %v8126 = vld [vmem:[#allocation8 + $0x708] sm:$0xff]
    %v8127 = vld [vmem:[#allocation8 + $0x710] sm:$0xff]
    %v8128 = vld [vmem:[#allocation8 + $0x718] sm:$0xf]
    %v8129 = vld [vmem:[#allocation8 + $0x71c] sm:$0xff]
    %v8130 = vld [vmem:[#allocation8 + $0x724] sm:$0xff]
    %v8131 = vld [vmem:[#allocation8 + $0x72c] sm:$0xf]
    %v8132 = vld [vmem:[#allocation8 + $0x730] sm:$0xff]
    %v8133 = vld [vmem:[#allocation8 + $0x738] sm:$0xff]
    %v8134 = vld [vmem:[#allocation8 + $0x740] sm:$0xf]
    %v8135 = vld [vmem:[#allocation8 + $0x744] sm:$0xff]
    %v8136 = vld [vmem:[#allocation8 + $0x74c] sm:$0xff]
    %v8137 = vld [vmem:[#allocation8 + $0x754] sm:$0xf]
    %v8138 = vld [vmem:[#allocation8 + $0x758] sm:$0xff]
    %v8139 = vld [vmem:[#allocation8 + $0x760] sm:$0xff]
    %v8140 = vld [vmem:[#allocation8 + $0x768] sm:$0xf]
    %v8141 = vld [vmem:[#allocation8 + $0x76c] sm:$0xff]
    %v8142 = vld [vmem:[#allocation8 + $0x774] sm:$0xff]
    %v8143 = vld [vmem:[#allocation8 + $0x77c] sm:$0xf]
    %v8144 = vld [vmem:[#allocation8 + $0x780] sm:$0xff]
    %v8145 = vld [vmem:[#allocation8 + $0x788] sm:$0xff]
    %v8146 = vld [vmem:[#allocation8 + $0x790] sm:$0xf]
    %v8147 = vld [vmem:[#allocation8 + $0x794] sm:$0xff]
    %v8148 = vld [vmem:[#allocation8 + $0x79c] sm:$0xff]
    %v8149 = vld [vmem:[#allocation8 + $0x7a4] sm:$0xf]
    %v8150 = vld [vmem:[#allocation8 + $0x7a8] sm:$0xff]
    %v8151 = vld [vmem:[#allocation8 + $0x7b0] sm:$0xff]
    %v8152 = vld [vmem:[#allocation8 + $0x7b8] sm:$0xf]
    %v8153 = vld [vmem:[#allocation8 + $0x7bc] sm:$0xff]
    %v8154 = vld [vmem:[#allocation8 + $0x7c4] sm:$0xff]
    %v8155 = vld [vmem:[#allocation8 + $0x7cc] sm:$0xf]
    %v8156 = vld [vmem:[#allocation8 + $0x7d0] sm:$0xff]
    %v8157 = vld [vmem:[#allocation8 + $0x7d8] sm:$0xff]
    %v8158 = vld [vmem:[#allocation8 + $0x7e0] sm:$0xf]
    %v8159 = vld [vmem:[#allocation8 + $0x7e4] sm:$0xff]
    %v8160 = vld [vmem:[#allocation8 + $0x7ec] sm:$0xff]
    %v8161 = vld [vmem:[#allocation8 + $0x7f4] sm:$0xf]
    %v8162 = vld [vmem:[#allocation8 + $0x7f8] sm:$0xff]
    %v8163 = vld [vmem:[#allocation8 + $0x800] sm:$0xff]
    %v8164 = vld [vmem:[#allocation8 + $0x808] sm:$0xf]
    %v8165 = vld [vmem:[#allocation8 + $0x80c] sm:$0xff]
    %v8166 = vld [vmem:[#allocation8 + $0x814] sm:$0xff]
    %v8167 = vld [vmem:[#allocation8 + $0x81c] sm:$0xf]
    %v8168 = vld [vmem:[#allocation8 + $0x820] sm:$0xff]
    %v8169 = vld [vmem:[#allocation8 + $0x828] sm:$0xff]
    %v8170 = vld [vmem:[#allocation8 + $0x830] sm:$0xf]
    %v8171 = vld [vmem:[#allocation8 + $0x834] sm:$0xff]
    %v8172 = vld [vmem:[#allocation8 + $0x83c] sm:$0xff]
    %v8173 = vld [vmem:[#allocation8 + $0x844] sm:$0xf]
    %v8174 = vld [vmem:[#allocation8 + $0x848] sm:$0xff]
    %v8175 = vld [vmem:[#allocation8 + $0x850] sm:$0xff]
    %v8176 = vld [vmem:[#allocation8 + $0x858] sm:$0xf]
    %v8177 = vld [vmem:[#allocation8 + $0x85c] sm:$0xff]
    %v8178 = vld [vmem:[#allocation8 + $0x864] sm:$0xff]
    %v8179 = vld [vmem:[#allocation8 + $0x86c] sm:$0xf]
    %v8180 = vld [vmem:[#allocation8 + $0x870] sm:$0xff]
    %v8181 = vld [vmem:[#allocation8 + $0x878] sm:$0xff]
    %v8182 = vld [vmem:[#allocation8 + $0x880] sm:$0xf]
    %v8183 = vld [vmem:[#allocation8 + $0x884] sm:$0xff]
    %v8184 = vld [vmem:[#allocation8 + $0x88c] sm:$0xff]
    %v8185 = vld [vmem:[#allocation8 + $0x894] sm:$0xf]
    %v8186 = vld [vmem:[#allocation8 + $0x898] sm:$0xff]
    %v8187 = vld [vmem:[#allocation8 + $0x8a0] sm:$0xff]
    %v8188 = vld [vmem:[#allocation8 + $0x8a8] sm:$0xf]
    %v8189 = vld [vmem:[#allocation8 + $0x8ac] sm:$0xff]
    %v8190 = vld [vmem:[#allocation8 + $0x8b4] sm:$0xff]
    %v8191 = vld [vmem:[#allocation8 + $0x8bc] sm:$0xf]
    %v8192 = vld [vmem:[#allocation8 + $0x8c0] sm:$0xff]
    %v8193 = vld [vmem:[#allocation8 + $0x8c8] sm:$0xff]
    %v8194 = vld [vmem:[#allocation8 + $0x8d0] sm:$0xf]
    %v8195 = vld [vmem:[#allocation8 + $0x8d4] sm:$0xff]
    %v8196 = vld [vmem:[#allocation8 + $0x8dc] sm:$0xff]
    %v8197 = vld [vmem:[#allocation8 + $0x8e4] sm:$0xf]
    %v8198 = vld [vmem:[#allocation8 + $0x8e8] sm:$0xff]
    %v8199 = vld [vmem:[#allocation8 + $0x8f0] sm:$0xff]
    %v8200 = vld [vmem:[#allocation8 + $0x8f8] sm:$0xf]
    %v8201 = vld [vmem:[#allocation8 + $0x8fc] sm:$0xff]
    %v8202 = vld [vmem:[#allocation8 + $0x904] sm:$0xff]
    %v8203 = vld [vmem:[#allocation8 + $0x90c] sm:$0xf]
    %v8204 = vld [vmem:[#allocation8 + $0x910] sm:$0xff]
    %v8205 = vld [vmem:[#allocation8 + $0x918] sm:$0xff]
    %v8206 = vld [vmem:[#allocation8 + $0x920] sm:$0xf]
    %v8207 = vld [vmem:[#allocation8 + $0x924] sm:$0xff]
    %v8208 = vld [vmem:[#allocation8 + $0x92c] sm:$0xff]
    %v8209 = vld [vmem:[#allocation8 + $0x934] sm:$0xf]
    %v8210 = vld [vmem:[#allocation8 + $0x938] sm:$0xff]
    %v8211 = vld [vmem:[#allocation8 + $0x940] sm:$0xff]
    %v8212 = vld [vmem:[#allocation8 + $0x948] sm:$0xf]
    %v8213 = vld [vmem:[#allocation8 + $0x94c] sm:$0xff]
    %v8214 = vld [vmem:[#allocation8 + $0x954] sm:$0xff]
    %v8215 = vld [vmem:[#allocation8 + $0x95c] sm:$0xf]
    %v8216 = vld [vmem:[#allocation8 + $0x960] sm:$0xff]
    %v8217 = vld [vmem:[#allocation8 + $0x968] sm:$0xff]
    %v8218 = vld [vmem:[#allocation8 + $0x970] sm:$0xf]
    %v8219 = vld [vmem:[#allocation8 + $0x974] sm:$0xff]
    %v8220 = vld [vmem:[#allocation8 + $0x97c] sm:$0xff]
    %v8221 = vld [vmem:[#allocation8 + $0x984] sm:$0xf]
    %v8222 = vld [vmem:[#allocation8 + $0x988] sm:$0xff]
    %v8223 = vld [vmem:[#allocation8 + $0x990] sm:$0xff]
    %v8224 = vld [vmem:[#allocation8 + $0x998] sm:$0xf]
    %v8225 = vld [vmem:[#allocation8 + $0x99c] sm:$0xff]
    %v8226 = vld [vmem:[#allocation8 + $0x9a4] sm:$0xff]
    %v8227 = vld [vmem:[#allocation8 + $0x9ac] sm:$0xf]
    %v8228 = vld [vmem:[#allocation8 + $0x9b0] sm:$0xff]
    %v8229 = vld [vmem:[#allocation8 + $0x9b8] sm:$0xff]
    %v8230 = vld [vmem:[#allocation8 + $0x9c0] sm:$0xf]
    %v8231 = vld [vmem:[#allocation8 + $0x9c4] sm:$0xff]
    %v8232 = vld [vmem:[#allocation8 + $0x9cc] sm:$0xff]
    %v8233 = vld [vmem:[#allocation8 + $0x9d4] sm:$0xf]
    %v8234 = vld [vmem:[#allocation8 + $0x9d8] sm:$0xff]
    %v8235 = vld [vmem:[#allocation8 + $0x9e0] sm:$0xff]
    %v8236 = vld [vmem:[#allocation8 + $0x9e8] sm:$0xf]
    %v8237 = vld [vmem:[#allocation8 + $0x9ec] sm:$0xff]
    %v8238 = vld [vmem:[#allocation8 + $0x9f4] sm:$0xff]
    %v8239 = vld [vmem:[#allocation8 + $0x9fc] sm:$0xf]
    %v8624 = vunpack.c.l.b16 %v7856
    %v8625 = vunpack.c.h.b16 %v7856
    %v8626 = vunpack.c.l.b16 %v7857
    %v8627 = vunpack.c.h.b16 %v7857
    %v8628 = vunpack.c.l.b16 %v7858
    %v8629 = vunpack.c.l.b16 %v7859
    %v8630 = vunpack.c.h.b16 %v7859
    %v8631 = vunpack.c.l.b16 %v7860
    %v8632 = vunpack.c.h.b16 %v7860
    %v8633 = vunpack.c.l.b16 %v7861
    %v8634 = vunpack.c.l.b16 %v7862
    %v8635 = vunpack.c.h.b16 %v7862
    %v8636 = vunpack.c.l.b16 %v7863
    %v8637 = vunpack.c.h.b16 %v7863
    %v8638 = vunpack.c.l.b16 %v7864
    %v8639 = vunpack.c.l.b16 %v7865
    %v8640 = vunpack.c.h.b16 %v7865
    %v8641 = vunpack.c.l.b16 %v7866
    %v8642 = vunpack.c.h.b16 %v7866
    %v8643 = vunpack.c.l.b16 %v7867
    %v8644 = vunpack.c.l.b16 %v7868
    %v8645 = vunpack.c.h.b16 %v7868
    %v8646 = vunpack.c.l.b16 %v7869
    %v8647 = vunpack.c.h.b16 %v7869
    %v8648 = vunpack.c.l.b16 %v7870
    %v8649 = vunpack.c.l.b16 %v7871
    %v8650 = vunpack.c.h.b16 %v7871
    %v8651 = vunpack.c.l.b16 %v7872
    %v8652 = vunpack.c.h.b16 %v7872
    %v8653 = vunpack.c.l.b16 %v7873
    %v8654 = vunpack.c.l.b16 %v7874
    %v8655 = vunpack.c.h.b16 %v7874
    %v8656 = vunpack.c.l.b16 %v7875
    %v8657 = vunpack.c.h.b16 %v7875
    %v8658 = vunpack.c.l.b16 %v7876
    %v8659 = vunpack.c.l.b16 %v7877
    %v8660 = vunpack.c.h.b16 %v7877
    %v8661 = vunpack.c.l.b16 %v7878
    %v8662 = vunpack.c.h.b16 %v7878
    %v8663 = vunpack.c.l.b16 %v7879
    %v8664 = vunpack.c.l.b16 %v7880
    %v8665 = vunpack.c.h.b16 %v7880
    %v8666 = vunpack.c.l.b16 %v7881
    %v8667 = vunpack.c.h.b16 %v7881
    %v8668 = vunpack.c.l.b16 %v7882
    %v8669 = vunpack.c.l.b16 %v7883
    %v8670 = vunpack.c.h.b16 %v7883
    %v8671 = vunpack.c.l.b16 %v7884
    %v8672 = vunpack.c.h.b16 %v7884
    %v8673 = vunpack.c.l.b16 %v7885
    %v8674 = vunpack.c.l.b16 %v7886
    %v8675 = vunpack.c.h.b16 %v7886
    %v8676 = vunpack.c.l.b16 %v7887
    %v8677 = vunpack.c.h.b16 %v7887
    %v8678 = vunpack.c.l.b16 %v7888
    %v8679 = vunpack.c.l.b16 %v7889
    %v8680 = vunpack.c.h.b16 %v7889
    %v8681 = vunpack.c.l.b16 %v7890
    %v8682 = vunpack.c.h.b16 %v7890
    %v8683 = vunpack.c.l.b16 %v7891
    %v8684 = vunpack.c.l.b16 %v7892
    %v8685 = vunpack.c.h.b16 %v7892
    %v8686 = vunpack.c.l.b16 %v7893
    %v8687 = vunpack.c.h.b16 %v7893
    %v8688 = vunpack.c.l.b16 %v7894
    %v8689 = vunpack.c.l.b16 %v7895
    %v8690 = vunpack.c.h.b16 %v7895
    %v8691 = vunpack.c.l.b16 %v7896
    %v8692 = vunpack.c.h.b16 %v7896
    %v8693 = vunpack.c.l.b16 %v7897
    %v8694 = vunpack.c.l.b16 %v7898
    %v8695 = vunpack.c.h.b16 %v7898
    %v8696 = vunpack.c.l.b16 %v7899
    %v8697 = vunpack.c.h.b16 %v7899
    %v8698 = vunpack.c.l.b16 %v7900
    %v8699 = vunpack.c.l.b16 %v7901
    %v8700 = vunpack.c.h.b16 %v7901
    %v8701 = vunpack.c.l.b16 %v7902
    %v8702 = vunpack.c.h.b16 %v7902
    %v8703 = vunpack.c.l.b16 %v7903
    %v8704 = vunpack.c.l.b16 %v7904
    %v8705 = vunpack.c.h.b16 %v7904
    %v8706 = vunpack.c.l.b16 %v7905
    %v8707 = vunpack.c.h.b16 %v7905
    %v8708 = vunpack.c.l.b16 %v7906
    %v8709 = vunpack.c.l.b16 %v7907
    %v8710 = vunpack.c.h.b16 %v7907
    %v8711 = vunpack.c.l.b16 %v7908
    %v8712 = vunpack.c.h.b16 %v7908
    %v8713 = vunpack.c.l.b16 %v7909
    %v8714 = vunpack.c.l.b16 %v7910
    %v8715 = vunpack.c.h.b16 %v7910
    %v8716 = vunpack.c.l.b16 %v7911
    %v8717 = vunpack.c.h.b16 %v7911
    %v8718 = vunpack.c.l.b16 %v7912
    %v8719 = vunpack.c.l.b16 %v7913
    %v8720 = vunpack.c.h.b16 %v7913
    %v8721 = vunpack.c.l.b16 %v7914
    %v8722 = vunpack.c.h.b16 %v7914
    %v8723 = vunpack.c.l.b16 %v7915
    %v8724 = vunpack.c.l.b16 %v7916
    %v8725 = vunpack.c.h.b16 %v7916
    %v8726 = vunpack.c.l.b16 %v7917
    %v8727 = vunpack.c.h.b16 %v7917
    %v8728 = vunpack.c.l.b16 %v7918
    %v8729 = vunpack.c.l.b16 %v7919
    %v8730 = vunpack.c.h.b16 %v7919
    %v8731 = vunpack.c.l.b16 %v7920
    %v8732 = vunpack.c.h.b16 %v7920
    %v8733 = vunpack.c.l.b16 %v7921
    %v8734 = vunpack.c.l.b16 %v7922
    %v8735 = vunpack.c.h.b16 %v7922
    %v8736 = vunpack.c.l.b16 %v7923
    %v8737 = vunpack.c.h.b16 %v7923
    %v8738 = vunpack.c.l.b16 %v7924
    %v8739 = vunpack.c.l.b16 %v7925
    %v8740 = vunpack.c.h.b16 %v7925
    %v8741 = vunpack.c.l.b16 %v7926
    %v8742 = vunpack.c.h.b16 %v7926
    %v8743 = vunpack.c.l.b16 %v7927
    %v8744 = vunpack.c.l.b16 %v7928
    %v8745 = vunpack.c.h.b16 %v7928
    %v8746 = vunpack.c.l.b16 %v7929
    %v8747 = vunpack.c.h.b16 %v7929
    %v8748 = vunpack.c.l.b16 %v7930
    %v8749 = vunpack.c.l.b16 %v7931
    %v8750 = vunpack.c.h.b16 %v7931
    %v8751 = vunpack.c.l.b16 %v7932
    %v8752 = vunpack.c.h.b16 %v7932
    %v8753 = vunpack.c.l.b16 %v7933
    %v8754 = vunpack.c.l.b16 %v7934
    %v8755 = vunpack.c.h.b16 %v7934
    %v8756 = vunpack.c.l.b16 %v7935
    %v8757 = vunpack.c.h.b16 %v7935
    %v8758 = vunpack.c.l.b16 %v7936
    %v8759 = vunpack.c.l.b16 %v7937
    %v8760 = vunpack.c.h.b16 %v7937
    %v8761 = vunpack.c.l.b16 %v7938
    %v8762 = vunpack.c.h.b16 %v7938
    %v8763 = vunpack.c.l.b16 %v7939
    %v8764 = vunpack.c.l.b16 %v7940
    %v8765 = vunpack.c.h.b16 %v7940
    %v8766 = vunpack.c.l.b16 %v7941
    %v8767 = vunpack.c.h.b16 %v7941
    %v8768 = vunpack.c.l.b16 %v7942
    %v8769 = vunpack.c.l.b16 %v7943
    %v8770 = vunpack.c.h.b16 %v7943
    %v8771 = vunpack.c.l.b16 %v7944
    %v8772 = vunpack.c.h.b16 %v7944
    %v8773 = vunpack.c.l.b16 %v7945
    %v8774 = vunpack.c.l.b16 %v7946
    %v8775 = vunpack.c.h.b16 %v7946
    %v8776 = vunpack.c.l.b16 %v7947
    %v8777 = vunpack.c.h.b16 %v7947
    %v8778 = vunpack.c.l.b16 %v7948
    %v8779 = vunpack.c.l.b16 %v7949
    %v8780 = vunpack.c.h.b16 %v7949
    %v8781 = vunpack.c.l.b16 %v7950
    %v8782 = vunpack.c.h.b16 %v7950
    %v8783 = vunpack.c.l.b16 %v7951
    %v8784 = vunpack.c.l.b16 %v7952
    %v8785 = vunpack.c.h.b16 %v7952
    %v8786 = vunpack.c.l.b16 %v7953
    %v8787 = vunpack.c.h.b16 %v7953
    %v8788 = vunpack.c.l.b16 %v7954
    %v8789 = vunpack.c.l.b16 %v7955
    %v8790 = vunpack.c.h.b16 %v7955
    %v8791 = vunpack.c.l.b16 %v7956
    %v8792 = vunpack.c.h.b16 %v7956
    %v8793 = vunpack.c.l.b16 %v7957
    %v8794 = vunpack.c.l.b16 %v7958
    %v8795 = vunpack.c.h.b16 %v7958
    %v8796 = vunpack.c.l.b16 %v7959
    %v8797 = vunpack.c.h.b16 %v7959
    %v8798 = vunpack.c.l.b16 %v7960
    %v8799 = vunpack.c.l.b16 %v7961
    %v8800 = vunpack.c.h.b16 %v7961
    %v8801 = vunpack.c.l.b16 %v7962
    %v8802 = vunpack.c.h.b16 %v7962
    %v8803 = vunpack.c.l.b16 %v7963
    %v8804 = vunpack.c.l.b16 %v7964
    %v8805 = vunpack.c.h.b16 %v7964
    %v8806 = vunpack.c.l.b16 %v7965
    %v8807 = vunpack.c.h.b16 %v7965
    %v8808 = vunpack.c.l.b16 %v7966
    %v8809 = vunpack.c.l.b16 %v7967
    %v8810 = vunpack.c.h.b16 %v7967
    %v8811 = vunpack.c.l.b16 %v7968
    %v8812 = vunpack.c.h.b16 %v7968
    %v8813 = vunpack.c.l.b16 %v7969
    %v8814 = vunpack.c.l.b16 %v7970
    %v8815 = vunpack.c.h.b16 %v7970
    %v8816 = vunpack.c.l.b16 %v7971
    %v8817 = vunpack.c.h.b16 %v7971
    %v8818 = vunpack.c.l.b16 %v7972
    %v8819 = vunpack.c.l.b16 %v7973
    %v8820 = vunpack.c.h.b16 %v7973
    %v8821 = vunpack.c.l.b16 %v7974
    %v8822 = vunpack.c.h.b16 %v7974
    %v8823 = vunpack.c.l.b16 %v7975
    %v8824 = vunpack.c.l.b16 %v7976
    %v8825 = vunpack.c.h.b16 %v7976
    %v8826 = vunpack.c.l.b16 %v7977
    %v8827 = vunpack.c.h.b16 %v7977
    %v8828 = vunpack.c.l.b16 %v7978
    %v8829 = vunpack.c.l.b16 %v7979
    %v8830 = vunpack.c.h.b16 %v7979
    %v8831 = vunpack.c.l.b16 %v7980
    %v8832 = vunpack.c.h.b16 %v7980
    %v8833 = vunpack.c.l.b16 %v7981
    %v8834 = vunpack.c.l.b16 %v7982
    %v8835 = vunpack.c.h.b16 %v7982
    %v8836 = vunpack.c.l.b16 %v7983
    %v8837 = vunpack.c.h.b16 %v7983
    %v8838 = vunpack.c.l.b16 %v7984
    %v8839 = vunpack.c.l.b16 %v7985
    %v8840 = vunpack.c.h.b16 %v7985
    %v8841 = vunpack.c.l.b16 %v7986
    %v8842 = vunpack.c.h.b16 %v7986
    %v8843 = vunpack.c.l.b16 %v7987
    %v8844 = vunpack.c.l.b16 %v7988
    %v8845 = vunpack.c.h.b16 %v7988
    %v8846 = vunpack.c.l.b16 %v7989
    %v8847 = vunpack.c.h.b16 %v7989
    %v8848 = vunpack.c.l.b16 %v7990
    %v8849 = vunpack.c.l.b16 %v7991
    %v8850 = vunpack.c.h.b16 %v7991
    %v8851 = vunpack.c.l.b16 %v7992
    %v8852 = vunpack.c.h.b16 %v7992
    %v8853 = vunpack.c.l.b16 %v7993
    %v8854 = vunpack.c.l.b16 %v7994
    %v8855 = vunpack.c.h.b16 %v7994
    %v8856 = vunpack.c.l.b16 %v7995
    %v8857 = vunpack.c.h.b16 %v7995
    %v8858 = vunpack.c.l.b16 %v7996
    %v8859 = vunpack.c.l.b16 %v7997
    %v8860 = vunpack.c.h.b16 %v7997
    %v8861 = vunpack.c.l.b16 %v7998
    %v8862 = vunpack.c.h.b16 %v7998
    %v8863 = vunpack.c.l.b16 %v7999
    %v8864 = vunpack.c.l.b16 %v8000
    %v8865 = vunpack.c.h.b16 %v8000
    %v8866 = vunpack.c.l.b16 %v8001
    %v8867 = vunpack.c.h.b16 %v8001
    %v8868 = vunpack.c.l.b16 %v8002
    %v8869 = vunpack.c.l.b16 %v8003
    %v8870 = vunpack.c.h.b16 %v8003
    %v8871 = vunpack.c.l.b16 %v8004
    %v8872 = vunpack.c.h.b16 %v8004
    %v8873 = vunpack.c.l.b16 %v8005
    %v8874 = vunpack.c.l.b16 %v8006
    %v8875 = vunpack.c.h.b16 %v8006
    %v8876 = vunpack.c.l.b16 %v8007
    %v8877 = vunpack.c.h.b16 %v8007
    %v8878 = vunpack.c.l.b16 %v8008
    %v8879 = vunpack.c.l.b16 %v8009
    %v8880 = vunpack.c.h.b16 %v8009
    %v8881 = vunpack.c.l.b16 %v8010
    %v8882 = vunpack.c.h.b16 %v8010
    %v8883 = vunpack.c.l.b16 %v8011
    %v8884 = vunpack.c.l.b16 %v8012
    %v8885 = vunpack.c.h.b16 %v8012
    %v8886 = vunpack.c.l.b16 %v8013
    %v8887 = vunpack.c.h.b16 %v8013
    %v8888 = vunpack.c.l.b16 %v8014
    %v8889 = vunpack.c.l.b16 %v8015
    %v8890 = vunpack.c.h.b16 %v8015
    %v8891 = vunpack.c.l.b16 %v8016
    %v8892 = vunpack.c.h.b16 %v8016
    %v8893 = vunpack.c.l.b16 %v8017
    %v8894 = vunpack.c.l.b16 %v8018
    %v8895 = vunpack.c.h.b16 %v8018
    %v8896 = vunpack.c.l.b16 %v8019
    %v8897 = vunpack.c.h.b16 %v8019
    %v8898 = vunpack.c.l.b16 %v8020
    %v8899 = vunpack.c.l.b16 %v8021
    %v8900 = vunpack.c.h.b16 %v8021
    %v8901 = vunpack.c.l.b16 %v8022
    %v8902 = vunpack.c.h.b16 %v8022
    %v8903 = vunpack.c.l.b16 %v8023
    %v8904 = vunpack.c.l.b16 %v8024
    %v8905 = vunpack.c.h.b16 %v8024
    %v8906 = vunpack.c.l.b16 %v8025
    %v8907 = vunpack.c.h.b16 %v8025
    %v8908 = vunpack.c.l.b16 %v8026
    %v8909 = vunpack.c.l.b16 %v8027
    %v8910 = vunpack.c.h.b16 %v8027
    %v8911 = vunpack.c.l.b16 %v8028
    %v8912 = vunpack.c.h.b16 %v8028
    %v8913 = vunpack.c.l.b16 %v8029
    %v8914 = vunpack.c.l.b16 %v8030
    %v8915 = vunpack.c.h.b16 %v8030
    %v8916 = vunpack.c.l.b16 %v8031
    %v8917 = vunpack.c.h.b16 %v8031
    %v8918 = vunpack.c.l.b16 %v8032
    %v8919 = vunpack.c.l.b16 %v8033
    %v8920 = vunpack.c.h.b16 %v8033
    %v8921 = vunpack.c.l.b16 %v8034
    %v8922 = vunpack.c.h.b16 %v8034
    %v8923 = vunpack.c.l.b16 %v8035
    %v8924 = vunpack.c.l.b16 %v8036
    %v8925 = vunpack.c.h.b16 %v8036
    %v8926 = vunpack.c.l.b16 %v8037
    %v8927 = vunpack.c.h.b16 %v8037
    %v8928 = vunpack.c.l.b16 %v8038
    %v8929 = vunpack.c.l.b16 %v8039
    %v8930 = vunpack.c.h.b16 %v8039
    %v8931 = vunpack.c.l.b16 %v8040
    %v8932 = vunpack.c.h.b16 %v8040
    %v8933 = vunpack.c.l.b16 %v8041
    %v8934 = vunpack.c.l.b16 %v8042
    %v8935 = vunpack.c.h.b16 %v8042
    %v8936 = vunpack.c.l.b16 %v8043
    %v8937 = vunpack.c.h.b16 %v8043
    %v8938 = vunpack.c.l.b16 %v8044
    %v8939 = vunpack.c.l.b16 %v8045
    %v8940 = vunpack.c.h.b16 %v8045
    %v8941 = vunpack.c.l.b16 %v8046
    %v8942 = vunpack.c.h.b16 %v8046
    %v8943 = vunpack.c.l.b16 %v8047
    %v8944 = vunpack.c.l.b16 %v8048
    %v8945 = vunpack.c.h.b16 %v8048
    %v8946 = vunpack.c.l.b16 %v8049
    %v8947 = vunpack.c.h.b16 %v8049
    %v8948 = vunpack.c.l.b16 %v8050
    %v8949 = vunpack.c.l.b16 %v8051
    %v8950 = vunpack.c.h.b16 %v8051
    %v8951 = vunpack.c.l.b16 %v8052
    %v8952 = vunpack.c.h.b16 %v8052
    %v8953 = vunpack.c.l.b16 %v8053
    %v8954 = vunpack.c.l.b16 %v8054
    %v8955 = vunpack.c.h.b16 %v8054
    %v8956 = vunpack.c.l.b16 %v8055
    %v8957 = vunpack.c.h.b16 %v8055
    %v8958 = vunpack.c.l.b16 %v8056
    %v8959 = vunpack.c.l.b16 %v8057
    %v8960 = vunpack.c.h.b16 %v8057
    %v8961 = vunpack.c.l.b16 %v8058
    %v8962 = vunpack.c.h.b16 %v8058
    %v8963 = vunpack.c.l.b16 %v8059
    %v8964 = vunpack.c.l.b16 %v8060
    %v8965 = vunpack.c.h.b16 %v8060
    %v8966 = vunpack.c.l.b16 %v8061
    %v8967 = vunpack.c.h.b16 %v8061
    %v8968 = vunpack.c.l.b16 %v8062
    %v8969 = vunpack.c.l.b16 %v8063
    %v8970 = vunpack.c.h.b16 %v8063
    %v8971 = vunpack.c.l.b16 %v8064
    %v8972 = vunpack.c.h.b16 %v8064
    %v8973 = vunpack.c.l.b16 %v8065
    %v8974 = vunpack.c.l.b16 %v8066
    %v8975 = vunpack.c.h.b16 %v8066
    %v8976 = vunpack.c.l.b16 %v8067
    %v8977 = vunpack.c.h.b16 %v8067
    %v8978 = vunpack.c.l.b16 %v8068
    %v8979 = vunpack.c.l.b16 %v8069
    %v8980 = vunpack.c.h.b16 %v8069
    %v8981 = vunpack.c.l.b16 %v8070
    %v8982 = vunpack.c.h.b16 %v8070
    %v8983 = vunpack.c.l.b16 %v8071
    %v8984 = vunpack.c.l.b16 %v8072
    %v8985 = vunpack.c.h.b16 %v8072
    %v8986 = vunpack.c.l.b16 %v8073
    %v8987 = vunpack.c.h.b16 %v8073
    %v8988 = vunpack.c.l.b16 %v8074
    %v8989 = vunpack.c.l.b16 %v8075
    %v8990 = vunpack.c.h.b16 %v8075
    %v8991 = vunpack.c.l.b16 %v8076
    %v8992 = vunpack.c.h.b16 %v8076
    %v8993 = vunpack.c.l.b16 %v8077
    %v8994 = vunpack.c.l.b16 %v8078
    %v8995 = vunpack.c.h.b16 %v8078
    %v8996 = vunpack.c.l.b16 %v8079
    %v8997 = vunpack.c.h.b16 %v8079
    %v8998 = vunpack.c.l.b16 %v8080
    %v8999 = vunpack.c.l.b16 %v8081
    %v9000 = vunpack.c.h.b16 %v8081
    %v9001 = vunpack.c.l.b16 %v8082
    %v9002 = vunpack.c.h.b16 %v8082
    %v9003 = vunpack.c.l.b16 %v8083
    %v9004 = vunpack.c.l.b16 %v8084
    %v9005 = vunpack.c.h.b16 %v8084
    %v9006 = vunpack.c.l.b16 %v8085
    %v9007 = vunpack.c.h.b16 %v8085
    %v9008 = vunpack.c.l.b16 %v8086
    %v9009 = vunpack.c.l.b16 %v8087
    %v9010 = vunpack.c.h.b16 %v8087
    %v9011 = vunpack.c.l.b16 %v8088
    %v9012 = vunpack.c.h.b16 %v8088
    %v9013 = vunpack.c.l.b16 %v8089
    %v9014 = vunpack.c.l.b16 %v8090
    %v9015 = vunpack.c.h.b16 %v8090
    %v9016 = vunpack.c.l.b16 %v8091
    %v9017 = vunpack.c.h.b16 %v8091
    %v9018 = vunpack.c.l.b16 %v8092
    %v9019 = vunpack.c.l.b16 %v8093
    %v9020 = vunpack.c.h.b16 %v8093
    %v9021 = vunpack.c.l.b16 %v8094
    %v9022 = vunpack.c.h.b16 %v8094
    %v9023 = vunpack.c.l.b16 %v8095
    %v9024 = vunpack.c.l.b16 %v8096
    %v9025 = vunpack.c.h.b16 %v8096
    %v9026 = vunpack.c.l.b16 %v8097
    %v9027 = vunpack.c.h.b16 %v8097
    %v9028 = vunpack.c.l.b16 %v8098
    %v9029 = vunpack.c.l.b16 %v8099
    %v9030 = vunpack.c.h.b16 %v8099
    %v9031 = vunpack.c.l.b16 %v8100
    %v9032 = vunpack.c.h.b16 %v8100
    %v9033 = vunpack.c.l.b16 %v8101
    %v9034 = vunpack.c.l.b16 %v8102
    %v9035 = vunpack.c.h.b16 %v8102
    %v9036 = vunpack.c.l.b16 %v8103
    %v9037 = vunpack.c.h.b16 %v8103
    %v9038 = vunpack.c.l.b16 %v8104
    %v9039 = vunpack.c.l.b16 %v8105
    %v9040 = vunpack.c.h.b16 %v8105
    %v9041 = vunpack.c.l.b16 %v8106
    %v9042 = vunpack.c.h.b16 %v8106
    %v9043 = vunpack.c.l.b16 %v8107
    %v9044 = vunpack.c.l.b16 %v8108
    %v9045 = vunpack.c.h.b16 %v8108
    %v9046 = vunpack.c.l.b16 %v8109
    %v9047 = vunpack.c.h.b16 %v8109
    %v9048 = vunpack.c.l.b16 %v8110
    %v9049 = vunpack.c.l.b16 %v8111
    %v9050 = vunpack.c.h.b16 %v8111
    %v9051 = vunpack.c.l.b16 %v8112
    %v9052 = vunpack.c.h.b16 %v8112
    %v9053 = vunpack.c.l.b16 %v8113
    %v9054 = vunpack.c.l.b16 %v8114
    %v9055 = vunpack.c.h.b16 %v8114
    %v9056 = vunpack.c.l.b16 %v8115
    %v9057 = vunpack.c.h.b16 %v8115
    %v9058 = vunpack.c.l.b16 %v8116
    %v9059 = vunpack.c.l.b16 %v8117
    %v9060 = vunpack.c.h.b16 %v8117
    %v9061 = vunpack.c.l.b16 %v8118
    %v9062 = vunpack.c.h.b16 %v8118
    %v9063 = vunpack.c.l.b16 %v8119
    %v9064 = vunpack.c.l.b16 %v8120
    %v9065 = vunpack.c.h.b16 %v8120
    %v9066 = vunpack.c.l.b16 %v8121
    %v9067 = vunpack.c.h.b16 %v8121
    %v9068 = vunpack.c.l.b16 %v8122
    %v9069 = vunpack.c.l.b16 %v8123
    %v9070 = vunpack.c.h.b16 %v8123
    %v9071 = vunpack.c.l.b16 %v8124
    %v9072 = vunpack.c.h.b16 %v8124
    %v9073 = vunpack.c.l.b16 %v8125
    %v9074 = vunpack.c.l.b16 %v8126
    %v9075 = vunpack.c.h.b16 %v8126
    %v9076 = vunpack.c.l.b16 %v8127
    %v9077 = vunpack.c.h.b16 %v8127
    %v9078 = vunpack.c.l.b16 %v8128
    %v9079 = vunpack.c.l.b16 %v8129
    %v9080 = vunpack.c.h.b16 %v8129
    %v9081 = vunpack.c.l.b16 %v8130
    %v9082 = vunpack.c.h.b16 %v8130
    %v9083 = vunpack.c.l.b16 %v8131
    %v9084 = vunpack.c.l.b16 %v8132
    %v9085 = vunpack.c.h.b16 %v8132
    %v9086 = vunpack.c.l.b16 %v8133
    %v9087 = vunpack.c.h.b16 %v8133
    %v9088 = vunpack.c.l.b16 %v8134
    %v9089 = vunpack.c.l.b16 %v8135
    %v9090 = vunpack.c.h.b16 %v8135
    %v9091 = vunpack.c.l.b16 %v8136
    %v9092 = vunpack.c.h.b16 %v8136
    %v9093 = vunpack.c.l.b16 %v8137
    %v9094 = vunpack.c.l.b16 %v8138
    %v9095 = vunpack.c.h.b16 %v8138
    %v9096 = vunpack.c.l.b16 %v8139
    %v9097 = vunpack.c.h.b16 %v8139
    %v9098 = vunpack.c.l.b16 %v8140
    %v9099 = vunpack.c.l.b16 %v8141
    %v9100 = vunpack.c.h.b16 %v8141
    %v9101 = vunpack.c.l.b16 %v8142
    %v9102 = vunpack.c.h.b16 %v8142
    %v9103 = vunpack.c.l.b16 %v8143
    %v9104 = vunpack.c.l.b16 %v8144
    %v9105 = vunpack.c.h.b16 %v8144
    %v9106 = vunpack.c.l.b16 %v8145
    %v9107 = vunpack.c.h.b16 %v8145
    %v9108 = vunpack.c.l.b16 %v8146
    %v9109 = vunpack.c.l.b16 %v8147
    %v9110 = vunpack.c.h.b16 %v8147
    %v9111 = vunpack.c.l.b16 %v8148
    %v9112 = vunpack.c.h.b16 %v8148
    %v9113 = vunpack.c.l.b16 %v8149
    %v9114 = vunpack.c.l.b16 %v8150
    %v9115 = vunpack.c.h.b16 %v8150
    %v9116 = vunpack.c.l.b16 %v8151
    %v9117 = vunpack.c.h.b16 %v8151
    %v9118 = vunpack.c.l.b16 %v8152
    %v9119 = vunpack.c.l.b16 %v8153
    %v9120 = vunpack.c.h.b16 %v8153
    %v9121 = vunpack.c.l.b16 %v8154
    %v9122 = vunpack.c.h.b16 %v8154
    %v9123 = vunpack.c.l.b16 %v8155
    %v9124 = vunpack.c.l.b16 %v8156
    %v9125 = vunpack.c.h.b16 %v8156
    %v9126 = vunpack.c.l.b16 %v8157
    %v9127 = vunpack.c.h.b16 %v8157
    %v9128 = vunpack.c.l.b16 %v8158
    %v9129 = vunpack.c.l.b16 %v8159
    %v9130 = vunpack.c.h.b16 %v8159
    %v9131 = vunpack.c.l.b16 %v8160
    %v9132 = vunpack.c.h.b16 %v8160
    %v9133 = vunpack.c.l.b16 %v8161
    %v9134 = vunpack.c.l.b16 %v8162
    %v9135 = vunpack.c.h.b16 %v8162
    %v9136 = vunpack.c.l.b16 %v8163
    %v9137 = vunpack.c.h.b16 %v8163
    %v9138 = vunpack.c.l.b16 %v8164
    %v9139 = vunpack.c.l.b16 %v8165
    %v9140 = vunpack.c.h.b16 %v8165
    %v9141 = vunpack.c.l.b16 %v8166
    %v9142 = vunpack.c.h.b16 %v8166
    %v9143 = vunpack.c.l.b16 %v8167
    %v9144 = vunpack.c.l.b16 %v8168
    %v9145 = vunpack.c.h.b16 %v8168
    %v9146 = vunpack.c.l.b16 %v8169
    %v9147 = vunpack.c.h.b16 %v8169
    %v9148 = vunpack.c.l.b16 %v8170
    %v9149 = vunpack.c.l.b16 %v8171
    %v9150 = vunpack.c.h.b16 %v8171
    %v9151 = vunpack.c.l.b16 %v8172
    %v9152 = vunpack.c.h.b16 %v8172
    %v9153 = vunpack.c.l.b16 %v8173
    %v9154 = vunpack.c.l.b16 %v8174
    %v9155 = vunpack.c.h.b16 %v8174
    %v9156 = vunpack.c.l.b16 %v8175
    %v9157 = vunpack.c.h.b16 %v8175
    %v9158 = vunpack.c.l.b16 %v8176
    %v9159 = vunpack.c.l.b16 %v8177
    %v9160 = vunpack.c.h.b16 %v8177
    %v9161 = vunpack.c.l.b16 %v8178
    %v9162 = vunpack.c.h.b16 %v8178
    %v9163 = vunpack.c.l.b16 %v8179
    %v9164 = vunpack.c.l.b16 %v8180
    %v9165 = vunpack.c.h.b16 %v8180
    %v9166 = vunpack.c.l.b16 %v8181
    %v9167 = vunpack.c.h.b16 %v8181
    %v9168 = vunpack.c.l.b16 %v8182
    %v9169 = vunpack.c.l.b16 %v8183
    %v9170 = vunpack.c.h.b16 %v8183
    %v9171 = vunpack.c.l.b16 %v8184
    %v9172 = vunpack.c.h.b16 %v8184
    %v9173 = vunpack.c.l.b16 %v8185
    %v9174 = vunpack.c.l.b16 %v8186
    %v9175 = vunpack.c.h.b16 %v8186
    %v9176 = vunpack.c.l.b16 %v8187
    %v9177 = vunpack.c.h.b16 %v8187
    %v9178 = vunpack.c.l.b16 %v8188
    %v9179 = vunpack.c.l.b16 %v8189
    %v9180 = vunpack.c.h.b16 %v8189
    %v9181 = vunpack.c.l.b16 %v8190
    %v9182 = vunpack.c.h.b16 %v8190
    %v9183 = vunpack.c.l.b16 %v8191
    %v9184 = vunpack.c.l.b16 %v8192
    %v9185 = vunpack.c.h.b16 %v8192
    %v9186 = vunpack.c.l.b16 %v8193
    %v9187 = vunpack.c.h.b16 %v8193
    %v9188 = vunpack.c.l.b16 %v8194
    %v9189 = vunpack.c.l.b16 %v8195
    %v9190 = vunpack.c.h.b16 %v8195
    %v9191 = vunpack.c.l.b16 %v8196
    %v9192 = vunpack.c.h.b16 %v8196
    %v9193 = vunpack.c.l.b16 %v8197
    %v9194 = vunpack.c.l.b16 %v8198
    %v9195 = vunpack.c.h.b16 %v8198
    %v9196 = vunpack.c.l.b16 %v8199
    %v9197 = vunpack.c.h.b16 %v8199
    %v9198 = vunpack.c.l.b16 %v8200
    %v9199 = vunpack.c.l.b16 %v8201
    %v9200 = vunpack.c.h.b16 %v8201
    %v9201 = vunpack.c.l.b16 %v8202
    %v9202 = vunpack.c.h.b16 %v8202
    %v9203 = vunpack.c.l.b16 %v8203
    %v9204 = vunpack.c.l.b16 %v8204
    %v9205 = vunpack.c.h.b16 %v8204
    %v9206 = vunpack.c.l.b16 %v8205
    %v9207 = vunpack.c.h.b16 %v8205
    %v9208 = vunpack.c.l.b16 %v8206
    %v9209 = vunpack.c.l.b16 %v8207
    %v9210 = vunpack.c.h.b16 %v8207
    %v9211 = vunpack.c.l.b16 %v8208
    %v9212 = vunpack.c.h.b16 %v8208
    %v9213 = vunpack.c.l.b16 %v8209
    %v9214 = vunpack.c.l.b16 %v8210
    %v9215 = vunpack.c.h.b16 %v8210
    %v9216 = vunpack.c.l.b16 %v8211
    %v9217 = vunpack.c.h.b16 %v8211
    %v9218 = vunpack.c.l.b16 %v8212
    %v9219 = vunpack.c.l.b16 %v8213
    %v9220 = vunpack.c.h.b16 %v8213
    %v9221 = vunpack.c.l.b16 %v8214
    %v9222 = vunpack.c.h.b16 %v8214
    %v9223 = vunpack.c.l.b16 %v8215
    %v9224 = vunpack.c.l.b16 %v8216
    %v9225 = vunpack.c.h.b16 %v8216
    %v9226 = vunpack.c.l.b16 %v8217
    %v9227 = vunpack.c.h.b16 %v8217
    %v9228 = vunpack.c.l.b16 %v8218
    %v9229 = vunpack.c.l.b16 %v8219
    %v9230 = vunpack.c.h.b16 %v8219
    %v9231 = vunpack.c.l.b16 %v8220
    %v9232 = vunpack.c.h.b16 %v8220
    %v9233 = vunpack.c.l.b16 %v8221
    %v9234 = vunpack.c.l.b16 %v8222
    %v9235 = vunpack.c.h.b16 %v8222
    %v9236 = vunpack.c.l.b16 %v8223
    %v9237 = vunpack.c.h.b16 %v8223
    %v9238 = vunpack.c.l.b16 %v8224
    %v9239 = vunpack.c.l.b16 %v8225
    %v9240 = vunpack.c.h.b16 %v8225
    %v9241 = vunpack.c.l.b16 %v8226
    %v9242 = vunpack.c.h.b16 %v8226
    %v9243 = vunpack.c.l.b16 %v8227
    %v9244 = vunpack.c.l.b16 %v8228
    %v9245 = vunpack.c.h.b16 %v8228
    %v9246 = vunpack.c.l.b16 %v8229
    %v9247 = vunpack.c.h.b16 %v8229
    %v9248 = vunpack.c.l.b16 %v8230
    %v9249 = vunpack.c.l.b16 %v8231
    %v9250 = vunpack.c.h.b16 %v8231
    %v9251 = vunpack.c.l.b16 %v8232
    %v9252 = vunpack.c.h.b16 %v8232
    %v9253 = vunpack.c.l.b16 %v8233
    %v9254 = vunpack.c.l.b16 %v8234
    %v9255 = vunpack.c.h.b16 %v8234
    %v9256 = vunpack.c.l.b16 %v8235
    %v9257 = vunpack.c.h.b16 %v8235
    %v9258 = vunpack.c.l.b16 %v8236
    %v9259 = vunpack.c.l.b16 %v8237
    %v9260 = vunpack.c.h.b16 %v8237
    %v9261 = vunpack.c.l.b16 %v8238
    %v9262 = vunpack.c.h.b16 %v8238
    %v9263 = vunpack.c.l.b16 %v8239
    %v9264 = vpack.c.b16 %v8629, %v8624
    %v9265 = vpack.c.b16 %v8630, %v8625
    %v9266 = vpack.c.b16 %v8631, %v8626
    %v9267 = vpack.c.b16 %v8632, %v8627
    %v9268 = vpack.c.b16 %v8633, %v8628
    %v9269 = vpack.c.b16 %v8639, %v8634
    %v9270 = vpack.c.b16 %v8640, %v8635
    %v9271 = vpack.c.b16 %v8641, %v8636
    %v9272 = vpack.c.b16 %v8642, %v8637
    %v9273 = vpack.c.b16 %v8643, %v8638
    %v9274 = vpack.c.b16 %v8649, %v8644
    %v9275 = vpack.c.b16 %v8650, %v8645
    %v9276 = vpack.c.b16 %v8651, %v8646
    %v9277 = vpack.c.b16 %v8652, %v8647
    %v9278 = vpack.c.b16 %v8653, %v8648
    %v9279 = vpack.c.b16 %v8659, %v8654
    %v9280 = vpack.c.b16 %v8660, %v8655
    %v9281 = vpack.c.b16 %v8661, %v8656
    %v9282 = vpack.c.b16 %v8662, %v8657
    %v9283 = vpack.c.b16 %v8663, %v8658
    %v9284 = vpack.c.b16 %v8669, %v8664
    %v9285 = vpack.c.b16 %v8670, %v8665
    %v9286 = vpack.c.b16 %v8671, %v8666
    %v9287 = vpack.c.b16 %v8672, %v8667
    %v9288 = vpack.c.b16 %v8673, %v8668
    %v9289 = vpack.c.b16 %v8679, %v8674
    %v9290 = vpack.c.b16 %v8680, %v8675
    %v9291 = vpack.c.b16 %v8681, %v8676
    %v9292 = vpack.c.b16 %v8682, %v8677
    %v9293 = vpack.c.b16 %v8683, %v8678
    %v9294 = vpack.c.b16 %v8689, %v8684
    %v9295 = vpack.c.b16 %v8690, %v8685
    %v9296 = vpack.c.b16 %v8691, %v8686
    %v9297 = vpack.c.b16 %v8692, %v8687
    %v9298 = vpack.c.b16 %v8693, %v8688
    %v9299 = vpack.c.b16 %v8699, %v8694
    %v9300 = vpack.c.b16 %v8700, %v8695
    %v9301 = vpack.c.b16 %v8701, %v8696
    %v9302 = vpack.c.b16 %v8702, %v8697
    %v9303 = vpack.c.b16 %v8703, %v8698
    %v9304 = vpack.c.b16 %v8709, %v8704
    %v9305 = vpack.c.b16 %v8710, %v8705
    %v9306 = vpack.c.b16 %v8711, %v8706
    %v9307 = vpack.c.b16 %v8712, %v8707
    %v9308 = vpack.c.b16 %v8713, %v8708
    %v9309 = vpack.c.b16 %v8719, %v8714
    %v9310 = vpack.c.b16 %v8720, %v8715
    %v9311 = vpack.c.b16 %v8721, %v8716
    %v9312 = vpack.c.b16 %v8722, %v8717
    %v9313 = vpack.c.b16 %v8723, %v8718
    %v9314 = vpack.c.b16 %v8729, %v8724
    %v9315 = vpack.c.b16 %v8730, %v8725
    %v9316 = vpack.c.b16 %v8731, %v8726
    %v9317 = vpack.c.b16 %v8732, %v8727
    %v9318 = vpack.c.b16 %v8733, %v8728
    %v9319 = vpack.c.b16 %v8739, %v8734
    %v9320 = vpack.c.b16 %v8740, %v8735
    %v9321 = vpack.c.b16 %v8741, %v8736
    %v9322 = vpack.c.b16 %v8742, %v8737
    %v9323 = vpack.c.b16 %v8743, %v8738
    %v9324 = vpack.c.b16 %v8749, %v8744
    %v9325 = vpack.c.b16 %v8750, %v8745
    %v9326 = vpack.c.b16 %v8751, %v8746
    %v9327 = vpack.c.b16 %v8752, %v8747
    %v9328 = vpack.c.b16 %v8753, %v8748
    %v9329 = vpack.c.b16 %v8759, %v8754
    %v9330 = vpack.c.b16 %v8760, %v8755
    %v9331 = vpack.c.b16 %v8761, %v8756
    %v9332 = vpack.c.b16 %v8762, %v8757
    %v9333 = vpack.c.b16 %v8763, %v8758
    %v9334 = vpack.c.b16 %v8769, %v8764
    %v9335 = vpack.c.b16 %v8770, %v8765
    %v9336 = vpack.c.b16 %v8771, %v8766
    %v9337 = vpack.c.b16 %v8772, %v8767
    %v9338 = vpack.c.b16 %v8773, %v8768
    %v9339 = vpack.c.b16 %v8779, %v8774
    %v9340 = vpack.c.b16 %v8780, %v8775
    %v9341 = vpack.c.b16 %v8781, %v8776
    %v9342 = vpack.c.b16 %v8782, %v8777
    %v9343 = vpack.c.b16 %v8783, %v8778
    %v9344 = vpack.c.b16 %v8789, %v8784
    %v9345 = vpack.c.b16 %v8790, %v8785
    %v9346 = vpack.c.b16 %v8791, %v8786
    %v9347 = vpack.c.b16 %v8792, %v8787
    %v9348 = vpack.c.b16 %v8793, %v8788
    %v9349 = vpack.c.b16 %v8799, %v8794
    %v9350 = vpack.c.b16 %v8800, %v8795
    %v9351 = vpack.c.b16 %v8801, %v8796
    %v9352 = vpack.c.b16 %v8802, %v8797
    %v9353 = vpack.c.b16 %v8803, %v8798
    %v9354 = vpack.c.b16 %v8809, %v8804
    %v9355 = vpack.c.b16 %v8810, %v8805
    %v9356 = vpack.c.b16 %v8811, %v8806
    %v9357 = vpack.c.b16 %v8812, %v8807
    %v9358 = vpack.c.b16 %v8813, %v8808
    %v9359 = vpack.c.b16 %v8819, %v8814
    %v9360 = vpack.c.b16 %v8820, %v8815
    %v9361 = vpack.c.b16 %v8821, %v8816
    %v9362 = vpack.c.b16 %v8822, %v8817
    %v9363 = vpack.c.b16 %v8823, %v8818
    %v9364 = vpack.c.b16 %v8829, %v8824
    %v9365 = vpack.c.b16 %v8830, %v8825
    %v9366 = vpack.c.b16 %v8831, %v8826
    %v9367 = vpack.c.b16 %v8832, %v8827
    %v9368 = vpack.c.b16 %v8833, %v8828
    %v9369 = vpack.c.b16 %v8839, %v8834
    %v9370 = vpack.c.b16 %v8840, %v8835
    %v9371 = vpack.c.b16 %v8841, %v8836
    %v9372 = vpack.c.b16 %v8842, %v8837
    %v9373 = vpack.c.b16 %v8843, %v8838
    %v9374 = vpack.c.b16 %v8849, %v8844
    %v9375 = vpack.c.b16 %v8850, %v8845
    %v9376 = vpack.c.b16 %v8851, %v8846
    %v9377 = vpack.c.b16 %v8852, %v8847
    %v9378 = vpack.c.b16 %v8853, %v8848
    %v9379 = vpack.c.b16 %v8859, %v8854
    %v9380 = vpack.c.b16 %v8860, %v8855
    %v9381 = vpack.c.b16 %v8861, %v8856
    %v9382 = vpack.c.b16 %v8862, %v8857
    %v9383 = vpack.c.b16 %v8863, %v8858
    %v9384 = vpack.c.b16 %v8869, %v8864
    %v9385 = vpack.c.b16 %v8870, %v8865
    %v9386 = vpack.c.b16 %v8871, %v8866
    %v9387 = vpack.c.b16 %v8872, %v8867
    %v9388 = vpack.c.b16 %v8873, %v8868
    %v9389 = vpack.c.b16 %v8879, %v8874
    %v9390 = vpack.c.b16 %v8880, %v8875
    %v9391 = vpack.c.b16 %v8881, %v8876
    %v9392 = vpack.c.b16 %v8882, %v8877
    %v9393 = vpack.c.b16 %v8883, %v8878
    %v9394 = vpack.c.b16 %v8889, %v8884
    %v9395 = vpack.c.b16 %v8890, %v8885
    %v9396 = vpack.c.b16 %v8891, %v8886
    %v9397 = vpack.c.b16 %v8892, %v8887
    %v9398 = vpack.c.b16 %v8893, %v8888
    %v9399 = vpack.c.b16 %v8899, %v8894
    %v9400 = vpack.c.b16 %v8900, %v8895
    %v9401 = vpack.c.b16 %v8901, %v8896
    %v9402 = vpack.c.b16 %v8902, %v8897
    %v9403 = vpack.c.b16 %v8903, %v8898
    %v9404 = vpack.c.b16 %v8909, %v8904
    %v9405 = vpack.c.b16 %v8910, %v8905
    %v9406 = vpack.c.b16 %v8911, %v8906
    %v9407 = vpack.c.b16 %v8912, %v8907
    %v9408 = vpack.c.b16 %v8913, %v8908
    %v9409 = vpack.c.b16 %v8919, %v8914
    %v9410 = vpack.c.b16 %v8920, %v8915
    %v9411 = vpack.c.b16 %v8921, %v8916
    %v9412 = vpack.c.b16 %v8922, %v8917
    %v9413 = vpack.c.b16 %v8923, %v8918
    %v9414 = vpack.c.b16 %v8929, %v8924
    %v9415 = vpack.c.b16 %v8930, %v8925
    %v9416 = vpack.c.b16 %v8931, %v8926
    %v9417 = vpack.c.b16 %v8932, %v8927
    %v9418 = vpack.c.b16 %v8933, %v8928
    %v9419 = vpack.c.b16 %v8939, %v8934
    %v9420 = vpack.c.b16 %v8940, %v8935
    %v9421 = vpack.c.b16 %v8941, %v8936
    %v9422 = vpack.c.b16 %v8942, %v8937
    %v9423 = vpack.c.b16 %v8943, %v8938
    %v9424 = vpack.c.b16 %v8949, %v8944
    %v9425 = vpack.c.b16 %v8950, %v8945
    %v9426 = vpack.c.b16 %v8951, %v8946
    %v9427 = vpack.c.b16 %v8952, %v8947
    %v9428 = vpack.c.b16 %v8953, %v8948
    %v9429 = vpack.c.b16 %v8959, %v8954
    %v9430 = vpack.c.b16 %v8960, %v8955
    %v9431 = vpack.c.b16 %v8961, %v8956
    %v9432 = vpack.c.b16 %v8962, %v8957
    %v9433 = vpack.c.b16 %v8963, %v8958
    %v9434 = vpack.c.b16 %v8969, %v8964
    %v9435 = vpack.c.b16 %v8970, %v8965
    %v9436 = vpack.c.b16 %v8971, %v8966
    %v9437 = vpack.c.b16 %v8972, %v8967
    %v9438 = vpack.c.b16 %v8973, %v8968
    %v9439 = vpack.c.b16 %v8979, %v8974
    %v9440 = vpack.c.b16 %v8980, %v8975
    %v9441 = vpack.c.b16 %v8981, %v8976
    %v9442 = vpack.c.b16 %v8982, %v8977
    %v9443 = vpack.c.b16 %v8983, %v8978
    %v9444 = vpack.c.b16 %v8989, %v8984
    %v9445 = vpack.c.b16 %v8990, %v8985
    %v9446 = vpack.c.b16 %v8991, %v8986
    %v9447 = vpack.c.b16 %v8992, %v8987
    %v9448 = vpack.c.b16 %v8993, %v8988
    %v9449 = vpack.c.b16 %v8999, %v8994
    %v9450 = vpack.c.b16 %v9000, %v8995
    %v9451 = vpack.c.b16 %v9001, %v8996
    %v9452 = vpack.c.b16 %v9002, %v8997
    %v9453 = vpack.c.b16 %v9003, %v8998
    %v9454 = vpack.c.b16 %v9009, %v9004
    %v9455 = vpack.c.b16 %v9010, %v9005
    %v9456 = vpack.c.b16 %v9011, %v9006
    %v9457 = vpack.c.b16 %v9012, %v9007
    %v9458 = vpack.c.b16 %v9013, %v9008
    %v9459 = vpack.c.b16 %v9019, %v9014
    %v9460 = vpack.c.b16 %v9020, %v9015
    %v9461 = vpack.c.b16 %v9021, %v9016
    %v9462 = vpack.c.b16 %v9022, %v9017
    %v9463 = vpack.c.b16 %v9023, %v9018
    %v9464 = vpack.c.b16 %v9029, %v9024
    %v9465 = vpack.c.b16 %v9030, %v9025
    %v9466 = vpack.c.b16 %v9031, %v9026
    %v9467 = vpack.c.b16 %v9032, %v9027
    %v9468 = vpack.c.b16 %v9033, %v9028
    %v9469 = vpack.c.b16 %v9039, %v9034
    %v9470 = vpack.c.b16 %v9040, %v9035
    %v9471 = vpack.c.b16 %v9041, %v9036
    %v9472 = vpack.c.b16 %v9042, %v9037
    %v9473 = vpack.c.b16 %v9043, %v9038
    %v9474 = vpack.c.b16 %v9049, %v9044
    %v9475 = vpack.c.b16 %v9050, %v9045
    %v9476 = vpack.c.b16 %v9051, %v9046
    %v9477 = vpack.c.b16 %v9052, %v9047
    %v9478 = vpack.c.b16 %v9053, %v9048
    %v9479 = vpack.c.b16 %v9059, %v9054
    %v9480 = vpack.c.b16 %v9060, %v9055
    %v9481 = vpack.c.b16 %v9061, %v9056
    %v9482 = vpack.c.b16 %v9062, %v9057
    %v9483 = vpack.c.b16 %v9063, %v9058
    %v9484 = vpack.c.b16 %v9069, %v9064
    %v9485 = vpack.c.b16 %v9070, %v9065
    %v9486 = vpack.c.b16 %v9071, %v9066
    %v9487 = vpack.c.b16 %v9072, %v9067
    %v9488 = vpack.c.b16 %v9073, %v9068
    %v9489 = vpack.c.b16 %v9079, %v9074
    %v9490 = vpack.c.b16 %v9080, %v9075
    %v9491 = vpack.c.b16 %v9081, %v9076
    %v9492 = vpack.c.b16 %v9082, %v9077
    %v9493 = vpack.c.b16 %v9083, %v9078
    %v9494 = vpack.c.b16 %v9089, %v9084
    %v9495 = vpack.c.b16 %v9090, %v9085
    %v9496 = vpack.c.b16 %v9091, %v9086
    %v9497 = vpack.c.b16 %v9092, %v9087
    %v9498 = vpack.c.b16 %v9093, %v9088
    %v9499 = vpack.c.b16 %v9099, %v9094
    %v9500 = vpack.c.b16 %v9100, %v9095
    %v9501 = vpack.c.b16 %v9101, %v9096
    %v9502 = vpack.c.b16 %v9102, %v9097
    %v9503 = vpack.c.b16 %v9103, %v9098
    %v9504 = vpack.c.b16 %v9109, %v9104
    %v9505 = vpack.c.b16 %v9110, %v9105
    %v9506 = vpack.c.b16 %v9111, %v9106
    %v9507 = vpack.c.b16 %v9112, %v9107
    %v9508 = vpack.c.b16 %v9113, %v9108
    %v9509 = vpack.c.b16 %v9119, %v9114
    %v9510 = vpack.c.b16 %v9120, %v9115
    %v9511 = vpack.c.b16 %v9121, %v9116
    %v9512 = vpack.c.b16 %v9122, %v9117
    %v9513 = vpack.c.b16 %v9123, %v9118
    %v9514 = vpack.c.b16 %v9129, %v9124
    %v9515 = vpack.c.b16 %v9130, %v9125
    %v9516 = vpack.c.b16 %v9131, %v9126
    %v9517 = vpack.c.b16 %v9132, %v9127
    %v9518 = vpack.c.b16 %v9133, %v9128
    %v9519 = vpack.c.b16 %v9139, %v9134
    %v9520 = vpack.c.b16 %v9140, %v9135
    %v9521 = vpack.c.b16 %v9141, %v9136
    %v9522 = vpack.c.b16 %v9142, %v9137
    %v9523 = vpack.c.b16 %v9143, %v9138
    %v9524 = vpack.c.b16 %v9149, %v9144
    %v9525 = vpack.c.b16 %v9150, %v9145
    %v9526 = vpack.c.b16 %v9151, %v9146
    %v9527 = vpack.c.b16 %v9152, %v9147
    %v9528 = vpack.c.b16 %v9153, %v9148
    %v9529 = vpack.c.b16 %v9159, %v9154
    %v9530 = vpack.c.b16 %v9160, %v9155
    %v9531 = vpack.c.b16 %v9161, %v9156
    %v9532 = vpack.c.b16 %v9162, %v9157
    %v9533 = vpack.c.b16 %v9163, %v9158
    %v9534 = vpack.c.b16 %v9169, %v9164
    %v9535 = vpack.c.b16 %v9170, %v9165
    %v9536 = vpack.c.b16 %v9171, %v9166
    %v9537 = vpack.c.b16 %v9172, %v9167
    %v9538 = vpack.c.b16 %v9173, %v9168
    %v9539 = vpack.c.b16 %v9179, %v9174
    %v9540 = vpack.c.b16 %v9180, %v9175
    %v9541 = vpack.c.b16 %v9181, %v9176
    %v9542 = vpack.c.b16 %v9182, %v9177
    %v9543 = vpack.c.b16 %v9183, %v9178
    %v9544 = vpack.c.b16 %v9189, %v9184
    %v9545 = vpack.c.b16 %v9190, %v9185
    %v9546 = vpack.c.b16 %v9191, %v9186
    %v9547 = vpack.c.b16 %v9192, %v9187
    %v9548 = vpack.c.b16 %v9193, %v9188
    %v9549 = vpack.c.b16 %v9199, %v9194
    %v9550 = vpack.c.b16 %v9200, %v9195
    %v9551 = vpack.c.b16 %v9201, %v9196
    %v9552 = vpack.c.b16 %v9202, %v9197
    %v9553 = vpack.c.b16 %v9203, %v9198
    %v9554 = vpack.c.b16 %v9209, %v9204
    %v9555 = vpack.c.b16 %v9210, %v9205
    %v9556 = vpack.c.b16 %v9211, %v9206
    %v9557 = vpack.c.b16 %v9212, %v9207
    %v9558 = vpack.c.b16 %v9213, %v9208
    %v9559 = vpack.c.b16 %v9219, %v9214
    %v9560 = vpack.c.b16 %v9220, %v9215
    %v9561 = vpack.c.b16 %v9221, %v9216
    %v9562 = vpack.c.b16 %v9222, %v9217
    %v9563 = vpack.c.b16 %v9223, %v9218
    %v9564 = vpack.c.b16 %v9229, %v9224
    %v9565 = vpack.c.b16 %v9230, %v9225
    %v9566 = vpack.c.b16 %v9231, %v9226
    %v9567 = vpack.c.b16 %v9232, %v9227
    %v9568 = vpack.c.b16 %v9233, %v9228
    %v9569 = vpack.c.b16 %v9239, %v9234
    %v9570 = vpack.c.b16 %v9240, %v9235
    %v9571 = vpack.c.b16 %v9241, %v9236
    %v9572 = vpack.c.b16 %v9242, %v9237
    %v9573 = vpack.c.b16 %v9243, %v9238
    %v9574 = vpack.c.b16 %v9249, %v9244
    %v9575 = vpack.c.b16 %v9250, %v9245
    %v9576 = vpack.c.b16 %v9251, %v9246
    %v9577 = vpack.c.b16 %v9252, %v9247
    %v9578 = vpack.c.b16 %v9253, %v9248
    %v9579 = vpack.c.b16 %v9259, %v9254
    %v9580 = vpack.c.b16 %v9260, %v9255
    %v9581 = vpack.c.b16 %v9261, %v9256
    %v9582 = vpack.c.b16 %v9262, %v9257
    %v9583 = vpack.c.b16 %v9263, %v9258
    %9904 = vmatprep.subr.bf16.mxu0 %v9300
    %9905 = vmatpush1.bf16.msra.mxu0 %v9299
    %9906 = vmatprep.subr.bf16.mxu0 %v9295
    %9907 = vmatpush1.bf16.msra.mxu0 %v9294
    %9908 = vmatprep.subr.bf16.mxu0 %v9290
    %9909 = vmatpush1.bf16.msra.mxu0 %v9289
    %9910 = vmatprep.subr.bf16.mxu0 %v9285
    %9911 = vmatpush1.bf16.msra.mxu0 %v9284
    %9912 = vmatprep.subr.bf16.mxu0 %v9280
    %9913 = vmatpush1.bf16.msra.mxu0 %v9279
    %9914 = vmatprep.subr.bf16.mxu0 %v9275
    %9915 = vmatpush1.bf16.msra.mxu0 %v9274
    %9916 = vmatprep.subr.bf16.mxu0 %v9270
    %9917 = vmatpush1.bf16.msra.mxu0 %v9269
    %9918 = vmatprep.subr.bf16.mxu0 %v9265
    %9919 = vmatpush1.bf16.msra.mxu0 %v9264
    %9920 = vmatprep.subr.bf16.mxu0 %v9340
    %9921 = vmatpush2.bf16.msra.mxu0 %v9339
    %9922 = vmatprep.subr.bf16.mxu0 %v9335
    %9923 = vmatpush2.bf16.msra.mxu0 %v9334
    %9924 = vmatprep.subr.bf16.mxu0 %v9330
    %9925 = vmatpush2.bf16.msra.mxu0 %v9329
    %9926 = vmatprep.subr.bf16.mxu0 %v9325
    %9927 = vmatpush2.bf16.msra.mxu0 %v9324
    %9928 = vmatprep.subr.bf16.mxu0 %v9320
    %9929 = vmatpush2.bf16.msra.mxu0 %v9319
    %9930 = vmatprep.subr.bf16.mxu0 %v9315
    %9931 = vmatpush2.bf16.msra.mxu0 %v9314
    %9932 = vmatprep.subr.bf16.mxu0 %v9310
    %9933 = vmatpush2.bf16.msra.mxu0 %v9309
    %9934 = vmatprep.subr.bf16.mxu0 %v9305
    %9935 = vmatpush2.bf16.msra.mxu0 %v9304
    %9936 = vmatprep.mubr.bf16.mxu0 %v7849
    %9937 = vmatmul.mubr.bf16.gmra.mxu0 %v7848
    %v9938 = vpop.f32.mrf.mxu0
    %v9939 = vadd.f32 0.0, %v9938
    %v9940 = vpop.f32.mrf.mxu0
    %v9941 = vadd.f32 0.0, %v9940
    %v9942 = vpop.f32.mrf.mxu0
    %v9943 = vpop.f32.mrf.mxu0
    %9944 = vdwg.mxu0
    %9945 = vmatprep.subr.bf16.mxu0 %v9380
    %9946 = vmatpush1.bf16.msra.mxu0 %v9379
    %9947 = vmatprep.subr.bf16.mxu0 %v9375
    %9948 = vmatpush1.bf16.msra.mxu0 %v9374
    %9949 = vmatprep.subr.bf16.mxu0 %v9370
    %9950 = vmatpush1.bf16.msra.mxu0 %v9369
    %9951 = vmatprep.subr.bf16.mxu0 %v9365
    %9952 = vmatpush1.bf16.msra.mxu0 %v9364
    %9953 = vmatprep.subr.bf16.mxu0 %v9360
    %9954 = vmatpush1.bf16.msra.mxu0 %v9359
    %9955 = vmatprep.subr.bf16.mxu0 %v9355
    %9956 = vmatpush1.bf16.msra.mxu0 %v9354
    %9957 = vmatprep.subr.bf16.mxu0 %v9350
    %9958 = vmatpush1.bf16.msra.mxu0 %v9349
    %9959 = vmatprep.subr.bf16.mxu0 %v9345
    %9960 = vmatpush1.bf16.msra.mxu0 %v9344
    %9961 = vmatprep.subr.bf16.mxu0 %v9420
    %9962 = vmatpush2.bf16.msra.mxu0 %v9419
    %9963 = vmatprep.subr.bf16.mxu0 %v9415
    %9964 = vmatpush2.bf16.msra.mxu0 %v9414
    %9965 = vmatprep.subr.bf16.mxu0 %v9410
    %9966 = vmatpush2.bf16.msra.mxu0 %v9409
    %9967 = vmatprep.subr.bf16.mxu0 %v9405
    %9968 = vmatpush2.bf16.msra.mxu0 %v9404
    %9969 = vmatprep.subr.bf16.mxu0 %v9400
    %9970 = vmatpush2.bf16.msra.mxu0 %v9399
    %9971 = vmatprep.subr.bf16.mxu0 %v9395
    %9972 = vmatpush2.bf16.msra.mxu0 %v9394
    %9973 = vmatprep.subr.bf16.mxu0 %v9390
    %9974 = vmatpush2.bf16.msra.mxu0 %v9389
    %9975 = vmatprep.subr.bf16.mxu0 %v9385
    %9976 = vmatpush2.bf16.msra.mxu0 %v9384
    %9977 = vmatprep.mubr.bf16.mxu0 %v7851
    %9978 = vmatmul.mubr.bf16.gmra.mxu0 %v7850
    %v9979 = vpop.f32.mrf.mxu0
    %v9980 = vadd.f32 %v9939, %v9979
    %v9981 = vpop.f32.mrf.mxu0
    %v9982 = vadd.f32 %v9941, %v9981
    %v9983 = vpop.f32.mrf.mxu0
    %v9984 = vpop.f32.mrf.mxu0
    %9985 = vdwg.mxu0
    %9986 = vmatprep.subr.bf16.mxu0 %v9460
    %9987 = vmatpush1.bf16.msra.mxu0 %v9459
    %9988 = vmatprep.subr.bf16.mxu0 %v9455
    %9989 = vmatpush1.bf16.msra.mxu0 %v9454
    %9990 = vmatprep.subr.bf16.mxu0 %v9450
    %9991 = vmatpush1.bf16.msra.mxu0 %v9449
    %9992 = vmatprep.subr.bf16.mxu0 %v9445
    %9993 = vmatpush1.bf16.msra.mxu0 %v9444
    %9994 = vmatprep.subr.bf16.mxu0 %v9440
    %9995 = vmatpush1.bf16.msra.mxu0 %v9439
    %9996 = vmatprep.subr.bf16.mxu0 %v9435
    %9997 = vmatpush1.bf16.msra.mxu0 %v9434
    %9998 = vmatprep.subr.bf16.mxu0 %v9430
    %9999 = vmatpush1.bf16.msra.mxu0 %v9429
    %10000 = vmatprep.subr.bf16.mxu0 %v9425
    %10001 = vmatpush1.bf16.msra.mxu0 %v9424
    %10002 = vmatprep.subr.bf16.mxu0 %v9500
    %10003 = vmatpush2.bf16.msra.mxu0 %v9499
    %10004 = vmatprep.subr.bf16.mxu0 %v9495
    %10005 = vmatpush2.bf16.msra.mxu0 %v9494
    %10006 = vmatprep.subr.bf16.mxu0 %v9490
    %10007 = vmatpush2.bf16.msra.mxu0 %v9489
    %10008 = vmatprep.subr.bf16.mxu0 %v9485
    %10009 = vmatpush2.bf16.msra.mxu0 %v9484
    %10010 = vmatprep.subr.bf16.mxu0 %v9480
    %10011 = vmatpush2.bf16.msra.mxu0 %v9479
    %10012 = vmatprep.subr.bf16.mxu0 %v9475
    %10013 = vmatpush2.bf16.msra.mxu0 %v9474
    %10014 = vmatprep.subr.bf16.mxu0 %v9470
    %10015 = vmatpush2.bf16.msra.mxu0 %v9469
    %10016 = vmatprep.subr.bf16.mxu0 %v9465
    %10017 = vmatpush2.bf16.msra.mxu0 %v9464
    %10018 = vmatprep.mubr.bf16.mxu0 %v7853
    %10019 = vmatmul.mubr.bf16.gmra.mxu0 %v7852
    %v10020 = vpop.f32.mrf.mxu0
    %v10021 = vadd.f32 %v9980, %v10020
    %v10022 = vpop.f32.mrf.mxu0
    %v10023 = vadd.f32 %v9982, %v10022
    %v10024 = vpop.f32.mrf.mxu0
    %v10025 = vpop.f32.mrf.mxu0
    %10026 = vdwg.mxu0
    %10027 = vmatprep.subr.bf16.mxu0 %v9540
    %10028 = vmatpush1.bf16.msra.mxu0 %v9539
    %10029 = vmatprep.subr.bf16.mxu0 %v9535
    %10030 = vmatpush1.bf16.msra.mxu0 %v9534
    %10031 = vmatprep.subr.bf16.mxu0 %v9530
    %10032 = vmatpush1.bf16.msra.mxu0 %v9529
    %10033 = vmatprep.subr.bf16.mxu0 %v9525
    %10034 = vmatpush1.bf16.msra.mxu0 %v9524
    %10035 = vmatprep.subr.bf16.mxu0 %v9520
    %10036 = vmatpush1.bf16.msra.mxu0 %v9519
    %10037 = vmatprep.subr.bf16.mxu0 %v9515
    %10038 = vmatpush1.bf16.msra.mxu0 %v9514
    %10039 = vmatprep.subr.bf16.mxu0 %v9510
    %10040 = vmatpush1.bf16.msra.mxu0 %v9509
    %10041 = vmatprep.subr.bf16.mxu0 %v9505
    %10042 = vmatpush1.bf16.msra.mxu0 %v9504
    %10043 = vmatprep.subr.bf16.mxu0 %v9580
    %10044 = vmatpush2.bf16.msra.mxu0 %v9579
    %10045 = vmatprep.subr.bf16.mxu0 %v9575
    %10046 = vmatpush2.bf16.msra.mxu0 %v9574
    %10047 = vmatprep.subr.bf16.mxu0 %v9570
    %10048 = vmatpush2.bf16.msra.mxu0 %v9569
    %10049 = vmatprep.subr.bf16.mxu0 %v9565
    %10050 = vmatpush2.bf16.msra.mxu0 %v9564
    %10051 = vmatprep.subr.bf16.mxu0 %v9560
    %10052 = vmatpush2.bf16.msra.mxu0 %v9559
    %10053 = vmatprep.subr.bf16.mxu0 %v9555
    %10054 = vmatpush2.bf16.msra.mxu0 %v9554
    %10055 = vmatprep.subr.bf16.mxu0 %v9550
    %10056 = vmatpush2.bf16.msra.mxu0 %v9549
    %10057 = vmatprep.subr.bf16.mxu0 %v9545
    %10058 = vmatpush2.bf16.msra.mxu0 %v9544
    %10059 = vmatprep.mubr.bf16.mxu0 %v7855
    %10060 = vmatmul.mubr.bf16.gmra.mxu0 %v7854
    %v10061 = vpop.f32.mrf.mxu0
    %v10062 = vadd.f32 %v10021, %v10061
    %v10063 = vpop.f32.mrf.mxu0
    %v10064 = vadd.f32 %v10023, %v10063
    %v10065 = vpop.f32.mrf.mxu0
    %v10066 = vpop.f32.mrf.mxu0
    %10067 = vdwg.mxu0
    %10068 = vmatprep.subr.bf16.mxu0 %v9302
    %10069 = vmatpush1.bf16.msra.mxu0 %v9301
    %10070 = vmatprep.subr.bf16.mxu0 %v9297
    %10071 = vmatpush1.bf16.msra.mxu0 %v9296
    %10072 = vmatprep.subr.bf16.mxu0 %v9292
    %10073 = vmatpush1.bf16.msra.mxu0 %v9291
    %10074 = vmatprep.subr.bf16.mxu0 %v9287
    %10075 = vmatpush1.bf16.msra.mxu0 %v9286
    %10076 = vmatprep.subr.bf16.mxu0 %v9282
    %10077 = vmatpush1.bf16.msra.mxu0 %v9281
    %10078 = vmatprep.subr.bf16.mxu0 %v9277
    %10079 = vmatpush1.bf16.msra.mxu0 %v9276
    %10080 = vmatprep.subr.bf16.mxu0 %v9272
    %10081 = vmatpush1.bf16.msra.mxu0 %v9271
    %10082 = vmatprep.subr.bf16.mxu0 %v9267
    %10083 = vmatpush1.bf16.msra.mxu0 %v9266
    %10084 = vmatprep.subr.bf16.mxu0 %v9342
    %10085 = vmatpush2.bf16.msra.mxu0 %v9341
    %10086 = vmatprep.subr.bf16.mxu0 %v9337
    %10087 = vmatpush2.bf16.msra.mxu0 %v9336
    %10088 = vmatprep.subr.bf16.mxu0 %v9332
    %10089 = vmatpush2.bf16.msra.mxu0 %v9331
    %10090 = vmatprep.subr.bf16.mxu0 %v9327
    %10091 = vmatpush2.bf16.msra.mxu0 %v9326
    %10092 = vmatprep.subr.bf16.mxu0 %v9322
    %10093 = vmatpush2.bf16.msra.mxu0 %v9321
    %10094 = vmatprep.subr.bf16.mxu0 %v9317
    %10095 = vmatpush2.bf16.msra.mxu0 %v9316
    %10096 = vmatprep.subr.bf16.mxu0 %v9312
    %10097 = vmatpush2.bf16.msra.mxu0 %v9311
    %10098 = vmatprep.subr.bf16.mxu0 %v9307
    %10099 = vmatpush2.bf16.msra.mxu0 %v9306
    %10100 = vmatprep.mubr.bf16.mxu0 %v7849
    %10101 = vmatmul.mubr.bf16.gmra.mxu0 %v7848
    %v10102 = vpop.f32.mrf.mxu0
    %v10103 = vadd.f32 0.0, %v10102
    %v10104 = vpop.f32.mrf.mxu0
    %v10105 = vadd.f32 0.0, %v10104
    %v10106 = vpop.f32.mrf.mxu0
    %v10107 = vpop.f32.mrf.mxu0
    %10108 = vdwg.mxu0
    %10109 = vmatprep.subr.bf16.mxu0 %v9382
    %10110 = vmatpush1.bf16.msra.mxu0 %v9381
    %10111 = vmatprep.subr.bf16.mxu0 %v9377
    %10112 = vmatpush1.bf16.msra.mxu0 %v9376
    %10113 = vmatprep.subr.bf16.mxu0 %v9372
    %10114 = vmatpush1.bf16.msra.mxu0 %v9371
    %10115 = vmatprep.subr.bf16.mxu0 %v9367
    %10116 = vmatpush1.bf16.msra.mxu0 %v9366
    %10117 = vmatprep.subr.bf16.mxu0 %v9362
    %10118 = vmatpush1.bf16.msra.mxu0 %v9361
    %10119 = vmatprep.subr.bf16.mxu0 %v9357
    %10120 = vmatpush1.bf16.msra.mxu0 %v9356
    %10121 = vmatprep.subr.bf16.mxu0 %v9352
    %10122 = vmatpush1.bf16.msra.mxu0 %v9351
    %10123 = vmatprep.subr.bf16.mxu0 %v9347
    %10124 = vmatpush1.bf16.msra.mxu0 %v9346
    %10125 = vmatprep.subr.bf16.mxu0 %v9422
    %10126 = vmatpush2.bf16.msra.mxu0 %v9421
    %10127 = vmatprep.subr.bf16.mxu0 %v9417
    %10128 = vmatpush2.bf16.msra.mxu0 %v9416
    %10129 = vmatprep.subr.bf16.mxu0 %v9412
    %10130 = vmatpush2.bf16.msra.mxu0 %v9411
    %10131 = vmatprep.subr.bf16.mxu0 %v9407
    %10132 = vmatpush2.bf16.msra.mxu0 %v9406
    %10133 = vmatprep.subr.bf16.mxu0 %v9402
    %10134 = vmatpush2.bf16.msra.mxu0 %v9401
    %10135 = vmatprep.subr.bf16.mxu0 %v9397
    %10136 = vmatpush2.bf16.msra.mxu0 %v9396
    %10137 = vmatprep.subr.bf16.mxu0 %v9392
    %10138 = vmatpush2.bf16.msra.mxu0 %v9391
    %10139 = vmatprep.subr.bf16.mxu0 %v9387
    %10140 = vmatpush2.bf16.msra.mxu0 %v9386
    %10141 = vmatprep.mubr.bf16.mxu0 %v7851
    %10142 = vmatmul.mubr.bf16.gmra.mxu0 %v7850
    %v10143 = vpop.f32.mrf.mxu0
    %v10144 = vadd.f32 %v10103, %v10143
    %v10145 = vpop.f32.mrf.mxu0
    %v10146 = vadd.f32 %v10105, %v10145
    %v10147 = vpop.f32.mrf.mxu0
    %v10148 = vpop.f32.mrf.mxu0
    %10149 = vdwg.mxu0
    %10150 = vmatprep.subr.bf16.mxu0 %v9462
    %10151 = vmatpush1.bf16.msra.mxu0 %v9461
    %10152 = vmatprep.subr.bf16.mxu0 %v9457
    %10153 = vmatpush1.bf16.msra.mxu0 %v9456
    %10154 = vmatprep.subr.bf16.mxu0 %v9452
    %10155 = vmatpush1.bf16.msra.mxu0 %v9451
    %10156 = vmatprep.subr.bf16.mxu0 %v9447
    %10157 = vmatpush1.bf16.msra.mxu0 %v9446
    %10158 = vmatprep.subr.bf16.mxu0 %v9442
    %10159 = vmatpush1.bf16.msra.mxu0 %v9441
    %10160 = vmatprep.subr.bf16.mxu0 %v9437
    %10161 = vmatpush1.bf16.msra.mxu0 %v9436
    %10162 = vmatprep.subr.bf16.mxu0 %v9432
    %10163 = vmatpush1.bf16.msra.mxu0 %v9431
    %10164 = vmatprep.subr.bf16.mxu0 %v9427
    %10165 = vmatpush1.bf16.msra.mxu0 %v9426
    %10166 = vmatprep.subr.bf16.mxu0 %v9502
    %10167 = vmatpush2.bf16.msra.mxu0 %v9501
    %10168 = vmatprep.subr.bf16.mxu0 %v9497
    %10169 = vmatpush2.bf16.msra.mxu0 %v9496
    %10170 = vmatprep.subr.bf16.mxu0 %v9492
    %10171 = vmatpush2.bf16.msra.mxu0 %v9491
    %10172 = vmatprep.subr.bf16.mxu0 %v9487
    %10173 = vmatpush2.bf16.msra.mxu0 %v9486
    %10174 = vmatprep.subr.bf16.mxu0 %v9482
    %10175 = vmatpush2.bf16.msra.mxu0 %v9481
    %10176 = vmatprep.subr.bf16.mxu0 %v9477
    %10177 = vmatpush2.bf16.msra.mxu0 %v9476
    %10178 = vmatprep.subr.bf16.mxu0 %v9472
    %10179 = vmatpush2.bf16.msra.mxu0 %v9471
    %10180 = vmatprep.subr.bf16.mxu0 %v9467
    %10181 = vmatpush2.bf16.msra.mxu0 %v9466
    %10182 = vmatprep.mubr.bf16.mxu0 %v7853
    %10183 = vmatmul.mubr.bf16.gmra.mxu0 %v7852
    %v10184 = vpop.f32.mrf.mxu0
    %v10185 = vadd.f32 %v10144, %v10184
    %v10186 = vpop.f32.mrf.mxu0
    %v10187 = vadd.f32 %v10146, %v10186
    %v10188 = vpop.f32.mrf.mxu0
    %v10189 = vpop.f32.mrf.mxu0
    %10190 = vdwg.mxu0
    %10191 = vmatprep.subr.bf16.mxu0 %v9542
    %10192 = vmatpush1.bf16.msra.mxu0 %v9541
    %10193 = vmatprep.subr.bf16.mxu0 %v9537
    %10194 = vmatpush1.bf16.msra.mxu0 %v9536
    %10195 = vmatprep.subr.bf16.mxu0 %v9532
    %10196 = vmatpush1.bf16.msra.mxu0 %v9531
    %10197 = vmatprep.subr.bf16.mxu0 %v9527
    %10198 = vmatpush1.bf16.msra.mxu0 %v9526
    %10199 = vmatprep.subr.bf16.mxu0 %v9522
    %10200 = vmatpush1.bf16.msra.mxu0 %v9521
    %10201 = vmatprep.subr.bf16.mxu0 %v9517
    %10202 = vmatpush1.bf16.msra.mxu0 %v9516
    %10203 = vmatprep.subr.bf16.mxu0 %v9512
    %10204 = vmatpush1.bf16.msra.mxu0 %v9511
    %10205 = vmatprep.subr.bf16.mxu0 %v9507
    %10206 = vmatpush1.bf16.msra.mxu0 %v9506
    %10207 = vmatprep.subr.bf16.mxu0 %v9582
    %10208 = vmatpush2.bf16.msra.mxu0 %v9581
    %10209 = vmatprep.subr.bf16.mxu0 %v9577
    %10210 = vmatpush2.bf16.msra.mxu0 %v9576
    %10211 = vmatprep.subr.bf16.mxu0 %v9572
    %10212 = vmatpush2.bf16.msra.mxu0 %v9571
    %10213 = vmatprep.subr.bf16.mxu0 %v9567
    %10214 = vmatpush2.bf16.msra.mxu0 %v9566
    %10215 = vmatprep.subr.bf16.mxu0 %v9562
    %10216 = vmatpush2.bf16.msra.mxu0 %v9561
    %10217 = vmatprep.subr.bf16.mxu0 %v9557
    %10218 = vmatpush2.bf16.msra.mxu0 %v9556
    %10219 = vmatprep.subr.bf16.mxu0 %v9552
    %10220 = vmatpush2.bf16.msra.mxu0 %v9551
    %10221 = vmatprep.subr.bf16.mxu0 %v9547
    %10222 = vmatpush2.bf16.msra.mxu0 %v9546
    %10223 = vmatprep.mubr.bf16.mxu0 %v7855
    %10224 = vmatmul.mubr.bf16.gmra.mxu0 %v7854
    %v10225 = vpop.f32.mrf.mxu0
    %v10226 = vadd.f32 %v10185, %v10225
    %v10227 = vpop.f32.mrf.mxu0
    %v10228 = vadd.f32 %v10187, %v10227
    %v10229 = vpop.f32.mrf.mxu0
    %v10230 = vpop.f32.mrf.mxu0
    %10231 = vdwg.mxu0
    %10232 = vmatprep.subr.bf16.mxu0 0
    %10233 = vmatpush1.bf16.msra.mxu0 %v9303
    %10234 = vmatprep.subr.bf16.mxu0 0
    %10235 = vmatpush1.bf16.msra.mxu0 %v9298
    %10236 = vmatprep.subr.bf16.mxu0 0
    %10237 = vmatpush1.bf16.msra.mxu0 %v9293
    %10238 = vmatprep.subr.bf16.mxu0 0
    %10239 = vmatpush1.bf16.msra.mxu0 %v9288
    %10240 = vmatprep.subr.bf16.mxu0 0
    %10241 = vmatpush1.bf16.msra.mxu0 %v9283
    %10242 = vmatprep.subr.bf16.mxu0 0
    %10243 = vmatpush1.bf16.msra.mxu0 %v9278
    %10244 = vmatprep.subr.bf16.mxu0 0
    %10245 = vmatpush1.bf16.msra.mxu0 %v9273
    %10246 = vmatprep.subr.bf16.mxu0 0
    %10247 = vmatpush1.bf16.msra.mxu0 %v9268
    %10248 = vmatprep.subr.bf16.mxu0 0
    %10249 = vmatpush2.bf16.msra.mxu0 %v9343
    %10250 = vmatprep.subr.bf16.mxu0 0
    %10251 = vmatpush2.bf16.msra.mxu0 %v9338
    %10252 = vmatprep.subr.bf16.mxu0 0
    %10253 = vmatpush2.bf16.msra.mxu0 %v9333
    %10254 = vmatprep.subr.bf16.mxu0 0
    %10255 = vmatpush2.bf16.msra.mxu0 %v9328
    %10256 = vmatprep.subr.bf16.mxu0 0
    %10257 = vmatpush2.bf16.msra.mxu0 %v9323
    %10258 = vmatprep.subr.bf16.mxu0 0
    %10259 = vmatpush2.bf16.msra.mxu0 %v9318
    %10260 = vmatprep.subr.bf16.mxu0 0
    %10261 = vmatpush2.bf16.msra.mxu0 %v9313
    %10262 = vmatprep.subr.bf16.mxu0 0
    %10263 = vmatpush2.bf16.msra.mxu0 %v9308
    %10264 = vmatprep.mubr.bf16.mxu0 %v7849
    %10265 = vmatmul.mubr.bf16.gmra.mxu0 %v7848
    %v10266 = vpop.f32.mrf.mxu0
    %v10267 = vadd.f32 0.0, %v10266
    %v10268 = vpop.f32.mrf.mxu0
    %v10269 = vpop.f32.mrf.mxu0
    %v10270 = vpop.f32.mrf.mxu0
    %10271 = vdwg.mxu0
    %10272 = vmatprep.subr.bf16.mxu0 0
    %10273 = vmatpush1.bf16.msra.mxu0 %v9383
    %10274 = vmatprep.subr.bf16.mxu0 0
    %10275 = vmatpush1.bf16.msra.mxu0 %v9378
    %10276 = vmatprep.subr.bf16.mxu0 0
    %10277 = vmatpush1.bf16.msra.mxu0 %v9373
    %10278 = vmatprep.subr.bf16.mxu0 0
    %10279 = vmatpush1.bf16.msra.mxu0 %v9368
    %10280 = vmatprep.subr.bf16.mxu0 0
    %10281 = vmatpush1.bf16.msra.mxu0 %v9363
    %10282 = vmatprep.subr.bf16.mxu0 0
    %10283 = vmatpush1.bf16.msra.mxu0 %v9358
    %10284 = vmatprep.subr.bf16.mxu0 0
    %10285 = vmatpush1.bf16.msra.mxu0 %v9353
    %10286 = vmatprep.subr.bf16.mxu0 0
    %10287 = vmatpush1.bf16.msra.mxu0 %v9348
    %10288 = vmatprep.subr.bf16.mxu0 0
    %10289 = vmatpush2.bf16.msra.mxu0 %v9423
    %10290 = vmatprep.subr.bf16.mxu0 0
    %10291 = vmatpush2.bf16.msra.mxu0 %v9418
    %10292 = vmatprep.subr.bf16.mxu0 0
    %10293 = vmatpush2.bf16.msra.mxu0 %v9413
    %10294 = vmatprep.subr.bf16.mxu0 0
    %10295 = vmatpush2.bf16.msra.mxu0 %v9408
    %10296 = vmatprep.subr.bf16.mxu0 0
    %10297 = vmatpush2.bf16.msra.mxu0 %v9403
    %10298 = vmatprep.subr.bf16.mxu0 0
    %10299 = vmatpush2.bf16.msra.mxu0 %v9398
    %10300 = vmatprep.subr.bf16.mxu0 0
    %10301 = vmatpush2.bf16.msra.mxu0 %v9393
    %10302 = vmatprep.subr.bf16.mxu0 0
    %10303 = vmatpush2.bf16.msra.mxu0 %v9388
    %10304 = vmatprep.mubr.bf16.mxu0 %v7851
    %10305 = vmatmul.mubr.bf16.gmra.mxu0 %v7850
    %v10306 = vpop.f32.mrf.mxu0
    %v10307 = vadd.f32 %v10267, %v10306
    %v10308 = vpop.f32.mrf.mxu0
    %v10309 = vpop.f32.mrf.mxu0
    %v10310 = vpop.f32.mrf.mxu0
    %10311 = vdwg.mxu0
    %10312 = vmatprep.subr.bf16.mxu0 0
    %10313 = vmatpush1.bf16.msra.mxu0 %v9463
    %10314 = vmatprep.subr.bf16.mxu0 0
    %10315 = vmatpush1.bf16.msra.mxu0 %v9458
    %10316 = vmatprep.subr.bf16.mxu0 0
    %10317 = vmatpush1.bf16.msra.mxu0 %v9453
    %10318 = vmatprep.subr.bf16.mxu0 0
    %10319 = vmatpush1.bf16.msra.mxu0 %v9448
    %10320 = vmatprep.subr.bf16.mxu0 0
    %10321 = vmatpush1.bf16.msra.mxu0 %v9443
    %10322 = vmatprep.subr.bf16.mxu0 0
    %10323 = vmatpush1.bf16.msra.mxu0 %v9438
    %10324 = vmatprep.subr.bf16.mxu0 0
    %10325 = vmatpush1.bf16.msra.mxu0 %v9433
    %10326 = vmatprep.subr.bf16.mxu0 0
    %10327 = vmatpush1.bf16.msra.mxu0 %v9428
    %10328 = vmatprep.subr.bf16.mxu0 0
    %10329 = vmatpush2.bf16.msra.mxu0 %v9503
    %10330 = vmatprep.subr.bf16.mxu0 0
    %10331 = vmatpush2.bf16.msra.mxu0 %v9498
    %10332 = vmatprep.subr.bf16.mxu0 0
    %10333 = vmatpush2.bf16.msra.mxu0 %v9493
    %10334 = vmatprep.subr.bf16.mxu0 0
    %10335 = vmatpush2.bf16.msra.mxu0 %v9488
    %10336 = vmatprep.subr.bf16.mxu0 0
    %10337 = vmatpush2.bf16.msra.mxu0 %v9483
    %10338 = vmatprep.subr.bf16.mxu0 0
    %10339 = vmatpush2.bf16.msra.mxu0 %v9478
    %10340 = vmatprep.subr.bf16.mxu0 0
    %10341 = vmatpush2.bf16.msra.mxu0 %v9473
    %10342 = vmatprep.subr.bf16.mxu0 0
    %10343 = vmatpush2.bf16.msra.mxu0 %v9468
    %10344 = vmatprep.mubr.bf16.mxu0 %v7853
    %10345 = vmatmul.mubr.bf16.gmra.mxu0 %v7852
    %v10346 = vpop.f32.mrf.mxu0
    %v10347 = vadd.f32 %v10307, %v10346
    %v10348 = vpop.f32.mrf.mxu0
    %v10349 = vpop.f32.mrf.mxu0
    %v10350 = vpop.f32.mrf.mxu0
    %10351 = vdwg.mxu0
    %10352 = vmatprep.subr.bf16.mxu0 0
    %10353 = vmatpush1.bf16.msra.mxu0 %v9543
    %10354 = vmatprep.subr.bf16.mxu0 0
    %10355 = vmatpush1.bf16.msra.mxu0 %v9538
    %10356 = vmatprep.subr.bf16.mxu0 0
    %10357 = vmatpush1.bf16.msra.mxu0 %v9533
    %10358 = vmatprep.subr.bf16.mxu0 0
    %10359 = vmatpush1.bf16.msra.mxu0 %v9528
    %10360 = vmatprep.subr.bf16.mxu0 0
    %10361 = vmatpush1.bf16.msra.mxu0 %v9523
    %10362 = vmatprep.subr.bf16.mxu0 0
    %10363 = vmatpush1.bf16.msra.mxu0 %v9518
    %10364 = vmatprep.subr.bf16.mxu0 0
    %10365 = vmatpush1.bf16.msra.mxu0 %v9513
    %10366 = vmatprep.subr.bf16.mxu0 0
    %10367 = vmatpush1.bf16.msra.mxu0 %v9508
    %10368 = vmatprep.subr.bf16.mxu0 0
    %10369 = vmatpush2.bf16.msra.mxu0 %v9583
    %10370 = vmatprep.subr.bf16.mxu0 0
    %10371 = vmatpush2.bf16.msra.mxu0 %v9578
    %10372 = vmatprep.subr.bf16.mxu0 0
    %10373 = vmatpush2.bf16.msra.mxu0 %v9573
    %10374 = vmatprep.subr.bf16.mxu0 0
    %10375 = vmatpush2.bf16.msra.mxu0 %v9568
    %10376 = vmatprep.subr.bf16.mxu0 0
    %10377 = vmatpush2.bf16.msra.mxu0 %v9563
    %10378 = vmatprep.subr.bf16.mxu0 0
    %10379 = vmatpush2.bf16.msra.mxu0 %v9558
    %10380 = vmatprep.subr.bf16.mxu0 0
    %10381 = vmatpush2.bf16.msra.mxu0 %v9553
    %10382 = vmatprep.subr.bf16.mxu0 0
    %10383 = vmatpush2.bf16.msra.mxu0 %v9548
    %10384 = vmatprep.mubr.bf16.mxu0 %v7855
    %10385 = vmatmul.mubr.bf16.gmra.mxu0 %v7854
    %v10386 = vpop.f32.mrf.mxu0
    %v10387 = vadd.f32 %v10347, %v10386
    %v10388 = vpop.f32.mrf.mxu0
    %v10389 = vpop.f32.mrf.mxu0
    %v10390 = vpop.f32.mrf.mxu0
    %10391 = vdwg.mxu0
    %v10392 = vld [vmem:[#allocation11] sm:$0xff]
    %v10393 = vld [vmem:[#allocation11 + $0x8] sm:$0xff]
    %v10394 = vld [vmem:[#allocation11 + $0x10] sm:$0xf]
    %v10395 = vmul.f32 %v10062, %v10062
    %v10396 = vmul.f32 %v10064, %v10064
    %v10397 = vmul.f32 %v10226, %v10226
    %v10398 = vmul.f32 %v10228, %v10228
    %v10399 = vmul.f32 %v10387, %v10387
    %v10405 = vrot.slane %v10395, 6
    %v10406 = vrot.slane %v10396, 6
    %v10407 = vrot.slane %v10397, 6
    %v10408 = vrot.slane %v10398, 6
    %v10409 = vrot.slane %v10399, 6
    %v10415 = vsel %vm3937, %v10062, %v10405
    %v10416 = vsel %vm3937, %v10064, %v10406
    %v10417 = vsel %vm3937, %v10226, %v10407
    %v10418 = vsel %vm3937, %v10228, %v10408
    %v10419 = vsel %vm3937, %v10387, %v10409
    %v10423 = vcombine.high %v10392, %v10392
    %v10424 = vcombine.high %v10393, %v10393
    %10427 = vmatprep.subr.mxu0 0.0
    %10428 = vmatpush1.xpose.msra.mxu0 0.0
    %10429 = vmatprep.subr.mxu0 0.0
    %10430 = vmatpush1.xpose.msra.mxu0 0.0
    %10431 = vmatprep.subr.mxu0 0.0
    %10432 = vmatpush1.xpose.msra.mxu0 0.0
    %10433 = vmatprep.subr.mxu0 0.0
    %10434 = vmatpush1.xpose.msra.mxu0 0.0
    %10435 = vmatprep.subr.mxu0 0.0
    %10436 = vmatpush1.xpose.msra.mxu0 0.0
    %10437 = vmatprep.subr.mxu0 0.0
    %10438 = vmatpush1.xpose.msra.mxu0 0.0
    %10439 = vmatprep.subr.mxu0 0.0
    %10440 = vmatpush1.xpose.msra.mxu0 0.0
    %10441 = vmatprep.subr.mxu0 0.0
    %10442 = vmatpush1.xpose.msra.mxu0 0.0
    %10443 = vmatprep.subr.mxu0 0.0
    %10444 = vmatpush1.xpose.msra.mxu0 0.0
    %10445 = vmatprep.subr.mxu0 0.0
    %10446 = vmatpush1.xpose.msra.mxu0 0.0
    %10447 = vmatprep.subr.mxu0 0.0
    %10448 = vmatpush1.xpose.msra.mxu0 0.0
    %10449 = vmatprep.subr.mxu0 0.0
    %10450 = vmatpush1.xpose.msra.mxu0 0.0
    %10451 = vmatprep.subr.mxu0 0.0
    %10452 = vmatpush1.xpose.msra.mxu0 0.0
    %10453 = vmatprep.subr.mxu0 0.0
    %10454 = vmatpush1.xpose.msra.mxu0 0.0
    %10455 = vmatprep.subr.mxu0 0.0
    %10456 = vmatpush1.xpose.msra.mxu0 0.0
    %v10457 = vand.u32 %v10423, 4294901760
    %10458 = vmatprep.subr.mxu0 %v10457
    %v10459 = vand.u32 %v10392, 4294901760
    %10460 = vmatpush1.xpose.msra.mxu0 %v10459
    %10461 = vmatprep.subr.mxu0 0.0
    %10462 = vmatpush2.xpose.msra.mxu0 0.0
    %10463 = vmatprep.subr.mxu0 0.0
    %10464 = vmatpush2.xpose.msra.mxu0 0.0
    %10465 = vmatprep.subr.mxu0 0.0
    %10466 = vmatpush2.xpose.msra.mxu0 0.0
    %10467 = vmatprep.subr.mxu0 0.0
    %10468 = vmatpush2.xpose.msra.mxu0 0.0
    %10469 = vmatprep.subr.mxu0 0.0
    %10470 = vmatpush2.xpose.msra.mxu0 0.0
    %10471 = vmatprep.subr.mxu0 0.0
    %10472 = vmatpush2.xpose.msra.mxu0 0.0
    %10473 = vmatprep.subr.mxu0 0.0
    %10474 = vmatpush2.xpose.msra.mxu0 0.0
    %10475 = vmatprep.subr.mxu0 0.0
    %10476 = vmatpush2.xpose.msra.mxu0 0.0
    %10477 = vmatprep.subr.mxu0 0.0
    %10478 = vmatpush2.xpose.msra.mxu0 0.0
    %10479 = vmatprep.subr.mxu0 0.0
    %10480 = vmatpush2.xpose.msra.mxu0 0.0
    %10481 = vmatprep.subr.mxu0 0.0
    %10482 = vmatpush2.xpose.msra.mxu0 0.0
    %10483 = vmatprep.subr.mxu0 0.0
    %10484 = vmatpush2.xpose.msra.mxu0 0.0
    %10485 = vmatprep.subr.mxu0 0.0
    %10486 = vmatpush2.xpose.msra.mxu0 0.0
    %10487 = vmatprep.subr.mxu0 0.0
    %10488 = vmatpush2.xpose.msra.mxu0 0.0
    %10489 = vmatprep.subr.mxu0 0.0
    %10490 = vmatpush2.xpose.msra.mxu0 0.0
    %10491 = vmatprep.subr.mxu0 0.0
    %10492 = vmatpush2.xpose.msra.mxu0 0.0
    %v10493 = vand.u32 %v10416, 4294901760
    %v10494 = vsub.f32 %v10416, %v10493
    %v10495 = vand.u32 %v10494, 4294901760
    %v10496 = vsub.f32 %v10494, %v10495
    %v10497 = vand.u32 %v10496, 4294901760
    %10498 = vmatprep.mubr.f32.mxu0 %v10497
    %v10499 = vand.u32 %v10415, 4294901760
    %v10500 = vsub.f32 %v10415, %v10499
    %v10501 = vand.u32 %v10500, 4294901760
    %v10502 = vsub.f32 %v10500, %v10501
    %v10503 = vand.u32 %v10502, 4294901760
    %10504 = vmatmul.mubr.f32.gmra.mxu0 %v10503
    %v10505 = vpop.f32.mrf.mxu0
    %v10506 = vadd.f32 0.0, %v10505
    %v10507 = vpop.f32.mrf.mxu0
    %10508 = vdwg.mxu0
    %10509 = vmatprep.subr.mxu0 0.0
    %10510 = vmatpush1.xpose.msra.mxu0 0.0
    %10511 = vmatprep.subr.mxu0 0.0
    %10512 = vmatpush1.xpose.msra.mxu0 0.0
    %10513 = vmatprep.subr.mxu0 0.0
    %10514 = vmatpush1.xpose.msra.mxu0 0.0
    %10515 = vmatprep.subr.mxu0 0.0
    %10516 = vmatpush1.xpose.msra.mxu0 0.0
    %10517 = vmatprep.subr.mxu0 0.0
    %10518 = vmatpush1.xpose.msra.mxu0 0.0
    %10519 = vmatprep.subr.mxu0 0.0
    %10520 = vmatpush1.xpose.msra.mxu0 0.0
    %10521 = vmatprep.subr.mxu0 0.0
    %10522 = vmatpush1.xpose.msra.mxu0 0.0
    %10523 = vmatprep.subr.mxu0 0.0
    %10524 = vmatpush1.xpose.msra.mxu0 0.0
    %10525 = vmatprep.subr.mxu0 0.0
    %10526 = vmatpush1.xpose.msra.mxu0 0.0
    %10527 = vmatprep.subr.mxu0 0.0
    %10528 = vmatpush1.xpose.msra.mxu0 0.0
    %10529 = vmatprep.subr.mxu0 0.0
    %10530 = vmatpush1.xpose.msra.mxu0 0.0
    %10531 = vmatprep.subr.mxu0 0.0
    %10532 = vmatpush1.xpose.msra.mxu0 0.0
    %10533 = vmatprep.subr.mxu0 0.0
    %10534 = vmatpush1.xpose.msra.mxu0 0.0
    %10535 = vmatprep.subr.mxu0 0.0
    %10536 = vmatpush1.xpose.msra.mxu0 0.0
    %10537 = vmatprep.subr.mxu0 0.0
    %10538 = vmatpush1.xpose.msra.mxu0 0.0
    %v10539 = vand.u32 %v10423, 4294901760
    %v10540 = vsub.f32 %v10423, %v10539
    %v10541 = vand.u32 %v10540, 4294901760
    %v10542 = vsub.f32 %v10540, %v10541
    %v10543 = vand.u32 %v10542, 4294901760
    %10544 = vmatprep.subr.mxu0 %v10543
    %v10545 = vand.u32 %v10392, 4294901760
    %v10546 = vsub.f32 %v10392, %v10545
    %v10547 = vand.u32 %v10546, 4294901760
    %v10548 = vsub.f32 %v10546, %v10547
    %v10549 = vand.u32 %v10548, 4294901760
    %10550 = vmatpush1.xpose.msra.mxu0 %v10549
    %10551 = vmatprep.subr.mxu0 0.0
    %10552 = vmatpush2.xpose.msra.mxu0 0.0
    %10553 = vmatprep.subr.mxu0 0.0
    %10554 = vmatpush2.xpose.msra.mxu0 0.0
    %10555 = vmatprep.subr.mxu0 0.0
    %10556 = vmatpush2.xpose.msra.mxu0 0.0
    %10557 = vmatprep.subr.mxu0 0.0
    %10558 = vmatpush2.xpose.msra.mxu0 0.0
    %10559 = vmatprep.subr.mxu0 0.0
    %10560 = vmatpush2.xpose.msra.mxu0 0.0
    %10561 = vmatprep.subr.mxu0 0.0
    %10562 = vmatpush2.xpose.msra.mxu0 0.0
    %10563 = vmatprep.subr.mxu0 0.0
    %10564 = vmatpush2.xpose.msra.mxu0 0.0
    %10565 = vmatprep.subr.mxu0 0.0
    %10566 = vmatpush2.xpose.msra.mxu0 0.0
    %10567 = vmatprep.subr.mxu0 0.0
    %10568 = vmatpush2.xpose.msra.mxu0 0.0
    %10569 = vmatprep.subr.mxu0 0.0
    %10570 = vmatpush2.xpose.msra.mxu0 0.0
    %10571 = vmatprep.subr.mxu0 0.0
    %10572 = vmatpush2.xpose.msra.mxu0 0.0
    %10573 = vmatprep.subr.mxu0 0.0
    %10574 = vmatpush2.xpose.msra.mxu0 0.0
    %10575 = vmatprep.subr.mxu0 0.0
    %10576 = vmatpush2.xpose.msra.mxu0 0.0
    %10577 = vmatprep.subr.mxu0 0.0
    %10578 = vmatpush2.xpose.msra.mxu0 0.0
    %10579 = vmatprep.subr.mxu0 0.0
    %10580 = vmatpush2.xpose.msra.mxu0 0.0
    %10581 = vmatprep.subr.mxu0 0.0
    %10582 = vmatpush2.xpose.msra.mxu0 0.0
    %v10583 = vand.u32 %v10416, 4294901760
    %10584 = vmatprep.mubr.f32.mxu0 %v10583
    %v10585 = vand.u32 %v10415, 4294901760
    %10586 = vmatmul.mubr.f32.gmra.mxu0 %v10585
    %v10587 = vpop.f32.mrf.mxu0
    %v10588 = vadd.f32 %v10506, %v10587
    %v10589 = vpop.f32.mrf.mxu0
    %10590 = vdwg.mxu0
    %10591 = vmatprep.subr.mxu0 0.0
    %10592 = vmatpush1.xpose.msra.mxu0 0.0
    %10593 = vmatprep.subr.mxu0 0.0
    %10594 = vmatpush1.xpose.msra.mxu0 0.0
    %10595 = vmatprep.subr.mxu0 0.0
    %10596 = vmatpush1.xpose.msra.mxu0 0.0
    %10597 = vmatprep.subr.mxu0 0.0
    %10598 = vmatpush1.xpose.msra.mxu0 0.0
    %10599 = vmatprep.subr.mxu0 0.0
    %10600 = vmatpush1.xpose.msra.mxu0 0.0
    %10601 = vmatprep.subr.mxu0 0.0
    %10602 = vmatpush1.xpose.msra.mxu0 0.0
    %10603 = vmatprep.subr.mxu0 0.0
    %10604 = vmatpush1.xpose.msra.mxu0 0.0
    %10605 = vmatprep.subr.mxu0 0.0
    %10606 = vmatpush1.xpose.msra.mxu0 0.0
    %10607 = vmatprep.subr.mxu0 0.0
    %10608 = vmatpush1.xpose.msra.mxu0 0.0
    %10609 = vmatprep.subr.mxu0 0.0
    %10610 = vmatpush1.xpose.msra.mxu0 0.0
    %10611 = vmatprep.subr.mxu0 0.0
    %10612 = vmatpush1.xpose.msra.mxu0 0.0
    %10613 = vmatprep.subr.mxu0 0.0
    %10614 = vmatpush1.xpose.msra.mxu0 0.0
    %10615 = vmatprep.subr.mxu0 0.0
    %10616 = vmatpush1.xpose.msra.mxu0 0.0
    %10617 = vmatprep.subr.mxu0 0.0
    %10618 = vmatpush1.xpose.msra.mxu0 0.0
    %10619 = vmatprep.subr.mxu0 0.0
    %10620 = vmatpush1.xpose.msra.mxu0 0.0
    %v10621 = vand.u32 %v10423, 4294901760
    %v10622 = vsub.f32 %v10423, %v10621
    %10623 = vmatprep.subr.mxu0 %v10622
    %v10624 = vand.u32 %v10392, 4294901760
    %v10625 = vsub.f32 %v10392, %v10624
    %10626 = vmatpush1.xpose.msra.mxu0 %v10625
    %10627 = vmatprep.subr.mxu0 0.0
    %10628 = vmatpush2.xpose.msra.mxu0 0.0
    %10629 = vmatprep.subr.mxu0 0.0
    %10630 = vmatpush2.xpose.msra.mxu0 0.0
    %10631 = vmatprep.subr.mxu0 0.0
    %10632 = vmatpush2.xpose.msra.mxu0 0.0
    %10633 = vmatprep.subr.mxu0 0.0
    %10634 = vmatpush2.xpose.msra.mxu0 0.0
    %10635 = vmatprep.subr.mxu0 0.0
    %10636 = vmatpush2.xpose.msra.mxu0 0.0
    %10637 = vmatprep.subr.mxu0 0.0
    %10638 = vmatpush2.xpose.msra.mxu0 0.0
    %10639 = vmatprep.subr.mxu0 0.0
    %10640 = vmatpush2.xpose.msra.mxu0 0.0
    %10641 = vmatprep.subr.mxu0 0.0
    %10642 = vmatpush2.xpose.msra.mxu0 0.0
    %10643 = vmatprep.subr.mxu0 0.0
    %10644 = vmatpush2.xpose.msra.mxu0 0.0
    %10645 = vmatprep.subr.mxu0 0.0
    %10646 = vmatpush2.xpose.msra.mxu0 0.0
    %10647 = vmatprep.subr.mxu0 0.0
    %10648 = vmatpush2.xpose.msra.mxu0 0.0
    %10649 = vmatprep.subr.mxu0 0.0
    %10650 = vmatpush2.xpose.msra.mxu0 0.0
    %10651 = vmatprep.subr.mxu0 0.0
    %10652 = vmatpush2.xpose.msra.mxu0 0.0
    %10653 = vmatprep.subr.mxu0 0.0
    %10654 = vmatpush2.xpose.msra.mxu0 0.0
    %10655 = vmatprep.subr.mxu0 0.0
    %10656 = vmatpush2.xpose.msra.mxu0 0.0
    %10657 = vmatprep.subr.mxu0 0.0
    %10658 = vmatpush2.xpose.msra.mxu0 0.0
    %v10659 = vand.u32 %v10416, 4294901760
    %v10660 = vsub.f32 %v10416, %v10659
    %10661 = vmatprep.mubr.f32.mxu0 %v10660
    %v10662 = vand.u32 %v10415, 4294901760
    %v10663 = vsub.f32 %v10415, %v10662
    %10664 = vmatmul.mubr.f32.gmra.mxu0 %v10663
    %v10665 = vpop.f32.mrf.mxu0
    %v10666 = vadd.f32 %v10588, %v10665
    %v10667 = vpop.f32.mrf.mxu0
    %10668 = vdwg.mxu0
    %10669 = vmatprep.subr.mxu0 0.0
    %10670 = vmatpush1.xpose.msra.mxu0 0.0
    %10671 = vmatprep.subr.mxu0 0.0
    %10672 = vmatpush1.xpose.msra.mxu0 0.0
    %10673 = vmatprep.subr.mxu0 0.0
    %10674 = vmatpush1.xpose.msra.mxu0 0.0
    %10675 = vmatprep.subr.mxu0 0.0
    %10676 = vmatpush1.xpose.msra.mxu0 0.0
    %10677 = vmatprep.subr.mxu0 0.0
    %10678 = vmatpush1.xpose.msra.mxu0 0.0
    %10679 = vmatprep.subr.mxu0 0.0
    %10680 = vmatpush1.xpose.msra.mxu0 0.0
    %10681 = vmatprep.subr.mxu0 0.0
    %10682 = vmatpush1.xpose.msra.mxu0 0.0
    %10683 = vmatprep.subr.mxu0 0.0
    %10684 = vmatpush1.xpose.msra.mxu0 0.0
    %10685 = vmatprep.subr.mxu0 0.0
    %10686 = vmatpush1.xpose.msra.mxu0 0.0
    %10687 = vmatprep.subr.mxu0 0.0
    %10688 = vmatpush1.xpose.msra.mxu0 0.0
    %10689 = vmatprep.subr.mxu0 0.0
    %10690 = vmatpush1.xpose.msra.mxu0 0.0
    %10691 = vmatprep.subr.mxu0 0.0
    %10692 = vmatpush1.xpose.msra.mxu0 0.0
    %10693 = vmatprep.subr.mxu0 0.0
    %10694 = vmatpush1.xpose.msra.mxu0 0.0
    %10695 = vmatprep.subr.mxu0 0.0
    %10696 = vmatpush1.xpose.msra.mxu0 0.0
    %10697 = vmatprep.subr.mxu0 0.0
    %10698 = vmatpush1.xpose.msra.mxu0 0.0
    %v10699 = vand.u32 %v10423, 4294901760
    %10700 = vmatprep.subr.mxu0 %v10699
    %v10701 = vand.u32 %v10392, 4294901760
    %10702 = vmatpush1.xpose.msra.mxu0 %v10701
    %10703 = vmatprep.subr.mxu0 0.0
    %10704 = vmatpush2.xpose.msra.mxu0 0.0
    %10705 = vmatprep.subr.mxu0 0.0
    %10706 = vmatpush2.xpose.msra.mxu0 0.0
    %10707 = vmatprep.subr.mxu0 0.0
    %10708 = vmatpush2.xpose.msra.mxu0 0.0
    %10709 = vmatprep.subr.mxu0 0.0
    %10710 = vmatpush2.xpose.msra.mxu0 0.0
    %10711 = vmatprep.subr.mxu0 0.0
    %10712 = vmatpush2.xpose.msra.mxu0 0.0
    %10713 = vmatprep.subr.mxu0 0.0
    %10714 = vmatpush2.xpose.msra.mxu0 0.0
    %10715 = vmatprep.subr.mxu0 0.0
    %10716 = vmatpush2.xpose.msra.mxu0 0.0
    %10717 = vmatprep.subr.mxu0 0.0
    %10718 = vmatpush2.xpose.msra.mxu0 0.0
    %10719 = vmatprep.subr.mxu0 0.0
    %10720 = vmatpush2.xpose.msra.mxu0 0.0
    %10721 = vmatprep.subr.mxu0 0.0
    %10722 = vmatpush2.xpose.msra.mxu0 0.0
    %10723 = vmatprep.subr.mxu0 0.0
    %10724 = vmatpush2.xpose.msra.mxu0 0.0
    %10725 = vmatprep.subr.mxu0 0.0
    %10726 = vmatpush2.xpose.msra.mxu0 0.0
    %10727 = vmatprep.subr.mxu0 0.0
    %10728 = vmatpush2.xpose.msra.mxu0 0.0
    %10729 = vmatprep.subr.mxu0 0.0
    %10730 = vmatpush2.xpose.msra.mxu0 0.0
    %10731 = vmatprep.subr.mxu0 0.0
    %10732 = vmatpush2.xpose.msra.mxu0 0.0
    %10733 = vmatprep.subr.mxu0 0.0
    %10734 = vmatpush2.xpose.msra.mxu0 0.0
    %v10735 = vand.u32 %v10416, 4294901760
    %v10736 = vsub.f32 %v10416, %v10735
    %v10737 = vand.u32 %v10736, 4294901760
    %10738 = vmatprep.mubr.f32.mxu0 %v10737
    %v10739 = vand.u32 %v10415, 4294901760
    %v10740 = vsub.f32 %v10415, %v10739
    %v10741 = vand.u32 %v10740, 4294901760
    %10742 = vmatmul.mubr.f32.gmra.mxu0 %v10741
    %v10743 = vpop.f32.mrf.mxu0
    %v10744 = vadd.f32 %v10666, %v10743
    %v10745 = vpop.f32.mrf.mxu0
    %10746 = vdwg.mxu0
    %10747 = vmatprep.subr.mxu0 0.0
    %10748 = vmatpush1.xpose.msra.mxu0 0.0
    %10749 = vmatprep.subr.mxu0 0.0
    %10750 = vmatpush1.xpose.msra.mxu0 0.0
    %10751 = vmatprep.subr.mxu0 0.0
    %10752 = vmatpush1.xpose.msra.mxu0 0.0
    %10753 = vmatprep.subr.mxu0 0.0
    %10754 = vmatpush1.xpose.msra.mxu0 0.0
    %10755 = vmatprep.subr.mxu0 0.0
    %10756 = vmatpush1.xpose.msra.mxu0 0.0
    %10757 = vmatprep.subr.mxu0 0.0
    %10758 = vmatpush1.xpose.msra.mxu0 0.0
    %10759 = vmatprep.subr.mxu0 0.0
    %10760 = vmatpush1.xpose.msra.mxu0 0.0
    %10761 = vmatprep.subr.mxu0 0.0
    %10762 = vmatpush1.xpose.msra.mxu0 0.0
    %10763 = vmatprep.subr.mxu0 0.0
    %10764 = vmatpush1.xpose.msra.mxu0 0.0
    %10765 = vmatprep.subr.mxu0 0.0
    %10766 = vmatpush1.xpose.msra.mxu0 0.0
    %10767 = vmatprep.subr.mxu0 0.0
    %10768 = vmatpush1.xpose.msra.mxu0 0.0
    %10769 = vmatprep.subr.mxu0 0.0
    %10770 = vmatpush1.xpose.msra.mxu0 0.0
    %10771 = vmatprep.subr.mxu0 0.0
    %10772 = vmatpush1.xpose.msra.mxu0 0.0
    %10773 = vmatprep.subr.mxu0 0.0
    %10774 = vmatpush1.xpose.msra.mxu0 0.0
    %10775 = vmatprep.subr.mxu0 0.0
    %10776 = vmatpush1.xpose.msra.mxu0 0.0
    %v10777 = vand.u32 %v10423, 4294901760
    %v10778 = vsub.f32 %v10423, %v10777
    %v10779 = vand.u32 %v10778, 4294901760
    %10780 = vmatprep.subr.mxu0 %v10779
    %v10781 = vand.u32 %v10392, 4294901760
    %v10782 = vsub.f32 %v10392, %v10781
    %v10783 = vand.u32 %v10782, 4294901760
    %10784 = vmatpush1.xpose.msra.mxu0 %v10783
    %10785 = vmatprep.subr.mxu0 0.0
    %10786 = vmatpush2.xpose.msra.mxu0 0.0
    %10787 = vmatprep.subr.mxu0 0.0
    %10788 = vmatpush2.xpose.msra.mxu0 0.0
    %10789 = vmatprep.subr.mxu0 0.0
    %10790 = vmatpush2.xpose.msra.mxu0 0.0
    %10791 = vmatprep.subr.mxu0 0.0
    %10792 = vmatpush2.xpose.msra.mxu0 0.0
    %10793 = vmatprep.subr.mxu0 0.0
    %10794 = vmatpush2.xpose.msra.mxu0 0.0
    %10795 = vmatprep.subr.mxu0 0.0
    %10796 = vmatpush2.xpose.msra.mxu0 0.0
    %10797 = vmatprep.subr.mxu0 0.0
    %10798 = vmatpush2.xpose.msra.mxu0 0.0
    %10799 = vmatprep.subr.mxu0 0.0
    %10800 = vmatpush2.xpose.msra.mxu0 0.0
    %10801 = vmatprep.subr.mxu0 0.0
    %10802 = vmatpush2.xpose.msra.mxu0 0.0
    %10803 = vmatprep.subr.mxu0 0.0
    %10804 = vmatpush2.xpose.msra.mxu0 0.0
    %10805 = vmatprep.subr.mxu0 0.0
    %10806 = vmatpush2.xpose.msra.mxu0 0.0
    %10807 = vmatprep.subr.mxu0 0.0
    %10808 = vmatpush2.xpose.msra.mxu0 0.0
    %10809 = vmatprep.subr.mxu0 0.0
    %10810 = vmatpush2.xpose.msra.mxu0 0.0
    %10811 = vmatprep.subr.mxu0 0.0
    %10812 = vmatpush2.xpose.msra.mxu0 0.0
    %10813 = vmatprep.subr.mxu0 0.0
    %10814 = vmatpush2.xpose.msra.mxu0 0.0
    %10815 = vmatprep.subr.mxu0 0.0
    %10816 = vmatpush2.xpose.msra.mxu0 0.0
    %v10817 = vand.u32 %v10416, 4294901760
    %10818 = vmatprep.mubr.f32.mxu0 %v10817
    %v10819 = vand.u32 %v10415, 4294901760
    %10820 = vmatmul.mubr.f32.gmra.mxu0 %v10819
    %v10821 = vpop.f32.mrf.mxu0
    %v10822 = vadd.f32 %v10744, %v10821
    %v10823 = vpop.f32.mrf.mxu0
    %10824 = vdwg.mxu0
    %10825 = vmatprep.subr.mxu0 0.0
    %10826 = vmatpush1.xpose.msra.mxu0 0.0
    %10827 = vmatprep.subr.mxu0 0.0
    %10828 = vmatpush1.xpose.msra.mxu0 0.0
    %10829 = vmatprep.subr.mxu0 0.0
    %10830 = vmatpush1.xpose.msra.mxu0 0.0
    %10831 = vmatprep.subr.mxu0 0.0
    %10832 = vmatpush1.xpose.msra.mxu0 0.0
    %10833 = vmatprep.subr.mxu0 0.0
    %10834 = vmatpush1.xpose.msra.mxu0 0.0
    %10835 = vmatprep.subr.mxu0 0.0
    %10836 = vmatpush1.xpose.msra.mxu0 0.0
    %10837 = vmatprep.subr.mxu0 0.0
    %10838 = vmatpush1.xpose.msra.mxu0 0.0
    %10839 = vmatprep.subr.mxu0 0.0
    %10840 = vmatpush1.xpose.msra.mxu0 0.0
    %10841 = vmatprep.subr.mxu0 0.0
    %10842 = vmatpush1.xpose.msra.mxu0 0.0
    %10843 = vmatprep.subr.mxu0 0.0
    %10844 = vmatpush1.xpose.msra.mxu0 0.0
    %10845 = vmatprep.subr.mxu0 0.0
    %10846 = vmatpush1.xpose.msra.mxu0 0.0
    %10847 = vmatprep.subr.mxu0 0.0
    %10848 = vmatpush1.xpose.msra.mxu0 0.0
    %10849 = vmatprep.subr.mxu0 0.0
    %10850 = vmatpush1.xpose.msra.mxu0 0.0
    %10851 = vmatprep.subr.mxu0 0.0
    %10852 = vmatpush1.xpose.msra.mxu0 0.0
    %10853 = vmatprep.subr.mxu0 0.0
    %10854 = vmatpush1.xpose.msra.mxu0 0.0
    %v10855 = vand.u32 %v10423, 4294901760
    %10856 = vmatprep.subr.mxu0 %v10855
    %v10857 = vand.u32 %v10392, 4294901760
    %10858 = vmatpush1.xpose.msra.mxu0 %v10857
    %10859 = vmatprep.subr.mxu0 0.0
    %10860 = vmatpush2.xpose.msra.mxu0 0.0
    %10861 = vmatprep.subr.mxu0 0.0
    %10862 = vmatpush2.xpose.msra.mxu0 0.0
    %10863 = vmatprep.subr.mxu0 0.0
    %10864 = vmatpush2.xpose.msra.mxu0 0.0
    %10865 = vmatprep.subr.mxu0 0.0
    %10866 = vmatpush2.xpose.msra.mxu0 0.0
    %10867 = vmatprep.subr.mxu0 0.0
    %10868 = vmatpush2.xpose.msra.mxu0 0.0
    %10869 = vmatprep.subr.mxu0 0.0
    %10870 = vmatpush2.xpose.msra.mxu0 0.0
    %10871 = vmatprep.subr.mxu0 0.0
    %10872 = vmatpush2.xpose.msra.mxu0 0.0
    %10873 = vmatprep.subr.mxu0 0.0
    %10874 = vmatpush2.xpose.msra.mxu0 0.0
    %10875 = vmatprep.subr.mxu0 0.0
    %10876 = vmatpush2.xpose.msra.mxu0 0.0
    %10877 = vmatprep.subr.mxu0 0.0
    %10878 = vmatpush2.xpose.msra.mxu0 0.0
    %10879 = vmatprep.subr.mxu0 0.0
    %10880 = vmatpush2.xpose.msra.mxu0 0.0
    %10881 = vmatprep.subr.mxu0 0.0
    %10882 = vmatpush2.xpose.msra.mxu0 0.0
    %10883 = vmatprep.subr.mxu0 0.0
    %10884 = vmatpush2.xpose.msra.mxu0 0.0
    %10885 = vmatprep.subr.mxu0 0.0
    %10886 = vmatpush2.xpose.msra.mxu0 0.0
    %10887 = vmatprep.subr.mxu0 0.0
    %10888 = vmatpush2.xpose.msra.mxu0 0.0
    %10889 = vmatprep.subr.mxu0 0.0
    %10890 = vmatpush2.xpose.msra.mxu0 0.0
    %v10891 = vand.u32 %v10416, 4294901760
    %10892 = vmatprep.mubr.f32.mxu0 %v10891
    %v10893 = vand.u32 %v10415, 4294901760
    %10894 = vmatmul.mubr.f32.gmra.mxu0 %v10893
    %v10895 = vpop.f32.mrf.mxu0
    %v10896 = vadd.f32 %v10822, %v10895
    %v10897 = vpop.f32.mrf.mxu0
    %10898 = vdwg.mxu0
    %10899 = vmatprep.subr.mxu0 0.0
    %10900 = vmatpush1.xpose.msra.mxu0 0.0
    %10901 = vmatprep.subr.mxu0 0.0
    %10902 = vmatpush1.xpose.msra.mxu0 0.0
    %10903 = vmatprep.subr.mxu0 0.0
    %10904 = vmatpush1.xpose.msra.mxu0 0.0
    %10905 = vmatprep.subr.mxu0 0.0
    %10906 = vmatpush1.xpose.msra.mxu0 0.0
    %10907 = vmatprep.subr.mxu0 0.0
    %10908 = vmatpush1.xpose.msra.mxu0 0.0
    %10909 = vmatprep.subr.mxu0 0.0
    %10910 = vmatpush1.xpose.msra.mxu0 0.0
    %10911 = vmatprep.subr.mxu0 0.0
    %10912 = vmatpush1.xpose.msra.mxu0 0.0
    %10913 = vmatprep.subr.mxu0 0.0
    %10914 = vmatpush1.xpose.msra.mxu0 0.0
    %10915 = vmatprep.subr.mxu0 0.0
    %10916 = vmatpush1.xpose.msra.mxu0 0.0
    %10917 = vmatprep.subr.mxu0 0.0
    %10918 = vmatpush1.xpose.msra.mxu0 0.0
    %10919 = vmatprep.subr.mxu0 0.0
    %10920 = vmatpush1.xpose.msra.mxu0 0.0
    %10921 = vmatprep.subr.mxu0 0.0
    %10922 = vmatpush1.xpose.msra.mxu0 0.0
    %10923 = vmatprep.subr.mxu0 0.0
    %10924 = vmatpush1.xpose.msra.mxu0 0.0
    %10925 = vmatprep.subr.mxu0 0.0
    %10926 = vmatpush1.xpose.msra.mxu0 0.0
    %10927 = vmatprep.subr.mxu0 0.0
    %10928 = vmatpush1.xpose.msra.mxu0 0.0
    %v10929 = vand.u32 %v10424, 4294901760
    %10930 = vmatprep.subr.mxu0 %v10929
    %v10931 = vand.u32 %v10393, 4294901760
    %10932 = vmatpush1.xpose.msra.mxu0 %v10931
    %10933 = vmatprep.subr.mxu0 0.0
    %10934 = vmatpush2.xpose.msra.mxu0 0.0
    %10935 = vmatprep.subr.mxu0 0.0
    %10936 = vmatpush2.xpose.msra.mxu0 0.0
    %10937 = vmatprep.subr.mxu0 0.0
    %10938 = vmatpush2.xpose.msra.mxu0 0.0
    %10939 = vmatprep.subr.mxu0 0.0
    %10940 = vmatpush2.xpose.msra.mxu0 0.0
    %10941 = vmatprep.subr.mxu0 0.0
    %10942 = vmatpush2.xpose.msra.mxu0 0.0
    %10943 = vmatprep.subr.mxu0 0.0
    %10944 = vmatpush2.xpose.msra.mxu0 0.0
    %10945 = vmatprep.subr.mxu0 0.0
    %10946 = vmatpush2.xpose.msra.mxu0 0.0
    %10947 = vmatprep.subr.mxu0 0.0
    %10948 = vmatpush2.xpose.msra.mxu0 0.0
    %10949 = vmatprep.subr.mxu0 0.0
    %10950 = vmatpush2.xpose.msra.mxu0 0.0
    %10951 = vmatprep.subr.mxu0 0.0
    %10952 = vmatpush2.xpose.msra.mxu0 0.0
    %10953 = vmatprep.subr.mxu0 0.0
    %10954 = vmatpush2.xpose.msra.mxu0 0.0
    %10955 = vmatprep.subr.mxu0 0.0
    %10956 = vmatpush2.xpose.msra.mxu0 0.0
    %10957 = vmatprep.subr.mxu0 0.0
    %10958 = vmatpush2.xpose.msra.mxu0 0.0
    %10959 = vmatprep.subr.mxu0 0.0
    %10960 = vmatpush2.xpose.msra.mxu0 0.0
    %10961 = vmatprep.subr.mxu0 0.0
    %10962 = vmatpush2.xpose.msra.mxu0 0.0
    %10963 = vmatprep.subr.mxu0 0.0
    %10964 = vmatpush2.xpose.msra.mxu0 0.0
    %v10965 = vand.u32 %v10418, 4294901760
    %v10966 = vsub.f32 %v10418, %v10965
    %v10967 = vand.u32 %v10966, 4294901760
    %v10968 = vsub.f32 %v10966, %v10967
    %v10969 = vand.u32 %v10968, 4294901760
    %10970 = vmatprep.mubr.f32.mxu0 %v10969
    %v10971 = vand.u32 %v10417, 4294901760
    %v10972 = vsub.f32 %v10417, %v10971
    %v10973 = vand.u32 %v10972, 4294901760
    %v10974 = vsub.f32 %v10972, %v10973
    %v10975 = vand.u32 %v10974, 4294901760
    %10976 = vmatmul.mubr.f32.gmra.mxu0 %v10975
    %v10977 = vpop.f32.mrf.mxu0
    %v10978 = vadd.f32 %v10896, %v10977
    %v10979 = vpop.f32.mrf.mxu0
    %10980 = vdwg.mxu0
    %10981 = vmatprep.subr.mxu0 0.0
    %10982 = vmatpush1.xpose.msra.mxu0 0.0
    %10983 = vmatprep.subr.mxu0 0.0
    %10984 = vmatpush1.xpose.msra.mxu0 0.0
    %10985 = vmatprep.subr.mxu0 0.0
    %10986 = vmatpush1.xpose.msra.mxu0 0.0
    %10987 = vmatprep.subr.mxu0 0.0
    %10988 = vmatpush1.xpose.msra.mxu0 0.0
    %10989 = vmatprep.subr.mxu0 0.0
    %10990 = vmatpush1.xpose.msra.mxu0 0.0
    %10991 = vmatprep.subr.mxu0 0.0
    %10992 = vmatpush1.xpose.msra.mxu0 0.0
    %10993 = vmatprep.subr.mxu0 0.0
    %10994 = vmatpush1.xpose.msra.mxu0 0.0
    %10995 = vmatprep.subr.mxu0 0.0
    %10996 = vmatpush1.xpose.msra.mxu0 0.0
    %10997 = vmatprep.subr.mxu0 0.0
    %10998 = vmatpush1.xpose.msra.mxu0 0.0
    %10999 = vmatprep.subr.mxu0 0.0
    %11000 = vmatpush1.xpose.msra.mxu0 0.0
    %11001 = vmatprep.subr.mxu0 0.0
    %11002 = vmatpush1.xpose.msra.mxu0 0.0
    %11003 = vmatprep.subr.mxu0 0.0
    %11004 = vmatpush1.xpose.msra.mxu0 0.0
    %11005 = vmatprep.subr.mxu0 0.0
    %11006 = vmatpush1.xpose.msra.mxu0 0.0
    %11007 = vmatprep.subr.mxu0 0.0
    %11008 = vmatpush1.xpose.msra.mxu0 0.0
    %11009 = vmatprep.subr.mxu0 0.0
    %11010 = vmatpush1.xpose.msra.mxu0 0.0
    %v11011 = vand.u32 %v10424, 4294901760
    %v11012 = vsub.f32 %v10424, %v11011
    %v11013 = vand.u32 %v11012, 4294901760
    %v11014 = vsub.f32 %v11012, %v11013
    %v11015 = vand.u32 %v11014, 4294901760
    %11016 = vmatprep.subr.mxu0 %v11015
    %v11017 = vand.u32 %v10393, 4294901760
    %v11018 = vsub.f32 %v10393, %v11017
    %v11019 = vand.u32 %v11018, 4294901760
    %v11020 = vsub.f32 %v11018, %v11019
    %v11021 = vand.u32 %v11020, 4294901760
    %11022 = vmatpush1.xpose.msra.mxu0 %v11021
    %11023 = vmatprep.subr.mxu0 0.0
    %11024 = vmatpush2.xpose.msra.mxu0 0.0
    %11025 = vmatprep.subr.mxu0 0.0
    %11026 = vmatpush2.xpose.msra.mxu0 0.0
    %11027 = vmatprep.subr.mxu0 0.0
    %11028 = vmatpush2.xpose.msra.mxu0 0.0
    %11029 = vmatprep.subr.mxu0 0.0
    %11030 = vmatpush2.xpose.msra.mxu0 0.0
    %11031 = vmatprep.subr.mxu0 0.0
    %11032 = vmatpush2.xpose.msra.mxu0 0.0
    %11033 = vmatprep.subr.mxu0 0.0
    %11034 = vmatpush2.xpose.msra.mxu0 0.0
    %11035 = vmatprep.subr.mxu0 0.0
    %11036 = vmatpush2.xpose.msra.mxu0 0.0
    %11037 = vmatprep.subr.mxu0 0.0
    %11038 = vmatpush2.xpose.msra.mxu0 0.0
    %11039 = vmatprep.subr.mxu0 0.0
    %11040 = vmatpush2.xpose.msra.mxu0 0.0
    %11041 = vmatprep.subr.mxu0 0.0
    %11042 = vmatpush2.xpose.msra.mxu0 0.0
    %11043 = vmatprep.subr.mxu0 0.0
    %11044 = vmatpush2.xpose.msra.mxu0 0.0
    %11045 = vmatprep.subr.mxu0 0.0
    %11046 = vmatpush2.xpose.msra.mxu0 0.0
    %11047 = vmatprep.subr.mxu0 0.0
    %11048 = vmatpush2.xpose.msra.mxu0 0.0
    %11049 = vmatprep.subr.mxu0 0.0
    %11050 = vmatpush2.xpose.msra.mxu0 0.0
    %11051 = vmatprep.subr.mxu0 0.0
    %11052 = vmatpush2.xpose.msra.mxu0 0.0
    %11053 = vmatprep.subr.mxu0 0.0
    %11054 = vmatpush2.xpose.msra.mxu0 0.0
    %v11055 = vand.u32 %v10418, 4294901760
    %11056 = vmatprep.mubr.f32.mxu0 %v11055
    %v11057 = vand.u32 %v10417, 4294901760
    %11058 = vmatmul.mubr.f32.gmra.mxu0 %v11057
    %v11059 = vpop.f32.mrf.mxu0
    %v11060 = vadd.f32 %v10978, %v11059
    %v11061 = vpop.f32.mrf.mxu0
    %11062 = vdwg.mxu0
    %11063 = vmatprep.subr.mxu0 0.0
    %11064 = vmatpush1.xpose.msra.mxu0 0.0
    %11065 = vmatprep.subr.mxu0 0.0
    %11066 = vmatpush1.xpose.msra.mxu0 0.0
    %11067 = vmatprep.subr.mxu0 0.0
    %11068 = vmatpush1.xpose.msra.mxu0 0.0
    %11069 = vmatprep.subr.mxu0 0.0
    %11070 = vmatpush1.xpose.msra.mxu0 0.0
    %11071 = vmatprep.subr.mxu0 0.0
    %11072 = vmatpush1.xpose.msra.mxu0 0.0
    %11073 = vmatprep.subr.mxu0 0.0
    %11074 = vmatpush1.xpose.msra.mxu0 0.0
    %11075 = vmatprep.subr.mxu0 0.0
    %11076 = vmatpush1.xpose.msra.mxu0 0.0
    %11077 = vmatprep.subr.mxu0 0.0
    %11078 = vmatpush1.xpose.msra.mxu0 0.0
    %11079 = vmatprep.subr.mxu0 0.0
    %11080 = vmatpush1.xpose.msra.mxu0 0.0
    %11081 = vmatprep.subr.mxu0 0.0
    %11082 = vmatpush1.xpose.msra.mxu0 0.0
    %11083 = vmatprep.subr.mxu0 0.0
    %11084 = vmatpush1.xpose.msra.mxu0 0.0
    %11085 = vmatprep.subr.mxu0 0.0
    %11086 = vmatpush1.xpose.msra.mxu0 0.0
    %11087 = vmatprep.subr.mxu0 0.0
    %11088 = vmatpush1.xpose.msra.mxu0 0.0
    %11089 = vmatprep.subr.mxu0 0.0
    %11090 = vmatpush1.xpose.msra.mxu0 0.0
    %11091 = vmatprep.subr.mxu0 0.0
    %11092 = vmatpush1.xpose.msra.mxu0 0.0
    %v11093 = vand.u32 %v10424, 4294901760
    %v11094 = vsub.f32 %v10424, %v11093
    %11095 = vmatprep.subr.mxu0 %v11094
    %v11096 = vand.u32 %v10393, 4294901760
    %v11097 = vsub.f32 %v10393, %v11096
    %11098 = vmatpush1.xpose.msra.mxu0 %v11097
    %11099 = vmatprep.subr.mxu0 0.0
    %11100 = vmatpush2.xpose.msra.mxu0 0.0
    %11101 = vmatprep.subr.mxu0 0.0
    %11102 = vmatpush2.xpose.msra.mxu0 0.0
    %11103 = vmatprep.subr.mxu0 0.0
    %11104 = vmatpush2.xpose.msra.mxu0 0.0
    %11105 = vmatprep.subr.mxu0 0.0
    %11106 = vmatpush2.xpose.msra.mxu0 0.0
    %11107 = vmatprep.subr.mxu0 0.0
    %11108 = vmatpush2.xpose.msra.mxu0 0.0
    %11109 = vmatprep.subr.mxu0 0.0
    %11110 = vmatpush2.xpose.msra.mxu0 0.0
    %11111 = vmatprep.subr.mxu0 0.0
    %11112 = vmatpush2.xpose.msra.mxu0 0.0
    %11113 = vmatprep.subr.mxu0 0.0
    %11114 = vmatpush2.xpose.msra.mxu0 0.0
    %11115 = vmatprep.subr.mxu0 0.0
    %11116 = vmatpush2.xpose.msra.mxu0 0.0
    %11117 = vmatprep.subr.mxu0 0.0
    %11118 = vmatpush2.xpose.msra.mxu0 0.0
    %11119 = vmatprep.subr.mxu0 0.0
    %11120 = vmatpush2.xpose.msra.mxu0 0.0
    %11121 = vmatprep.subr.mxu0 0.0
    %11122 = vmatpush2.xpose.msra.mxu0 0.0
    %11123 = vmatprep.subr.mxu0 0.0
    %11124 = vmatpush2.xpose.msra.mxu0 0.0
    %11125 = vmatprep.subr.mxu0 0.0
    %11126 = vmatpush2.xpose.msra.mxu0 0.0
    %11127 = vmatprep.subr.mxu0 0.0
    %11128 = vmatpush2.xpose.msra.mxu0 0.0
    %11129 = vmatprep.subr.mxu0 0.0
    %11130 = vmatpush2.xpose.msra.mxu0 0.0
    %v11131 = vand.u32 %v10418, 4294901760
    %v11132 = vsub.f32 %v10418, %v11131
    %11133 = vmatprep.mubr.f32.mxu0 %v11132
    %v11134 = vand.u32 %v10417, 4294901760
    %v11135 = vsub.f32 %v10417, %v11134
    %11136 = vmatmul.mubr.f32.gmra.mxu0 %v11135
    %v11137 = vpop.f32.mrf.mxu0
    %v11138 = vadd.f32 %v11060, %v11137
    %v11139 = vpop.f32.mrf.mxu0
    %11140 = vdwg.mxu0
    %11141 = vmatprep.subr.mxu0 0.0
    %11142 = vmatpush1.xpose.msra.mxu0 0.0
    %11143 = vmatprep.subr.mxu0 0.0
    %11144 = vmatpush1.xpose.msra.mxu0 0.0
    %11145 = vmatprep.subr.mxu0 0.0
    %11146 = vmatpush1.xpose.msra.mxu0 0.0
    %11147 = vmatprep.subr.mxu0 0.0
    %11148 = vmatpush1.xpose.msra.mxu0 0.0
    %11149 = vmatprep.subr.mxu0 0.0
    %11150 = vmatpush1.xpose.msra.mxu0 0.0
    %11151 = vmatprep.subr.mxu0 0.0
    %11152 = vmatpush1.xpose.msra.mxu0 0.0
    %11153 = vmatprep.subr.mxu0 0.0
    %11154 = vmatpush1.xpose.msra.mxu0 0.0
    %11155 = vmatprep.subr.mxu0 0.0
    %11156 = vmatpush1.xpose.msra.mxu0 0.0
    %11157 = vmatprep.subr.mxu0 0.0
    %11158 = vmatpush1.xpose.msra.mxu0 0.0
    %11159 = vmatprep.subr.mxu0 0.0
    %11160 = vmatpush1.xpose.msra.mxu0 0.0
    %11161 = vmatprep.subr.mxu0 0.0
    %11162 = vmatpush1.xpose.msra.mxu0 0.0
    %11163 = vmatprep.subr.mxu0 0.0
    %11164 = vmatpush1.xpose.msra.mxu0 0.0
    %11165 = vmatprep.subr.mxu0 0.0
    %11166 = vmatpush1.xpose.msra.mxu0 0.0
    %11167 = vmatprep.subr.mxu0 0.0
    %11168 = vmatpush1.xpose.msra.mxu0 0.0
    %11169 = vmatprep.subr.mxu0 0.0
    %11170 = vmatpush1.xpose.msra.mxu0 0.0
    %v11171 = vand.u32 %v10424, 4294901760
    %11172 = vmatprep.subr.mxu0 %v11171
    %v11173 = vand.u32 %v10393, 4294901760
    %11174 = vmatpush1.xpose.msra.mxu0 %v11173
    %11175 = vmatprep.subr.mxu0 0.0
    %11176 = vmatpush2.xpose.msra.mxu0 0.0
    %11177 = vmatprep.subr.mxu0 0.0
    %11178 = vmatpush2.xpose.msra.mxu0 0.0
    %11179 = vmatprep.subr.mxu0 0.0
    %11180 = vmatpush2.xpose.msra.mxu0 0.0
    %11181 = vmatprep.subr.mxu0 0.0
    %11182 = vmatpush2.xpose.msra.mxu0 0.0
    %11183 = vmatprep.subr.mxu0 0.0
    %11184 = vmatpush2.xpose.msra.mxu0 0.0
    %11185 = vmatprep.subr.mxu0 0.0
    %11186 = vmatpush2.xpose.msra.mxu0 0.0
    %11187 = vmatprep.subr.mxu0 0.0
    %11188 = vmatpush2.xpose.msra.mxu0 0.0
    %11189 = vmatprep.subr.mxu0 0.0
    %11190 = vmatpush2.xpose.msra.mxu0 0.0
    %11191 = vmatprep.subr.mxu0 0.0
    %11192 = vmatpush2.xpose.msra.mxu0 0.0
    %11193 = vmatprep.subr.mxu0 0.0
    %11194 = vmatpush2.xpose.msra.mxu0 0.0
    %11195 = vmatprep.subr.mxu0 0.0
    %11196 = vmatpush2.xpose.msra.mxu0 0.0
    %11197 = vmatprep.subr.mxu0 0.0
    %11198 = vmatpush2.xpose.msra.mxu0 0.0
    %11199 = vmatprep.subr.mxu0 0.0
    %11200 = vmatpush2.xpose.msra.mxu0 0.0
    %11201 = vmatprep.subr.mxu0 0.0
    %11202 = vmatpush2.xpose.msra.mxu0 0.0
    %11203 = vmatprep.subr.mxu0 0.0
    %11204 = vmatpush2.xpose.msra.mxu0 0.0
    %11205 = vmatprep.subr.mxu0 0.0
    %11206 = vmatpush2.xpose.msra.mxu0 0.0
    %v11207 = vand.u32 %v10418, 4294901760
    %v11208 = vsub.f32 %v10418, %v11207
    %v11209 = vand.u32 %v11208, 4294901760
    %11210 = vmatprep.mubr.f32.mxu0 %v11209
    %v11211 = vand.u32 %v10417, 4294901760
    %v11212 = vsub.f32 %v10417, %v11211
    %v11213 = vand.u32 %v11212, 4294901760
    %11214 = vmatmul.mubr.f32.gmra.mxu0 %v11213
    %v11215 = vpop.f32.mrf.mxu0
    %v11216 = vadd.f32 %v11138, %v11215
    %v11217 = vpop.f32.mrf.mxu0
    %11218 = vdwg.mxu0
    %11219 = vmatprep.subr.mxu0 0.0
    %11220 = vmatpush1.xpose.msra.mxu0 0.0
    %11221 = vmatprep.subr.mxu0 0.0
    %11222 = vmatpush1.xpose.msra.mxu0 0.0
    %11223 = vmatprep.subr.mxu0 0.0
    %11224 = vmatpush1.xpose.msra.mxu0 0.0
    %11225 = vmatprep.subr.mxu0 0.0
    %11226 = vmatpush1.xpose.msra.mxu0 0.0
    %11227 = vmatprep.subr.mxu0 0.0
    %11228 = vmatpush1.xpose.msra.mxu0 0.0
    %11229 = vmatprep.subr.mxu0 0.0
    %11230 = vmatpush1.xpose.msra.mxu0 0.0
    %11231 = vmatprep.subr.mxu0 0.0
    %11232 = vmatpush1.xpose.msra.mxu0 0.0
    %11233 = vmatprep.subr.mxu0 0.0
    %11234 = vmatpush1.xpose.msra.mxu0 0.0
    %11235 = vmatprep.subr.mxu0 0.0
    %11236 = vmatpush1.xpose.msra.mxu0 0.0
    %11237 = vmatprep.subr.mxu0 0.0
    %11238 = vmatpush1.xpose.msra.mxu0 0.0
    %11239 = vmatprep.subr.mxu0 0.0
    %11240 = vmatpush1.xpose.msra.mxu0 0.0
    %11241 = vmatprep.subr.mxu0 0.0
    %11242 = vmatpush1.xpose.msra.mxu0 0.0
    %11243 = vmatprep.subr.mxu0 0.0
    %11244 = vmatpush1.xpose.msra.mxu0 0.0
    %11245 = vmatprep.subr.mxu0 0.0
    %11246 = vmatpush1.xpose.msra.mxu0 0.0
    %11247 = vmatprep.subr.mxu0 0.0
    %11248 = vmatpush1.xpose.msra.mxu0 0.0
    %v11249 = vand.u32 %v10424, 4294901760
    %v11250 = vsub.f32 %v10424, %v11249
    %v11251 = vand.u32 %v11250, 4294901760
    %11252 = vmatprep.subr.mxu0 %v11251
    %v11253 = vand.u32 %v10393, 4294901760
    %v11254 = vsub.f32 %v10393, %v11253
    %v11255 = vand.u32 %v11254, 4294901760
    %11256 = vmatpush1.xpose.msra.mxu0 %v11255
    %11257 = vmatprep.subr.mxu0 0.0
    %11258 = vmatpush2.xpose.msra.mxu0 0.0
    %11259 = vmatprep.subr.mxu0 0.0
    %11260 = vmatpush2.xpose.msra.mxu0 0.0
    %11261 = vmatprep.subr.mxu0 0.0
    %11262 = vmatpush2.xpose.msra.mxu0 0.0
    %11263 = vmatprep.subr.mxu0 0.0
    %11264 = vmatpush2.xpose.msra.mxu0 0.0
    %11265 = vmatprep.subr.mxu0 0.0
    %11266 = vmatpush2.xpose.msra.mxu0 0.0
    %11267 = vmatprep.subr.mxu0 0.0
    %11268 = vmatpush2.xpose.msra.mxu0 0.0
    %11269 = vmatprep.subr.mxu0 0.0
    %11270 = vmatpush2.xpose.msra.mxu0 0.0
    %11271 = vmatprep.subr.mxu0 0.0
    %11272 = vmatpush2.xpose.msra.mxu0 0.0
    %11273 = vmatprep.subr.mxu0 0.0
    %11274 = vmatpush2.xpose.msra.mxu0 0.0
    %11275 = vmatprep.subr.mxu0 0.0
    %11276 = vmatpush2.xpose.msra.mxu0 0.0
    %11277 = vmatprep.subr.mxu0 0.0
    %11278 = vmatpush2.xpose.msra.mxu0 0.0
    %11279 = vmatprep.subr.mxu0 0.0
    %11280 = vmatpush2.xpose.msra.mxu0 0.0
    %11281 = vmatprep.subr.mxu0 0.0
    %11282 = vmatpush2.xpose.msra.mxu0 0.0
    %11283 = vmatprep.subr.mxu0 0.0
    %11284 = vmatpush2.xpose.msra.mxu0 0.0
    %11285 = vmatprep.subr.mxu0 0.0
    %11286 = vmatpush2.xpose.msra.mxu0 0.0
    %11287 = vmatprep.subr.mxu0 0.0
    %11288 = vmatpush2.xpose.msra.mxu0 0.0
    %v11289 = vand.u32 %v10418, 4294901760
    %11290 = vmatprep.mubr.f32.mxu0 %v11289
    %v11291 = vand.u32 %v10417, 4294901760
    %11292 = vmatmul.mubr.f32.gmra.mxu0 %v11291
    %v11293 = vpop.f32.mrf.mxu0
    %v11294 = vadd.f32 %v11216, %v11293
    %v11295 = vpop.f32.mrf.mxu0
    %11296 = vdwg.mxu0
    %11297 = vmatprep.subr.mxu0 0.0
    %11298 = vmatpush1.xpose.msra.mxu0 0.0
    %11299 = vmatprep.subr.mxu0 0.0
    %11300 = vmatpush1.xpose.msra.mxu0 0.0
    %11301 = vmatprep.subr.mxu0 0.0
    %11302 = vmatpush1.xpose.msra.mxu0 0.0
    %11303 = vmatprep.subr.mxu0 0.0
    %11304 = vmatpush1.xpose.msra.mxu0 0.0
    %11305 = vmatprep.subr.mxu0 0.0
    %11306 = vmatpush1.xpose.msra.mxu0 0.0
    %11307 = vmatprep.subr.mxu0 0.0
    %11308 = vmatpush1.xpose.msra.mxu0 0.0
    %11309 = vmatprep.subr.mxu0 0.0
    %11310 = vmatpush1.xpose.msra.mxu0 0.0
    %11311 = vmatprep.subr.mxu0 0.0
    %11312 = vmatpush1.xpose.msra.mxu0 0.0
    %11313 = vmatprep.subr.mxu0 0.0
    %11314 = vmatpush1.xpose.msra.mxu0 0.0
    %11315 = vmatprep.subr.mxu0 0.0
    %11316 = vmatpush1.xpose.msra.mxu0 0.0
    %11317 = vmatprep.subr.mxu0 0.0
    %11318 = vmatpush1.xpose.msra.mxu0 0.0
    %11319 = vmatprep.subr.mxu0 0.0
    %11320 = vmatpush1.xpose.msra.mxu0 0.0
    %11321 = vmatprep.subr.mxu0 0.0
    %11322 = vmatpush1.xpose.msra.mxu0 0.0
    %11323 = vmatprep.subr.mxu0 0.0
    %11324 = vmatpush1.xpose.msra.mxu0 0.0
    %11325 = vmatprep.subr.mxu0 0.0
    %11326 = vmatpush1.xpose.msra.mxu0 0.0
    %v11327 = vand.u32 %v10424, 4294901760
    %11328 = vmatprep.subr.mxu0 %v11327
    %v11329 = vand.u32 %v10393, 4294901760
    %11330 = vmatpush1.xpose.msra.mxu0 %v11329
    %11331 = vmatprep.subr.mxu0 0.0
    %11332 = vmatpush2.xpose.msra.mxu0 0.0
    %11333 = vmatprep.subr.mxu0 0.0
    %11334 = vmatpush2.xpose.msra.mxu0 0.0
    %11335 = vmatprep.subr.mxu0 0.0
    %11336 = vmatpush2.xpose.msra.mxu0 0.0
    %11337 = vmatprep.subr.mxu0 0.0
    %11338 = vmatpush2.xpose.msra.mxu0 0.0
    %11339 = vmatprep.subr.mxu0 0.0
    %11340 = vmatpush2.xpose.msra.mxu0 0.0
    %11341 = vmatprep.subr.mxu0 0.0
    %11342 = vmatpush2.xpose.msra.mxu0 0.0
    %11343 = vmatprep.subr.mxu0 0.0
    %11344 = vmatpush2.xpose.msra.mxu0 0.0
    %11345 = vmatprep.subr.mxu0 0.0
    %11346 = vmatpush2.xpose.msra.mxu0 0.0
    %11347 = vmatprep.subr.mxu0 0.0
    %11348 = vmatpush2.xpose.msra.mxu0 0.0
    %11349 = vmatprep.subr.mxu0 0.0
    %11350 = vmatpush2.xpose.msra.mxu0 0.0
    %11351 = vmatprep.subr.mxu0 0.0
    %11352 = vmatpush2.xpose.msra.mxu0 0.0
    %11353 = vmatprep.subr.mxu0 0.0
    %11354 = vmatpush2.xpose.msra.mxu0 0.0
    %11355 = vmatprep.subr.mxu0 0.0
    %11356 = vmatpush2.xpose.msra.mxu0 0.0
    %11357 = vmatprep.subr.mxu0 0.0
    %11358 = vmatpush2.xpose.msra.mxu0 0.0
    %11359 = vmatprep.subr.mxu0 0.0
    %11360 = vmatpush2.xpose.msra.mxu0 0.0
    %11361 = vmatprep.subr.mxu0 0.0
    %11362 = vmatpush2.xpose.msra.mxu0 0.0
    %v11363 = vand.u32 %v10418, 4294901760
    %11364 = vmatprep.mubr.f32.mxu0 %v11363
    %v11365 = vand.u32 %v10417, 4294901760
    %11366 = vmatmul.mubr.f32.gmra.mxu0 %v11365
    %v11367 = vpop.f32.mrf.mxu0
    %v11368 = vadd.f32 %v11294, %v11367
    %v11369 = vpop.f32.mrf.mxu0
    %11370 = vdwg.mxu0
    %11371 = vmatprep.subr.mxu0 0.0
    %11372 = vmatpush1.xpose.msra.mxu0 0.0
    %11373 = vmatprep.subr.mxu0 0.0
    %11374 = vmatpush1.xpose.msra.mxu0 0.0
    %11375 = vmatprep.subr.mxu0 0.0
    %11376 = vmatpush1.xpose.msra.mxu0 0.0
    %11377 = vmatprep.subr.mxu0 0.0
    %11378 = vmatpush1.xpose.msra.mxu0 0.0
    %11379 = vmatprep.subr.mxu0 0.0
    %11380 = vmatpush1.xpose.msra.mxu0 0.0
    %11381 = vmatprep.subr.mxu0 0.0
    %11382 = vmatpush1.xpose.msra.mxu0 0.0
    %11383 = vmatprep.subr.mxu0 0.0
    %11384 = vmatpush1.xpose.msra.mxu0 0.0
    %11385 = vmatprep.subr.mxu0 0.0
    %11386 = vmatpush1.xpose.msra.mxu0 0.0
    %11387 = vmatprep.subr.mxu0 0.0
    %11388 = vmatpush1.xpose.msra.mxu0 0.0
    %11389 = vmatprep.subr.mxu0 0.0
    %11390 = vmatpush1.xpose.msra.mxu0 0.0
    %11391 = vmatprep.subr.mxu0 0.0
    %11392 = vmatpush1.xpose.msra.mxu0 0.0
    %11393 = vmatprep.subr.mxu0 0.0
    %11394 = vmatpush1.xpose.msra.mxu0 0.0
    %11395 = vmatprep.subr.mxu0 0.0
    %11396 = vmatpush1.xpose.msra.mxu0 0.0
    %11397 = vmatprep.subr.mxu0 0.0
    %11398 = vmatpush1.xpose.msra.mxu0 0.0
    %11399 = vmatprep.subr.mxu0 0.0
    %11400 = vmatpush1.xpose.msra.mxu0 0.0
    %11401 = vmatprep.subr.mxu0 0.0
    %v11402 = vand.u32 %v10394, 4294901760
    %11403 = vmatpush1.xpose.msra.mxu0 %v11402
    %11404 = vmatprep.subr.mxu0 0.0
    %11405 = vmatpush2.xpose.msra.mxu0 0.0
    %11406 = vmatprep.subr.mxu0 0.0
    %11407 = vmatpush2.xpose.msra.mxu0 0.0
    %11408 = vmatprep.subr.mxu0 0.0
    %11409 = vmatpush2.xpose.msra.mxu0 0.0
    %11410 = vmatprep.subr.mxu0 0.0
    %11411 = vmatpush2.xpose.msra.mxu0 0.0
    %11412 = vmatprep.subr.mxu0 0.0
    %11413 = vmatpush2.xpose.msra.mxu0 0.0
    %11414 = vmatprep.subr.mxu0 0.0
    %11415 = vmatpush2.xpose.msra.mxu0 0.0
    %11416 = vmatprep.subr.mxu0 0.0
    %11417 = vmatpush2.xpose.msra.mxu0 0.0
    %11418 = vmatprep.subr.mxu0 0.0
    %11419 = vmatpush2.xpose.msra.mxu0 0.0
    %11420 = vmatprep.subr.mxu0 0.0
    %11421 = vmatpush2.xpose.msra.mxu0 0.0
    %11422 = vmatprep.subr.mxu0 0.0
    %11423 = vmatpush2.xpose.msra.mxu0 0.0
    %11424 = vmatprep.subr.mxu0 0.0
    %11425 = vmatpush2.xpose.msra.mxu0 0.0
    %11426 = vmatprep.subr.mxu0 0.0
    %11427 = vmatpush2.xpose.msra.mxu0 0.0
    %11428 = vmatprep.subr.mxu0 0.0
    %11429 = vmatpush2.xpose.msra.mxu0 0.0
    %11430 = vmatprep.subr.mxu0 0.0
    %11431 = vmatpush2.xpose.msra.mxu0 0.0
    %11432 = vmatprep.subr.mxu0 0.0
    %11433 = vmatpush2.xpose.msra.mxu0 0.0
    %11434 = vmatprep.subr.mxu0 0.0
    %11435 = vmatpush2.xpose.msra.mxu0 0.0
    %11436 = vmatprep.mubr.f32.mxu0 0.0
    %v11437 = vand.u32 %v10419, 4294901760
    %v11438 = vsub.f32 %v10419, %v11437
    %v11439 = vand.u32 %v11438, 4294901760
    %v11440 = vsub.f32 %v11438, %v11439
    %v11441 = vand.u32 %v11440, 4294901760
    %11442 = vmatmul.mubr.f32.gmra.mxu0 %v11441
    %v11443 = vpop.f32.mrf.mxu0
    %v11444 = vadd.f32 %v11368, %v11443
    %v11445 = vpop.f32.mrf.mxu0
    %11446 = vdwg.mxu0
    %11447 = vmatprep.subr.mxu0 0.0
    %11448 = vmatpush1.xpose.msra.mxu0 0.0
    %11449 = vmatprep.subr.mxu0 0.0
    %11450 = vmatpush1.xpose.msra.mxu0 0.0
    %11451 = vmatprep.subr.mxu0 0.0
    %11452 = vmatpush1.xpose.msra.mxu0 0.0
    %11453 = vmatprep.subr.mxu0 0.0
    %11454 = vmatpush1.xpose.msra.mxu0 0.0
    %11455 = vmatprep.subr.mxu0 0.0
    %11456 = vmatpush1.xpose.msra.mxu0 0.0
    %11457 = vmatprep.subr.mxu0 0.0
    %11458 = vmatpush1.xpose.msra.mxu0 0.0
    %11459 = vmatprep.subr.mxu0 0.0
    %11460 = vmatpush1.xpose.msra.mxu0 0.0
    %11461 = vmatprep.subr.mxu0 0.0
    %11462 = vmatpush1.xpose.msra.mxu0 0.0
    %11463 = vmatprep.subr.mxu0 0.0
    %11464 = vmatpush1.xpose.msra.mxu0 0.0
    %11465 = vmatprep.subr.mxu0 0.0
    %11466 = vmatpush1.xpose.msra.mxu0 0.0
    %11467 = vmatprep.subr.mxu0 0.0
    %11468 = vmatpush1.xpose.msra.mxu0 0.0
    %11469 = vmatprep.subr.mxu0 0.0
    %11470 = vmatpush1.xpose.msra.mxu0 0.0
    %11471 = vmatprep.subr.mxu0 0.0
    %11472 = vmatpush1.xpose.msra.mxu0 0.0
    %11473 = vmatprep.subr.mxu0 0.0
    %11474 = vmatpush1.xpose.msra.mxu0 0.0
    %11475 = vmatprep.subr.mxu0 0.0
    %11476 = vmatpush1.xpose.msra.mxu0 0.0
    %11477 = vmatprep.subr.mxu0 0.0
    %v11478 = vand.u32 %v10394, 4294901760
    %v11479 = vsub.f32 %v10394, %v11478
    %v11480 = vand.u32 %v11479, 4294901760
    %v11481 = vsub.f32 %v11479, %v11480
    %v11482 = vand.u32 %v11481, 4294901760
    %11483 = vmatpush1.xpose.msra.mxu0 %v11482
    %11484 = vmatprep.subr.mxu0 0.0
    %11485 = vmatpush2.xpose.msra.mxu0 0.0
    %11486 = vmatprep.subr.mxu0 0.0
    %11487 = vmatpush2.xpose.msra.mxu0 0.0
    %11488 = vmatprep.subr.mxu0 0.0
    %11489 = vmatpush2.xpose.msra.mxu0 0.0
    %11490 = vmatprep.subr.mxu0 0.0
    %11491 = vmatpush2.xpose.msra.mxu0 0.0
    %11492 = vmatprep.subr.mxu0 0.0
    %11493 = vmatpush2.xpose.msra.mxu0 0.0
    %11494 = vmatprep.subr.mxu0 0.0
    %11495 = vmatpush2.xpose.msra.mxu0 0.0
    %11496 = vmatprep.subr.mxu0 0.0
    %11497 = vmatpush2.xpose.msra.mxu0 0.0
    %11498 = vmatprep.subr.mxu0 0.0
    %11499 = vmatpush2.xpose.msra.mxu0 0.0
    %11500 = vmatprep.subr.mxu0 0.0
    %11501 = vmatpush2.xpose.msra.mxu0 0.0
    %11502 = vmatprep.subr.mxu0 0.0
    %11503 = vmatpush2.xpose.msra.mxu0 0.0
    %11504 = vmatprep.subr.mxu0 0.0
    %11505 = vmatpush2.xpose.msra.mxu0 0.0
    %11506 = vmatprep.subr.mxu0 0.0
    %11507 = vmatpush2.xpose.msra.mxu0 0.0
    %11508 = vmatprep.subr.mxu0 0.0
    %11509 = vmatpush2.xpose.msra.mxu0 0.0
    %11510 = vmatprep.subr.mxu0 0.0
    %11511 = vmatpush2.xpose.msra.mxu0 0.0
    %11512 = vmatprep.subr.mxu0 0.0
    %11513 = vmatpush2.xpose.msra.mxu0 0.0
    %11514 = vmatprep.subr.mxu0 0.0
    %11515 = vmatpush2.xpose.msra.mxu0 0.0
    %11516 = vmatprep.mubr.f32.mxu0 0.0
    %v11517 = vand.u32 %v10419, 4294901760
    %11518 = vmatmul.mubr.f32.gmra.mxu0 %v11517
    %v11519 = vpop.f32.mrf.mxu0
    %v11520 = vadd.f32 %v11444, %v11519
    %v11521 = vpop.f32.mrf.mxu0
    %11522 = vdwg.mxu0
    %11523 = vmatprep.subr.mxu0 0.0
    %11524 = vmatpush1.xpose.msra.mxu0 0.0
    %11525 = vmatprep.subr.mxu0 0.0
    %11526 = vmatpush1.xpose.msra.mxu0 0.0
    %11527 = vmatprep.subr.mxu0 0.0
    %11528 = vmatpush1.xpose.msra.mxu0 0.0
    %11529 = vmatprep.subr.mxu0 0.0
    %11530 = vmatpush1.xpose.msra.mxu0 0.0
    %11531 = vmatprep.subr.mxu0 0.0
    %11532 = vmatpush1.xpose.msra.mxu0 0.0
    %11533 = vmatprep.subr.mxu0 0.0
    %11534 = vmatpush1.xpose.msra.mxu0 0.0
    %11535 = vmatprep.subr.mxu0 0.0
    %11536 = vmatpush1.xpose.msra.mxu0 0.0
    %11537 = vmatprep.subr.mxu0 0.0
    %11538 = vmatpush1.xpose.msra.mxu0 0.0
    %11539 = vmatprep.subr.mxu0 0.0
    %11540 = vmatpush1.xpose.msra.mxu0 0.0
    %11541 = vmatprep.subr.mxu0 0.0
    %11542 = vmatpush1.xpose.msra.mxu0 0.0
    %11543 = vmatprep.subr.mxu0 0.0
    %11544 = vmatpush1.xpose.msra.mxu0 0.0
    %11545 = vmatprep.subr.mxu0 0.0
    %11546 = vmatpush1.xpose.msra.mxu0 0.0
    %11547 = vmatprep.subr.mxu0 0.0
    %11548 = vmatpush1.xpose.msra.mxu0 0.0
    %11549 = vmatprep.subr.mxu0 0.0
    %11550 = vmatpush1.xpose.msra.mxu0 0.0
    %11551 = vmatprep.subr.mxu0 0.0
    %11552 = vmatpush1.xpose.msra.mxu0 0.0
    %11553 = vmatprep.subr.mxu0 0.0
    %v11554 = vand.u32 %v10394, 4294901760
    %v11555 = vsub.f32 %v10394, %v11554
    %11556 = vmatpush1.xpose.msra.mxu0 %v11555
    %11557 = vmatprep.subr.mxu0 0.0
    %11558 = vmatpush2.xpose.msra.mxu0 0.0
    %11559 = vmatprep.subr.mxu0 0.0
    %11560 = vmatpush2.xpose.msra.mxu0 0.0
    %11561 = vmatprep.subr.mxu0 0.0
    %11562 = vmatpush2.xpose.msra.mxu0 0.0
    %11563 = vmatprep.subr.mxu0 0.0
    %11564 = vmatpush2.xpose.msra.mxu0 0.0
    %11565 = vmatprep.subr.mxu0 0.0
    %11566 = vmatpush2.xpose.msra.mxu0 0.0
    %11567 = vmatprep.subr.mxu0 0.0
    %11568 = vmatpush2.xpose.msra.mxu0 0.0
    %11569 = vmatprep.subr.mxu0 0.0
    %11570 = vmatpush2.xpose.msra.mxu0 0.0
    %11571 = vmatprep.subr.mxu0 0.0
    %11572 = vmatpush2.xpose.msra.mxu0 0.0
    %11573 = vmatprep.subr.mxu0 0.0
    %11574 = vmatpush2.xpose.msra.mxu0 0.0
    %11575 = vmatprep.subr.mxu0 0.0
    %11576 = vmatpush2.xpose.msra.mxu0 0.0
    %11577 = vmatprep.subr.mxu0 0.0
    %11578 = vmatpush2.xpose.msra.mxu0 0.0
    %11579 = vmatprep.subr.mxu0 0.0
    %11580 = vmatpush2.xpose.msra.mxu0 0.0
    %11581 = vmatprep.subr.mxu0 0.0
    %11582 = vmatpush2.xpose.msra.mxu0 0.0
    %11583 = vmatprep.subr.mxu0 0.0
    %11584 = vmatpush2.xpose.msra.mxu0 0.0
    %11585 = vmatprep.subr.mxu0 0.0
    %11586 = vmatpush2.xpose.msra.mxu0 0.0
    %11587 = vmatprep.subr.mxu0 0.0
    %11588 = vmatpush2.xpose.msra.mxu0 0.0
    %11589 = vmatprep.mubr.f32.mxu0 0.0
    %v11590 = vand.u32 %v10419, 4294901760
    %v11591 = vsub.f32 %v10419, %v11590
    %11592 = vmatmul.mubr.f32.gmra.mxu0 %v11591
    %v11593 = vpop.f32.mrf.mxu0
    %v11594 = vadd.f32 %v11520, %v11593
    %v11595 = vpop.f32.mrf.mxu0
    %11596 = vdwg.mxu0
    %11597 = vmatprep.subr.mxu0 0.0
    %11598 = vmatpush1.xpose.msra.mxu0 0.0
    %11599 = vmatprep.subr.mxu0 0.0
    %11600 = vmatpush1.xpose.msra.mxu0 0.0
    %11601 = vmatprep.subr.mxu0 0.0
    %11602 = vmatpush1.xpose.msra.mxu0 0.0
    %11603 = vmatprep.subr.mxu0 0.0
    %11604 = vmatpush1.xpose.msra.mxu0 0.0
    %11605 = vmatprep.subr.mxu0 0.0
    %11606 = vmatpush1.xpose.msra.mxu0 0.0
    %11607 = vmatprep.subr.mxu0 0.0
    %11608 = vmatpush1.xpose.msra.mxu0 0.0
    %11609 = vmatprep.subr.mxu0 0.0
    %11610 = vmatpush1.xpose.msra.mxu0 0.0
    %11611 = vmatprep.subr.mxu0 0.0
    %11612 = vmatpush1.xpose.msra.mxu0 0.0
    %11613 = vmatprep.subr.mxu0 0.0
    %11614 = vmatpush1.xpose.msra.mxu0 0.0
    %11615 = vmatprep.subr.mxu0 0.0
    %11616 = vmatpush1.xpose.msra.mxu0 0.0
    %11617 = vmatprep.subr.mxu0 0.0
    %11618 = vmatpush1.xpose.msra.mxu0 0.0
    %11619 = vmatprep.subr.mxu0 0.0
    %11620 = vmatpush1.xpose.msra.mxu0 0.0
    %11621 = vmatprep.subr.mxu0 0.0
    %11622 = vmatpush1.xpose.msra.mxu0 0.0
    %11623 = vmatprep.subr.mxu0 0.0
    %11624 = vmatpush1.xpose.msra.mxu0 0.0
    %11625 = vmatprep.subr.mxu0 0.0
    %11626 = vmatpush1.xpose.msra.mxu0 0.0
    %11627 = vmatprep.subr.mxu0 0.0
    %v11628 = vand.u32 %v10394, 4294901760
    %11629 = vmatpush1.xpose.msra.mxu0 %v11628
    %11630 = vmatprep.subr.mxu0 0.0
    %11631 = vmatpush2.xpose.msra.mxu0 0.0
    %11632 = vmatprep.subr.mxu0 0.0
    %11633 = vmatpush2.xpose.msra.mxu0 0.0
    %11634 = vmatprep.subr.mxu0 0.0
    %11635 = vmatpush2.xpose.msra.mxu0 0.0
    %11636 = vmatprep.subr.mxu0 0.0
    %11637 = vmatpush2.xpose.msra.mxu0 0.0
    %11638 = vmatprep.subr.mxu0 0.0
    %11639 = vmatpush2.xpose.msra.mxu0 0.0
    %11640 = vmatprep.subr.mxu0 0.0
    %11641 = vmatpush2.xpose.msra.mxu0 0.0
    %11642 = vmatprep.subr.mxu0 0.0
    %11643 = vmatpush2.xpose.msra.mxu0 0.0
    %11644 = vmatprep.subr.mxu0 0.0
    %11645 = vmatpush2.xpose.msra.mxu0 0.0
    %11646 = vmatprep.subr.mxu0 0.0
    %11647 = vmatpush2.xpose.msra.mxu0 0.0
    %11648 = vmatprep.subr.mxu0 0.0
    %11649 = vmatpush2.xpose.msra.mxu0 0.0
    %11650 = vmatprep.subr.mxu0 0.0
    %11651 = vmatpush2.xpose.msra.mxu0 0.0
    %11652 = vmatprep.subr.mxu0 0.0
    %11653 = vmatpush2.xpose.msra.mxu0 0.0
    %11654 = vmatprep.subr.mxu0 0.0
    %11655 = vmatpush2.xpose.msra.mxu0 0.0
    %11656 = vmatprep.subr.mxu0 0.0
    %11657 = vmatpush2.xpose.msra.mxu0 0.0
    %11658 = vmatprep.subr.mxu0 0.0
    %11659 = vmatpush2.xpose.msra.mxu0 0.0
    %11660 = vmatprep.subr.mxu0 0.0
    %11661 = vmatpush2.xpose.msra.mxu0 0.0
    %11662 = vmatprep.mubr.f32.mxu0 0.0
    %v11663 = vand.u32 %v10419, 4294901760
    %v11664 = vsub.f32 %v10419, %v11663
    %v11665 = vand.u32 %v11664, 4294901760
    %11666 = vmatmul.mubr.f32.gmra.mxu0 %v11665
    %v11667 = vpop.f32.mrf.mxu0
    %v11668 = vadd.f32 %v11594, %v11667
    %v11669 = vpop.f32.mrf.mxu0
    %11670 = vdwg.mxu0
    %11671 = vmatprep.subr.mxu0 0.0
    %11672 = vmatpush1.xpose.msra.mxu0 0.0
    %11673 = vmatprep.subr.mxu0 0.0
    %11674 = vmatpush1.xpose.msra.mxu0 0.0
    %11675 = vmatprep.subr.mxu0 0.0
    %11676 = vmatpush1.xpose.msra.mxu0 0.0
    %11677 = vmatprep.subr.mxu0 0.0
    %11678 = vmatpush1.xpose.msra.mxu0 0.0
    %11679 = vmatprep.subr.mxu0 0.0
    %11680 = vmatpush1.xpose.msra.mxu0 0.0
    %11681 = vmatprep.subr.mxu0 0.0
    %11682 = vmatpush1.xpose.msra.mxu0 0.0
    %11683 = vmatprep.subr.mxu0 0.0
    %11684 = vmatpush1.xpose.msra.mxu0 0.0
    %11685 = vmatprep.subr.mxu0 0.0
    %11686 = vmatpush1.xpose.msra.mxu0 0.0
    %11687 = vmatprep.subr.mxu0 0.0
    %11688 = vmatpush1.xpose.msra.mxu0 0.0
    %11689 = vmatprep.subr.mxu0 0.0
    %11690 = vmatpush1.xpose.msra.mxu0 0.0
    %11691 = vmatprep.subr.mxu0 0.0
    %11692 = vmatpush1.xpose.msra.mxu0 0.0
    %11693 = vmatprep.subr.mxu0 0.0
    %11694 = vmatpush1.xpose.msra.mxu0 0.0
    %11695 = vmatprep.subr.mxu0 0.0
    %11696 = vmatpush1.xpose.msra.mxu0 0.0
    %11697 = vmatprep.subr.mxu0 0.0
    %11698 = vmatpush1.xpose.msra.mxu0 0.0
    %11699 = vmatprep.subr.mxu0 0.0
    %11700 = vmatpush1.xpose.msra.mxu0 0.0
    %11701 = vmatprep.subr.mxu0 0.0
    %v11702 = vand.u32 %v10394, 4294901760
    %v11703 = vsub.f32 %v10394, %v11702
    %v11704 = vand.u32 %v11703, 4294901760
    %11705 = vmatpush1.xpose.msra.mxu0 %v11704
    %11706 = vmatprep.subr.mxu0 0.0
    %11707 = vmatpush2.xpose.msra.mxu0 0.0
    %11708 = vmatprep.subr.mxu0 0.0
    %11709 = vmatpush2.xpose.msra.mxu0 0.0
    %11710 = vmatprep.subr.mxu0 0.0
    %11711 = vmatpush2.xpose.msra.mxu0 0.0
    %11712 = vmatprep.subr.mxu0 0.0
    %11713 = vmatpush2.xpose.msra.mxu0 0.0
    %11714 = vmatprep.subr.mxu0 0.0
    %11715 = vmatpush2.xpose.msra.mxu0 0.0
    %11716 = vmatprep.subr.mxu0 0.0
    %11717 = vmatpush2.xpose.msra.mxu0 0.0
    %11718 = vmatprep.subr.mxu0 0.0
    %11719 = vmatpush2.xpose.msra.mxu0 0.0
    %11720 = vmatprep.subr.mxu0 0.0
    %11721 = vmatpush2.xpose.msra.mxu0 0.0
    %11722 = vmatprep.subr.mxu0 0.0
    %11723 = vmatpush2.xpose.msra.mxu0 0.0
    %11724 = vmatprep.subr.mxu0 0.0
    %11725 = vmatpush2.xpose.msra.mxu0 0.0
    %11726 = vmatprep.subr.mxu0 0.0
    %11727 = vmatpush2.xpose.msra.mxu0 0.0
    %11728 = vmatprep.subr.mxu0 0.0
    %11729 = vmatpush2.xpose.msra.mxu0 0.0
    %11730 = vmatprep.subr.mxu0 0.0
    %11731 = vmatpush2.xpose.msra.mxu0 0.0
    %11732 = vmatprep.subr.mxu0 0.0
    %11733 = vmatpush2.xpose.msra.mxu0 0.0
    %11734 = vmatprep.subr.mxu0 0.0
    %11735 = vmatpush2.xpose.msra.mxu0 0.0
    %11736 = vmatprep.subr.mxu0 0.0
    %11737 = vmatpush2.xpose.msra.mxu0 0.0
    %11738 = vmatprep.mubr.f32.mxu0 0.0
    %v11739 = vand.u32 %v10419, 4294901760
    %11740 = vmatmul.mubr.f32.gmra.mxu0 %v11739
    %v11741 = vpop.f32.mrf.mxu0
    %v11742 = vadd.f32 %v11668, %v11741
    %v11743 = vpop.f32.mrf.mxu0
    %11744 = vdwg.mxu0
    %11745 = vmatprep.subr.mxu0 0.0
    %11746 = vmatpush1.xpose.msra.mxu0 0.0
    %11747 = vmatprep.subr.mxu0 0.0
    %11748 = vmatpush1.xpose.msra.mxu0 0.0
    %11749 = vmatprep.subr.mxu0 0.0
    %11750 = vmatpush1.xpose.msra.mxu0 0.0
    %11751 = vmatprep.subr.mxu0 0.0
    %11752 = vmatpush1.xpose.msra.mxu0 0.0
    %11753 = vmatprep.subr.mxu0 0.0
    %11754 = vmatpush1.xpose.msra.mxu0 0.0
    %11755 = vmatprep.subr.mxu0 0.0
    %11756 = vmatpush1.xpose.msra.mxu0 0.0
    %11757 = vmatprep.subr.mxu0 0.0
    %11758 = vmatpush1.xpose.msra.mxu0 0.0
    %11759 = vmatprep.subr.mxu0 0.0
    %11760 = vmatpush1.xpose.msra.mxu0 0.0
    %11761 = vmatprep.subr.mxu0 0.0
    %11762 = vmatpush1.xpose.msra.mxu0 0.0
    %11763 = vmatprep.subr.mxu0 0.0
    %11764 = vmatpush1.xpose.msra.mxu0 0.0
    %11765 = vmatprep.subr.mxu0 0.0
    %11766 = vmatpush1.xpose.msra.mxu0 0.0
    %11767 = vmatprep.subr.mxu0 0.0
    %11768 = vmatpush1.xpose.msra.mxu0 0.0
    %11769 = vmatprep.subr.mxu0 0.0
    %11770 = vmatpush1.xpose.msra.mxu0 0.0
    %11771 = vmatprep.subr.mxu0 0.0
    %11772 = vmatpush1.xpose.msra.mxu0 0.0
    %11773 = vmatprep.subr.mxu0 0.0
    %11774 = vmatpush1.xpose.msra.mxu0 0.0
    %11775 = vmatprep.subr.mxu0 0.0
    %v11776 = vand.u32 %v10394, 4294901760
    %11777 = vmatpush1.xpose.msra.mxu0 %v11776
    %11778 = vmatprep.subr.mxu0 0.0
    %11779 = vmatpush2.xpose.msra.mxu0 0.0
    %11780 = vmatprep.subr.mxu0 0.0
    %11781 = vmatpush2.xpose.msra.mxu0 0.0
    %11782 = vmatprep.subr.mxu0 0.0
    %11783 = vmatpush2.xpose.msra.mxu0 0.0
    %11784 = vmatprep.subr.mxu0 0.0
    %11785 = vmatpush2.xpose.msra.mxu0 0.0
    %11786 = vmatprep.subr.mxu0 0.0
    %11787 = vmatpush2.xpose.msra.mxu0 0.0
    %11788 = vmatprep.subr.mxu0 0.0
    %11789 = vmatpush2.xpose.msra.mxu0 0.0
    %11790 = vmatprep.subr.mxu0 0.0
    %11791 = vmatpush2.xpose.msra.mxu0 0.0
    %11792 = vmatprep.subr.mxu0 0.0
    %11793 = vmatpush2.xpose.msra.mxu0 0.0
    %11794 = vmatprep.subr.mxu0 0.0
    %11795 = vmatpush2.xpose.msra.mxu0 0.0
    %11796 = vmatprep.subr.mxu0 0.0
    %11797 = vmatpush2.xpose.msra.mxu0 0.0
    %11798 = vmatprep.subr.mxu0 0.0
    %11799 = vmatpush2.xpose.msra.mxu0 0.0
    %11800 = vmatprep.subr.mxu0 0.0
    %11801 = vmatpush2.xpose.msra.mxu0 0.0
    %11802 = vmatprep.subr.mxu0 0.0
    %11803 = vmatpush2.xpose.msra.mxu0 0.0
    %11804 = vmatprep.subr.mxu0 0.0
    %11805 = vmatpush2.xpose.msra.mxu0 0.0
    %11806 = vmatprep.subr.mxu0 0.0
    %11807 = vmatpush2.xpose.msra.mxu0 0.0
    %11808 = vmatprep.subr.mxu0 0.0
    %11809 = vmatpush2.xpose.msra.mxu0 0.0
    %11810 = vmatprep.mubr.f32.mxu0 0.0
    %v11811 = vand.u32 %v10419, 4294901760
    %11812 = vmatmul.mubr.f32.gmra.mxu0 %v11811
    %v11813 = vpop.f32.mrf.mxu0
    %v11814 = vadd.f32 %v11742, %v11813
    %v11815 = vpop.f32.mrf.mxu0
    %11816 = vdwg.mxu0
    %v11817 = vsel %vm5846, %v11814, 0.0
    %v11818 = vrot.slane %v11817, 4
    %v11819 = vadd.f32 %v11817, %v11818
    %v11820 = vrot.slane %v11819, 2
    %v11821 = vadd.f32 %v11819, %v11820
    %v11822 = vrot.slane %v11821, 1
    %v11823 = vadd.f32 %v11821, %v11822
    %v11824 = vmul.f32 %v11823, 0.0034722222
    %v11826 = vrot.slane %v11814, 2
    %v11828 = vsel %vm5846, %v11826, 0.0
    %v11829 = vrot.slane %v11828, 4
    %v11830 = vadd.f32 %v11828, %v11829
    %v11831 = vrot.slane %v11830, 2
    %v11832 = vadd.f32 %v11830, %v11831
    %v11833 = vrot.slane %v11832, 1
    %v11834 = vadd.f32 %v11832, %v11833
    %v11835 = vmul.f32 %v11834, 0.0034722222
    %v11836 = vmul.f32 %v11824, %v11824
    %v11837 = vsub.f32 %v11835, %v11836
    %v11838 = vmax.f32 %v11837, 0.0
    %v11839 = vadd.f32 %v11838, 1e-05
    %v11840 = vrsqrt.pop %v11839
    %v11841 = vmul.f32 %v11840, %v113
    %v11842 = vmul.f32 %v11824, %v11841
    %v11844 = vrot.slane %v11842, 7
    %v11846 = vsub.f32 %v113, %v11844
    %v11848 = vrot.slane %v11841, 2
    %v11851 = vrot.slane %v11846, 2
    %v11853 = vsel %vm5877, %v11848, %v11851
    %v11855 = vsel %vm5879, %v11853, 0
    %v11857 = vsel %vm5883, %v10392, 0
    %v11859 = vsel %vm5883, %v10423, 0
    %v11861 = vsel %vm5883, %v10393, 0
    %v11863 = vsel %vm5883, %v10424, 0
    %v11865 = vsel %vm5883, %v10394, 0
    %11867 = vmatprep.subr.mxu0 0.0
    %11868 = vmatpush1.msra.mxu0 0.0
    %11869 = vmatprep.subr.mxu0 0.0
    %11870 = vmatpush1.msra.mxu0 0.0
    %11871 = vmatprep.subr.mxu0 0.0
    %11872 = vmatpush1.msra.mxu0 0.0
    %11873 = vmatprep.subr.mxu0 0.0
    %11874 = vmatpush1.msra.mxu0 0.0
    %11875 = vmatprep.subr.mxu0 0.0
    %11876 = vmatpush1.msra.mxu0 0.0
    %11877 = vmatprep.subr.mxu0 0.0
    %11878 = vmatpush1.msra.mxu0 0.0
    %11879 = vmatprep.subr.mxu0 0.0
    %11880 = vmatpush1.msra.mxu0 0.0
    %11881 = vmatprep.subr.mxu0 0.0
    %11882 = vmatpush1.msra.mxu0 0.0
    %11883 = vmatprep.subr.mxu0 0.0
    %11884 = vmatpush1.msra.mxu0 0.0
    %11885 = vmatprep.subr.mxu0 0.0
    %11886 = vmatpush1.msra.mxu0 0.0
    %11887 = vmatprep.subr.mxu0 0.0
    %11888 = vmatpush1.msra.mxu0 0.0
    %11889 = vmatprep.subr.mxu0 0.0
    %11890 = vmatpush1.msra.mxu0 0.0
    %11891 = vmatprep.subr.mxu0 0.0
    %11892 = vmatpush1.msra.mxu0 0.0
    %11893 = vmatprep.subr.mxu0 0.0
    %11894 = vmatpush1.msra.mxu0 0.0
    %11895 = vmatprep.subr.mxu0 0.0
    %11896 = vmatpush1.msra.mxu0 0.0
    %v11897 = vand.u32 %v11859, 4294901760
    %11898 = vmatprep.subr.mxu0 %v11897
    %v11899 = vand.u32 %v11857, 4294901760
    %11900 = vmatpush1.msra.mxu0 %v11899
    %11901 = vmatprep.subr.mxu0 0.0
    %11902 = vmatpush2.msra.mxu0 0.0
    %11903 = vmatprep.subr.mxu0 0.0
    %11904 = vmatpush2.msra.mxu0 0.0
    %11905 = vmatprep.subr.mxu0 0.0
    %11906 = vmatpush2.msra.mxu0 0.0
    %11907 = vmatprep.subr.mxu0 0.0
    %11908 = vmatpush2.msra.mxu0 0.0
    %11909 = vmatprep.subr.mxu0 0.0
    %11910 = vmatpush2.msra.mxu0 0.0
    %11911 = vmatprep.subr.mxu0 0.0
    %11912 = vmatpush2.msra.mxu0 0.0
    %11913 = vmatprep.subr.mxu0 0.0
    %11914 = vmatpush2.msra.mxu0 0.0
    %11915 = vmatprep.subr.mxu0 0.0
    %11916 = vmatpush2.msra.mxu0 0.0
    %11917 = vmatprep.subr.mxu0 0.0
    %11918 = vmatpush2.msra.mxu0 0.0
    %11919 = vmatprep.subr.mxu0 0.0
    %11920 = vmatpush2.msra.mxu0 0.0
    %11921 = vmatprep.subr.mxu0 0.0
    %11922 = vmatpush2.msra.mxu0 0.0
    %11923 = vmatprep.subr.mxu0 0.0
    %11924 = vmatpush2.msra.mxu0 0.0
    %11925 = vmatprep.subr.mxu0 0.0
    %11926 = vmatpush2.msra.mxu0 0.0
    %11927 = vmatprep.subr.mxu0 0.0
    %11928 = vmatpush2.msra.mxu0 0.0
    %11929 = vmatprep.subr.mxu0 0.0
    %11930 = vmatpush2.msra.mxu0 0.0
    %11931 = vmatprep.subr.mxu0 0.0
    %11932 = vmatpush2.msra.mxu0 0.0
    %11933 = vmatprep.mubr.f32.mxu0 0.0
    %v11934 = vand.u32 %v11855, 4294901760
    %v11935 = vsub.f32 %v11855, %v11934
    %v11936 = vand.u32 %v11935, 4294901760
    %v11937 = vsub.f32 %v11935, %v11936
    %v11938 = vand.u32 %v11937, 4294901760
    %11939 = vmatmul.mubr.f32.gmra.mxu0 %v11938
    %v11940 = vpop.f32.mrf.mxu0
    %v11941 = vadd.f32 0.0, %v11940
    %v11942 = vpop.f32.mrf.mxu0
    %v11943 = vadd.f32 0.0, %v11942
    %11944 = vdwg.mxu0
    %11945 = vmatprep.subr.mxu0 0.0
    %11946 = vmatpush1.msra.mxu0 0.0
    %11947 = vmatprep.subr.mxu0 0.0
    %11948 = vmatpush1.msra.mxu0 0.0
    %11949 = vmatprep.subr.mxu0 0.0
    %11950 = vmatpush1.msra.mxu0 0.0
    %11951 = vmatprep.subr.mxu0 0.0
    %11952 = vmatpush1.msra.mxu0 0.0
    %11953 = vmatprep.subr.mxu0 0.0
    %11954 = vmatpush1.msra.mxu0 0.0
    %11955 = vmatprep.subr.mxu0 0.0
    %11956 = vmatpush1.msra.mxu0 0.0
    %11957 = vmatprep.subr.mxu0 0.0
    %11958 = vmatpush1.msra.mxu0 0.0
    %11959 = vmatprep.subr.mxu0 0.0
    %11960 = vmatpush1.msra.mxu0 0.0
    %11961 = vmatprep.subr.mxu0 0.0
    %11962 = vmatpush1.msra.mxu0 0.0
    %11963 = vmatprep.subr.mxu0 0.0
    %11964 = vmatpush1.msra.mxu0 0.0
    %11965 = vmatprep.subr.mxu0 0.0
    %11966 = vmatpush1.msra.mxu0 0.0
    %11967 = vmatprep.subr.mxu0 0.0
    %11968 = vmatpush1.msra.mxu0 0.0
    %11969 = vmatprep.subr.mxu0 0.0
    %11970 = vmatpush1.msra.mxu0 0.0
    %11971 = vmatprep.subr.mxu0 0.0
    %11972 = vmatpush1.msra.mxu0 0.0
    %11973 = vmatprep.subr.mxu0 0.0
    %11974 = vmatpush1.msra.mxu0 0.0
    %v11975 = vand.u32 %v11859, 4294901760
    %v11976 = vsub.f32 %v11859, %v11975
    %v11977 = vand.u32 %v11976, 4294901760
    %v11978 = vsub.f32 %v11976, %v11977
    %v11979 = vand.u32 %v11978, 4294901760
    %11980 = vmatprep.subr.mxu0 %v11979
    %v11981 = vand.u32 %v11857, 4294901760
    %v11982 = vsub.f32 %v11857, %v11981
    %v11983 = vand.u32 %v11982, 4294901760
    %v11984 = vsub.f32 %v11982, %v11983
    %v11985 = vand.u32 %v11984, 4294901760
    %11986 = vmatpush1.msra.mxu0 %v11985
    %11987 = vmatprep.subr.mxu0 0.0
    %11988 = vmatpush2.msra.mxu0 0.0
    %11989 = vmatprep.subr.mxu0 0.0
    %11990 = vmatpush2.msra.mxu0 0.0
    %11991 = vmatprep.subr.mxu0 0.0
    %11992 = vmatpush2.msra.mxu0 0.0
    %11993 = vmatprep.subr.mxu0 0.0
    %11994 = vmatpush2.msra.mxu0 0.0
    %11995 = vmatprep.subr.mxu0 0.0
    %11996 = vmatpush2.msra.mxu0 0.0
    %11997 = vmatprep.subr.mxu0 0.0
    %11998 = vmatpush2.msra.mxu0 0.0
    %11999 = vmatprep.subr.mxu0 0.0
    %12000 = vmatpush2.msra.mxu0 0.0
    %12001 = vmatprep.subr.mxu0 0.0
    %12002 = vmatpush2.msra.mxu0 0.0
    %12003 = vmatprep.subr.mxu0 0.0
    %12004 = vmatpush2.msra.mxu0 0.0
    %12005 = vmatprep.subr.mxu0 0.0
    %12006 = vmatpush2.msra.mxu0 0.0
    %12007 = vmatprep.subr.mxu0 0.0
    %12008 = vmatpush2.msra.mxu0 0.0
    %12009 = vmatprep.subr.mxu0 0.0
    %12010 = vmatpush2.msra.mxu0 0.0
    %12011 = vmatprep.subr.mxu0 0.0
    %12012 = vmatpush2.msra.mxu0 0.0
    %12013 = vmatprep.subr.mxu0 0.0
    %12014 = vmatpush2.msra.mxu0 0.0
    %12015 = vmatprep.subr.mxu0 0.0
    %12016 = vmatpush2.msra.mxu0 0.0
    %12017 = vmatprep.subr.mxu0 0.0
    %12018 = vmatpush2.msra.mxu0 0.0
    %12019 = vmatprep.mubr.f32.mxu0 0.0
    %v12020 = vand.u32 %v11855, 4294901760
    %12021 = vmatmul.mubr.f32.gmra.mxu0 %v12020
    %v12022 = vpop.f32.mrf.mxu0
    %v12023 = vadd.f32 %v11941, %v12022
    %v12024 = vpop.f32.mrf.mxu0
    %v12025 = vadd.f32 %v11943, %v12024
    %12026 = vdwg.mxu0
    %12027 = vmatprep.subr.mxu0 0.0
    %12028 = vmatpush1.msra.mxu0 0.0
    %12029 = vmatprep.subr.mxu0 0.0
    %12030 = vmatpush1.msra.mxu0 0.0
    %12031 = vmatprep.subr.mxu0 0.0
    %12032 = vmatpush1.msra.mxu0 0.0
    %12033 = vmatprep.subr.mxu0 0.0
    %12034 = vmatpush1.msra.mxu0 0.0
    %12035 = vmatprep.subr.mxu0 0.0
    %12036 = vmatpush1.msra.mxu0 0.0
    %12037 = vmatprep.subr.mxu0 0.0
    %12038 = vmatpush1.msra.mxu0 0.0
    %12039 = vmatprep.subr.mxu0 0.0
    %12040 = vmatpush1.msra.mxu0 0.0
    %12041 = vmatprep.subr.mxu0 0.0
    %12042 = vmatpush1.msra.mxu0 0.0
    %12043 = vmatprep.subr.mxu0 0.0
    %12044 = vmatpush1.msra.mxu0 0.0
    %12045 = vmatprep.subr.mxu0 0.0
    %12046 = vmatpush1.msra.mxu0 0.0
    %12047 = vmatprep.subr.mxu0 0.0
    %12048 = vmatpush1.msra.mxu0 0.0
    %12049 = vmatprep.subr.mxu0 0.0
    %12050 = vmatpush1.msra.mxu0 0.0
    %12051 = vmatprep.subr.mxu0 0.0
    %12052 = vmatpush1.msra.mxu0 0.0
    %12053 = vmatprep.subr.mxu0 0.0
    %12054 = vmatpush1.msra.mxu0 0.0
    %12055 = vmatprep.subr.mxu0 0.0
    %12056 = vmatpush1.msra.mxu0 0.0
    %v12057 = vand.u32 %v11859, 4294901760
    %v12058 = vsub.f32 %v11859, %v12057
    %12059 = vmatprep.subr.mxu0 %v12058
    %v12060 = vand.u32 %v11857, 4294901760
    %v12061 = vsub.f32 %v11857, %v12060
    %12062 = vmatpush1.msra.mxu0 %v12061
    %12063 = vmatprep.subr.mxu0 0.0
    %12064 = vmatpush2.msra.mxu0 0.0
    %12065 = vmatprep.subr.mxu0 0.0
    %12066 = vmatpush2.msra.mxu0 0.0
    %12067 = vmatprep.subr.mxu0 0.0
    %12068 = vmatpush2.msra.mxu0 0.0
    %12069 = vmatprep.subr.mxu0 0.0
    %12070 = vmatpush2.msra.mxu0 0.0
    %12071 = vmatprep.subr.mxu0 0.0
    %12072 = vmatpush2.msra.mxu0 0.0
    %12073 = vmatprep.subr.mxu0 0.0
    %12074 = vmatpush2.msra.mxu0 0.0
    %12075 = vmatprep.subr.mxu0 0.0
    %12076 = vmatpush2.msra.mxu0 0.0
    %12077 = vmatprep.subr.mxu0 0.0
    %12078 = vmatpush2.msra.mxu0 0.0
    %12079 = vmatprep.subr.mxu0 0.0
    %12080 = vmatpush2.msra.mxu0 0.0
    %12081 = vmatprep.subr.mxu0 0.0
    %12082 = vmatpush2.msra.mxu0 0.0
    %12083 = vmatprep.subr.mxu0 0.0
    %12084 = vmatpush2.msra.mxu0 0.0
    %12085 = vmatprep.subr.mxu0 0.0
    %12086 = vmatpush2.msra.mxu0 0.0
    %12087 = vmatprep.subr.mxu0 0.0
    %12088 = vmatpush2.msra.mxu0 0.0
    %12089 = vmatprep.subr.mxu0 0.0
    %12090 = vmatpush2.msra.mxu0 0.0
    %12091 = vmatprep.subr.mxu0 0.0
    %12092 = vmatpush2.msra.mxu0 0.0
    %12093 = vmatprep.subr.mxu0 0.0
    %12094 = vmatpush2.msra.mxu0 0.0
    %12095 = vmatprep.mubr.f32.mxu0 0.0
    %v12096 = vand.u32 %v11855, 4294901760
    %v12097 = vsub.f32 %v11855, %v12096
    %12098 = vmatmul.mubr.f32.gmra.mxu0 %v12097
    %v12099 = vpop.f32.mrf.mxu0
    %v12100 = vadd.f32 %v12023, %v12099
    %v12101 = vpop.f32.mrf.mxu0
    %v12102 = vadd.f32 %v12025, %v12101
    %12103 = vdwg.mxu0
    %12104 = vmatprep.subr.mxu0 0.0
    %12105 = vmatpush1.msra.mxu0 0.0
    %12106 = vmatprep.subr.mxu0 0.0
    %12107 = vmatpush1.msra.mxu0 0.0
    %12108 = vmatprep.subr.mxu0 0.0
    %12109 = vmatpush1.msra.mxu0 0.0
    %12110 = vmatprep.subr.mxu0 0.0
    %12111 = vmatpush1.msra.mxu0 0.0
    %12112 = vmatprep.subr.mxu0 0.0
    %12113 = vmatpush1.msra.mxu0 0.0
    %12114 = vmatprep.subr.mxu0 0.0
    %12115 = vmatpush1.msra.mxu0 0.0
    %12116 = vmatprep.subr.mxu0 0.0
    %12117 = vmatpush1.msra.mxu0 0.0
    %12118 = vmatprep.subr.mxu0 0.0
    %12119 = vmatpush1.msra.mxu0 0.0
    %12120 = vmatprep.subr.mxu0 0.0
    %12121 = vmatpush1.msra.mxu0 0.0
    %12122 = vmatprep.subr.mxu0 0.0
    %12123 = vmatpush1.msra.mxu0 0.0
    %12124 = vmatprep.subr.mxu0 0.0
    %12125 = vmatpush1.msra.mxu0 0.0
    %12126 = vmatprep.subr.mxu0 0.0
    %12127 = vmatpush1.msra.mxu0 0.0
    %12128 = vmatprep.subr.mxu0 0.0
    %12129 = vmatpush1.msra.mxu0 0.0
    %12130 = vmatprep.subr.mxu0 0.0
    %12131 = vmatpush1.msra.mxu0 0.0
    %12132 = vmatprep.subr.mxu0 0.0
    %12133 = vmatpush1.msra.mxu0 0.0
    %v12134 = vand.u32 %v11859, 4294901760
    %12135 = vmatprep.subr.mxu0 %v12134
    %v12136 = vand.u32 %v11857, 4294901760
    %12137 = vmatpush1.msra.mxu0 %v12136
    %12138 = vmatprep.subr.mxu0 0.0
    %12139 = vmatpush2.msra.mxu0 0.0
    %12140 = vmatprep.subr.mxu0 0.0
    %12141 = vmatpush2.msra.mxu0 0.0
    %12142 = vmatprep.subr.mxu0 0.0
    %12143 = vmatpush2.msra.mxu0 0.0
    %12144 = vmatprep.subr.mxu0 0.0
    %12145 = vmatpush2.msra.mxu0 0.0
    %12146 = vmatprep.subr.mxu0 0.0
    %12147 = vmatpush2.msra.mxu0 0.0
    %12148 = vmatprep.subr.mxu0 0.0
    %12149 = vmatpush2.msra.mxu0 0.0
    %12150 = vmatprep.subr.mxu0 0.0
    %12151 = vmatpush2.msra.mxu0 0.0
    %12152 = vmatprep.subr.mxu0 0.0
    %12153 = vmatpush2.msra.mxu0 0.0
    %12154 = vmatprep.subr.mxu0 0.0
    %12155 = vmatpush2.msra.mxu0 0.0
    %12156 = vmatprep.subr.mxu0 0.0
    %12157 = vmatpush2.msra.mxu0 0.0
    %12158 = vmatprep.subr.mxu0 0.0
    %12159 = vmatpush2.msra.mxu0 0.0
    %12160 = vmatprep.subr.mxu0 0.0
    %12161 = vmatpush2.msra.mxu0 0.0
    %12162 = vmatprep.subr.mxu0 0.0
    %12163 = vmatpush2.msra.mxu0 0.0
    %12164 = vmatprep.subr.mxu0 0.0
    %12165 = vmatpush2.msra.mxu0 0.0
    %12166 = vmatprep.subr.mxu0 0.0
    %12167 = vmatpush2.msra.mxu0 0.0
    %12168 = vmatprep.subr.mxu0 0.0
    %12169 = vmatpush2.msra.mxu0 0.0
    %12170 = vmatprep.mubr.f32.mxu0 0.0
    %v12171 = vand.u32 %v11855, 4294901760
    %v12172 = vsub.f32 %v11855, %v12171
    %v12173 = vand.u32 %v12172, 4294901760
    %12174 = vmatmul.mubr.f32.gmra.mxu0 %v12173
    %v12175 = vpop.f32.mrf.mxu0
    %v12176 = vadd.f32 %v12100, %v12175
    %v12177 = vpop.f32.mrf.mxu0
    %v12178 = vadd.f32 %v12102, %v12177
    %12179 = vdwg.mxu0
    %12180 = vmatprep.subr.mxu0 0.0
    %12181 = vmatpush1.msra.mxu0 0.0
    %12182 = vmatprep.subr.mxu0 0.0
    %12183 = vmatpush1.msra.mxu0 0.0
    %12184 = vmatprep.subr.mxu0 0.0
    %12185 = vmatpush1.msra.mxu0 0.0
    %12186 = vmatprep.subr.mxu0 0.0
    %12187 = vmatpush1.msra.mxu0 0.0
    %12188 = vmatprep.subr.mxu0 0.0
    %12189 = vmatpush1.msra.mxu0 0.0
    %12190 = vmatprep.subr.mxu0 0.0
    %12191 = vmatpush1.msra.mxu0 0.0
    %12192 = vmatprep.subr.mxu0 0.0
    %12193 = vmatpush1.msra.mxu0 0.0
    %12194 = vmatprep.subr.mxu0 0.0
    %12195 = vmatpush1.msra.mxu0 0.0
    %12196 = vmatprep.subr.mxu0 0.0
    %12197 = vmatpush1.msra.mxu0 0.0
    %12198 = vmatprep.subr.mxu0 0.0
    %12199 = vmatpush1.msra.mxu0 0.0
    %12200 = vmatprep.subr.mxu0 0.0
    %12201 = vmatpush1.msra.mxu0 0.0
    %12202 = vmatprep.subr.mxu0 0.0
    %12203 = vmatpush1.msra.mxu0 0.0
    %12204 = vmatprep.subr.mxu0 0.0
    %12205 = vmatpush1.msra.mxu0 0.0
    %12206 = vmatprep.subr.mxu0 0.0
    %12207 = vmatpush1.msra.mxu0 0.0
    %12208 = vmatprep.subr.mxu0 0.0
    %12209 = vmatpush1.msra.mxu0 0.0
    %v12210 = vand.u32 %v11859, 4294901760
    %v12211 = vsub.f32 %v11859, %v12210
    %v12212 = vand.u32 %v12211, 4294901760
    %12213 = vmatprep.subr.mxu0 %v12212
    %v12214 = vand.u32 %v11857, 4294901760
    %v12215 = vsub.f32 %v11857, %v12214
    %v12216 = vand.u32 %v12215, 4294901760
    %12217 = vmatpush1.msra.mxu0 %v12216
    %12218 = vmatprep.subr.mxu0 0.0
    %12219 = vmatpush2.msra.mxu0 0.0
    %12220 = vmatprep.subr.mxu0 0.0
    %12221 = vmatpush2.msra.mxu0 0.0
    %12222 = vmatprep.subr.mxu0 0.0
    %12223 = vmatpush2.msra.mxu0 0.0
    %12224 = vmatprep.subr.mxu0 0.0
    %12225 = vmatpush2.msra.mxu0 0.0
    %12226 = vmatprep.subr.mxu0 0.0
    %12227 = vmatpush2.msra.mxu0 0.0
    %12228 = vmatprep.subr.mxu0 0.0
    %12229 = vmatpush2.msra.mxu0 0.0
    %12230 = vmatprep.subr.mxu0 0.0
    %12231 = vmatpush2.msra.mxu0 0.0
    %12232 = vmatprep.subr.mxu0 0.0
    %12233 = vmatpush2.msra.mxu0 0.0
    %12234 = vmatprep.subr.mxu0 0.0
    %12235 = vmatpush2.msra.mxu0 0.0
    %12236 = vmatprep.subr.mxu0 0.0
    %12237 = vmatpush2.msra.mxu0 0.0
    %12238 = vmatprep.subr.mxu0 0.0
    %12239 = vmatpush2.msra.mxu0 0.0
    %12240 = vmatprep.subr.mxu0 0.0
    %12241 = vmatpush2.msra.mxu0 0.0
    %12242 = vmatprep.subr.mxu0 0.0
    %12243 = vmatpush2.msra.mxu0 0.0
    %12244 = vmatprep.subr.mxu0 0.0
    %12245 = vmatpush2.msra.mxu0 0.0
    %12246 = vmatprep.subr.mxu0 0.0
    %12247 = vmatpush2.msra.mxu0 0.0
    %12248 = vmatprep.subr.mxu0 0.0
    %12249 = vmatpush2.msra.mxu0 0.0
    %12250 = vmatprep.mubr.f32.mxu0 0.0
    %v12251 = vand.u32 %v11855, 4294901760
    %12252 = vmatmul.mubr.f32.gmra.mxu0 %v12251
    %v12253 = vpop.f32.mrf.mxu0
    %v12254 = vadd.f32 %v12176, %v12253
    %v12255 = vpop.f32.mrf.mxu0
    %v12256 = vadd.f32 %v12178, %v12255
    %12257 = vdwg.mxu0
    %12258 = vmatprep.subr.mxu0 0.0
    %12259 = vmatpush1.msra.mxu0 0.0
    %12260 = vmatprep.subr.mxu0 0.0
    %12261 = vmatpush1.msra.mxu0 0.0
    %12262 = vmatprep.subr.mxu0 0.0
    %12263 = vmatpush1.msra.mxu0 0.0
    %12264 = vmatprep.subr.mxu0 0.0
    %12265 = vmatpush1.msra.mxu0 0.0
    %12266 = vmatprep.subr.mxu0 0.0
    %12267 = vmatpush1.msra.mxu0 0.0
    %12268 = vmatprep.subr.mxu0 0.0
    %12269 = vmatpush1.msra.mxu0 0.0
    %12270 = vmatprep.subr.mxu0 0.0
    %12271 = vmatpush1.msra.mxu0 0.0
    %12272 = vmatprep.subr.mxu0 0.0
    %12273 = vmatpush1.msra.mxu0 0.0
    %12274 = vmatprep.subr.mxu0 0.0
    %12275 = vmatpush1.msra.mxu0 0.0
    %12276 = vmatprep.subr.mxu0 0.0
    %12277 = vmatpush1.msra.mxu0 0.0
    %12278 = vmatprep.subr.mxu0 0.0
    %12279 = vmatpush1.msra.mxu0 0.0
    %12280 = vmatprep.subr.mxu0 0.0
    %12281 = vmatpush1.msra.mxu0 0.0
    %12282 = vmatprep.subr.mxu0 0.0
    %12283 = vmatpush1.msra.mxu0 0.0
    %12284 = vmatprep.subr.mxu0 0.0
    %12285 = vmatpush1.msra.mxu0 0.0
    %12286 = vmatprep.subr.mxu0 0.0
    %12287 = vmatpush1.msra.mxu0 0.0
    %v12288 = vand.u32 %v11859, 4294901760
    %12289 = vmatprep.subr.mxu0 %v12288
    %v12290 = vand.u32 %v11857, 4294901760
    %12291 = vmatpush1.msra.mxu0 %v12290
    %12292 = vmatprep.subr.mxu0 0.0
    %12293 = vmatpush2.msra.mxu0 0.0
    %12294 = vmatprep.subr.mxu0 0.0
    %12295 = vmatpush2.msra.mxu0 0.0
    %12296 = vmatprep.subr.mxu0 0.0
    %12297 = vmatpush2.msra.mxu0 0.0
    %12298 = vmatprep.subr.mxu0 0.0
    %12299 = vmatpush2.msra.mxu0 0.0
    %12300 = vmatprep.subr.mxu0 0.0
    %12301 = vmatpush2.msra.mxu0 0.0
    %12302 = vmatprep.subr.mxu0 0.0
    %12303 = vmatpush2.msra.mxu0 0.0
    %12304 = vmatprep.subr.mxu0 0.0
    %12305 = vmatpush2.msra.mxu0 0.0
    %12306 = vmatprep.subr.mxu0 0.0
    %12307 = vmatpush2.msra.mxu0 0.0
    %12308 = vmatprep.subr.mxu0 0.0
    %12309 = vmatpush2.msra.mxu0 0.0
    %12310 = vmatprep.subr.mxu0 0.0
    %12311 = vmatpush2.msra.mxu0 0.0
    %12312 = vmatprep.subr.mxu0 0.0
    %12313 = vmatpush2.msra.mxu0 0.0
    %12314 = vmatprep.subr.mxu0 0.0
    %12315 = vmatpush2.msra.mxu0 0.0
    %12316 = vmatprep.subr.mxu0 0.0
    %12317 = vmatpush2.msra.mxu0 0.0
    %12318 = vmatprep.subr.mxu0 0.0
    %12319 = vmatpush2.msra.mxu0 0.0
    %12320 = vmatprep.subr.mxu0 0.0
    %12321 = vmatpush2.msra.mxu0 0.0
    %12322 = vmatprep.subr.mxu0 0.0
    %12323 = vmatpush2.msra.mxu0 0.0
    %12324 = vmatprep.mubr.f32.mxu0 0.0
    %v12325 = vand.u32 %v11855, 4294901760
    %12326 = vmatmul.mubr.f32.gmra.mxu0 %v12325
    %v12327 = vpop.f32.mrf.mxu0
    %v12328 = vadd.f32 %v12254, %v12327
    %v12329 = vpop.f32.mrf.mxu0
    %v12330 = vadd.f32 %v12256, %v12329
    %12331 = vdwg.mxu0
    %12332 = vmatprep.subr.mxu0 0.0
    %12333 = vmatpush1.msra.mxu0 0.0
    %12334 = vmatprep.subr.mxu0 0.0
    %12335 = vmatpush1.msra.mxu0 0.0
    %12336 = vmatprep.subr.mxu0 0.0
    %12337 = vmatpush1.msra.mxu0 0.0
    %12338 = vmatprep.subr.mxu0 0.0
    %12339 = vmatpush1.msra.mxu0 0.0
    %12340 = vmatprep.subr.mxu0 0.0
    %12341 = vmatpush1.msra.mxu0 0.0
    %12342 = vmatprep.subr.mxu0 0.0
    %12343 = vmatpush1.msra.mxu0 0.0
    %12344 = vmatprep.subr.mxu0 0.0
    %12345 = vmatpush1.msra.mxu0 0.0
    %12346 = vmatprep.subr.mxu0 0.0
    %12347 = vmatpush1.msra.mxu0 0.0
    %12348 = vmatprep.subr.mxu0 0.0
    %12349 = vmatpush1.msra.mxu0 0.0
    %12350 = vmatprep.subr.mxu0 0.0
    %12351 = vmatpush1.msra.mxu0 0.0
    %12352 = vmatprep.subr.mxu0 0.0
    %12353 = vmatpush1.msra.mxu0 0.0
    %12354 = vmatprep.subr.mxu0 0.0
    %12355 = vmatpush1.msra.mxu0 0.0
    %12356 = vmatprep.subr.mxu0 0.0
    %12357 = vmatpush1.msra.mxu0 0.0
    %12358 = vmatprep.subr.mxu0 0.0
    %12359 = vmatpush1.msra.mxu0 0.0
    %12360 = vmatprep.subr.mxu0 0.0
    %12361 = vmatpush1.msra.mxu0 0.0
    %v12362 = vand.u32 %v11863, 4294901760
    %12363 = vmatprep.subr.mxu0 %v12362
    %v12364 = vand.u32 %v11861, 4294901760
    %12365 = vmatpush1.msra.mxu0 %v12364
    %12366 = vmatprep.subr.mxu0 0.0
    %12367 = vmatpush2.msra.mxu0 0.0
    %12368 = vmatprep.subr.mxu0 0.0
    %12369 = vmatpush2.msra.mxu0 0.0
    %12370 = vmatprep.subr.mxu0 0.0
    %12371 = vmatpush2.msra.mxu0 0.0
    %12372 = vmatprep.subr.mxu0 0.0
    %12373 = vmatpush2.msra.mxu0 0.0
    %12374 = vmatprep.subr.mxu0 0.0
    %12375 = vmatpush2.msra.mxu0 0.0
    %12376 = vmatprep.subr.mxu0 0.0
    %12377 = vmatpush2.msra.mxu0 0.0
    %12378 = vmatprep.subr.mxu0 0.0
    %12379 = vmatpush2.msra.mxu0 0.0
    %12380 = vmatprep.subr.mxu0 0.0
    %12381 = vmatpush2.msra.mxu0 0.0
    %12382 = vmatprep.subr.mxu0 0.0
    %12383 = vmatpush2.msra.mxu0 0.0
    %12384 = vmatprep.subr.mxu0 0.0
    %12385 = vmatpush2.msra.mxu0 0.0
    %12386 = vmatprep.subr.mxu0 0.0
    %12387 = vmatpush2.msra.mxu0 0.0
    %12388 = vmatprep.subr.mxu0 0.0
    %12389 = vmatpush2.msra.mxu0 0.0
    %12390 = vmatprep.subr.mxu0 0.0
    %12391 = vmatpush2.msra.mxu0 0.0
    %12392 = vmatprep.subr.mxu0 0.0
    %12393 = vmatpush2.msra.mxu0 0.0
    %12394 = vmatprep.subr.mxu0 0.0
    %12395 = vmatpush2.msra.mxu0 0.0
    %12396 = vmatprep.subr.mxu0 0.0
    %12397 = vmatpush2.msra.mxu0 0.0
    %12398 = vmatprep.mubr.f32.mxu0 0.0
    %v12399 = vand.u32 %v11855, 4294901760
    %v12400 = vsub.f32 %v11855, %v12399
    %v12401 = vand.u32 %v12400, 4294901760
    %v12402 = vsub.f32 %v12400, %v12401
    %v12403 = vand.u32 %v12402, 4294901760
    %12404 = vmatmul.mubr.f32.gmra.mxu0 %v12403
    %v12405 = vpop.f32.mrf.mxu0
    %v12406 = vadd.f32 0.0, %v12405
    %v12407 = vpop.f32.mrf.mxu0
    %v12408 = vadd.f32 0.0, %v12407
    %12409 = vdwg.mxu0
    %12410 = vmatprep.subr.mxu0 0.0
    %12411 = vmatpush1.msra.mxu0 0.0
    %12412 = vmatprep.subr.mxu0 0.0
    %12413 = vmatpush1.msra.mxu0 0.0
    %12414 = vmatprep.subr.mxu0 0.0
    %12415 = vmatpush1.msra.mxu0 0.0
    %12416 = vmatprep.subr.mxu0 0.0
    %12417 = vmatpush1.msra.mxu0 0.0
    %12418 = vmatprep.subr.mxu0 0.0
    %12419 = vmatpush1.msra.mxu0 0.0
    %12420 = vmatprep.subr.mxu0 0.0
    %12421 = vmatpush1.msra.mxu0 0.0
    %12422 = vmatprep.subr.mxu0 0.0
    %12423 = vmatpush1.msra.mxu0 0.0
    %12424 = vmatprep.subr.mxu0 0.0
    %12425 = vmatpush1.msra.mxu0 0.0
    %12426 = vmatprep.subr.mxu0 0.0
    %12427 = vmatpush1.msra.mxu0 0.0
    %12428 = vmatprep.subr.mxu0 0.0
    %12429 = vmatpush1.msra.mxu0 0.0
    %12430 = vmatprep.subr.mxu0 0.0
    %12431 = vmatpush1.msra.mxu0 0.0
    %12432 = vmatprep.subr.mxu0 0.0
    %12433 = vmatpush1.msra.mxu0 0.0
    %12434 = vmatprep.subr.mxu0 0.0
    %12435 = vmatpush1.msra.mxu0 0.0
    %12436 = vmatprep.subr.mxu0 0.0
    %12437 = vmatpush1.msra.mxu0 0.0
    %12438 = vmatprep.subr.mxu0 0.0
    %12439 = vmatpush1.msra.mxu0 0.0
    %v12440 = vand.u32 %v11863, 4294901760
    %v12441 = vsub.f32 %v11863, %v12440
    %v12442 = vand.u32 %v12441, 4294901760
    %v12443 = vsub.f32 %v12441, %v12442
    %v12444 = vand.u32 %v12443, 4294901760
    %12445 = vmatprep.subr.mxu0 %v12444
    %v12446 = vand.u32 %v11861, 4294901760
    %v12447 = vsub.f32 %v11861, %v12446
    %v12448 = vand.u32 %v12447, 4294901760
    %v12449 = vsub.f32 %v12447, %v12448
    %v12450 = vand.u32 %v12449, 4294901760
    %12451 = vmatpush1.msra.mxu0 %v12450
    %12452 = vmatprep.subr.mxu0 0.0
    %12453 = vmatpush2.msra.mxu0 0.0
    %12454 = vmatprep.subr.mxu0 0.0
    %12455 = vmatpush2.msra.mxu0 0.0
    %12456 = vmatprep.subr.mxu0 0.0
    %12457 = vmatpush2.msra.mxu0 0.0
    %12458 = vmatprep.subr.mxu0 0.0
    %12459 = vmatpush2.msra.mxu0 0.0
    %12460 = vmatprep.subr.mxu0 0.0
    %12461 = vmatpush2.msra.mxu0 0.0
    %12462 = vmatprep.subr.mxu0 0.0
    %12463 = vmatpush2.msra.mxu0 0.0
    %12464 = vmatprep.subr.mxu0 0.0
    %12465 = vmatpush2.msra.mxu0 0.0
    %12466 = vmatprep.subr.mxu0 0.0
    %12467 = vmatpush2.msra.mxu0 0.0
    %12468 = vmatprep.subr.mxu0 0.0
    %12469 = vmatpush2.msra.mxu0 0.0
    %12470 = vmatprep.subr.mxu0 0.0
    %12471 = vmatpush2.msra.mxu0 0.0
    %12472 = vmatprep.subr.mxu0 0.0
    %12473 = vmatpush2.msra.mxu0 0.0
    %12474 = vmatprep.subr.mxu0 0.0
    %12475 = vmatpush2.msra.mxu0 0.0
    %12476 = vmatprep.subr.mxu0 0.0
    %12477 = vmatpush2.msra.mxu0 0.0
    %12478 = vmatprep.subr.mxu0 0.0
    %12479 = vmatpush2.msra.mxu0 0.0
    %12480 = vmatprep.subr.mxu0 0.0
    %12481 = vmatpush2.msra.mxu0 0.0
    %12482 = vmatprep.subr.mxu0 0.0
    %12483 = vmatpush2.msra.mxu0 0.0
    %12484 = vmatprep.mubr.f32.mxu0 0.0
    %v12485 = vand.u32 %v11855, 4294901760
    %12486 = vmatmul.mubr.f32.gmra.mxu0 %v12485
    %v12487 = vpop.f32.mrf.mxu0
    %v12488 = vadd.f32 %v12406, %v12487
    %v12489 = vpop.f32.mrf.mxu0
    %v12490 = vadd.f32 %v12408, %v12489
    %12491 = vdwg.mxu0
    %12492 = vmatprep.subr.mxu0 0.0
    %12493 = vmatpush1.msra.mxu0 0.0
    %12494 = vmatprep.subr.mxu0 0.0
    %12495 = vmatpush1.msra.mxu0 0.0
    %12496 = vmatprep.subr.mxu0 0.0
    %12497 = vmatpush1.msra.mxu0 0.0
    %12498 = vmatprep.subr.mxu0 0.0
    %12499 = vmatpush1.msra.mxu0 0.0
    %12500 = vmatprep.subr.mxu0 0.0
    %12501 = vmatpush1.msra.mxu0 0.0
    %12502 = vmatprep.subr.mxu0 0.0
    %12503 = vmatpush1.msra.mxu0 0.0
    %12504 = vmatprep.subr.mxu0 0.0
    %12505 = vmatpush1.msra.mxu0 0.0
    %12506 = vmatprep.subr.mxu0 0.0
    %12507 = vmatpush1.msra.mxu0 0.0
    %12508 = vmatprep.subr.mxu0 0.0
    %12509 = vmatpush1.msra.mxu0 0.0
    %12510 = vmatprep.subr.mxu0 0.0
    %12511 = vmatpush1.msra.mxu0 0.0
    %12512 = vmatprep.subr.mxu0 0.0
    %12513 = vmatpush1.msra.mxu0 0.0
    %12514 = vmatprep.subr.mxu0 0.0
    %12515 = vmatpush1.msra.mxu0 0.0
    %12516 = vmatprep.subr.mxu0 0.0
    %12517 = vmatpush1.msra.mxu0 0.0
    %12518 = vmatprep.subr.mxu0 0.0
    %12519 = vmatpush1.msra.mxu0 0.0
    %12520 = vmatprep.subr.mxu0 0.0
    %12521 = vmatpush1.msra.mxu0 0.0
    %v12522 = vand.u32 %v11863, 4294901760
    %v12523 = vsub.f32 %v11863, %v12522
    %12524 = vmatprep.subr.mxu0 %v12523
    %v12525 = vand.u32 %v11861, 4294901760
    %v12526 = vsub.f32 %v11861, %v12525
    %12527 = vmatpush1.msra.mxu0 %v12526
    %12528 = vmatprep.subr.mxu0 0.0
    %12529 = vmatpush2.msra.mxu0 0.0
    %12530 = vmatprep.subr.mxu0 0.0
    %12531 = vmatpush2.msra.mxu0 0.0
    %12532 = vmatprep.subr.mxu0 0.0
    %12533 = vmatpush2.msra.mxu0 0.0
    %12534 = vmatprep.subr.mxu0 0.0
    %12535 = vmatpush2.msra.mxu0 0.0
    %12536 = vmatprep.subr.mxu0 0.0
    %12537 = vmatpush2.msra.mxu0 0.0
    %12538 = vmatprep.subr.mxu0 0.0
    %12539 = vmatpush2.msra.mxu0 0.0
    %12540 = vmatprep.subr.mxu0 0.0
    %12541 = vmatpush2.msra.mxu0 0.0
    %12542 = vmatprep.subr.mxu0 0.0
    %12543 = vmatpush2.msra.mxu0 0.0
    %12544 = vmatprep.subr.mxu0 0.0
    %12545 = vmatpush2.msra.mxu0 0.0
    %12546 = vmatprep.subr.mxu0 0.0
    %12547 = vmatpush2.msra.mxu0 0.0
    %12548 = vmatprep.subr.mxu0 0.0
    %12549 = vmatpush2.msra.mxu0 0.0
    %12550 = vmatprep.subr.mxu0 0.0
    %12551 = vmatpush2.msra.mxu0 0.0
    %12552 = vmatprep.subr.mxu0 0.0
    %12553 = vmatpush2.msra.mxu0 0.0
    %12554 = vmatprep.subr.mxu0 0.0
    %12555 = vmatpush2.msra.mxu0 0.0
    %12556 = vmatprep.subr.mxu0 0.0
    %12557 = vmatpush2.msra.mxu0 0.0
    %12558 = vmatprep.subr.mxu0 0.0
    %12559 = vmatpush2.msra.mxu0 0.0
    %12560 = vmatprep.mubr.f32.mxu0 0.0
    %v12561 = vand.u32 %v11855, 4294901760
    %v12562 = vsub.f32 %v11855, %v12561
    %12563 = vmatmul.mubr.f32.gmra.mxu0 %v12562
    %v12564 = vpop.f32.mrf.mxu0
    %v12565 = vadd.f32 %v12488, %v12564
    %v12566 = vpop.f32.mrf.mxu0
    %v12567 = vadd.f32 %v12490, %v12566
    %12568 = vdwg.mxu0
    %12569 = vmatprep.subr.mxu0 0.0
    %12570 = vmatpush1.msra.mxu0 0.0
    %12571 = vmatprep.subr.mxu0 0.0
    %12572 = vmatpush1.msra.mxu0 0.0
    %12573 = vmatprep.subr.mxu0 0.0
    %12574 = vmatpush1.msra.mxu0 0.0
    %12575 = vmatprep.subr.mxu0 0.0
    %12576 = vmatpush1.msra.mxu0 0.0
    %12577 = vmatprep.subr.mxu0 0.0
    %12578 = vmatpush1.msra.mxu0 0.0
    %12579 = vmatprep.subr.mxu0 0.0
    %12580 = vmatpush1.msra.mxu0 0.0
    %12581 = vmatprep.subr.mxu0 0.0
    %12582 = vmatpush1.msra.mxu0 0.0
    %12583 = vmatprep.subr.mxu0 0.0
    %12584 = vmatpush1.msra.mxu0 0.0
    %12585 = vmatprep.subr.mxu0 0.0
    %12586 = vmatpush1.msra.mxu0 0.0
    %12587 = vmatprep.subr.mxu0 0.0
    %12588 = vmatpush1.msra.mxu0 0.0
    %12589 = vmatprep.subr.mxu0 0.0
    %12590 = vmatpush1.msra.mxu0 0.0
    %12591 = vmatprep.subr.mxu0 0.0
    %12592 = vmatpush1.msra.mxu0 0.0
    %12593 = vmatprep.subr.mxu0 0.0
    %12594 = vmatpush1.msra.mxu0 0.0
    %12595 = vmatprep.subr.mxu0 0.0
    %12596 = vmatpush1.msra.mxu0 0.0
    %12597 = vmatprep.subr.mxu0 0.0
    %12598 = vmatpush1.msra.mxu0 0.0
    %v12599 = vand.u32 %v11863, 4294901760
    %12600 = vmatprep.subr.mxu0 %v12599
    %v12601 = vand.u32 %v11861, 4294901760
    %12602 = vmatpush1.msra.mxu0 %v12601
    %12603 = vmatprep.subr.mxu0 0.0
    %12604 = vmatpush2.msra.mxu0 0.0
    %12605 = vmatprep.subr.mxu0 0.0
    %12606 = vmatpush2.msra.mxu0 0.0
    %12607 = vmatprep.subr.mxu0 0.0
    %12608 = vmatpush2.msra.mxu0 0.0
    %12609 = vmatprep.subr.mxu0 0.0
    %12610 = vmatpush2.msra.mxu0 0.0
    %12611 = vmatprep.subr.mxu0 0.0
    %12612 = vmatpush2.msra.mxu0 0.0
    %12613 = vmatprep.subr.mxu0 0.0
    %12614 = vmatpush2.msra.mxu0 0.0
    %12615 = vmatprep.subr.mxu0 0.0
    %12616 = vmatpush2.msra.mxu0 0.0
    %12617 = vmatprep.subr.mxu0 0.0
    %12618 = vmatpush2.msra.mxu0 0.0
    %12619 = vmatprep.subr.mxu0 0.0
    %12620 = vmatpush2.msra.mxu0 0.0
    %12621 = vmatprep.subr.mxu0 0.0
    %12622 = vmatpush2.msra.mxu0 0.0
    %12623 = vmatprep.subr.mxu0 0.0
    %12624 = vmatpush2.msra.mxu0 0.0
    %12625 = vmatprep.subr.mxu0 0.0
    %12626 = vmatpush2.msra.mxu0 0.0
    %12627 = vmatprep.subr.mxu0 0.0
    %12628 = vmatpush2.msra.mxu0 0.0
    %12629 = vmatprep.subr.mxu0 0.0
    %12630 = vmatpush2.msra.mxu0 0.0
    %12631 = vmatprep.subr.mxu0 0.0
    %12632 = vmatpush2.msra.mxu0 0.0
    %12633 = vmatprep.subr.mxu0 0.0
    %12634 = vmatpush2.msra.mxu0 0.0
    %12635 = vmatprep.mubr.f32.mxu0 0.0
    %v12636 = vand.u32 %v11855, 4294901760
    %v12637 = vsub.f32 %v11855, %v12636
    %v12638 = vand.u32 %v12637, 4294901760
    %12639 = vmatmul.mubr.f32.gmra.mxu0 %v12638
    %v12640 = vpop.f32.mrf.mxu0
    %v12641 = vadd.f32 %v12565, %v12640
    %v12642 = vpop.f32.mrf.mxu0
    %v12643 = vadd.f32 %v12567, %v12642
    %12644 = vdwg.mxu0
    %12645 = vmatprep.subr.mxu0 0.0
    %12646 = vmatpush1.msra.mxu0 0.0
    %12647 = vmatprep.subr.mxu0 0.0
    %12648 = vmatpush1.msra.mxu0 0.0
    %12649 = vmatprep.subr.mxu0 0.0
    %12650 = vmatpush1.msra.mxu0 0.0
    %12651 = vmatprep.subr.mxu0 0.0
    %12652 = vmatpush1.msra.mxu0 0.0
    %12653 = vmatprep.subr.mxu0 0.0
    %12654 = vmatpush1.msra.mxu0 0.0
    %12655 = vmatprep.subr.mxu0 0.0
    %12656 = vmatpush1.msra.mxu0 0.0
    %12657 = vmatprep.subr.mxu0 0.0
    %12658 = vmatpush1.msra.mxu0 0.0
    %12659 = vmatprep.subr.mxu0 0.0
    %12660 = vmatpush1.msra.mxu0 0.0
    %12661 = vmatprep.subr.mxu0 0.0
    %12662 = vmatpush1.msra.mxu0 0.0
    %12663 = vmatprep.subr.mxu0 0.0
    %12664 = vmatpush1.msra.mxu0 0.0
    %12665 = vmatprep.subr.mxu0 0.0
    %12666 = vmatpush1.msra.mxu0 0.0
    %12667 = vmatprep.subr.mxu0 0.0
    %12668 = vmatpush1.msra.mxu0 0.0
    %12669 = vmatprep.subr.mxu0 0.0
    %12670 = vmatpush1.msra.mxu0 0.0
    %12671 = vmatprep.subr.mxu0 0.0
    %12672 = vmatpush1.msra.mxu0 0.0
    %12673 = vmatprep.subr.mxu0 0.0
    %12674 = vmatpush1.msra.mxu0 0.0
    %v12675 = vand.u32 %v11863, 4294901760
    %v12676 = vsub.f32 %v11863, %v12675
    %v12677 = vand.u32 %v12676, 4294901760
    %12678 = vmatprep.subr.mxu0 %v12677
    %v12679 = vand.u32 %v11861, 4294901760
    %v12680 = vsub.f32 %v11861, %v12679
    %v12681 = vand.u32 %v12680, 4294901760
    %12682 = vmatpush1.msra.mxu0 %v12681
    %12683 = vmatprep.subr.mxu0 0.0
    %12684 = vmatpush2.msra.mxu0 0.0
    %12685 = vmatprep.subr.mxu0 0.0
    %12686 = vmatpush2.msra.mxu0 0.0
    %12687 = vmatprep.subr.mxu0 0.0
    %12688 = vmatpush2.msra.mxu0 0.0
    %12689 = vmatprep.subr.mxu0 0.0
    %12690 = vmatpush2.msra.mxu0 0.0
    %12691 = vmatprep.subr.mxu0 0.0
    %12692 = vmatpush2.msra.mxu0 0.0
    %12693 = vmatprep.subr.mxu0 0.0
    %12694 = vmatpush2.msra.mxu0 0.0
    %12695 = vmatprep.subr.mxu0 0.0
    %12696 = vmatpush2.msra.mxu0 0.0
    %12697 = vmatprep.subr.mxu0 0.0
    %12698 = vmatpush2.msra.mxu0 0.0
    %12699 = vmatprep.subr.mxu0 0.0
    %12700 = vmatpush2.msra.mxu0 0.0
    %12701 = vmatprep.subr.mxu0 0.0
    %12702 = vmatpush2.msra.mxu0 0.0
    %12703 = vmatprep.subr.mxu0 0.0
    %12704 = vmatpush2.msra.mxu0 0.0
    %12705 = vmatprep.subr.mxu0 0.0
    %12706 = vmatpush2.msra.mxu0 0.0
    %12707 = vmatprep.subr.mxu0 0.0
    %12708 = vmatpush2.msra.mxu0 0.0
    %12709 = vmatprep.subr.mxu0 0.0
    %12710 = vmatpush2.msra.mxu0 0.0
    %12711 = vmatprep.subr.mxu0 0.0
    %12712 = vmatpush2.msra.mxu0 0.0
    %12713 = vmatprep.subr.mxu0 0.0
    %12714 = vmatpush2.msra.mxu0 0.0
    %12715 = vmatprep.mubr.f32.mxu0 0.0
    %v12716 = vand.u32 %v11855, 4294901760
    %12717 = vmatmul.mubr.f32.gmra.mxu0 %v12716
    %v12718 = vpop.f32.mrf.mxu0
    %v12719 = vadd.f32 %v12641, %v12718
    %v12720 = vpop.f32.mrf.mxu0
    %v12721 = vadd.f32 %v12643, %v12720
    %12722 = vdwg.mxu0
    %12723 = vmatprep.subr.mxu0 0.0
    %12724 = vmatpush1.msra.mxu0 0.0
    %12725 = vmatprep.subr.mxu0 0.0
    %12726 = vmatpush1.msra.mxu0 0.0
    %12727 = vmatprep.subr.mxu0 0.0
    %12728 = vmatpush1.msra.mxu0 0.0
    %12729 = vmatprep.subr.mxu0 0.0
    %12730 = vmatpush1.msra.mxu0 0.0
    %12731 = vmatprep.subr.mxu0 0.0
    %12732 = vmatpush1.msra.mxu0 0.0
    %12733 = vmatprep.subr.mxu0 0.0
    %12734 = vmatpush1.msra.mxu0 0.0
    %12735 = vmatprep.subr.mxu0 0.0
    %12736 = vmatpush1.msra.mxu0 0.0
    %12737 = vmatprep.subr.mxu0 0.0
    %12738 = vmatpush1.msra.mxu0 0.0
    %12739 = vmatprep.subr.mxu0 0.0
    %12740 = vmatpush1.msra.mxu0 0.0
    %12741 = vmatprep.subr.mxu0 0.0
    %12742 = vmatpush1.msra.mxu0 0.0
    %12743 = vmatprep.subr.mxu0 0.0
    %12744 = vmatpush1.msra.mxu0 0.0
    %12745 = vmatprep.subr.mxu0 0.0
    %12746 = vmatpush1.msra.mxu0 0.0
    %12747 = vmatprep.subr.mxu0 0.0
    %12748 = vmatpush1.msra.mxu0 0.0
    %12749 = vmatprep.subr.mxu0 0.0
    %12750 = vmatpush1.msra.mxu0 0.0
    %12751 = vmatprep.subr.mxu0 0.0
    %12752 = vmatpush1.msra.mxu0 0.0
    %v12753 = vand.u32 %v11863, 4294901760
    %12754 = vmatprep.subr.mxu0 %v12753
    %v12755 = vand.u32 %v11861, 4294901760
    %12756 = vmatpush1.msra.mxu0 %v12755
    %12757 = vmatprep.subr.mxu0 0.0
    %12758 = vmatpush2.msra.mxu0 0.0
    %12759 = vmatprep.subr.mxu0 0.0
    %12760 = vmatpush2.msra.mxu0 0.0
    %12761 = vmatprep.subr.mxu0 0.0
    %12762 = vmatpush2.msra.mxu0 0.0
    %12763 = vmatprep.subr.mxu0 0.0
    %12764 = vmatpush2.msra.mxu0 0.0
    %12765 = vmatprep.subr.mxu0 0.0
    %12766 = vmatpush2.msra.mxu0 0.0
    %12767 = vmatprep.subr.mxu0 0.0
    %12768 = vmatpush2.msra.mxu0 0.0
    %12769 = vmatprep.subr.mxu0 0.0
    %12770 = vmatpush2.msra.mxu0 0.0
    %12771 = vmatprep.subr.mxu0 0.0
    %12772 = vmatpush2.msra.mxu0 0.0
    %12773 = vmatprep.subr.mxu0 0.0
    %12774 = vmatpush2.msra.mxu0 0.0
    %12775 = vmatprep.subr.mxu0 0.0
    %12776 = vmatpush2.msra.mxu0 0.0
    %12777 = vmatprep.subr.mxu0 0.0
    %12778 = vmatpush2.msra.mxu0 0.0
    %12779 = vmatprep.subr.mxu0 0.0
    %12780 = vmatpush2.msra.mxu0 0.0
    %12781 = vmatprep.subr.mxu0 0.0
    %12782 = vmatpush2.msra.mxu0 0.0
    %12783 = vmatprep.subr.mxu0 0.0
    %12784 = vmatpush2.msra.mxu0 0.0
    %12785 = vmatprep.subr.mxu0 0.0
    %12786 = vmatpush2.msra.mxu0 0.0
    %12787 = vmatprep.subr.mxu0 0.0
    %12788 = vmatpush2.msra.mxu0 0.0
    %12789 = vmatprep.mubr.f32.mxu0 0.0
    %v12790 = vand.u32 %v11855, 4294901760
    %12791 = vmatmul.mubr.f32.gmra.mxu0 %v12790
    %v12792 = vpop.f32.mrf.mxu0
    %v12793 = vadd.f32 %v12719, %v12792
    %v12794 = vpop.f32.mrf.mxu0
    %v12795 = vadd.f32 %v12721, %v12794
    %12796 = vdwg.mxu0
    %12797 = vmatprep.subr.mxu0 0.0
    %12798 = vmatpush1.msra.mxu0 0.0
    %12799 = vmatprep.subr.mxu0 0.0
    %12800 = vmatpush1.msra.mxu0 0.0
    %12801 = vmatprep.subr.mxu0 0.0
    %12802 = vmatpush1.msra.mxu0 0.0
    %12803 = vmatprep.subr.mxu0 0.0
    %12804 = vmatpush1.msra.mxu0 0.0
    %12805 = vmatprep.subr.mxu0 0.0
    %12806 = vmatpush1.msra.mxu0 0.0
    %12807 = vmatprep.subr.mxu0 0.0
    %12808 = vmatpush1.msra.mxu0 0.0
    %12809 = vmatprep.subr.mxu0 0.0
    %12810 = vmatpush1.msra.mxu0 0.0
    %12811 = vmatprep.subr.mxu0 0.0
    %12812 = vmatpush1.msra.mxu0 0.0
    %12813 = vmatprep.subr.mxu0 0.0
    %12814 = vmatpush1.msra.mxu0 0.0
    %12815 = vmatprep.subr.mxu0 0.0
    %12816 = vmatpush1.msra.mxu0 0.0
    %12817 = vmatprep.subr.mxu0 0.0
    %12818 = vmatpush1.msra.mxu0 0.0
    %12819 = vmatprep.subr.mxu0 0.0
    %12820 = vmatpush1.msra.mxu0 0.0
    %12821 = vmatprep.subr.mxu0 0.0
    %12822 = vmatpush1.msra.mxu0 0.0
    %12823 = vmatprep.subr.mxu0 0.0
    %12824 = vmatpush1.msra.mxu0 0.0
    %12825 = vmatprep.subr.mxu0 0.0
    %12826 = vmatpush1.msra.mxu0 0.0
    %12827 = vmatprep.subr.mxu0 0.0
    %v12828 = vand.u32 %v11865, 4294901760
    %12829 = vmatpush1.msra.mxu0 %v12828
    %12830 = vmatprep.subr.mxu0 0.0
    %12831 = vmatpush2.msra.mxu0 0.0
    %12832 = vmatprep.subr.mxu0 0.0
    %12833 = vmatpush2.msra.mxu0 0.0
    %12834 = vmatprep.subr.mxu0 0.0
    %12835 = vmatpush2.msra.mxu0 0.0
    %12836 = vmatprep.subr.mxu0 0.0
    %12837 = vmatpush2.msra.mxu0 0.0
    %12838 = vmatprep.subr.mxu0 0.0
    %12839 = vmatpush2.msra.mxu0 0.0
    %12840 = vmatprep.subr.mxu0 0.0
    %12841 = vmatpush2.msra.mxu0 0.0
    %12842 = vmatprep.subr.mxu0 0.0
    %12843 = vmatpush2.msra.mxu0 0.0
    %12844 = vmatprep.subr.mxu0 0.0
    %12845 = vmatpush2.msra.mxu0 0.0
    %12846 = vmatprep.subr.mxu0 0.0
    %12847 = vmatpush2.msra.mxu0 0.0
    %12848 = vmatprep.subr.mxu0 0.0
    %12849 = vmatpush2.msra.mxu0 0.0
    %12850 = vmatprep.subr.mxu0 0.0
    %12851 = vmatpush2.msra.mxu0 0.0
    %12852 = vmatprep.subr.mxu0 0.0
    %12853 = vmatpush2.msra.mxu0 0.0
    %12854 = vmatprep.subr.mxu0 0.0
    %12855 = vmatpush2.msra.mxu0 0.0
    %12856 = vmatprep.subr.mxu0 0.0
    %12857 = vmatpush2.msra.mxu0 0.0
    %12858 = vmatprep.subr.mxu0 0.0
    %12859 = vmatpush2.msra.mxu0 0.0
    %12860 = vmatprep.subr.mxu0 0.0
    %12861 = vmatpush2.msra.mxu0 0.0
    %12862 = vmatprep.mubr.f32.mxu0 0.0
    %v12863 = vand.u32 %v11855, 4294901760
    %v12864 = vsub.f32 %v11855, %v12863
    %v12865 = vand.u32 %v12864, 4294901760
    %v12866 = vsub.f32 %v12864, %v12865
    %v12867 = vand.u32 %v12866, 4294901760
    %12868 = vmatmul.mubr.f32.gmra.mxu0 %v12867
    %v12869 = vpop.f32.mrf.mxu0
    %v12870 = vadd.f32 0.0, %v12869
    %v12871 = vpop.f32.mrf.mxu0
    %12872 = vdwg.mxu0
    %12873 = vmatprep.subr.mxu0 0.0
    %12874 = vmatpush1.msra.mxu0 0.0
    %12875 = vmatprep.subr.mxu0 0.0
    %12876 = vmatpush1.msra.mxu0 0.0
    %12877 = vmatprep.subr.mxu0 0.0
    %12878 = vmatpush1.msra.mxu0 0.0
    %12879 = vmatprep.subr.mxu0 0.0
    %12880 = vmatpush1.msra.mxu0 0.0
    %12881 = vmatprep.subr.mxu0 0.0
    %12882 = vmatpush1.msra.mxu0 0.0
    %12883 = vmatprep.subr.mxu0 0.0
    %12884 = vmatpush1.msra.mxu0 0.0
    %12885 = vmatprep.subr.mxu0 0.0
    %12886 = vmatpush1.msra.mxu0 0.0
    %12887 = vmatprep.subr.mxu0 0.0
    %12888 = vmatpush1.msra.mxu0 0.0
    %12889 = vmatprep.subr.mxu0 0.0
    %12890 = vmatpush1.msra.mxu0 0.0
    %12891 = vmatprep.subr.mxu0 0.0
    %12892 = vmatpush1.msra.mxu0 0.0
    %12893 = vmatprep.subr.mxu0 0.0
    %12894 = vmatpush1.msra.mxu0 0.0
    %12895 = vmatprep.subr.mxu0 0.0
    %12896 = vmatpush1.msra.mxu0 0.0
    %12897 = vmatprep.subr.mxu0 0.0
    %12898 = vmatpush1.msra.mxu0 0.0
    %12899 = vmatprep.subr.mxu0 0.0
    %12900 = vmatpush1.msra.mxu0 0.0
    %12901 = vmatprep.subr.mxu0 0.0
    %12902 = vmatpush1.msra.mxu0 0.0
    %12903 = vmatprep.subr.mxu0 0.0
    %v12904 = vand.u32 %v11865, 4294901760
    %v12905 = vsub.f32 %v11865, %v12904
    %v12906 = vand.u32 %v12905, 4294901760
    %v12907 = vsub.f32 %v12905, %v12906
    %v12908 = vand.u32 %v12907, 4294901760
    %12909 = vmatpush1.msra.mxu0 %v12908
    %12910 = vmatprep.subr.mxu0 0.0
    %12911 = vmatpush2.msra.mxu0 0.0
    %12912 = vmatprep.subr.mxu0 0.0
    %12913 = vmatpush2.msra.mxu0 0.0
    %12914 = vmatprep.subr.mxu0 0.0
    %12915 = vmatpush2.msra.mxu0 0.0
    %12916 = vmatprep.subr.mxu0 0.0
    %12917 = vmatpush2.msra.mxu0 0.0
    %12918 = vmatprep.subr.mxu0 0.0
    %12919 = vmatpush2.msra.mxu0 0.0
    %12920 = vmatprep.subr.mxu0 0.0
    %12921 = vmatpush2.msra.mxu0 0.0
    %12922 = vmatprep.subr.mxu0 0.0
    %12923 = vmatpush2.msra.mxu0 0.0
    %12924 = vmatprep.subr.mxu0 0.0
    %12925 = vmatpush2.msra.mxu0 0.0
    %12926 = vmatprep.subr.mxu0 0.0
    %12927 = vmatpush2.msra.mxu0 0.0
    %12928 = vmatprep.subr.mxu0 0.0
    %12929 = vmatpush2.msra.mxu0 0.0
    %12930 = vmatprep.subr.mxu0 0.0
    %12931 = vmatpush2.msra.mxu0 0.0
    %12932 = vmatprep.subr.mxu0 0.0
    %12933 = vmatpush2.msra.mxu0 0.0
    %12934 = vmatprep.subr.mxu0 0.0
    %12935 = vmatpush2.msra.mxu0 0.0
    %12936 = vmatprep.subr.mxu0 0.0
    %12937 = vmatpush2.msra.mxu0 0.0
    %12938 = vmatprep.subr.mxu0 0.0
    %12939 = vmatpush2.msra.mxu0 0.0
    %12940 = vmatprep.subr.mxu0 0.0
    %12941 = vmatpush2.msra.mxu0 0.0
    %12942 = vmatprep.mubr.f32.mxu0 0.0
    %v12943 = vand.u32 %v11855, 4294901760
    %12944 = vmatmul.mubr.f32.gmra.mxu0 %v12943
    %v12945 = vpop.f32.mrf.mxu0
    %v12946 = vadd.f32 %v12870, %v12945
    %v12947 = vpop.f32.mrf.mxu0
    %12948 = vdwg.mxu0
    %12949 = vmatprep.subr.mxu0 0.0
    %12950 = vmatpush1.msra.mxu0 0.0
    %12951 = vmatprep.subr.mxu0 0.0
    %12952 = vmatpush1.msra.mxu0 0.0
    %12953 = vmatprep.subr.mxu0 0.0
    %12954 = vmatpush1.msra.mxu0 0.0
    %12955 = vmatprep.subr.mxu0 0.0
    %12956 = vmatpush1.msra.mxu0 0.0
    %12957 = vmatprep.subr.mxu0 0.0
    %12958 = vmatpush1.msra.mxu0 0.0
    %12959 = vmatprep.subr.mxu0 0.0
    %12960 = vmatpush1.msra.mxu0 0.0
    %12961 = vmatprep.subr.mxu0 0.0
    %12962 = vmatpush1.msra.mxu0 0.0
    %12963 = vmatprep.subr.mxu0 0.0
    %12964 = vmatpush1.msra.mxu0 0.0
    %12965 = vmatprep.subr.mxu0 0.0
    %12966 = vmatpush1.msra.mxu0 0.0
    %12967 = vmatprep.subr.mxu0 0.0
    %12968 = vmatpush1.msra.mxu0 0.0
    %12969 = vmatprep.subr.mxu0 0.0
    %12970 = vmatpush1.msra.mxu0 0.0
    %12971 = vmatprep.subr.mxu0 0.0
    %12972 = vmatpush1.msra.mxu0 0.0
    %12973 = vmatprep.subr.mxu0 0.0
    %12974 = vmatpush1.msra.mxu0 0.0
    %12975 = vmatprep.subr.mxu0 0.0
    %12976 = vmatpush1.msra.mxu0 0.0
    %12977 = vmatprep.subr.mxu0 0.0
    %12978 = vmatpush1.msra.mxu0 0.0
    %12979 = vmatprep.subr.mxu0 0.0
    %v12980 = vand.u32 %v11865, 4294901760
    %v12981 = vsub.f32 %v11865, %v12980
    %12982 = vmatpush1.msra.mxu0 %v12981
    %12983 = vmatprep.subr.mxu0 0.0
    %12984 = vmatpush2.msra.mxu0 0.0
    %12985 = vmatprep.subr.mxu0 0.0
    %12986 = vmatpush2.msra.mxu0 0.0
    %12987 = vmatprep.subr.mxu0 0.0
    %12988 = vmatpush2.msra.mxu0 0.0
    %12989 = vmatprep.subr.mxu0 0.0
    %12990 = vmatpush2.msra.mxu0 0.0
    %12991 = vmatprep.subr.mxu0 0.0
    %12992 = vmatpush2.msra.mxu0 0.0
    %12993 = vmatprep.subr.mxu0 0.0
    %12994 = vmatpush2.msra.mxu0 0.0
    %12995 = vmatprep.subr.mxu0 0.0
    %12996 = vmatpush2.msra.mxu0 0.0
    %12997 = vmatprep.subr.mxu0 0.0
    %12998 = vmatpush2.msra.mxu0 0.0
    %12999 = vmatprep.subr.mxu0 0.0
    %13000 = vmatpush2.msra.mxu0 0.0
    %13001 = vmatprep.subr.mxu0 0.0
    %13002 = vmatpush2.msra.mxu0 0.0
    %13003 = vmatprep.subr.mxu0 0.0
    %13004 = vmatpush2.msra.mxu0 0.0
    %13005 = vmatprep.subr.mxu0 0.0
    %13006 = vmatpush2.msra.mxu0 0.0
    %13007 = vmatprep.subr.mxu0 0.0
    %13008 = vmatpush2.msra.mxu0 0.0
    %13009 = vmatprep.subr.mxu0 0.0
    %13010 = vmatpush2.msra.mxu0 0.0
    %13011 = vmatprep.subr.mxu0 0.0
    %13012 = vmatpush2.msra.mxu0 0.0
    %13013 = vmatprep.subr.mxu0 0.0
    %13014 = vmatpush2.msra.mxu0 0.0
    %13015 = vmatprep.mubr.f32.mxu0 0.0
    %v13016 = vand.u32 %v11855, 4294901760
    %v13017 = vsub.f32 %v11855, %v13016
    %13018 = vmatmul.mubr.f32.gmra.mxu0 %v13017
    %v13019 = vpop.f32.mrf.mxu0
    %v13020 = vadd.f32 %v12946, %v13019
    %v13021 = vpop.f32.mrf.mxu0
    %13022 = vdwg.mxu0
    %13023 = vmatprep.subr.mxu0 0.0
    %13024 = vmatpush1.msra.mxu0 0.0
    %13025 = vmatprep.subr.mxu0 0.0
    %13026 = vmatpush1.msra.mxu0 0.0
    %13027 = vmatprep.subr.mxu0 0.0
    %13028 = vmatpush1.msra.mxu0 0.0
    %13029 = vmatprep.subr.mxu0 0.0
    %13030 = vmatpush1.msra.mxu0 0.0
    %13031 = vmatprep.subr.mxu0 0.0
    %13032 = vmatpush1.msra.mxu0 0.0
    %13033 = vmatprep.subr.mxu0 0.0
    %13034 = vmatpush1.msra.mxu0 0.0
    %13035 = vmatprep.subr.mxu0 0.0
    %13036 = vmatpush1.msra.mxu0 0.0
    %13037 = vmatprep.subr.mxu0 0.0
    %13038 = vmatpush1.msra.mxu0 0.0
    %13039 = vmatprep.subr.mxu0 0.0
    %13040 = vmatpush1.msra.mxu0 0.0
    %13041 = vmatprep.subr.mxu0 0.0
    %13042 = vmatpush1.msra.mxu0 0.0
    %13043 = vmatprep.subr.mxu0 0.0
    %13044 = vmatpush1.msra.mxu0 0.0
    %13045 = vmatprep.subr.mxu0 0.0
    %13046 = vmatpush1.msra.mxu0 0.0
    %13047 = vmatprep.subr.mxu0 0.0
    %13048 = vmatpush1.msra.mxu0 0.0
    %13049 = vmatprep.subr.mxu0 0.0
    %13050 = vmatpush1.msra.mxu0 0.0
    %13051 = vmatprep.subr.mxu0 0.0
    %13052 = vmatpush1.msra.mxu0 0.0
    %13053 = vmatprep.subr.mxu0 0.0
    %v13054 = vand.u32 %v11865, 4294901760
    %13055 = vmatpush1.msra.mxu0 %v13054
    %13056 = vmatprep.subr.mxu0 0.0
    %13057 = vmatpush2.msra.mxu0 0.0
    %13058 = vmatprep.subr.mxu0 0.0
    %13059 = vmatpush2.msra.mxu0 0.0
    %13060 = vmatprep.subr.mxu0 0.0
    %13061 = vmatpush2.msra.mxu0 0.0
    %13062 = vmatprep.subr.mxu0 0.0
    %13063 = vmatpush2.msra.mxu0 0.0
    %13064 = vmatprep.subr.mxu0 0.0
    %13065 = vmatpush2.msra.mxu0 0.0
    %13066 = vmatprep.subr.mxu0 0.0
    %13067 = vmatpush2.msra.mxu0 0.0
    %13068 = vmatprep.subr.mxu0 0.0
    %13069 = vmatpush2.msra.mxu0 0.0
    %13070 = vmatprep.subr.mxu0 0.0
    %13071 = vmatpush2.msra.mxu0 0.0
    %13072 = vmatprep.subr.mxu0 0.0
    %13073 = vmatpush2.msra.mxu0 0.0
    %13074 = vmatprep.subr.mxu0 0.0
    %13075 = vmatpush2.msra.mxu0 0.0
    %13076 = vmatprep.subr.mxu0 0.0
    %13077 = vmatpush2.msra.mxu0 0.0
    %13078 = vmatprep.subr.mxu0 0.0
    %13079 = vmatpush2.msra.mxu0 0.0
    %13080 = vmatprep.subr.mxu0 0.0
    %13081 = vmatpush2.msra.mxu0 0.0
    %13082 = vmatprep.subr.mxu0 0.0
    %13083 = vmatpush2.msra.mxu0 0.0
    %13084 = vmatprep.subr.mxu0 0.0
    %13085 = vmatpush2.msra.mxu0 0.0
    %13086 = vmatprep.subr.mxu0 0.0
    %13087 = vmatpush2.msra.mxu0 0.0
    %13088 = vmatprep.mubr.f32.mxu0 0.0
    %v13089 = vand.u32 %v11855, 4294901760
    %v13090 = vsub.f32 %v11855, %v13089
    %v13091 = vand.u32 %v13090, 4294901760
    %13092 = vmatmul.mubr.f32.gmra.mxu0 %v13091
    %v13093 = vpop.f32.mrf.mxu0
    %v13094 = vadd.f32 %v13020, %v13093
    %v13095 = vpop.f32.mrf.mxu0
    %13096 = vdwg.mxu0
    %13097 = vmatprep.subr.mxu0 0.0
    %13098 = vmatpush1.msra.mxu0 0.0
    %13099 = vmatprep.subr.mxu0 0.0
    %13100 = vmatpush1.msra.mxu0 0.0
    %13101 = vmatprep.subr.mxu0 0.0
    %13102 = vmatpush1.msra.mxu0 0.0
    %13103 = vmatprep.subr.mxu0 0.0
    %13104 = vmatpush1.msra.mxu0 0.0
    %13105 = vmatprep.subr.mxu0 0.0
    %13106 = vmatpush1.msra.mxu0 0.0
    %13107 = vmatprep.subr.mxu0 0.0
    %13108 = vmatpush1.msra.mxu0 0.0
    %13109 = vmatprep.subr.mxu0 0.0
    %13110 = vmatpush1.msra.mxu0 0.0
    %13111 = vmatprep.subr.mxu0 0.0
    %13112 = vmatpush1.msra.mxu0 0.0
    %13113 = vmatprep.subr.mxu0 0.0
    %13114 = vmatpush1.msra.mxu0 0.0
    %13115 = vmatprep.subr.mxu0 0.0
    %13116 = vmatpush1.msra.mxu0 0.0
    %13117 = vmatprep.subr.mxu0 0.0
    %13118 = vmatpush1.msra.mxu0 0.0
    %13119 = vmatprep.subr.mxu0 0.0
    %13120 = vmatpush1.msra.mxu0 0.0
    %13121 = vmatprep.subr.mxu0 0.0
    %13122 = vmatpush1.msra.mxu0 0.0
    %13123 = vmatprep.subr.mxu0 0.0
    %13124 = vmatpush1.msra.mxu0 0.0
    %13125 = vmatprep.subr.mxu0 0.0
    %13126 = vmatpush1.msra.mxu0 0.0
    %13127 = vmatprep.subr.mxu0 0.0
    %v13128 = vand.u32 %v11865, 4294901760
    %v13129 = vsub.f32 %v11865, %v13128
    %v13130 = vand.u32 %v13129, 4294901760
    %13131 = vmatpush1.msra.mxu0 %v13130
    %13132 = vmatprep.subr.mxu0 0.0
    %13133 = vmatpush2.msra.mxu0 0.0
    %13134 = vmatprep.subr.mxu0 0.0
    %13135 = vmatpush2.msra.mxu0 0.0
    %13136 = vmatprep.subr.mxu0 0.0
    %13137 = vmatpush2.msra.mxu0 0.0
    %13138 = vmatprep.subr.mxu0 0.0
    %13139 = vmatpush2.msra.mxu0 0.0
    %13140 = vmatprep.subr.mxu0 0.0
    %13141 = vmatpush2.msra.mxu0 0.0
    %13142 = vmatprep.subr.mxu0 0.0
    %13143 = vmatpush2.msra.mxu0 0.0
    %13144 = vmatprep.subr.mxu0 0.0
    %13145 = vmatpush2.msra.mxu0 0.0
    %13146 = vmatprep.subr.mxu0 0.0
    %13147 = vmatpush2.msra.mxu0 0.0
    %13148 = vmatprep.subr.mxu0 0.0
    %13149 = vmatpush2.msra.mxu0 0.0
    %13150 = vmatprep.subr.mxu0 0.0
    %13151 = vmatpush2.msra.mxu0 0.0
    %13152 = vmatprep.subr.mxu0 0.0
    %13153 = vmatpush2.msra.mxu0 0.0
    %13154 = vmatprep.subr.mxu0 0.0
    %13155 = vmatpush2.msra.mxu0 0.0
    %13156 = vmatprep.subr.mxu0 0.0
    %13157 = vmatpush2.msra.mxu0 0.0
    %13158 = vmatprep.subr.mxu0 0.0
    %13159 = vmatpush2.msra.mxu0 0.0
    %13160 = vmatprep.subr.mxu0 0.0
    %13161 = vmatpush2.msra.mxu0 0.0
    %13162 = vmatprep.subr.mxu0 0.0
    %13163 = vmatpush2.msra.mxu0 0.0
    %13164 = vmatprep.mubr.f32.mxu0 0.0
    %v13165 = vand.u32 %v11855, 4294901760
    %13166 = vmatmul.mubr.f32.gmra.mxu0 %v13165
    %v13167 = vpop.f32.mrf.mxu0
    %v13168 = vadd.f32 %v13094, %v13167
    %v13169 = vpop.f32.mrf.mxu0
    %13170 = vdwg.mxu0
    %13171 = vmatprep.subr.mxu0 0.0
    %13172 = vmatpush1.msra.mxu0 0.0
    %13173 = vmatprep.subr.mxu0 0.0
    %13174 = vmatpush1.msra.mxu0 0.0
    %13175 = vmatprep.subr.mxu0 0.0
    %13176 = vmatpush1.msra.mxu0 0.0
    %13177 = vmatprep.subr.mxu0 0.0
    %13178 = vmatpush1.msra.mxu0 0.0
    %13179 = vmatprep.subr.mxu0 0.0
    %13180 = vmatpush1.msra.mxu0 0.0
    %13181 = vmatprep.subr.mxu0 0.0
    %13182 = vmatpush1.msra.mxu0 0.0
    %13183 = vmatprep.subr.mxu0 0.0
    %13184 = vmatpush1.msra.mxu0 0.0
    %13185 = vmatprep.subr.mxu0 0.0
    %13186 = vmatpush1.msra.mxu0 0.0
    %13187 = vmatprep.subr.mxu0 0.0
    %13188 = vmatpush1.msra.mxu0 0.0
    %13189 = vmatprep.subr.mxu0 0.0
    %13190 = vmatpush1.msra.mxu0 0.0
    %13191 = vmatprep.subr.mxu0 0.0
    %13192 = vmatpush1.msra.mxu0 0.0
    %13193 = vmatprep.subr.mxu0 0.0
    %13194 = vmatpush1.msra.mxu0 0.0
    %13195 = vmatprep.subr.mxu0 0.0
    %13196 = vmatpush1.msra.mxu0 0.0
    %13197 = vmatprep.subr.mxu0 0.0
    %13198 = vmatpush1.msra.mxu0 0.0
    %13199 = vmatprep.subr.mxu0 0.0
    %13200 = vmatpush1.msra.mxu0 0.0
    %13201 = vmatprep.subr.mxu0 0.0
    %v13202 = vand.u32 %v11865, 4294901760
    %13203 = vmatpush1.msra.mxu0 %v13202
    %13204 = vmatprep.subr.mxu0 0.0
    %13205 = vmatpush2.msra.mxu0 0.0
    %13206 = vmatprep.subr.mxu0 0.0
    %13207 = vmatpush2.msra.mxu0 0.0
    %13208 = vmatprep.subr.mxu0 0.0
    %13209 = vmatpush2.msra.mxu0 0.0
    %13210 = vmatprep.subr.mxu0 0.0
    %13211 = vmatpush2.msra.mxu0 0.0
    %13212 = vmatprep.subr.mxu0 0.0
    %13213 = vmatpush2.msra.mxu0 0.0
    %13214 = vmatprep.subr.mxu0 0.0
    %13215 = vmatpush2.msra.mxu0 0.0
    %13216 = vmatprep.subr.mxu0 0.0
    %13217 = vmatpush2.msra.mxu0 0.0
    %13218 = vmatprep.subr.mxu0 0.0
    %13219 = vmatpush2.msra.mxu0 0.0
    %13220 = vmatprep.subr.mxu0 0.0
    %13221 = vmatpush2.msra.mxu0 0.0
    %13222 = vmatprep.subr.mxu0 0.0
    %13223 = vmatpush2.msra.mxu0 0.0
    %13224 = vmatprep.subr.mxu0 0.0
    %13225 = vmatpush2.msra.mxu0 0.0
    %13226 = vmatprep.subr.mxu0 0.0
    %13227 = vmatpush2.msra.mxu0 0.0
    %13228 = vmatprep.subr.mxu0 0.0
    %13229 = vmatpush2.msra.mxu0 0.0
    %13230 = vmatprep.subr.mxu0 0.0
    %13231 = vmatpush2.msra.mxu0 0.0
    %13232 = vmatprep.subr.mxu0 0.0
    %13233 = vmatpush2.msra.mxu0 0.0
    %13234 = vmatprep.subr.mxu0 0.0
    %13235 = vmatpush2.msra.mxu0 0.0
    %13236 = vmatprep.mubr.f32.mxu0 0.0
    %v13237 = vand.u32 %v11855, 4294901760
    %13238 = vmatmul.mubr.f32.gmra.mxu0 %v13237
    %v13239 = vpop.f32.mrf.mxu0
    %v13240 = vadd.f32 %v13168, %v13239
    %v13241 = vpop.f32.mrf.mxu0
    %13242 = vdwg.mxu0
    %v13243 = vlaneseq
    %v13244 = vshrl.u32 %v13243, 7
    %v13245 = vsub.s32 0, %v13244
    %v13246 = vrot.slane %v12328, %v13245
    %v13247 = vlaneseq
    %v13248 = vshrl.u32 %v13247, 7
    %v13249 = vsub.s32 0, %v13248
    %v13250 = vrot.slane %v12330, %v13249
    %v13251 = vlaneseq
    %v13252 = vshrl.u32 %v13251, 7
    %v13253 = vsub.s32 0, %v13252
    %v13254 = vrot.slane %v12793, %v13253
    %v13255 = vlaneseq
    %v13256 = vshrl.u32 %v13255, 7
    %v13257 = vsub.s32 0, %v13256
    %v13258 = vrot.slane %v12795, %v13257
    %v13259 = vlaneseq
    %v13260 = vshrl.u32 %v13259, 7
    %v13261 = vsub.s32 0, %v13260
    %v13262 = vrot.slane %v13240, %v13261
    %v13263 = vmul.f32 %v10062, %v13246
    %v13264 = vmul.f32 %v10064, %v13250
    %v13265 = vmul.f32 %v10226, %v13254
    %v13266 = vmul.f32 %v10228, %v13258
    %v13267 = vmul.f32 %v10387, %v13262
    %v13268 = vlaneseq
    %v13269 = vshrl.u32 %v13268, 7
    %v13270 = vsub.s32 1, %v13269
    %v13271 = vrot.slane %v12328, %v13270
    %v13272 = vlaneseq
    %v13273 = vshrl.u32 %v13272, 7
    %v13274 = vsub.s32 1, %v13273
    %v13275 = vrot.slane %v12330, %v13274
    %v13276 = vlaneseq
    %v13277 = vshrl.u32 %v13276, 7
    %v13278 = vsub.s32 1, %v13277
    %v13279 = vrot.slane %v12793, %v13278
    %v13280 = vlaneseq
    %v13281 = vshrl.u32 %v13280, 7
    %v13282 = vsub.s32 1, %v13281
    %v13283 = vrot.slane %v12795, %v13282
    %v13284 = vlaneseq
    %v13285 = vshrl.u32 %v13284, 7
    %v13286 = vsub.s32 1, %v13285
    %v13287 = vrot.slane %v13240, %v13286
    %v13288 = vadd.f32 %v13263, %v13271
    %v13289 = vadd.f32 %v13264, %v13275
    %v13290 = vadd.f32 %v13265, %v13279
    %v13291 = vadd.f32 %v13266, %v13283
    %v13292 = vadd.f32 %v13267, %v13287
    %v13293 = vmax.f32 %v13288, 0.0
    %v13294 = vmax.f32 %v13289, 0.0
    %v13295 = vmax.f32 %v13290, 0.0
    %v13296 = vmax.f32 %v13291, 0.0
    %v13297 = vmax.f32 %v13292, 0.0
    %v13298 = vld [vmem:[#allocation5] sm:$0xff]
    %v13299 = vld [vmem:[#allocation5 + $0x8] sm:$0x3]
    %v13302 = vcombine.high %v13298, %v13298
    %v13304 = vunpack.c.l.s4 1983009808
    %v13305 = vunpack.c.0.s8 %v13304
    %v13306 = vlaneseq
    %v13307 = vshrl.u32 %v13306, 7
    %v13308 = vsub.s32 %v13305, %v13307
    %v13309 = vrot.slane %v13298, %v13308
    %v13311 = vunpack.c.l.s4 1983009808
    %v13312 = vunpack.c.0.s8 %v13311
    %v13313 = vlaneseq
    %v13314 = vshrl.u32 %v13313, 7
    %v13315 = vsub.s32 %v13312, %v13314
    %v13316 = vrot.slane %v13302, %v13315
    %v13317 = vcombine.high %v13309, %v13309
    %v13318 = vcombine.high %v13316, %v13316
    %v13320 = vunpack.c.l.s4 1983009808
    %v13321 = vunpack.c.0.s8 %v13320
    %v13322 = vlaneseq
    %v13323 = vshrl.u32 %v13322, 7
    %v13324 = vsub.s32 %v13321, %v13323
    %v13325 = vrot.slane %v13299, %v13324
    %v13331 = vadd.f32 %v13293, %v13309
    %v13332 = vadd.f32 %v13294, %v13317
    %v13333 = vadd.f32 %v13295, %v13316
    %v13334 = vadd.f32 %v13296, %v13318
    %v13335 = vadd.f32 %v13297, %v13325
    %v13341 = vcombine.low %v13331, %v13332
    %v13342 = vcombine.low %v13333, %v13334
    %v13344 = vunpack.c.l.s4 1983009808
    %v13345 = vunpack.c.0.s8 %v13344
    %v13346 = vlaneseq
    %v13347 = vshrl.u32 %v13346, 7
    %v13348 = vsub.s32 %v13345, %v13347
    %v13349 = vrot.slane %v13341, %v13348
    %v13351 = vunpack.c.l.s4 1983009808
    %v13352 = vunpack.c.0.s8 %v13351
    %v13353 = vlaneseq
    %v13354 = vshrl.u32 %v13353, 7
    %v13355 = vsub.s32 %v13352, %v13354
    %v13356 = vrot.slane %v13342, %v13355
    %v13357 = vcombine.low %v13349, %v13356
    %v13359 = vunpack.c.l.s4 1983009808
    %v13360 = vunpack.c.0.s8 %v13359
    %v13361 = vlaneseq
    %v13362 = vshrl.u32 %v13361, 7
    %v13363 = vsub.s32 %v13360, %v13362
    %v13364 = vrot.slane %v13335, %v13363
    %13367 = vst [vmem:[#allocation14] sm:$0xff] %v13357
    %13368 = vst [vmem:[#allocation14 + $0x8] sm:$0x3] %v13364
    // Predicated region
    $region58: #{tpu_custom_call.1} parent=1 // pred_check
      _
    $region59: #{tpu_custom_call.1} parent=1 // pred_check_branch
      %13370 = sbr.rel (0) target = $region61
    $region60: #{tpu_custom_call.1} parent=1 // pred_region
      %s13372 = ssub.s32 160, 160
      %13373 = vsyncadd [#allocation4], %s13372
      %s13375 = sshll.u32 [#allocation14], 4
      %s13376 = int_to_ptr.vmem [resolvable:$true] %s13375
      %13378 = dma.vmem_to_hbm [thread:$0]  %s13376, 160, %s7, [#allocation4]
    $region61: #{tpu_custom_call.1} parent=1 // pred_fallthru
      _
    // Predicated region
    $region62: #{tpu_custom_call.1} parent=1 // pred_check
      _
    $region63: #{tpu_custom_call.1} parent=1 // pred_check_branch
      %13380 = sbr.rel (0) target = $region65
    $region64: #{tpu_custom_call.1} parent=1 // pred_region
      %13381 = dma.done [#allocation4], 160
    $region65: #{tpu_custom_call.1} parent=1 // pred_fallthru
      _
    %13382 = vsyncpa [#allocation3], 1
    %13383 = vsyncpa [#allocation6], 1
    %13384 = vsyncpa [#allocation9], 1
    %13385 = vsyncpa [#allocation12], 1
    %13386 = vsyncpa [#allocation4], 1

</llo_original>
